<compile_context>
chip_gen: v7x
topology: tpu7x:2x2x1
jax: 0.10.0
libtpu: 0.0.40
codegen_flags: <defaults>
</compile_context>

<pallas_src>
import jax
import jax.numpy as jnp
from jax import lax
from jax.experimental import pallas as pl
from jax.experimental.pallas import tpu as pltpu


BT = 32          # samples per grid block (review: 32-128; 64 -> conv M = 256)
MR = BT * 4      # conv-stage rows per block: (sample, pooled row pr in 0..3)
PAD = 8          # zero rows around the pooled map for conv2's +-1 row taps


# ------------------------------ fused kernel ------------------------------

def _fused_cnn_kernel(p_ref, s1_ref, b1_ref, w2_ref, b2_ref, w3_ref, b3_ref,
                      w4_ref, b4_ref, out_ref, p1_scr):
    f32, bf16 = jnp.float32, jnp.bfloat16

    # ---- conv1 (6x6, s2, 1->64) + ReLU, fused with the 3-row part of pool1 ----
    # p_ref[u] holds, for every (sample, pooled-row pr), the six 28-pixel image
    # rows feeding conv1 output row 3*pr+u; s1 folds the kernel-column window
    # selection, so one GEMM per u yields all 12 output columns x 64 channels.
    s1 = s1_ref[...]                                       # (168, 768) bf16
    b1 = b1_ref[...]                                       # (1, 768)  f32
    rmax = None
    for u in range(3):
        t = jnp.dot(p_ref[u], s1, preferred_element_type=f32)      # (MR, 768)
        t = jnp.maximum(t + b1, 0.0)
        rmax = t if rmax is None else jnp.maximum(rmax, t)
    # 3-column part of pool1 via lane slices (lane = c_out*64 + channel); only
    # lane blocks with c_out in {0,3,6,9} are consumed by conv2's weights.
    pooled = jnp.maximum(jnp.maximum(rmax[:, 0:640], rmax[:, 64:704]),
                         rmax[:, 128:768])                 # (MR, 640) f32

    # ---- conv2 (3x3, s1, pad 1, 64->16) + bias + tanh -------------------------
    # The 3 column taps (dc) are pre-folded into each weight matrix; the +-1
    # row taps (da) read a zero-padded VMEM copy of the pooled map (2 offset
    # reads only; the da=0 tap uses the live register value).
    p1_scr[0:PAD, :] = jnp.zeros((PAD, 640), f32)
    p1_scr[PAD + MR:PAD + MR + PAD, :] = jnp.zeros((PAD, 640), f32)
    p1_scr[PAD:PAD + MR, :] = pooled

    a_idx = lax.broadcasted_iota(jnp.int32, (MR, 1), 0) % 4        # pooled row a
    up = jnp.where(a_idx > 0, p1_scr[pl.ds(PAD - 1, MR), :], 0.0)  # row a-1
    dn = jnp.where(a_idx < 3, p1_scr[pl.ds(PAD + 1, MR), :], 0.0)  # row a+1
    z2 = (jnp.dot(up.astype(bf16), w2_ref[0], preferred_element_type=f32)
          + jnp.dot(pooled.astype(bf16), w2_ref[1], preferred_element_type=f32)
          + jnp.dot(dn.astype(bf16), w2_ref[2], preferred_element_type=f32))
    y2 = jnp.tanh(z2 + b2_ref[...])                        # (MR, 64) f32

    # ---- maxpool2 (2x2/2) + torch (C,H,W) flatten + fc3 + ReLU ----------------
    # Row extraction (4 rows/sample -> per-sample rows) uses 4 small one-hot
    # GEMMs over (BT, 4*BT) (linear in useful work at this BT); the pooling
    # maxes run on the extracted (BT, 64) tiles and the flatten permutation is
    # folded into the packed fc3 weights.
    row_i = lax.broadcasted_iota(jnp.int32, (BT, MR), 0)
    col_i = lax.broadcasted_iota(jnp.int32, (BT, MR), 1)
    rel = col_i - 4 * row_i

    def pick(a):                         # y2 rows (sample, a) -> (BT, 64)
        sel = (rel == a).astype(f32)
        return jnp.dot(sel, y2, preferred_element_type=f32)

    p_top = jnp.maximum(pick(0), pick(1))                  # pooled rows hp=0
    p_bot = jnp.maximum(pick(2), pick(3))                  # pooled rows hp=1
    f_top = jnp.maximum(p_top[:, 0:48], p_top[:, 16:64])   # col pairs; c in {0,2}
    f_bot = jnp.maximum(p_bot[:, 0:48], p_bot[:, 16:64])
    feat = jnp.concatenate([f_top, f_bot], axis=1).astype(bf16)    # (BT, 96)
    h = jnp.maximum(jnp.dot(feat, w3_ref[...], preferred_element_type=f32)
                    + b3_ref[...], 0.0)                    # (BT, 128), lanes>=100 zero

    # ---- fc4 + softmax(dim=1): padded lanes carry a -1e30 bias -> exp == 0 ----
    logits = jnp.dot(h.astype(bf16), w4_ref[...],
                     preferred_element_type=f32) + b4_ref[...]
    mx = jnp.max(logits, axis=1, keepdims=True)
    e = jnp.exp(logits - mx)
    out_ref[...] = e * pl.reciprocal(jnp.sum(e, axis=1, keepdims=True), approx=True)


# -------------------------- host-side prep (one-time) --------------------------

def prepare_params(params):
    """Repack torch-layout weights into MXU-friendly GEMM layouts (outside jit)."""
    w1, b1, w2, b2, w3, b3, w4, b4 = params
    f32, bf16 = jnp.float32, jnp.bfloat16

    # conv1: S1[(kh, c_in), (c_out, o)] = w1[o, 0, kh, c_in - 2*c_out] on the window.
    w1c = jnp.transpose(w1[:, 0], (1, 2, 0))               # (kh, kw, 64)
    s1 = jnp.zeros((6, 28, 12, 64), f32)
    for c_out in range(12):
        s1 = s1.at[:, 2 * c_out:2 * c_out + 6, c_out, :].set(w1c)
    s1 = s1.reshape(168, 768).astype(bf16)
    b1big = jnp.tile(b1.astype(f32), 12).reshape(1, 768)

    # conv2: one (640, 64) matrix per row tap da; the 3 column taps (dc) and the
    # pool1 column selection (c_out = 3*(c+dc)) are folded into the layout.
    w2t = jnp.transpose(w2, (2, 3, 1, 0))                  # (da+1, dc+1, ci, o2)
    w2m = jnp.zeros((3, 10, 64, 4, 16), f32)
    for dc in (-1, 0, 1):
        for c in range(4):
            if 0 <= c + dc <= 3:
                w2m = w2m.at[:, 3 * (c + dc), :, c, :].set(w2t[:, dc + 1])
    w2m = w2m.reshape(3, 640, 64).astype(bf16)
    b2big = jnp.tile(b2.astype(f32), 4).reshape(1, 64)

    # fc3: fold torch's (C,H,W) flatten order and the kernel's (hp, c, o2) feature
    # layout into one (96, 128) matrix (output lanes >= 100 zero-padded).
    w3r = w3.reshape(16, 2, 2, 100)                        # (o2, hp, wp, n)
    w3c = jnp.zeros((2, 3, 16, 100), f32)
    for hp in range(2):
        for wp in range(2):
            w3c = w3c.at[hp, 2 * wp].set(w3r[:, hp, wp])
    w3c = jnp.pad(w3c.reshape(96, 100), ((0, 0), (0, 28))).astype(bf16)
    b3p = jnp.pad(b3.astype(f32), (0, 28)).reshape(1, 128)

    # fc4: zero-pad to 128x128; padded output lanes get a -1e30 (f32) bias so the
    # in-kernel softmax stays exact.
    w4p = jnp.pad(w4, ((0, 28), (0, 118))).astype(bf16)
    b4p = jnp.concatenate([b4.astype(f32),
                           jnp.full((118,), -1e30, f32)]).reshape(1, 128)
    return (s1, b1big, w2m, b2big, w3c, b3p, w4p, b4p)


def build_conv1_rows(x):
    """x: (B, 1, 28, 28) -> (3, B*4, 168) bf16.

    Row (u, b*4 + pr) holds the six consecutive 28-pixel image rows feeding conv1
    output row 3*pr + u.  Built with static strided slices only (no gather) and a
    2.6x expansion of the raw pixels instead of the old 6.6x full im2col."""
    B = x.shape[0]
    xs = x[:, 0]                                           # (B, 28, 28)
    groups = []
    for u in range(3):
        slabs = []
        for kh in range(6):
            r0 = 2 * u + kh                                # rows 6*pr + 2*u + kh
            slabs.append(lax.slice_in_dim(xs, r0, r0 + 19, stride=6, axis=1))
        groups.append(jnp.stack(slabs, axis=2).reshape(B, 4, 168))
    return jnp.stack(groups, axis=0).reshape(3, B * 4, 168).astype(jnp.bfloat16)


# ------------------------------- forward pass -------------------------------

def forward(x, prep):
    """x: (B, 1, 28, 28) float32 (NCHW, as in the PyTorch module)."""
    s1, b1big, w2m, b2big, w3c, b3p, w4p, b4p = prep
    B = x.shape[0]
    pad = (-B) % BT                    # pad to a BT-sized batch bucket
    if pad:
        x = jnp.pad(x, ((0, pad), (0, 0), (0, 0), (0, 0)))
    Bp = B + pad
    p = build_conv1_rows(x)            # (3, Bp*4, 168) bf16 -- the only streamed input
    nb = Bp // BT

    out = pl.pallas_call(
        _fused_cnn_kernel,
        out_shape=jax.ShapeDtypeStruct((Bp, 128), jnp.float32),
        grid_spec=pltpu.PrefetchScalarGridSpec(
            num_scalar_prefetch=0,
            grid=(nb,),
            in_specs=[
                pl.BlockSpec((3, MR, 168), lambda i: (0, i, 0)),   # conv1 row-im2col
                pl.BlockSpec((168, 768), lambda i: (0, 0)),        # conv1 weights
                pl.BlockSpec((1, 768), lambda i: (0, 0)),          # conv1 bias
                pl.BlockSpec((3, 640, 64), lambda i: (0, 0, 0)),   # conv2 row taps
                pl.BlockSpec((1, 64), lambda i: (0, 0)),           # conv2 bias
                pl.BlockSpec((96, 128), lambda i: (0, 0)),         # fc3 (padded)
                pl.BlockSpec((1, 128), lambda i: (0, 0)),          # fc3 bias
                pl.BlockSpec((128, 128), lambda i: (0, 0)),        # fc4 (padded)
                pl.BlockSpec((1, 128), lambda i: (0, 0)),          # fc4 bias (-1e30 pad)
            ],
            out_specs=pl.BlockSpec((BT, 128), lambda i: (i, 0)),
            scratch_shapes=[pltpu.VMEM((MR + 2 * PAD, 640), jnp.float32)],
        ),
        compiler_params=pltpu.CompilerParams(
            dimension_semantics=("parallel",),
            vmem_limit_bytes=32 * 1024 * 1024),
    )(p, s1, b1big, w2m, b2big, w3c, b3p, w4p, b4p)

    return out[:B, :10]


forward = jax.jit(forward)


# ------------------------- params & XLA reference -------------------------

def init_params(key):
    ks = jax.random.split(key, 8)

    def u(k, shape, fan_in):
        bound = 1.0 / jnp.sqrt(jnp.float32(fan_in))
        return jax.random.uniform(k, shape, jnp.float32, -bound, bound)

    w1 = u(ks[0], (64, 1, 6, 6), 36);    b1 = u(ks[1], (64,), 36)
    w2 = u(ks[2], (16, 64, 3, 3), 576);  b2 = u(ks[3], (16,), 576)
    w3 = u(ks[4], (64, 100), 64);        b3 = u(ks[5], (100,), 64)
    w4 = u(ks[6], (100, 10), 100);       b4 = u(ks[7], (10,), 100)
    return (w1, b1, w2, b2, w3, b3, w4, b4)


def reference_forward(x, params):
    (w1, b1, w2, b2, w3, b3, w4, b4) = params
    dn = ("NCHW", "OIHW", "NCHW")
    y = jax.lax.conv_general_dilated(x, w1, (2, 2), "VALID", dimension_numbers=dn)
    y = jax.nn.relu(y + b1[None, :, None, None])
    y = jax.lax.reduce_window(y, -jnp.inf, jax.lax.max, (1, 1, 3, 3), (1, 1, 3, 3), "VALID")
    y = jax.lax.conv_general_dilated(y, w2, (1, 1), ((1, 1), (1, 1)), dimension_numbers=dn)
    y = jnp.tanh(y + b2[None, :, None, None])
    y = jax.lax.reduce_window(y, -jnp.inf, jax.lax.max, (1, 1, 2, 2), (1, 1, 2, 2), "VALID")
    y = y.reshape(y.shape[0], -1)
    y = jax.nn.relu(y @ w3 + b3)
    return jax.nn.softmax(y @ w4 + b4, axis=1)


if __name__ == "__main__":
    key = jax.random.PRNGKey(0)
    k_params, k_x = jax.random.split(key)
    params = init_params(k_params)
    prep = prepare_params(params)       # one-time GEMM-layout weight repack

    # MNIST-shaped input implied by the module (fc3 expects 16*2*2 features).
    # B=2 is the small demo; B=70 also exercises a multi-block (padded) grid.
    for B in (2, 70):
        x = jax.random.normal(jax.random.fold_in(k_x, B), (B, 1, 28, 28),
                              dtype=jnp.float32)
        out = jax.block_until_ready(forward(x, prep))
        ref = jax.block_until_ready(reference_forward(x, params))
        assert out.shape == (B, 10)
        err = float(jnp.max(jnp.abs(out - ref)))
        assert jnp.allclose(out, ref, atol=2e-2, rtol=2e-2), \
            f"mismatch vs. XLA reference at B={B} (max abs err {err})"

    print("KERNEL_OK")
</pallas_src>

<mosaic_0001>
module attributes {stable_mosaic.version = 11 : i64} {
  func.func @_fused_cnn_kernel(%arg0: i32, %arg1: memref<3x128x168xbf16, #tpu.memory_space<vmem>>, %arg2: memref<168x768xbf16, #tpu.memory_space<vmem>>, %arg3: memref<1x768xf32, #tpu.memory_space<vmem>>, %arg4: memref<3x640x64xbf16, #tpu.memory_space<vmem>>, %arg5: memref<1x64xf32, #tpu.memory_space<vmem>>, %arg6: memref<96x128xbf16, #tpu.memory_space<vmem>>, %arg7: memref<1x128xf32, #tpu.memory_space<vmem>>, %arg8: memref<128x128xbf16, #tpu.memory_space<vmem>>, %arg9: memref<1x128xf32, #tpu.memory_space<vmem>>, %arg10: memref<32x128xf32, #tpu.memory_space<vmem>>, %arg11: memref<144x640xf32, #tpu.memory_space<vmem>>) attributes {dimension_semantics = [#tpu.dimension_semantics<parallel>], iteration_bounds = array<i64: 1>, scalar_prefetch = 0 : i64, scratch_operands = 1 : i64, tpu.core_type = #tpu.core_type<tc>, window_params = [{transform_indices = @transform_0, window_bounds = array<i64: 3, 128, 168>}, {pipeline_mode = #tpu.pipeline_mode<synchronous>, transform_indices = @transform_1, window_bounds = array<i64: 168, 768>}, {pipeline_mode = #tpu.pipeline_mode<synchronous>, transform_indices = @transform_2, window_bounds = array<i64: 1, 768>}, {pipeline_mode = #tpu.pipeline_mode<synchronous>, transform_indices = @transform_3, window_bounds = array<i64: 3, 640, 64>}, {pipeline_mode = #tpu.pipeline_mode<synchronous>, transform_indices = @transform_4, window_bounds = array<i64: 1, 64>}, {pipeline_mode = #tpu.pipeline_mode<synchronous>, transform_indices = @transform_5, window_bounds = array<i64: 96, 128>}, {pipeline_mode = #tpu.pipeline_mode<synchronous>, transform_indices = @transform_6, window_bounds = array<i64: 1, 128>}, {pipeline_mode = #tpu.pipeline_mode<synchronous>, transform_indices = @transform_7, window_bounds = array<i64: 128, 128>}, {pipeline_mode = #tpu.pipeline_mode<synchronous>, transform_indices = @transform_8, window_bounds = array<i64: 1, 128>}, {transform_indices = @transform_9, window_bounds = array<i64: 32, 128>}]} {
    %c0 = arith.constant 0 : index
    %c0_0 = arith.constant 0 : index
    %0 = vector.load %arg2[%c0, %c0_0] : memref<168x768xbf16, #tpu.memory_space<vmem>>, vector<168x768xbf16>
    %c0_1 = arith.constant 0 : index
    %c0_2 = arith.constant 0 : index
    %1 = vector.load %arg3[%c0_1, %c0_2] : memref<1x768xf32, #tpu.memory_space<vmem>>, vector<1x768xf32>
    %c0_3 = arith.constant 0 : index
    %c0_4 = arith.constant 0 : index
    %c0_5 = arith.constant 0 : index
    %2 = vector.load %arg1[%c0_3, %c0_4, %c0_5] : memref<3x128x168xbf16, #tpu.memory_space<vmem>>, vector<1x128x168xbf16>
    %3 = vector.shape_cast %2 : vector<1x128x168xbf16> to vector<128x168xbf16>
    %cst = arith.constant dense<0.000000e+00> : vector<128x768xf32>
    %4 = tpu.matmul %3, %0, %cst {dimension_numbers = #tpu.dot_dimension_numbers<[1], [0], [0], [1], [0, 0, 1, 1], [], []>} : vector<128x168xbf16>, vector<168x768xbf16>, vector<128x768xf32> -> vector<128x768xf32>
    %5 = vector.broadcast %1 : vector<1x768xf32> to vector<128x768xf32>
    %6 = arith.addf %4, %5 : vector<128x768xf32>
    %cst_6 = arith.constant 0.000000e+00 : f32
    %7 = vector.broadcast %cst_6 : f32 to vector<128x768xf32>
    %8 = arith.maximumf %6, %7 : vector<128x768xf32>
    %c1 = arith.constant 1 : index
    %c0_7 = arith.constant 0 : index
    %c0_8 = arith.constant 0 : index
    %9 = vector.load %arg1[%c1, %c0_7, %c0_8] : memref<3x128x168xbf16, #tpu.memory_space<vmem>>, vector<1x128x168xbf16>
    %10 = vector.shape_cast %9 : vector<1x128x168xbf16> to vector<128x168xbf16>
    %cst_9 = arith.constant dense<0.000000e+00> : vector<128x768xf32>
    %11 = tpu.matmul %10, %0, %cst_9 {dimension_numbers = #tpu.dot_dimension_numbers<[1], [0], [0], [1], [0, 0, 1, 1], [], []>} : vector<128x168xbf16>, vector<168x768xbf16>, vector<128x768xf32> -> vector<128x768xf32>
    %12 = vector.broadcast %1 : vector<1x768xf32> to vector<128x768xf32>
    %13 = arith.addf %11, %12 : vector<128x768xf32>
    %cst_10 = arith.constant 0.000000e+00 : f32
    %14 = vector.broadcast %cst_10 : f32 to vector<128x768xf32>
    %15 = arith.maximumf %13, %14 : vector<128x768xf32>
    %16 = arith.maximumf %8, %15 : vector<128x768xf32>
    %c2 = arith.constant 2 : index
    %c0_11 = arith.constant 0 : index
    %c0_12 = arith.constant 0 : index
    %17 = vector.load %arg1[%c2, %c0_11, %c0_12] : memref<3x128x168xbf16, #tpu.memory_space<vmem>>, vector<1x128x168xbf16>
    %18 = vector.shape_cast %17 : vector<1x128x168xbf16> to vector<128x168xbf16>
    %cst_13 = arith.constant dense<0.000000e+00> : vector<128x768xf32>
    %19 = tpu.matmul %18, %0, %cst_13 {dimension_numbers = #tpu.dot_dimension_numbers<[1], [0], [0], [1], [0, 0, 1, 1], [], []>} : vector<128x168xbf16>, vector<168x768xbf16>, vector<128x768xf32> -> vector<128x768xf32>
    %20 = vector.broadcast %1 : vector<1x768xf32> to vector<128x768xf32>
    %21 = arith.addf %19, %20 : vector<128x768xf32>
    %cst_14 = arith.constant 0.000000e+00 : f32
    %22 = vector.broadcast %cst_14 : f32 to vector<128x768xf32>
    %23 = arith.maximumf %21, %22 : vector<128x768xf32>
    %24 = arith.maximumf %16, %23 : vector<128x768xf32>
    %25 = vector.extract_strided_slice %24 {offsets = [0, 0], sizes = [128, 640], strides = [1, 1]} : vector<128x768xf32> to vector<128x640xf32>
    %26 = vector.extract_strided_slice %24 {offsets = [0, 64], sizes = [128, 640], strides = [1, 1]} : vector<128x768xf32> to vector<128x640xf32>
    %27 = arith.maximumf %25, %26 : vector<128x640xf32>
    %28 = vector.extract_strided_slice %24 {offsets = [0, 128], sizes = [128, 640], strides = [1, 1]} : vector<128x768xf32> to vector<128x640xf32>
    %29 = arith.maximumf %27, %28 : vector<128x640xf32>
    %cst_15 = arith.constant 0.000000e+00 : f32
    %30 = vector.broadcast %cst_15 : f32 to vector<8x640xf32>
    %c0_16 = arith.constant 0 : index
    %c0_17 = arith.constant 0 : index
    %31 = vector.load %arg11[%c0_16, %c0_17] : memref<144x640xf32, #tpu.memory_space<vmem>>, vector<8x640xf32>
    tpu.vector_store %arg11[%c0_16, %c0_17], %30 {strides = array<i32>} : memref<144x640xf32, #tpu.memory_space<vmem>>, vector<8x640xf32>,
    %cst_18 = arith.constant 0.000000e+00 : f32
    %32 = vector.broadcast %cst_18 : f32 to vector<8x640xf32>
    %c136 = arith.constant 136 : index
    %c0_19 = arith.constant 0 : index
    %33 = vector.load %arg11[%c136, %c0_19] : memref<144x640xf32, #tpu.memory_space<vmem>>, vector<8x640xf32>
    tpu.vector_store %arg11[%c136, %c0_19], %32 {strides = array<i32>} : memref<144x640xf32, #tpu.memory_space<vmem>>, vector<8x640xf32>,
    %c8 = arith.constant 8 : index
    %c0_20 = arith.constant 0 : index
    %34 = vector.load %arg11[%c8, %c0_20] : memref<144x640xf32, #tpu.memory_space<vmem>>, vector<128x640xf32>
    tpu.vector_store %arg11[%c8, %c0_20], %29 {strides = array<i32>} : memref<144x640xf32, #tpu.memory_space<vmem>>, vector<128x640xf32>,
    %35 = tpu.iota {dimensions = array<i32: 0>} : vector<128x1xi32>
    %c4_i32 = arith.constant 4 : i32
    %c0_i32 = arith.constant 0 : i32
    %36 = arith.cmpi eq, %c4_i32, %c0_i32 : i32
    %c1_i32 = arith.constant 1 : i32
    %37 = arith.select %36, %c1_i32, %c4_i32 : i32
    %38 = vector.broadcast %37 : i32 to vector<128x1xi32>
    %39 = arith.remsi %35, %38 : vector<128x1xi32>
    %c0_i32_21 = arith.constant 0 : i32
    %40 = vector.broadcast %c0_i32_21 : i32 to vector<128x1xi32>
    %41 = arith.cmpi ne, %39, %40 : vector<128x1xi32>
    %c0_i32_22 = arith.constant 0 : i32
    %42 = vector.broadcast %c0_i32_22 : i32 to vector<128x1xi32>
    %43 = arith.cmpi slt, %39, %42 : vector<128x1xi32>
    %c0_i32_23 = arith.constant 0 : i32
    %44 = arith.cmpi slt, %37, %c0_i32_23 : i32
    %45 = vector.broadcast %44 : i1 to vector<128x1xi1>
    %46 = vector.broadcast %45 : vector<128x1xi1> to vector<128x1xi1>
    %47 = arith.xori %43, %46 : vector<128x1xi1>
    %48 = arith.andi %47, %41 : vector<128x1xi1>
    %49 = vector.broadcast %37 : i32 to vector<128x1xi32>
    %50 = arith.addi %39, %49 : vector<128x1xi32>
    %51 = arith.select %48, %50, %39 : vector<128x1xi1>, vector<128x1xi32>
    %c0_i32_24 = arith.constant 0 : i32
    %52 = vector.broadcast %c0_i32_24 : i32 to vector<128x1xi32>
    %53 = arith.cmpi sgt, %51, %52 : vector<128x1xi32>
    %c7 = arith.constant 7 : index
    %c0_25 = arith.constant 0 : index
    %54 = vector.load %arg11[%c7, %c0_25] : memref<144x640xf32, #tpu.memory_space<vmem>>, vector<128x640xf32>
    %cst_26 = arith.constant 0.000000e+00 : f32
    %55 = vector.shape_cast %53 : vector<128x1xi1> to vector<128x1xi1>
    %56 = vector.broadcast %55 : vector<128x1xi1> to vector<128x640xi1>
    %57 = vector.broadcast %cst_26 : f32 to vector<128x640xf32>
    %58 = arith.select %56, %54, %57 : vector<128x640xi1>, vector<128x640xf32>
    %c3_i32 = arith.constant 3 : i32
    %59 = vector.broadcast %c3_i32 : i32 to vector<128x1xi32>
    %60 = arith.cmpi slt, %51, %59 : vector<128x1xi32>
    %c9 = arith.constant 9 : index
    %c0_27 = arith.constant 0 : index
    %61 = vector.load %arg11[%c9, %c0_27] : memref<144x640xf32, #tpu.memory_space<vmem>>, vector<128x640xf32>
    %cst_28 = arith.constant 0.000000e+00 : f32
    %62 = vector.shape_cast %60 : vector<128x1xi1> to vector<128x1xi1>
    %63 = vector.broadcast %62 : vector<128x1xi1> to vector<128x640xi1>
    %64 = vector.broadcast %cst_28 : f32 to vector<128x640xf32>
    %65 = arith.select %63, %61, %64 : vector<128x640xi1>, vector<128x640xf32>
    %66 = arith.truncf %58 : vector<128x640xf32> to vector<128x640xbf16>
    %c0_29 = arith.constant 0 : index
    %c0_30 = arith.constant 0 : index
    %c0_31 = arith.constant 0 : index
    %67 = vector.load %arg4[%c0_29, %c0_30, %c0_31] : memref<3x640x64xbf16, #tpu.memory_space<vmem>>, vector<1x640x64xbf16>
    %68 = vector.shape_cast %67 : vector<1x640x64xbf16> to vector<640x64xbf16>
    %cst_32 = arith.constant dense<0.000000e+00> : vector<128x64xf32>
    %69 = tpu.matmul %66, %68, %cst_32 {dimension_numbers = #tpu.dot_dimension_numbers<[1], [0], [0], [1], [0, 0, 1, 1], [], []>} : vector<128x640xbf16>, vector<640x64xbf16>, vector<128x64xf32> -> vector<128x64xf32>
    %70 = arith.truncf %29 : vector<128x640xf32> to vector<128x640xbf16>
    %c1_33 = arith.constant 1 : index
    %c0_34 = arith.constant 0 : index
    %c0_35 = arith.constant 0 : index
    %71 = vector.load %arg4[%c1_33, %c0_34, %c0_35] : memref<3x640x64xbf16, #tpu.memory_space<vmem>>, vector<1x640x64xbf16>
    %72 = vector.shape_cast %71 : vector<1x640x64xbf16> to vector<640x64xbf16>
    %cst_36 = arith.constant dense<0.000000e+00> : vector<128x64xf32>
    %73 = tpu.matmul %70, %72, %cst_36 {dimension_numbers = #tpu.dot_dimension_numbers<[1], [0], [0], [1], [0, 0, 1, 1], [], []>} : vector<128x640xbf16>, vector<640x64xbf16>, vector<128x64xf32> -> vector<128x64xf32>
    %74 = arith.addf %69, %73 : vector<128x64xf32>
    %75 = arith.truncf %65 : vector<128x640xf32> to vector<128x640xbf16>
    %c2_37 = arith.constant 2 : index
    %c0_38 = arith.constant 0 : index
    %c0_39 = arith.constant 0 : index
    %76 = vector.load %arg4[%c2_37, %c0_38, %c0_39] : memref<3x640x64xbf16, #tpu.memory_space<vmem>>, vector<1x640x64xbf16>
    %77 = vector.shape_cast %76 : vector<1x640x64xbf16> to vector<640x64xbf16>
    %cst_40 = arith.constant dense<0.000000e+00> : vector<128x64xf32>
    %78 = tpu.matmul %75, %77, %cst_40 {dimension_numbers = #tpu.dot_dimension_numbers<[1], [0], [0], [1], [0, 0, 1, 1], [], []>} : vector<128x640xbf16>, vector<640x64xbf16>, vector<128x64xf32> -> vector<128x64xf32>
    %79 = arith.addf %74, %78 : vector<128x64xf32>
    %c0_41 = arith.constant 0 : index
    %c0_42 = arith.constant 0 : index
    %80 = vector.load %arg5[%c0_41, %c0_42] : memref<1x64xf32, #tpu.memory_space<vmem>>, vector<1x64xf32>
    %81 = vector.broadcast %80 : vector<1x64xf32> to vector<128x64xf32>
    %82 = arith.addf %79, %81 : vector<128x64xf32>
    %83 = math.tanh %82 : vector<128x64xf32>
    %84 = tpu.iota {dimensions = array<i32: 0>} : vector<32x128xi32>
    %85 = tpu.iota {dimensions = array<i32: 1>} : vector<32x128xi32>
    %c4_i32_43 = arith.constant 4 : i32
    %86 = vector.broadcast %c4_i32_43 : i32 to vector<32x128xi32>
    %87 = arith.muli %86, %84 : vector<32x128xi32>
    %88 = arith.subi %85, %87 : vector<32x128xi32>
    %c0_i32_44 = arith.constant 0 : i32
    %89 = vector.broadcast %c0_i32_44 : i32 to vector<32x128xi32>
    %90 = arith.cmpi eq, %88, %89 : vector<32x128xi32>
    %91 = arith.extui %90 : vector<32x128xi1> to vector<32x128xi32>
    %92 = arith.sitofp %91 : vector<32x128xi32> to vector<32x128xf32>
    %cst_45 = arith.constant dense<0.000000e+00> : vector<32x64xf32>
    %93 = tpu.matmul %92, %83, %cst_45 {dimension_numbers = #tpu.dot_dimension_numbers<[1], [0], [0], [1], [0, 0, 1, 1], [], []>} : vector<32x128xf32>, vector<128x64xf32>, vector<32x64xf32> -> vector<32x64xf32>
    %c1_i32_46 = arith.constant 1 : i32
    %94 = vector.broadcast %c1_i32_46 : i32 to vector<32x128xi32>
    %95 = arith.cmpi eq, %88, %94 : vector<32x128xi32>
    %96 = arith.extui %95 : vector<32x128xi1> to vector<32x128xi32>
    %97 = arith.sitofp %96 : vector<32x128xi32> to vector<32x128xf32>
    %cst_47 = arith.constant dense<0.000000e+00> : vector<32x64xf32>
    %98 = tpu.matmul %97, %83, %cst_47 {dimension_numbers = #tpu.dot_dimension_numbers<[1], [0], [0], [1], [0, 0, 1, 1], [], []>} : vector<32x128xf32>, vector<128x64xf32>, vector<32x64xf32> -> vector<32x64xf32>
    %99 = arith.maximumf %93, %98 : vector<32x64xf32>
    %c2_i32 = arith.constant 2 : i32
    %100 = vector.broadcast %c2_i32 : i32 to vector<32x128xi32>
    %101 = arith.cmpi eq, %88, %100 : vector<32x128xi32>
    %102 = arith.extui %101 : vector<32x128xi1> to vector<32x128xi32>
    %103 = arith.sitofp %102 : vector<32x128xi32> to vector<32x128xf32>
    %cst_48 = arith.constant dense<0.000000e+00> : vector<32x64xf32>
    %104 = tpu.matmul %103, %83, %cst_48 {dimension_numbers = #tpu.dot_dimension_numbers<[1], [0], [0], [1], [0, 0, 1, 1], [], []>} : vector<32x128xf32>, vector<128x64xf32>, vector<32x64xf32> -> vector<32x64xf32>
    %c3_i32_49 = arith.constant 3 : i32
    %105 = vector.broadcast %c3_i32_49 : i32 to vector<32x128xi32>
    %106 = arith.cmpi eq, %88, %105 : vector<32x128xi32>
    %107 = arith.extui %106 : vector<32x128xi1> to vector<32x128xi32>
    %108 = arith.sitofp %107 : vector<32x128xi32> to vector<32x128xf32>
    %cst_50 = arith.constant dense<0.000000e+00> : vector<32x64xf32>
    %109 = tpu.matmul %108, %83, %cst_50 {dimension_numbers = #tpu.dot_dimension_numbers<[1], [0], [0], [1], [0, 0, 1, 1], [], []>} : vector<32x128xf32>, vector<128x64xf32>, vector<32x64xf32> -> vector<32x64xf32>
    %110 = arith.maximumf %104, %109 : vector<32x64xf32>
    %111 = vector.extract_strided_slice %99 {offsets = [0, 0], sizes = [32, 48], strides = [1, 1]} : vector<32x64xf32> to vector<32x48xf32>
    %112 = vector.extract_strided_slice %99 {offsets = [0, 16], sizes = [32, 48], strides = [1, 1]} : vector<32x64xf32> to vector<32x48xf32>
    %113 = arith.maximumf %111, %112 : vector<32x48xf32>
    %114 = vector.extract_strided_slice %110 {offsets = [0, 0], sizes = [32, 48], strides = [1, 1]} : vector<32x64xf32> to vector<32x48xf32>
    %115 = vector.extract_strided_slice %110 {offsets = [0, 16], sizes = [32, 48], strides = [1, 1]} : vector<32x64xf32> to vector<32x48xf32>
    %116 = arith.maximumf %114, %115 : vector<32x48xf32>
    %117 = tpu.concatenate %113, %116 in 1 : vector<32x48xf32>, vector<32x48xf32> -> vector<32x96xf32>
    %118 = arith.truncf %117 : vector<32x96xf32> to vector<32x96xbf16>
    %c0_51 = arith.constant 0 : index
    %c0_52 = arith.constant 0 : index
    %119 = vector.load %arg6[%c0_51, %c0_52] : memref<96x128xbf16, #tpu.memory_space<vmem>>, vector<96x128xbf16>
    %cst_53 = arith.constant dense<0.000000e+00> : vector<32x128xf32>
    %120 = tpu.matmul %118, %119, %cst_53 {dimension_numbers = #tpu.dot_dimension_numbers<[1], [0], [0], [1], [0, 0, 1, 1], [], []>} : vector<32x96xbf16>, vector<96x128xbf16>, vector<32x128xf32> -> vector<32x128xf32>
    %c0_54 = arith.constant 0 : index
    %c0_55 = arith.constant 0 : index
    %121 = vector.load %arg7[%c0_54, %c0_55] : memref<1x128xf32, #tpu.memory_space<vmem>>, vector<1x128xf32>
    %122 = vector.broadcast %121 : vector<1x128xf32> to vector<32x128xf32>
    %123 = arith.addf %120, %122 : vector<32x128xf32>
    %cst_56 = arith.constant 0.000000e+00 : f32
    %124 = vector.broadcast %cst_56 : f32 to vector<32x128xf32>
    %125 = arith.maximumf %123, %124 : vector<32x128xf32>
    %126 = arith.truncf %125 : vector<32x128xf32> to vector<32x128xbf16>
    %c0_57 = arith.constant 0 : index
    %c0_58 = arith.constant 0 : index
    %127 = vector.load %arg8[%c0_57, %c0_58] : memref<128x128xbf16, #tpu.memory_space<vmem>>, vector<128x128xbf16>
    %cst_59 = arith.constant dense<0.000000e+00> : vector<32x128xf32>
    %128 = tpu.matmul %126, %127, %cst_59 {dimension_numbers = #tpu.dot_dimension_numbers<[1], [0], [0], [1], [0, 0, 1, 1], [], []>} : vector<32x128xbf16>, vector<128x128xbf16>, vector<32x128xf32> -> vector<32x128xf32>
    %c0_60 = arith.constant 0 : index
    %c0_61 = arith.constant 0 : index
    %129 = vector.load %arg9[%c0_60, %c0_61] : memref<1x128xf32, #tpu.memory_space<vmem>>, vector<1x128xf32>
    %130 = vector.broadcast %129 : vector<1x128xf32> to vector<32x128xf32>
    %131 = arith.addf %128, %130 : vector<32x128xf32>
    %cst_62 = arith.constant dense<0xFF800000> : vector<32xf32>
    %132 = vector.multi_reduction <maximumf>, %131, %cst_62 [1] : vector<32x128xf32> to vector<32xf32>
    %133 = vector.shape_cast %132 : vector<32xf32> to vector<32x1xf32>
    %134 = vector.broadcast %133 : vector<32x1xf32> to vector<32x128xf32>
    %135 = arith.subf %131, %134 : vector<32x128xf32>
    %136 = math.exp %135 : vector<32x128xf32>
    %cst_63 = arith.constant dense<0.000000e+00> : vector<32xf32>
    %137 = vector.multi_reduction <add>, %136, %cst_63 [1] : vector<32x128xf32> to vector<32xf32>
    %138 = vector.shape_cast %137 : vector<32xf32> to vector<32x1xf32>
    %139 = tpu.reciprocal %138 {approx = true} : vector<32x1xf32> -> vector<32x1xf32>
    %140 = vector.broadcast %139 : vector<32x1xf32> to vector<32x128xf32>
    %141 = arith.mulf %136, %140 : vector<32x128xf32>
    %c0_64 = arith.constant 0 : index
    %c0_65 = arith.constant 0 : index
    %142 = vector.load %arg10[%c0_64, %c0_65] : memref<32x128xf32, #tpu.memory_space<vmem>>, vector<32x128xf32>
    tpu.vector_store %arg10[%c0_64, %c0_65], %141 {strides = array<i32>} : memref<32x128xf32, #tpu.memory_space<vmem>>, vector<32x128xf32>,
    return
  }
  func.func @transform_0(%arg0: i32) -> (i32, i32, i32) {
    %c0_i32 = arith.constant 0 : i32
    %c0_i32_0 = arith.constant 0 : i32
    %c0_i32_1 = arith.constant 0 : i32
    return %c0_i32, %arg0, %c0_i32_0 : i32, i32, i32
  }
  func.func @transform_1(%arg0: i32) -> (i32, i32) {
    %c0_i32 = arith.constant 0 : i32
    %c0_i32_0 = arith.constant 0 : i32
    %c0_i32_1 = arith.constant 0 : i32
    return %c0_i32, %c0_i32_0 : i32, i32
  }
  func.func @transform_2(%arg0: i32) -> (i32, i32) {
    %c0_i32 = arith.constant 0 : i32
    %c0_i32_0 = arith.constant 0 : i32
    %c0_i32_1 = arith.constant 0 : i32
    return %c0_i32, %c0_i32_0 : i32, i32
  }
  func.func @transform_3(%arg0: i32) -> (i32, i32, i32) {
    %c0_i32 = arith.constant 0 : i32
    %c0_i32_0 = arith.constant 0 : i32
    %c0_i32_1 = arith.constant 0 : i32
    %c0_i32_2 = arith.constant 0 : i32
    return %c0_i32, %c0_i32_0, %c0_i32_1 : i32, i32, i32
  }
  func.func @transform_4(%arg0: i32) -> (i32, i32) {
    %c0_i32 = arith.constant 0 : i32
    %c0_i32_0 = arith.constant 0 : i32
    %c0_i32_1 = arith.constant 0 : i32
    return %c0_i32, %c0_i32_0 : i32, i32
  }
  func.func @transform_5(%arg0: i32) -> (i32, i32) {
    %c0_i32 = arith.constant 0 : i32
    %c0_i32_0 = arith.constant 0 : i32
    %c0_i32_1 = arith.constant 0 : i32
    return %c0_i32, %c0_i32_0 : i32, i32
  }
  func.func @transform_6(%arg0: i32) -> (i32, i32) {
    %c0_i32 = arith.constant 0 : i32
    %c0_i32_0 = arith.constant 0 : i32
    %c0_i32_1 = arith.constant 0 : i32
    return %c0_i32, %c0_i32_0 : i32, i32
  }
  func.func @transform_7(%arg0: i32) -> (i32, i32) {
    %c0_i32 = arith.constant 0 : i32
    %c0_i32_0 = arith.constant 0 : i32
    %c0_i32_1 = arith.constant 0 : i32
    return %c0_i32, %c0_i32_0 : i32, i32
  }
  func.func @transform_8(%arg0: i32) -> (i32, i32) {
    %c0_i32 = arith.constant 0 : i32
    %c0_i32_0 = arith.constant 0 : i32
    %c0_i32_1 = arith.constant 0 : i32
    return %c0_i32, %c0_i32_0 : i32, i32
  }
  func.func @transform_9(%arg0: i32) -> (i32, i32) {
    %c0_i32 = arith.constant 0 : i32
    %c0_i32_0 = arith.constant 0 : i32
    return %arg0, %c0_i32 : i32, i32
  }
}

</mosaic_0001>

<llo_original>
// kernel: forward.1
$region0: #{forward.1}
  #allocation0 [shape = 'u32[]', space=smem, size = 0x4, offset = 0x4, fixed_abs, tag = 'smem constant byte address 0x4 - core index']
  #allocation1 [shape = 'u32[144,128]{1,0:T(1,128)}', space=vmem, size = 0x12000, scoped, tag = 'internal scratch']
  #allocation2 [shape = 'f32[144,640]{1,0:T(8,128)}', space=vmem, size = 0x5a000, scoped, tag = 'scratch operand']
  %s0 = inlined_call_operand.vmem [shape: bf16[3,128,168], index: 0, kind: input, shape index: {}]
  %s1 = inlined_call_operand.vmem [shape: bf16[168,768], index: 1, kind: input, shape index: {}]
  %s2 = inlined_call_operand.vmem [shape: f32[1,768], index: 2, kind: input, shape index: {}]
  %s3 = inlined_call_operand.vmem [shape: bf16[3,640,64], index: 3, kind: input, shape index: {}]
  %s4 = inlined_call_operand.vmem [shape: f32[1,64], index: 4, kind: input, shape index: {}]
  %s5 = inlined_call_operand.vmem [shape: bf16[96,128], index: 5, kind: input, shape index: {}]
  %s6 = inlined_call_operand.vmem [shape: f32[1,128], index: 6, kind: input, shape index: {}]
  %s7 = inlined_call_operand.vmem [shape: bf16[128,128], index: 7, kind: input, shape index: {}]
  %s8 = inlined_call_operand.vmem [shape: f32[1,128], index: 8, kind: input, shape index: {}]
  %s9 = inlined_call_operand.vmem [shape: f32[32,128], index: 9, kind: output, shape index: {}]
  %s10 = sld [smem:[#allocation0]]
  $region46: #{forward.1} parent=0
    _
  %s12 = ssub.s32 1, %s10
  %s13 = scalar_select 0, %s12, %s10
  // Predicated region
  $region2: #{forward.1} parent=0 // pred_check
    _
  $region3: #{forward.1} parent=0 // pred_check_branch
    %15 = sbr.rel (0) target = $region5
  $region4: #{forward.1} parent=0 // pred_region
    _
  $region5: #{forward.1} parent=0 // pred_fallthru
    _
  // Predicated region
  $region6: #{forward.1} parent=0 // pred_check
    _
  $region7: #{forward.1} parent=0 // pred_check_branch
    %17 = sbr.rel (0) target = $region9
  $region8: #{forward.1} parent=0 // pred_region
    _
  $region9: #{forward.1} parent=0 // pred_fallthru
    _
  // Predicated region
  $region10: #{forward.1} parent=0 // pred_check
    _
  $region11: #{forward.1} parent=0 // pred_check_branch
    %19 = sbr.rel (0) target = $region13
  $region12: #{forward.1} parent=0 // pred_region
    _
  $region13: #{forward.1} parent=0 // pred_fallthru
    _
  // Predicated region
  $region14: #{forward.1} parent=0 // pred_check
    _
  $region15: #{forward.1} parent=0 // pred_check_branch
    %21 = sbr.rel (0) target = $region17
  $region16: #{forward.1} parent=0 // pred_region
    _
  $region17: #{forward.1} parent=0 // pred_fallthru
    _
  // Predicated region
  $region18: #{forward.1} parent=0 // pred_check
    _
  $region19: #{forward.1} parent=0 // pred_check_branch
    %23 = sbr.rel (0) target = $region21
  $region20: #{forward.1} parent=0 // pred_region
    _
  $region21: #{forward.1} parent=0 // pred_fallthru
    _
  // Predicated region
  $region22: #{forward.1} parent=0 // pred_check
    _
  $region23: #{forward.1} parent=0 // pred_check_branch
    %25 = sbr.rel (0) target = $region25
  $region24: #{forward.1} parent=0 // pred_region
    _
  $region25: #{forward.1} parent=0 // pred_fallthru
    _
  // Predicated region
  $region26: #{forward.1} parent=0 // pred_check
    _
  $region27: #{forward.1} parent=0 // pred_check_branch
    %27 = sbr.rel (0) target = $region29
  $region28: #{forward.1} parent=0 // pred_region
    _
  $region29: #{forward.1} parent=0 // pred_fallthru
    _
  // Predicated region
  $region30: #{forward.1} parent=0 // pred_check
    _
  $region31: #{forward.1} parent=0 // pred_check_branch
    %29 = sbr.rel (0) target = $region33
  $region32: #{forward.1} parent=0 // pred_region
    _
  $region33: #{forward.1} parent=0 // pred_fallthru
    _
  // Predicated region
  $region34: #{forward.1} parent=0 // pred_check
    _
  $region35: #{forward.1} parent=0 // pred_check_branch
    %31 = sbr.rel (0) target = $region37
  $region36: #{forward.1} parent=0 // pred_region
    _
  $region37: #{forward.1} parent=0 // pred_fallthru
    _
  %v33 = vld [vmem:[%s1] sm:$0xff]
  %v34 = vld [vmem:[%s1 + $0x8] sm:$0xff]
  %v35 = vld [vmem:[%s1 + $0x10] sm:$0xff]
  %v36 = vld [vmem:[%s1 + $0x18] sm:$0xff]
  %v37 = vld [vmem:[%s1 + $0x20] sm:$0xff]
  %v38 = vld [vmem:[%s1 + $0x28] sm:$0xff]
  %v39 = vld [vmem:[%s1 + $0x30] sm:$0xff]
  %v40 = vld [vmem:[%s1 + $0x38] sm:$0xff]
  %v41 = vld [vmem:[%s1 + $0x40] sm:$0xff]
  %v42 = vld [vmem:[%s1 + $0x48] sm:$0xff]
  %v43 = vld [vmem:[%s1 + $0x50] sm:$0xff]
  %v44 = vld [vmem:[%s1 + $0x58] sm:$0xff]
  %v45 = vld [vmem:[%s1 + $0x60] sm:$0xff]
  %v46 = vld [vmem:[%s1 + $0x68] sm:$0xff]
  %v47 = vld [vmem:[%s1 + $0x70] sm:$0xff]
  %v48 = vld [vmem:[%s1 + $0x78] sm:$0xff]
  %v49 = vld [vmem:[%s1 + $0x80] sm:$0xff]
  %v50 = vld [vmem:[%s1 + $0x88] sm:$0xff]
  %v51 = vld [vmem:[%s1 + $0x90] sm:$0xff]
  %v52 = vld [vmem:[%s1 + $0x98] sm:$0xff]
  %v53 = vld [vmem:[%s1 + $0xa0] sm:$0xff]
  %v54 = vld [vmem:[%s1 + $0xa8] sm:$0xff]
  %v55 = vld [vmem:[%s1 + $0xb0] sm:$0xff]
  %v56 = vld [vmem:[%s1 + $0xb8] sm:$0xff]
  %v57 = vld [vmem:[%s1 + $0xc0] sm:$0xff]
  %v58 = vld [vmem:[%s1 + $0xc8] sm:$0xff]
  %v59 = vld [vmem:[%s1 + $0xd0] sm:$0xff]
  %v60 = vld [vmem:[%s1 + $0xd8] sm:$0xff]
  %v61 = vld [vmem:[%s1 + $0xe0] sm:$0xff]
  %v62 = vld [vmem:[%s1 + $0xe8] sm:$0xff]
  %v63 = vld [vmem:[%s1 + $0xf0] sm:$0xff]
  %v64 = vld [vmem:[%s1 + $0xf8] sm:$0xff]
  %v65 = vld [vmem:[%s1 + $0x100] sm:$0xff]
  %v66 = vld [vmem:[%s1 + $0x108] sm:$0xff]
  %v67 = vld [vmem:[%s1 + $0x110] sm:$0xff]
  %v68 = vld [vmem:[%s1 + $0x118] sm:$0xff]
  %v69 = vld [vmem:[%s1 + $0x120] sm:$0xff]
  %v70 = vld [vmem:[%s1 + $0x128] sm:$0xff]
  %v71 = vld [vmem:[%s1 + $0x130] sm:$0xff]
  %v72 = vld [vmem:[%s1 + $0x138] sm:$0xff]
  %v73 = vld [vmem:[%s1 + $0x140] sm:$0xff]
  %v74 = vld [vmem:[%s1 + $0x148] sm:$0xff]
  %v75 = vld [vmem:[%s1 + $0x150] sm:$0xff]
  %v76 = vld [vmem:[%s1 + $0x158] sm:$0xff]
  %v77 = vld [vmem:[%s1 + $0x160] sm:$0xff]
  %v78 = vld [vmem:[%s1 + $0x168] sm:$0xff]
  %v79 = vld [vmem:[%s1 + $0x170] sm:$0xff]
  %v80 = vld [vmem:[%s1 + $0x178] sm:$0xff]
  %v81 = vld [vmem:[%s1 + $0x180] sm:$0xff]
  %v82 = vld [vmem:[%s1 + $0x188] sm:$0xff]
  %v83 = vld [vmem:[%s1 + $0x190] sm:$0xff]
  %v84 = vld [vmem:[%s1 + $0x198] sm:$0xff]
  %v85 = vld [vmem:[%s1 + $0x1a0] sm:$0xff]
  %v86 = vld [vmem:[%s1 + $0x1a8] sm:$0xff]
  %v87 = vld [vmem:[%s1 + $0x1b0] sm:$0xff]
  %v88 = vld [vmem:[%s1 + $0x1b8] sm:$0xff]
  %v89 = vld [vmem:[%s1 + $0x1c0] sm:$0xff]
  %v90 = vld [vmem:[%s1 + $0x1c8] sm:$0xff]
  %v91 = vld [vmem:[%s1 + $0x1d0] sm:$0xff]
  %v92 = vld [vmem:[%s1 + $0x1d8] sm:$0xff]
  %v93 = vld [vmem:[%s1 + $0x1e0] sm:$0xff]
  %v94 = vld [vmem:[%s1 + $0x1e8] sm:$0xff]
  %v95 = vld [vmem:[%s1 + $0x1f0] sm:$0xff]
  %v96 = vld [vmem:[%s2] sm:$0x3f]
  %v97 = vld [vmem:[%s0] sm:$0xff]
  %v98 = vld [vmem:[%s0 + $0x8] sm:$0xff]
  %v99 = vld [vmem:[%s0 + $0x10] sm:$0xff]
  %v100 = vld [vmem:[%s0 + $0x18] sm:$0xff]
  %v101 = vld [vmem:[%s0 + $0x20] sm:$0xff]
  %v102 = vld [vmem:[%s0 + $0x28] sm:$0xff]
  %v103 = vld [vmem:[%s0 + $0x30] sm:$0xff]
  %v104 = vld [vmem:[%s0 + $0x38] sm:$0xff]
  %v105 = vld [vmem:[%s0 + $0x40] sm:$0xff]
  %v106 = vld [vmem:[%s0 + $0x48] sm:$0xff]
  %v107 = vld [vmem:[%s0 + $0x50] sm:$0xff]
  %v108 = vld [vmem:[%s0 + $0x58] sm:$0xff]
  %v109 = vld [vmem:[%s0 + $0x60] sm:$0xff]
  %v110 = vld [vmem:[%s0 + $0x68] sm:$0xff]
  %v111 = vld [vmem:[%s0 + $0x70] sm:$0xff]
  %v112 = vld [vmem:[%s0 + $0x78] sm:$0xff]
  %v114 = vlaneseq
  %v115 = vshrl.u32 %v114, 7
  %v116 = vsub.s32 0, %v115
  %v117 = vrot.slane %v96, %v116
  %v118 = vlaneseq
  %v119 = vshrl.u32 %v118, 7
  %v120 = vsub.s32 1, %v119
  %v121 = vrot.slane %v96, %v120
  %v122 = vlaneseq
  %v123 = vshrl.u32 %v122, 7
  %v124 = vsub.s32 2, %v123
  %v125 = vrot.slane %v96, %v124
  %v126 = vlaneseq
  %v127 = vshrl.u32 %v126, 7
  %v128 = vsub.s32 3, %v127
  %v129 = vrot.slane %v96, %v128
  %v130 = vlaneseq
  %v131 = vshrl.u32 %v130, 7
  %v132 = vsub.s32 4, %v131
  %v133 = vrot.slane %v96, %v132
  %v134 = vlaneseq
  %v135 = vshrl.u32 %v134, 7
  %v136 = vsub.s32 5, %v135
  %v137 = vrot.slane %v96, %v136
  %v160 = vunpack.c.l.b16 %v97
  %v161 = vunpack.c.h.b16 %v97
  %v162 = vunpack.c.l.b16 %v98
  %v163 = vunpack.c.h.b16 %v98
  %v164 = vunpack.c.l.b16 %v99
  %v165 = vunpack.c.h.b16 %v99
  %v166 = vunpack.c.l.b16 %v100
  %v167 = vunpack.c.h.b16 %v100
  %v168 = vunpack.c.l.b16 %v101
  %v169 = vunpack.c.h.b16 %v101
  %v170 = vunpack.c.l.b16 %v102
  %v171 = vunpack.c.h.b16 %v102
  %v172 = vunpack.c.l.b16 %v103
  %v173 = vunpack.c.h.b16 %v103
  %v174 = vunpack.c.l.b16 %v104
  %v175 = vunpack.c.h.b16 %v104
  %v176 = vunpack.c.l.b16 %v105
  %v177 = vunpack.c.h.b16 %v105
  %v178 = vunpack.c.l.b16 %v106
  %v179 = vunpack.c.h.b16 %v106
  %v180 = vunpack.c.l.b16 %v107
  %v181 = vunpack.c.h.b16 %v107
  %v182 = vunpack.c.l.b16 %v108
  %v183 = vunpack.c.h.b16 %v108
  %v184 = vunpack.c.l.b16 %v109
  %v185 = vunpack.c.h.b16 %v109
  %v186 = vunpack.c.l.b16 %v110
  %v187 = vunpack.c.h.b16 %v110
  %v188 = vunpack.c.l.b16 %v111
  %v189 = vunpack.c.h.b16 %v111
  %v190 = vunpack.c.l.b16 %v112
  %v191 = vunpack.c.h.b16 %v112
  %v192 = vpack.c.b16 %v162, %v160
  %v193 = vpack.c.b16 %v163, %v161
  %v194 = vpack.c.b16 %v166, %v164
  %v195 = vpack.c.b16 %v167, %v165
  %v196 = vpack.c.b16 %v170, %v168
  %v197 = vpack.c.b16 %v171, %v169
  %v198 = vpack.c.b16 %v174, %v172
  %v199 = vpack.c.b16 %v175, %v173
  %v200 = vpack.c.b16 %v178, %v176
  %v201 = vpack.c.b16 %v179, %v177
  %v202 = vpack.c.b16 %v182, %v180
  %v203 = vpack.c.b16 %v183, %v181
  %v204 = vpack.c.b16 %v186, %v184
  %v205 = vpack.c.b16 %v187, %v185
  %v206 = vpack.c.b16 %v190, %v188
  %v207 = vpack.c.b16 %v191, %v189
  %v279 = vunpack.c.l.b16 %v33
  %v280 = vunpack.c.h.b16 %v33
  %v281 = vunpack.c.l.b16 %v34
  %v282 = vunpack.c.h.b16 %v34
  %v283 = vunpack.c.l.b16 %v35
  %v284 = vunpack.c.h.b16 %v35
  %v285 = vunpack.c.l.b16 %v36
  %v286 = vunpack.c.h.b16 %v36
  %v287 = vunpack.c.l.b16 %v37
  %v288 = vunpack.c.h.b16 %v37
  %v289 = vunpack.c.l.b16 %v38
  %v290 = vunpack.c.h.b16 %v38
  %v291 = vunpack.c.l.b16 %v39
  %v292 = vunpack.c.h.b16 %v39
  %v293 = vunpack.c.l.b16 %v40
  %v294 = vunpack.c.h.b16 %v40
  %v295 = vunpack.c.l.b16 %v41
  %v296 = vunpack.c.h.b16 %v41
  %v297 = vunpack.c.l.b16 %v42
  %v298 = vunpack.c.h.b16 %v42
  %v299 = vunpack.c.l.b16 %v43
  %v300 = vunpack.c.h.b16 %v43
  %v301 = vunpack.c.l.b16 %v44
  %v302 = vunpack.c.h.b16 %v44
  %v303 = vunpack.c.l.b16 %v45
  %v304 = vunpack.c.h.b16 %v45
  %v305 = vunpack.c.l.b16 %v46
  %v306 = vunpack.c.h.b16 %v46
  %v307 = vunpack.c.l.b16 %v47
  %v308 = vunpack.c.h.b16 %v47
  %v309 = vunpack.c.l.b16 %v48
  %v310 = vunpack.c.h.b16 %v48
  %v311 = vunpack.c.l.b16 %v49
  %v312 = vunpack.c.h.b16 %v49
  %v313 = vunpack.c.l.b16 %v50
  %v314 = vunpack.c.h.b16 %v50
  %v315 = vunpack.c.l.b16 %v51
  %v316 = vunpack.c.h.b16 %v51
  %v317 = vunpack.c.l.b16 %v52
  %v318 = vunpack.c.h.b16 %v52
  %v319 = vunpack.c.l.b16 %v53
  %v320 = vunpack.c.h.b16 %v53
  %v321 = vunpack.c.l.b16 %v54
  %v322 = vunpack.c.h.b16 %v54
  %v323 = vunpack.c.l.b16 %v55
  %v324 = vunpack.c.h.b16 %v55
  %v325 = vunpack.c.l.b16 %v56
  %v326 = vunpack.c.h.b16 %v56
  %v327 = vunpack.c.l.b16 %v57
  %v328 = vunpack.c.h.b16 %v57
  %v329 = vunpack.c.l.b16 %v58
  %v330 = vunpack.c.h.b16 %v58
  %v331 = vunpack.c.l.b16 %v59
  %v332 = vunpack.c.h.b16 %v59
  %v333 = vunpack.c.l.b16 %v60
  %v334 = vunpack.c.h.b16 %v60
  %v335 = vunpack.c.l.b16 %v61
  %v336 = vunpack.c.h.b16 %v61
  %v337 = vunpack.c.l.b16 %v62
  %v338 = vunpack.c.h.b16 %v62
  %v339 = vunpack.c.l.b16 %v63
  %v340 = vunpack.c.h.b16 %v63
  %v341 = vunpack.c.l.b16 %v64
  %v342 = vunpack.c.h.b16 %v64
  %v343 = vunpack.c.l.b16 %v65
  %v344 = vunpack.c.h.b16 %v65
  %v345 = vunpack.c.l.b16 %v66
  %v346 = vunpack.c.h.b16 %v66
  %v347 = vunpack.c.l.b16 %v67
  %v348 = vunpack.c.h.b16 %v67
  %v349 = vunpack.c.l.b16 %v68
  %v350 = vunpack.c.h.b16 %v68
  %v351 = vunpack.c.l.b16 %v69
  %v352 = vunpack.c.h.b16 %v69
  %v353 = vunpack.c.l.b16 %v70
  %v354 = vunpack.c.h.b16 %v70
  %v355 = vunpack.c.l.b16 %v71
  %v356 = vunpack.c.h.b16 %v71
  %v357 = vunpack.c.l.b16 %v72
  %v358 = vunpack.c.h.b16 %v72
  %v359 = vunpack.c.l.b16 %v73
  %v360 = vunpack.c.h.b16 %v73
  %v361 = vunpack.c.l.b16 %v74
  %v362 = vunpack.c.h.b16 %v74
  %v363 = vunpack.c.l.b16 %v75
  %v364 = vunpack.c.h.b16 %v75
  %v365 = vunpack.c.l.b16 %v76
  %v366 = vunpack.c.h.b16 %v76
  %v367 = vunpack.c.l.b16 %v77
  %v368 = vunpack.c.h.b16 %v77
  %v369 = vunpack.c.l.b16 %v78
  %v370 = vunpack.c.h.b16 %v78
  %v371 = vunpack.c.l.b16 %v79
  %v372 = vunpack.c.h.b16 %v79
  %v373 = vunpack.c.l.b16 %v80
  %v374 = vunpack.c.h.b16 %v80
  %v375 = vunpack.c.l.b16 %v81
  %v376 = vunpack.c.h.b16 %v81
  %v377 = vunpack.c.l.b16 %v82
  %v378 = vunpack.c.h.b16 %v82
  %v379 = vunpack.c.l.b16 %v83
  %v380 = vunpack.c.h.b16 %v83
  %v381 = vunpack.c.l.b16 %v84
  %v382 = vunpack.c.h.b16 %v84
  %v383 = vunpack.c.l.b16 %v85
  %v384 = vunpack.c.h.b16 %v85
  %v385 = vunpack.c.l.b16 %v86
  %v386 = vunpack.c.h.b16 %v86
  %v387 = vunpack.c.l.b16 %v87
  %v388 = vunpack.c.h.b16 %v87
  %v389 = vunpack.c.l.b16 %v88
  %v390 = vunpack.c.h.b16 %v88
  %v391 = vunpack.c.l.b16 %v89
  %v392 = vunpack.c.h.b16 %v89
  %v393 = vunpack.c.l.b16 %v90
  %v394 = vunpack.c.h.b16 %v90
  %v395 = vunpack.c.l.b16 %v91
  %v396 = vunpack.c.h.b16 %v91
  %v397 = vunpack.c.l.b16 %v92
  %v398 = vunpack.c.h.b16 %v92
  %v399 = vunpack.c.l.b16 %v93
  %v400 = vunpack.c.h.b16 %v93
  %v401 = vunpack.c.l.b16 %v94
  %v402 = vunpack.c.h.b16 %v94
  %v403 = vunpack.c.l.b16 %v95
  %v404 = vunpack.c.h.b16 %v95
  %v405 = vpack.c.b16 %v285, %v279
  %v406 = vpack.c.b16 %v286, %v280
  %v407 = vpack.c.b16 %v287, %v281
  %v408 = vpack.c.b16 %v288, %v282
  %v409 = vpack.c.b16 %v289, %v283
  %v410 = vpack.c.b16 %v290, %v284
  %v411 = vpack.c.b16 %v297, %v291
  %v412 = vpack.c.b16 %v298, %v292
  %v413 = vpack.c.b16 %v299, %v293
  %v414 = vpack.c.b16 %v300, %v294
  %v415 = vpack.c.b16 %v301, %v295
  %v416 = vpack.c.b16 %v302, %v296
  %v417 = vpack.c.b16 %v309, %v303
  %v418 = vpack.c.b16 %v310, %v304
  %v419 = vpack.c.b16 %v311, %v305
  %v420 = vpack.c.b16 %v312, %v306
  %v421 = vpack.c.b16 %v313, %v307
  %v422 = vpack.c.b16 %v314, %v308
  %v423 = vpack.c.b16 %v321, %v315
  %v424 = vpack.c.b16 %v322, %v316
  %v425 = vpack.c.b16 %v323, %v317
  %v426 = vpack.c.b16 %v324, %v318
  %v427 = vpack.c.b16 %v325, %v319
  %v428 = vpack.c.b16 %v326, %v320
  %v429 = vpack.c.b16 %v333, %v327
  %v430 = vpack.c.b16 %v334, %v328
  %v431 = vpack.c.b16 %v335, %v329
  %v432 = vpack.c.b16 %v336, %v330
  %v433 = vpack.c.b16 %v337, %v331
  %v434 = vpack.c.b16 %v338, %v332
  %v435 = vpack.c.b16 %v345, %v339
  %v436 = vpack.c.b16 %v346, %v340
  %v437 = vpack.c.b16 %v347, %v341
  %v438 = vpack.c.b16 %v348, %v342
  %v439 = vpack.c.b16 %v349, %v343
  %v440 = vpack.c.b16 %v350, %v344
  %v441 = vpack.c.b16 %v357, %v351
  %v442 = vpack.c.b16 %v358, %v352
  %v443 = vpack.c.b16 %v359, %v353
  %v444 = vpack.c.b16 %v360, %v354
  %v445 = vpack.c.b16 %v361, %v355
  %v446 = vpack.c.b16 %v362, %v356
  %v447 = vpack.c.b16 %v369, %v363
  %v448 = vpack.c.b16 %v370, %v364
  %v449 = vpack.c.b16 %v371, %v365
  %v450 = vpack.c.b16 %v372, %v366
  %v451 = vpack.c.b16 %v373, %v367
  %v452 = vpack.c.b16 %v374, %v368
  %v453 = vpack.c.b16 %v381, %v375
  %v454 = vpack.c.b16 %v382, %v376
  %v455 = vpack.c.b16 %v383, %v377
  %v456 = vpack.c.b16 %v384, %v378
  %v457 = vpack.c.b16 %v385, %v379
  %v458 = vpack.c.b16 %v386, %v380
  %v459 = vpack.c.b16 %v393, %v387
  %v460 = vpack.c.b16 %v394, %v388
  %v461 = vpack.c.b16 %v395, %v389
  %v462 = vpack.c.b16 %v396, %v390
  %v463 = vpack.c.b16 %v397, %v391
  %v464 = vpack.c.b16 %v398, %v392
  %v465 = vpack.c.b16 %v399, %v399
  %v466 = vpack.c.b16 %v400, %v400
  %v467 = vpack.c.b16 %v401, %v401
  %v468 = vpack.c.b16 %v402, %v402
  %v469 = vpack.c.b16 %v403, %v403
  %v470 = vpack.c.b16 %v404, %v404
  %vm531 = vcmask 326656
  %v533 = vsel %vm531, %v193, 0
  %v536 = vsel %vm531, %v195, 0
  %v539 = vsel %vm531, %v197, 0
  %v542 = vsel %vm531, %v199, 0
  %v545 = vsel %vm531, %v201, 0
  %v548 = vsel %vm531, %v203, 0
  %v551 = vsel %vm531, %v205, 0
  %v554 = vsel %vm531, %v207, 0
  %vm556 = vcmask 1043456
  %v558 = vsel %vm556, %v465, 0
  %v561 = vsel %vm556, %v466, 0
  %v564 = vsel %vm556, %v467, 0
  %v567 = vsel %vm556, %v468, 0
  %v570 = vsel %vm556, %v469, 0
  %v573 = vsel %vm556, %v470, 0
  %575 = vmatprep.subr.bf16.mxu0 %v406
  %576 = vmatpush1.bf16.msra.mxu0 %v405
  %577 = vmatprep.subr.bf16.mxu0 %v412
  %578 = vmatpush1.bf16.msra.mxu0 %v411
  %579 = vmatprep.subr.bf16.mxu0 %v418
  %580 = vmatpush1.bf16.msra.mxu0 %v417
  %581 = vmatprep.subr.bf16.mxu0 %v424
  %582 = vmatpush1.bf16.msra.mxu0 %v423
  %583 = vmatprep.subr.bf16.mxu0 %v430
  %584 = vmatpush1.bf16.msra.mxu0 %v429
  %585 = vmatprep.subr.bf16.mxu0 %v436
  %586 = vmatpush1.bf16.msra.mxu0 %v435
  %587 = vmatprep.subr.bf16.mxu0 %v442
  %588 = vmatpush1.bf16.msra.mxu0 %v441
  %589 = vmatprep.subr.bf16.mxu0 %v448
  %590 = vmatpush1.bf16.msra.mxu0 %v447
  %591 = vmatprep.subr.bf16.mxu0 %v454
  %592 = vmatpush1.bf16.msra.mxu0 %v453
  %593 = vmatprep.subr.bf16.mxu0 %v460
  %594 = vmatpush1.bf16.msra.mxu0 %v459
  %595 = vmatprep.subr.bf16.mxu0 %v561
  %596 = vmatpush1.bf16.msra.mxu0 %v558
  %597 = vmatprep.subr.bf16.mxu0 0
  %598 = vmatpush1.bf16.msra.mxu0 0
  %599 = vmatprep.subr.bf16.mxu0 0
  %600 = vmatpush1.bf16.msra.mxu0 0
  %601 = vmatprep.subr.bf16.mxu0 0
  %602 = vmatpush1.bf16.msra.mxu0 0
  %603 = vmatprep.subr.bf16.mxu0 0
  %604 = vmatpush1.bf16.msra.mxu0 0
  %605 = vmatprep.subr.bf16.mxu0 0
  %606 = vmatpush1.bf16.msra.mxu0 0
  %607 = vmatprep.mubr.bf16.mxu0 %v533
  %608 = vmatmul.mubr.bf16.gmra.mrb[0].mxu0 %v192
  %v609 = vpop.f32.mrb[0].mxu0
  %v610 = vadd.f32 %v117, %v609
  %v611 = vpop.f32.mrb[0].mxu0
  %v612 = vadd.f32 %v121, %v611
  %v613 = vpop.f32.mrb[0].mxu0
  %v614 = vadd.f32 %v117, %v613
  %v615 = vpop.f32.mrb[0].mxu0
  %v616 = vadd.f32 %v121, %v615
  %617 = vmatprep.mubr.bf16.mxu0 %v536
  %618 = vmatmul.mubr.bf16.gmra.mrb[0].mxu0 %v194
  %v619 = vpop.f32.mrb[0].mxu0
  %v620 = vadd.f32 %v117, %v619
  %v621 = vpop.f32.mrb[0].mxu0
  %v622 = vadd.f32 %v121, %v621
  %v623 = vpop.f32.mrb[0].mxu0
  %v624 = vadd.f32 %v117, %v623
  %v625 = vpop.f32.mrb[0].mxu0
  %v626 = vadd.f32 %v121, %v625
  %627 = vmatprep.mubr.bf16.mxu0 %v539
  %628 = vmatmul.mubr.bf16.gmra.mrb[0].mxu0 %v196
  %v629 = vpop.f32.mrb[0].mxu0
  %v630 = vadd.f32 %v117, %v629
  %v631 = vpop.f32.mrb[0].mxu0
  %v632 = vadd.f32 %v121, %v631
  %v633 = vpop.f32.mrb[0].mxu0
  %v634 = vadd.f32 %v117, %v633
  %v635 = vpop.f32.mrb[0].mxu0
  %v636 = vadd.f32 %v121, %v635
  %637 = vmatprep.mubr.bf16.mxu0 %v542
  %638 = vmatmul.mubr.bf16.gmra.mrb[0].mxu0 %v198
  %v639 = vpop.f32.mrb[0].mxu0
  %v640 = vadd.f32 %v117, %v639
  %v641 = vpop.f32.mrb[0].mxu0
  %v642 = vadd.f32 %v121, %v641
  %v643 = vpop.f32.mrb[0].mxu0
  %v644 = vadd.f32 %v117, %v643
  %v645 = vpop.f32.mrb[0].mxu0
  %v646 = vadd.f32 %v121, %v645
  %647 = vmatprep.mubr.bf16.mxu0 %v545
  %648 = vmatmul.mubr.bf16.gmra.mrb[0].mxu0 %v200
  %v649 = vpop.f32.mrb[0].mxu0
  %v650 = vadd.f32 %v117, %v649
  %v651 = vpop.f32.mrb[0].mxu0
  %v652 = vadd.f32 %v121, %v651
  %v653 = vpop.f32.mrb[0].mxu0
  %v654 = vadd.f32 %v117, %v653
  %v655 = vpop.f32.mrb[0].mxu0
  %v656 = vadd.f32 %v121, %v655
  %657 = vmatprep.mubr.bf16.mxu0 %v548
  %658 = vmatmul.mubr.bf16.gmra.mrb[0].mxu0 %v202
  %v659 = vpop.f32.mrb[0].mxu0
  %v660 = vadd.f32 %v117, %v659
  %v661 = vpop.f32.mrb[0].mxu0
  %v662 = vadd.f32 %v121, %v661
  %v663 = vpop.f32.mrb[0].mxu0
  %v664 = vadd.f32 %v117, %v663
  %v665 = vpop.f32.mrb[0].mxu0
  %v666 = vadd.f32 %v121, %v665
  %667 = vmatprep.mubr.bf16.mxu0 %v551
  %668 = vmatmul.mubr.bf16.gmra.mrb[0].mxu0 %v204
  %v669 = vpop.f32.mrb[0].mxu0
  %v670 = vadd.f32 %v117, %v669
  %v671 = vpop.f32.mrb[0].mxu0
  %v672 = vadd.f32 %v121, %v671
  %v673 = vpop.f32.mrb[0].mxu0
  %v674 = vadd.f32 %v117, %v673
  %v675 = vpop.f32.mrb[0].mxu0
  %v676 = vadd.f32 %v121, %v675
  %677 = vmatprep.mubr.bf16.mxu0 %v554
  %678 = vmatmul.mubr.bf16.gmra.mrb[0].mxu0 %v206
  %v679 = vpop.f32.mrb[0].mxu0
  %v680 = vadd.f32 %v117, %v679
  %v681 = vpop.f32.mrb[0].mxu0
  %v682 = vadd.f32 %v121, %v681
  %v683 = vpop.f32.mrb[0].mxu0
  %v684 = vadd.f32 %v117, %v683
  %v685 = vpop.f32.mrb[0].mxu0
  %v686 = vadd.f32 %v121, %v685
  %687 = vdwg.mxu0
  %688 = vmatprep.subr.bf16.mxu0 %v408
  %689 = vmatpush1.bf16.msra.mxu0 %v407
  %690 = vmatprep.subr.bf16.mxu0 %v414
  %691 = vmatpush1.bf16.msra.mxu0 %v413
  %692 = vmatprep.subr.bf16.mxu0 %v420
  %693 = vmatpush1.bf16.msra.mxu0 %v419
  %694 = vmatprep.subr.bf16.mxu0 %v426
  %695 = vmatpush1.bf16.msra.mxu0 %v425
  %696 = vmatprep.subr.bf16.mxu0 %v432
  %697 = vmatpush1.bf16.msra.mxu0 %v431
  %698 = vmatprep.subr.bf16.mxu0 %v438
  %699 = vmatpush1.bf16.msra.mxu0 %v437
  %700 = vmatprep.subr.bf16.mxu0 %v444
  %701 = vmatpush1.bf16.msra.mxu0 %v443
  %702 = vmatprep.subr.bf16.mxu0 %v450
  %703 = vmatpush1.bf16.msra.mxu0 %v449
  %704 = vmatprep.subr.bf16.mxu0 %v456
  %705 = vmatpush1.bf16.msra.mxu0 %v455
  %706 = vmatprep.subr.bf16.mxu0 %v462
  %707 = vmatpush1.bf16.msra.mxu0 %v461
  %708 = vmatprep.subr.bf16.mxu0 %v567
  %709 = vmatpush1.bf16.msra.mxu0 %v564
  %710 = vmatprep.subr.bf16.mxu0 0
  %711 = vmatpush1.bf16.msra.mxu0 0
  %712 = vmatprep.subr.bf16.mxu0 0
  %713 = vmatpush1.bf16.msra.mxu0 0
  %714 = vmatprep.subr.bf16.mxu0 0
  %715 = vmatpush1.bf16.msra.mxu0 0
  %716 = vmatprep.subr.bf16.mxu0 0
  %717 = vmatpush1.bf16.msra.mxu0 0
  %718 = vmatprep.subr.bf16.mxu0 0
  %719 = vmatpush1.bf16.msra.mxu0 0
  %720 = vmatprep.mubr.bf16.mxu0 %v533
  %721 = vmatmul.mubr.bf16.gmra.mrb[0].mxu0 %v192
  %v722 = vpop.f32.mrb[0].mxu0
  %v723 = vadd.f32 %v125, %v722
  %v724 = vpop.f32.mrb[0].mxu0
  %v725 = vadd.f32 %v129, %v724
  %v726 = vpop.f32.mrb[0].mxu0
  %v727 = vadd.f32 %v125, %v726
  %v728 = vpop.f32.mrb[0].mxu0
  %v729 = vadd.f32 %v129, %v728
  %730 = vmatprep.mubr.bf16.mxu0 %v536
  %731 = vmatmul.mubr.bf16.gmra.mrb[0].mxu0 %v194
  %v732 = vpop.f32.mrb[0].mxu0
  %v733 = vadd.f32 %v125, %v732
  %v734 = vpop.f32.mrb[0].mxu0
  %v735 = vadd.f32 %v129, %v734
  %v736 = vpop.f32.mrb[0].mxu0
  %v737 = vadd.f32 %v125, %v736
  %v738 = vpop.f32.mrb[0].mxu0
  %v739 = vadd.f32 %v129, %v738
  %740 = vmatprep.mubr.bf16.mxu0 %v539
  %741 = vmatmul.mubr.bf16.gmra.mrb[0].mxu0 %v196
  %v742 = vpop.f32.mrb[0].mxu0
  %v743 = vadd.f32 %v125, %v742
  %v744 = vpop.f32.mrb[0].mxu0
  %v745 = vadd.f32 %v129, %v744
  %v746 = vpop.f32.mrb[0].mxu0
  %v747 = vadd.f32 %v125, %v746
  %v748 = vpop.f32.mrb[0].mxu0
  %v749 = vadd.f32 %v129, %v748
  %750 = vmatprep.mubr.bf16.mxu0 %v542
  %751 = vmatmul.mubr.bf16.gmra.mrb[0].mxu0 %v198
  %v752 = vpop.f32.mrb[0].mxu0
  %v753 = vadd.f32 %v125, %v752
  %v754 = vpop.f32.mrb[0].mxu0
  %v755 = vadd.f32 %v129, %v754
  %v756 = vpop.f32.mrb[0].mxu0
  %v757 = vadd.f32 %v125, %v756
  %v758 = vpop.f32.mrb[0].mxu0
  %v759 = vadd.f32 %v129, %v758
  %760 = vmatprep.mubr.bf16.mxu0 %v545
  %761 = vmatmul.mubr.bf16.gmra.mrb[0].mxu0 %v200
  %v762 = vpop.f32.mrb[0].mxu0
  %v763 = vadd.f32 %v125, %v762
  %v764 = vpop.f32.mrb[0].mxu0
  %v765 = vadd.f32 %v129, %v764
  %v766 = vpop.f32.mrb[0].mxu0
  %v767 = vadd.f32 %v125, %v766
  %v768 = vpop.f32.mrb[0].mxu0
  %v769 = vadd.f32 %v129, %v768
  %770 = vmatprep.mubr.bf16.mxu0 %v548
  %771 = vmatmul.mubr.bf16.gmra.mrb[0].mxu0 %v202
  %v772 = vpop.f32.mrb[0].mxu0
  %v773 = vadd.f32 %v125, %v772
  %v774 = vpop.f32.mrb[0].mxu0
  %v775 = vadd.f32 %v129, %v774
  %v776 = vpop.f32.mrb[0].mxu0
  %v777 = vadd.f32 %v125, %v776
  %v778 = vpop.f32.mrb[0].mxu0
  %v779 = vadd.f32 %v129, %v778
  %780 = vmatprep.mubr.bf16.mxu0 %v551
  %781 = vmatmul.mubr.bf16.gmra.mrb[0].mxu0 %v204
  %v782 = vpop.f32.mrb[0].mxu0
  %v783 = vadd.f32 %v125, %v782
  %v784 = vpop.f32.mrb[0].mxu0
  %v785 = vadd.f32 %v129, %v784
  %v786 = vpop.f32.mrb[0].mxu0
  %v787 = vadd.f32 %v125, %v786
  %v788 = vpop.f32.mrb[0].mxu0
  %v789 = vadd.f32 %v129, %v788
  %790 = vmatprep.mubr.bf16.mxu0 %v554
  %791 = vmatmul.mubr.bf16.gmra.mrb[0].mxu0 %v206
  %v792 = vpop.f32.mrb[0].mxu0
  %v793 = vadd.f32 %v125, %v792
  %v794 = vpop.f32.mrb[0].mxu0
  %v795 = vadd.f32 %v129, %v794
  %v796 = vpop.f32.mrb[0].mxu0
  %v797 = vadd.f32 %v125, %v796
  %v798 = vpop.f32.mrb[0].mxu0
  %v799 = vadd.f32 %v129, %v798
  %800 = vdwg.mxu0
  %801 = vmatprep.subr.bf16.mxu0 %v410
  %802 = vmatpush1.bf16.msra.mxu0 %v409
  %803 = vmatprep.subr.bf16.mxu0 %v416
  %804 = vmatpush1.bf16.msra.mxu0 %v415
  %805 = vmatprep.subr.bf16.mxu0 %v422
  %806 = vmatpush1.bf16.msra.mxu0 %v421
  %807 = vmatprep.subr.bf16.mxu0 %v428
  %808 = vmatpush1.bf16.msra.mxu0 %v427
  %809 = vmatprep.subr.bf16.mxu0 %v434
  %810 = vmatpush1.bf16.msra.mxu0 %v433
  %811 = vmatprep.subr.bf16.mxu0 %v440
  %812 = vmatpush1.bf16.msra.mxu0 %v439
  %813 = vmatprep.subr.bf16.mxu0 %v446
  %814 = vmatpush1.bf16.msra.mxu0 %v445
  %815 = vmatprep.subr.bf16.mxu0 %v452
  %816 = vmatpush1.bf16.msra.mxu0 %v451
  %817 = vmatprep.subr.bf16.mxu0 %v458
  %818 = vmatpush1.bf16.msra.mxu0 %v457
  %819 = vmatprep.subr.bf16.mxu0 %v464
  %820 = vmatpush1.bf16.msra.mxu0 %v463
  %821 = vmatprep.subr.bf16.mxu0 %v573
  %822 = vmatpush1.bf16.msra.mxu0 %v570
  %823 = vmatprep.subr.bf16.mxu0 0
  %824 = vmatpush1.bf16.msra.mxu0 0
  %825 = vmatprep.subr.bf16.mxu0 0
  %826 = vmatpush1.bf16.msra.mxu0 0
  %827 = vmatprep.subr.bf16.mxu0 0
  %828 = vmatpush1.bf16.msra.mxu0 0
  %829 = vmatprep.subr.bf16.mxu0 0
  %830 = vmatpush1.bf16.msra.mxu0 0
  %831 = vmatprep.subr.bf16.mxu0 0
  %832 = vmatpush1.bf16.msra.mxu0 0
  %833 = vmatprep.mubr.bf16.mxu0 %v533
  %834 = vmatmul.mubr.bf16.gmra.mrb[0].mxu0 %v192
  %v835 = vpop.f32.mrb[0].mxu0
  %v836 = vadd.f32 %v133, %v835
  %v837 = vpop.f32.mrb[0].mxu0
  %v838 = vadd.f32 %v137, %v837
  %v839 = vpop.f32.mrb[0].mxu0
  %v840 = vadd.f32 %v133, %v839
  %v841 = vpop.f32.mrb[0].mxu0
  %v842 = vadd.f32 %v137, %v841
  %843 = vmatprep.mubr.bf16.mxu0 %v536
  %844 = vmatmul.mubr.bf16.gmra.mrb[0].mxu0 %v194
  %v845 = vpop.f32.mrb[0].mxu0
  %v846 = vadd.f32 %v133, %v845
  %v847 = vpop.f32.mrb[0].mxu0
  %v848 = vadd.f32 %v137, %v847
  %v849 = vpop.f32.mrb[0].mxu0
  %v850 = vadd.f32 %v133, %v849
  %v851 = vpop.f32.mrb[0].mxu0
  %v852 = vadd.f32 %v137, %v851
  %853 = vmatprep.mubr.bf16.mxu0 %v539
  %854 = vmatmul.mubr.bf16.gmra.mrb[0].mxu0 %v196
  %v855 = vpop.f32.mrb[0].mxu0
  %v856 = vadd.f32 %v133, %v855
  %v857 = vpop.f32.mrb[0].mxu0
  %v858 = vadd.f32 %v137, %v857
  %v859 = vpop.f32.mrb[0].mxu0
  %v860 = vadd.f32 %v133, %v859
  %v861 = vpop.f32.mrb[0].mxu0
  %v862 = vadd.f32 %v137, %v861
  %863 = vmatprep.mubr.bf16.mxu0 %v542
  %864 = vmatmul.mubr.bf16.gmra.mrb[0].mxu0 %v198
  %v865 = vpop.f32.mrb[0].mxu0
  %v866 = vadd.f32 %v133, %v865
  %v867 = vpop.f32.mrb[0].mxu0
  %v868 = vadd.f32 %v137, %v867
  %v869 = vpop.f32.mrb[0].mxu0
  %v870 = vadd.f32 %v133, %v869
  %v871 = vpop.f32.mrb[0].mxu0
  %v872 = vadd.f32 %v137, %v871
  %873 = vmatprep.mubr.bf16.mxu0 %v545
  %874 = vmatmul.mubr.bf16.gmra.mrb[0].mxu0 %v200
  %v875 = vpop.f32.mrb[0].mxu0
  %v876 = vadd.f32 %v133, %v875
  %v877 = vpop.f32.mrb[0].mxu0
  %v878 = vadd.f32 %v137, %v877
  %v879 = vpop.f32.mrb[0].mxu0
  %v880 = vadd.f32 %v133, %v879
  %v881 = vpop.f32.mrb[0].mxu0
  %v882 = vadd.f32 %v137, %v881
  %883 = vmatprep.mubr.bf16.mxu0 %v548
  %884 = vmatmul.mubr.bf16.gmra.mrb[0].mxu0 %v202
  %v885 = vpop.f32.mrb[0].mxu0
  %v886 = vadd.f32 %v133, %v885
  %v887 = vpop.f32.mrb[0].mxu0
  %v888 = vadd.f32 %v137, %v887
  %v889 = vpop.f32.mrb[0].mxu0
  %v890 = vadd.f32 %v133, %v889
  %v891 = vpop.f32.mrb[0].mxu0
  %v892 = vadd.f32 %v137, %v891
  %893 = vmatprep.mubr.bf16.mxu0 %v551
  %894 = vmatmul.mubr.bf16.gmra.mrb[0].mxu0 %v204
  %v895 = vpop.f32.mrb[0].mxu0
  %v896 = vadd.f32 %v133, %v895
  %v897 = vpop.f32.mrb[0].mxu0
  %v898 = vadd.f32 %v137, %v897
  %v899 = vpop.f32.mrb[0].mxu0
  %v900 = vadd.f32 %v133, %v899
  %v901 = vpop.f32.mrb[0].mxu0
  %v902 = vadd.f32 %v137, %v901
  %903 = vmatprep.mubr.bf16.mxu0 %v554
  %904 = vmatmul.mubr.bf16.gmra.mrb[0].mxu0 %v206
  %v905 = vpop.f32.mrb[0].mxu0
  %v906 = vadd.f32 %v133, %v905
  %v907 = vpop.f32.mrb[0].mxu0
  %v908 = vadd.f32 %v137, %v907
  %v909 = vpop.f32.mrb[0].mxu0
  %v910 = vadd.f32 %v133, %v909
  %v911 = vpop.f32.mrb[0].mxu0
  %v912 = vadd.f32 %v137, %v911
  %913 = vdwg.mxu0
  %v914 = vmax.f32 %v610, 0.0
  %v915 = vmax.f32 %v612, 0.0
  %v916 = vmax.f32 %v723, 0.0
  %v917 = vmax.f32 %v725, 0.0
  %v918 = vmax.f32 %v836, 0.0
  %v919 = vmax.f32 %v838, 0.0
  %v920 = vmax.f32 %v614, 0.0
  %v921 = vmax.f32 %v616, 0.0
  %v922 = vmax.f32 %v727, 0.0
  %v923 = vmax.f32 %v729, 0.0
  %v924 = vmax.f32 %v840, 0.0
  %v925 = vmax.f32 %v842, 0.0
  %v926 = vmax.f32 %v620, 0.0
  %v927 = vmax.f32 %v622, 0.0
  %v928 = vmax.f32 %v733, 0.0
  %v929 = vmax.f32 %v735, 0.0
  %v930 = vmax.f32 %v846, 0.0
  %v931 = vmax.f32 %v848, 0.0
  %v932 = vmax.f32 %v624, 0.0
  %v933 = vmax.f32 %v626, 0.0
  %v934 = vmax.f32 %v737, 0.0
  %v935 = vmax.f32 %v739, 0.0
  %v936 = vmax.f32 %v850, 0.0
  %v937 = vmax.f32 %v852, 0.0
  %v938 = vmax.f32 %v630, 0.0
  %v939 = vmax.f32 %v632, 0.0
  %v940 = vmax.f32 %v743, 0.0
  %v941 = vmax.f32 %v745, 0.0
  %v942 = vmax.f32 %v856, 0.0
  %v943 = vmax.f32 %v858, 0.0
  %v944 = vmax.f32 %v634, 0.0
  %v945 = vmax.f32 %v636, 0.0
  %v946 = vmax.f32 %v747, 0.0
  %v947 = vmax.f32 %v749, 0.0
  %v948 = vmax.f32 %v860, 0.0
  %v949 = vmax.f32 %v862, 0.0
  %v950 = vmax.f32 %v640, 0.0
  %v951 = vmax.f32 %v642, 0.0
  %v952 = vmax.f32 %v753, 0.0
  %v953 = vmax.f32 %v755, 0.0
  %v954 = vmax.f32 %v866, 0.0
  %v955 = vmax.f32 %v868, 0.0
  %v956 = vmax.f32 %v644, 0.0
  %v957 = vmax.f32 %v646, 0.0
  %v958 = vmax.f32 %v757, 0.0
  %v959 = vmax.f32 %v759, 0.0
  %v960 = vmax.f32 %v870, 0.0
  %v961 = vmax.f32 %v872, 0.0
  %v962 = vmax.f32 %v650, 0.0
  %v963 = vmax.f32 %v652, 0.0
  %v964 = vmax.f32 %v763, 0.0
  %v965 = vmax.f32 %v765, 0.0
  %v966 = vmax.f32 %v876, 0.0
  %v967 = vmax.f32 %v878, 0.0
  %v968 = vmax.f32 %v654, 0.0
  %v969 = vmax.f32 %v656, 0.0
  %v970 = vmax.f32 %v767, 0.0
  %v971 = vmax.f32 %v769, 0.0
  %v972 = vmax.f32 %v880, 0.0
  %v973 = vmax.f32 %v882, 0.0
  %v974 = vmax.f32 %v660, 0.0
  %v975 = vmax.f32 %v662, 0.0
  %v976 = vmax.f32 %v773, 0.0
  %v977 = vmax.f32 %v775, 0.0
  %v978 = vmax.f32 %v886, 0.0
  %v979 = vmax.f32 %v888, 0.0
  %v980 = vmax.f32 %v664, 0.0
  %v981 = vmax.f32 %v666, 0.0
  %v982 = vmax.f32 %v777, 0.0
  %v983 = vmax.f32 %v779, 0.0
  %v984 = vmax.f32 %v890, 0.0
  %v985 = vmax.f32 %v892, 0.0
  %v986 = vmax.f32 %v670, 0.0
  %v987 = vmax.f32 %v672, 0.0
  %v988 = vmax.f32 %v783, 0.0
  %v989 = vmax.f32 %v785, 0.0
  %v990 = vmax.f32 %v896, 0.0
  %v991 = vmax.f32 %v898, 0.0
  %v992 = vmax.f32 %v674, 0.0
  %v993 = vmax.f32 %v676, 0.0
  %v994 = vmax.f32 %v787, 0.0
  %v995 = vmax.f32 %v789, 0.0
  %v996 = vmax.f32 %v900, 0.0
  %v997 = vmax.f32 %v902, 0.0
  %v998 = vmax.f32 %v680, 0.0
  %v999 = vmax.f32 %v682, 0.0
  %v1000 = vmax.f32 %v793, 0.0
  %v1001 = vmax.f32 %v795, 0.0
  %v1002 = vmax.f32 %v906, 0.0
  %v1003 = vmax.f32 %v908, 0.0
  %v1004 = vmax.f32 %v684, 0.0
  %v1005 = vmax.f32 %v686, 0.0
  %v1006 = vmax.f32 %v797, 0.0
  %v1007 = vmax.f32 %v799, 0.0
  %v1008 = vmax.f32 %v910, 0.0
  %v1009 = vmax.f32 %v912, 0.0
  %s1010 = scalar_lea.vmem %s0, 128
  %v1011 = vld [vmem:[%s1010] sm:$0xff]
  %v1012 = vld [vmem:[%s1010 + $0x8] sm:$0xff]
  %v1013 = vld [vmem:[%s1010 + $0x10] sm:$0xff]
  %v1014 = vld [vmem:[%s1010 + $0x18] sm:$0xff]
  %v1015 = vld [vmem:[%s1010 + $0x20] sm:$0xff]
  %v1016 = vld [vmem:[%s1010 + $0x28] sm:$0xff]
  %v1017 = vld [vmem:[%s1010 + $0x30] sm:$0xff]
  %v1018 = vld [vmem:[%s1010 + $0x38] sm:$0xff]
  %v1019 = vld [vmem:[%s1010 + $0x40] sm:$0xff]
  %v1020 = vld [vmem:[%s1010 + $0x48] sm:$0xff]
  %v1021 = vld [vmem:[%s1010 + $0x50] sm:$0xff]
  %v1022 = vld [vmem:[%s1010 + $0x58] sm:$0xff]
  %v1023 = vld [vmem:[%s1010 + $0x60] sm:$0xff]
  %v1024 = vld [vmem:[%s1010 + $0x68] sm:$0xff]
  %v1025 = vld [vmem:[%s1010 + $0x70] sm:$0xff]
  %v1026 = vld [vmem:[%s1010 + $0x78] sm:$0xff]
  %v1043 = vunpack.c.l.b16 %v1011
  %v1044 = vunpack.c.h.b16 %v1011
  %v1045 = vunpack.c.l.b16 %v1012
  %v1046 = vunpack.c.h.b16 %v1012
  %v1047 = vunpack.c.l.b16 %v1013
  %v1048 = vunpack.c.h.b16 %v1013
  %v1049 = vunpack.c.l.b16 %v1014
  %v1050 = vunpack.c.h.b16 %v1014
  %v1051 = vunpack.c.l.b16 %v1015
  %v1052 = vunpack.c.h.b16 %v1015
  %v1053 = vunpack.c.l.b16 %v1016
  %v1054 = vunpack.c.h.b16 %v1016
  %v1055 = vunpack.c.l.b16 %v1017
  %v1056 = vunpack.c.h.b16 %v1017
  %v1057 = vunpack.c.l.b16 %v1018
  %v1058 = vunpack.c.h.b16 %v1018
  %v1059 = vunpack.c.l.b16 %v1019
  %v1060 = vunpack.c.h.b16 %v1019
  %v1061 = vunpack.c.l.b16 %v1020
  %v1062 = vunpack.c.h.b16 %v1020
  %v1063 = vunpack.c.l.b16 %v1021
  %v1064 = vunpack.c.h.b16 %v1021
  %v1065 = vunpack.c.l.b16 %v1022
  %v1066 = vunpack.c.h.b16 %v1022
  %v1067 = vunpack.c.l.b16 %v1023
  %v1068 = vunpack.c.h.b16 %v1023
  %v1069 = vunpack.c.l.b16 %v1024
  %v1070 = vunpack.c.h.b16 %v1024
  %v1071 = vunpack.c.l.b16 %v1025
  %v1072 = vunpack.c.h.b16 %v1025
  %v1073 = vunpack.c.l.b16 %v1026
  %v1074 = vunpack.c.h.b16 %v1026
  %v1075 = vpack.c.b16 %v1045, %v1043
  %v1076 = vpack.c.b16 %v1046, %v1044
  %v1077 = vpack.c.b16 %v1049, %v1047
  %v1078 = vpack.c.b16 %v1050, %v1048
  %v1079 = vpack.c.b16 %v1053, %v1051
  %v1080 = vpack.c.b16 %v1054, %v1052
  %v1081 = vpack.c.b16 %v1057, %v1055
  %v1082 = vpack.c.b16 %v1058, %v1056
  %v1083 = vpack.c.b16 %v1061, %v1059
  %v1084 = vpack.c.b16 %v1062, %v1060
  %v1085 = vpack.c.b16 %v1065, %v1063
  %v1086 = vpack.c.b16 %v1066, %v1064
  %v1087 = vpack.c.b16 %v1069, %v1067
  %v1088 = vpack.c.b16 %v1070, %v1068
  %v1089 = vpack.c.b16 %v1073, %v1071
  %v1090 = vpack.c.b16 %v1074, %v1072
  %v1100 = vsel %vm531, %v1076, 0
  %v1103 = vsel %vm531, %v1078, 0
  %v1106 = vsel %vm531, %v1080, 0
  %v1109 = vsel %vm531, %v1082, 0
  %v1112 = vsel %vm531, %v1084, 0
  %v1115 = vsel %vm531, %v1086, 0
  %v1118 = vsel %vm531, %v1088, 0
  %v1121 = vsel %vm531, %v1090, 0
  %1123 = vmatprep.subr.bf16.mxu0 %v406
  %1124 = vmatpush1.bf16.msra.mxu0 %v405
  %1125 = vmatprep.subr.bf16.mxu0 %v412
  %1126 = vmatpush1.bf16.msra.mxu0 %v411
  %1127 = vmatprep.subr.bf16.mxu0 %v418
  %1128 = vmatpush1.bf16.msra.mxu0 %v417
  %1129 = vmatprep.subr.bf16.mxu0 %v424
  %1130 = vmatpush1.bf16.msra.mxu0 %v423
  %1131 = vmatprep.subr.bf16.mxu0 %v430
  %1132 = vmatpush1.bf16.msra.mxu0 %v429
  %1133 = vmatprep.subr.bf16.mxu0 %v436
  %1134 = vmatpush1.bf16.msra.mxu0 %v435
  %1135 = vmatprep.subr.bf16.mxu0 %v442
  %1136 = vmatpush1.bf16.msra.mxu0 %v441
  %1137 = vmatprep.subr.bf16.mxu0 %v448
  %1138 = vmatpush1.bf16.msra.mxu0 %v447
  %1139 = vmatprep.subr.bf16.mxu0 %v454
  %1140 = vmatpush1.bf16.msra.mxu0 %v453
  %1141 = vmatprep.subr.bf16.mxu0 %v460
  %1142 = vmatpush1.bf16.msra.mxu0 %v459
  %1143 = vmatprep.subr.bf16.mxu0 %v561
  %1144 = vmatpush1.bf16.msra.mxu0 %v558
  %1145 = vmatprep.subr.bf16.mxu0 0
  %1146 = vmatpush1.bf16.msra.mxu0 0
  %1147 = vmatprep.subr.bf16.mxu0 0
  %1148 = vmatpush1.bf16.msra.mxu0 0
  %1149 = vmatprep.subr.bf16.mxu0 0
  %1150 = vmatpush1.bf16.msra.mxu0 0
  %1151 = vmatprep.subr.bf16.mxu0 0
  %1152 = vmatpush1.bf16.msra.mxu0 0
  %1153 = vmatprep.subr.bf16.mxu0 0
  %1154 = vmatpush1.bf16.msra.mxu0 0
  %1155 = vmatprep.mubr.bf16.mxu0 %v1100
  %1156 = vmatmul.mubr.bf16.gmra.mrb[0].mxu0 %v1075
  %v1157 = vpop.f32.mrb[0].mxu0
  %v1158 = vadd.f32 %v117, %v1157
  %v1159 = vpop.f32.mrb[0].mxu0
  %v1160 = vadd.f32 %v121, %v1159
  %v1161 = vpop.f32.mrb[0].mxu0
  %v1162 = vadd.f32 %v117, %v1161
  %v1163 = vpop.f32.mrb[0].mxu0
  %v1164 = vadd.f32 %v121, %v1163
  %1165 = vmatprep.mubr.bf16.mxu0 %v1103
  %1166 = vmatmul.mubr.bf16.gmra.mrb[0].mxu0 %v1077
  %v1167 = vpop.f32.mrb[0].mxu0
  %v1168 = vadd.f32 %v117, %v1167
  %v1169 = vpop.f32.mrb[0].mxu0
  %v1170 = vadd.f32 %v121, %v1169
  %v1171 = vpop.f32.mrb[0].mxu0
  %v1172 = vadd.f32 %v117, %v1171
  %v1173 = vpop.f32.mrb[0].mxu0
  %v1174 = vadd.f32 %v121, %v1173
  %1175 = vmatprep.mubr.bf16.mxu0 %v1106
  %1176 = vmatmul.mubr.bf16.gmra.mrb[0].mxu0 %v1079
  %v1177 = vpop.f32.mrb[0].mxu0
  %v1178 = vadd.f32 %v117, %v1177
  %v1179 = vpop.f32.mrb[0].mxu0
  %v1180 = vadd.f32 %v121, %v1179
  %v1181 = vpop.f32.mrb[0].mxu0
  %v1182 = vadd.f32 %v117, %v1181
  %v1183 = vpop.f32.mrb[0].mxu0
  %v1184 = vadd.f32 %v121, %v1183
  %1185 = vmatprep.mubr.bf16.mxu0 %v1109
  %1186 = vmatmul.mubr.bf16.gmra.mrb[0].mxu0 %v1081
  %v1187 = vpop.f32.mrb[0].mxu0
  %v1188 = vadd.f32 %v117, %v1187
  %v1189 = vpop.f32.mrb[0].mxu0
  %v1190 = vadd.f32 %v121, %v1189
  %v1191 = vpop.f32.mrb[0].mxu0
  %v1192 = vadd.f32 %v117, %v1191
  %v1193 = vpop.f32.mrb[0].mxu0
  %v1194 = vadd.f32 %v121, %v1193
  %1195 = vmatprep.mubr.bf16.mxu0 %v1112
  %1196 = vmatmul.mubr.bf16.gmra.mrb[0].mxu0 %v1083
  %v1197 = vpop.f32.mrb[0].mxu0
  %v1198 = vadd.f32 %v117, %v1197
  %v1199 = vpop.f32.mrb[0].mxu0
  %v1200 = vadd.f32 %v121, %v1199
  %v1201 = vpop.f32.mrb[0].mxu0
  %v1202 = vadd.f32 %v117, %v1201
  %v1203 = vpop.f32.mrb[0].mxu0
  %v1204 = vadd.f32 %v121, %v1203
  %1205 = vmatprep.mubr.bf16.mxu0 %v1115
  %1206 = vmatmul.mubr.bf16.gmra.mrb[0].mxu0 %v1085
  %v1207 = vpop.f32.mrb[0].mxu0
  %v1208 = vadd.f32 %v117, %v1207
  %v1209 = vpop.f32.mrb[0].mxu0
  %v1210 = vadd.f32 %v121, %v1209
  %v1211 = vpop.f32.mrb[0].mxu0
  %v1212 = vadd.f32 %v117, %v1211
  %v1213 = vpop.f32.mrb[0].mxu0
  %v1214 = vadd.f32 %v121, %v1213
  %1215 = vmatprep.mubr.bf16.mxu0 %v1118
  %1216 = vmatmul.mubr.bf16.gmra.mrb[0].mxu0 %v1087
  %v1217 = vpop.f32.mrb[0].mxu0
  %v1218 = vadd.f32 %v117, %v1217
  %v1219 = vpop.f32.mrb[0].mxu0
  %v1220 = vadd.f32 %v121, %v1219
  %v1221 = vpop.f32.mrb[0].mxu0
  %v1222 = vadd.f32 %v117, %v1221
  %v1223 = vpop.f32.mrb[0].mxu0
  %v1224 = vadd.f32 %v121, %v1223
  %1225 = vmatprep.mubr.bf16.mxu0 %v1121
  %1226 = vmatmul.mubr.bf16.gmra.mrb[0].mxu0 %v1089
  %v1227 = vpop.f32.mrb[0].mxu0
  %v1228 = vadd.f32 %v117, %v1227
  %v1229 = vpop.f32.mrb[0].mxu0
  %v1230 = vadd.f32 %v121, %v1229
  %v1231 = vpop.f32.mrb[0].mxu0
  %v1232 = vadd.f32 %v117, %v1231
  %v1233 = vpop.f32.mrb[0].mxu0
  %v1234 = vadd.f32 %v121, %v1233
  %1235 = vdwg.mxu0
  %1236 = vmatprep.subr.bf16.mxu0 %v408
  %1237 = vmatpush1.bf16.msra.mxu0 %v407
  %1238 = vmatprep.subr.bf16.mxu0 %v414
  %1239 = vmatpush1.bf16.msra.mxu0 %v413
  %1240 = vmatprep.subr.bf16.mxu0 %v420
  %1241 = vmatpush1.bf16.msra.mxu0 %v419
  %1242 = vmatprep.subr.bf16.mxu0 %v426
  %1243 = vmatpush1.bf16.msra.mxu0 %v425
  %1244 = vmatprep.subr.bf16.mxu0 %v432
  %1245 = vmatpush1.bf16.msra.mxu0 %v431
  %1246 = vmatprep.subr.bf16.mxu0 %v438
  %1247 = vmatpush1.bf16.msra.mxu0 %v437
  %1248 = vmatprep.subr.bf16.mxu0 %v444
  %1249 = vmatpush1.bf16.msra.mxu0 %v443
  %1250 = vmatprep.subr.bf16.mxu0 %v450
  %1251 = vmatpush1.bf16.msra.mxu0 %v449
  %1252 = vmatprep.subr.bf16.mxu0 %v456
  %1253 = vmatpush1.bf16.msra.mxu0 %v455
  %1254 = vmatprep.subr.bf16.mxu0 %v462
  %1255 = vmatpush1.bf16.msra.mxu0 %v461
  %1256 = vmatprep.subr.bf16.mxu0 %v567
  %1257 = vmatpush1.bf16.msra.mxu0 %v564
  %1258 = vmatprep.subr.bf16.mxu0 0
  %1259 = vmatpush1.bf16.msra.mxu0 0
  %1260 = vmatprep.subr.bf16.mxu0 0
  %1261 = vmatpush1.bf16.msra.mxu0 0
  %1262 = vmatprep.subr.bf16.mxu0 0
  %1263 = vmatpush1.bf16.msra.mxu0 0
  %1264 = vmatprep.subr.bf16.mxu0 0
  %1265 = vmatpush1.bf16.msra.mxu0 0
  %1266 = vmatprep.subr.bf16.mxu0 0
  %1267 = vmatpush1.bf16.msra.mxu0 0
  %1268 = vmatprep.mubr.bf16.mxu0 %v1100
  %1269 = vmatmul.mubr.bf16.gmra.mrb[0].mxu0 %v1075
  %v1270 = vpop.f32.mrb[0].mxu0
  %v1271 = vadd.f32 %v125, %v1270
  %v1272 = vpop.f32.mrb[0].mxu0
  %v1273 = vadd.f32 %v129, %v1272
  %v1274 = vpop.f32.mrb[0].mxu0
  %v1275 = vadd.f32 %v125, %v1274
  %v1276 = vpop.f32.mrb[0].mxu0
  %v1277 = vadd.f32 %v129, %v1276
  %1278 = vmatprep.mubr.bf16.mxu0 %v1103
  %1279 = vmatmul.mubr.bf16.gmra.mrb[0].mxu0 %v1077
  %v1280 = vpop.f32.mrb[0].mxu0
  %v1281 = vadd.f32 %v125, %v1280
  %v1282 = vpop.f32.mrb[0].mxu0
  %v1283 = vadd.f32 %v129, %v1282
  %v1284 = vpop.f32.mrb[0].mxu0
  %v1285 = vadd.f32 %v125, %v1284
  %v1286 = vpop.f32.mrb[0].mxu0
  %v1287 = vadd.f32 %v129, %v1286
  %1288 = vmatprep.mubr.bf16.mxu0 %v1106
  %1289 = vmatmul.mubr.bf16.gmra.mrb[0].mxu0 %v1079
  %v1290 = vpop.f32.mrb[0].mxu0
  %v1291 = vadd.f32 %v125, %v1290
  %v1292 = vpop.f32.mrb[0].mxu0
  %v1293 = vadd.f32 %v129, %v1292
  %v1294 = vpop.f32.mrb[0].mxu0
  %v1295 = vadd.f32 %v125, %v1294
  %v1296 = vpop.f32.mrb[0].mxu0
  %v1297 = vadd.f32 %v129, %v1296
  %1298 = vmatprep.mubr.bf16.mxu0 %v1109
  %1299 = vmatmul.mubr.bf16.gmra.mrb[0].mxu0 %v1081
  %v1300 = vpop.f32.mrb[0].mxu0
  %v1301 = vadd.f32 %v125, %v1300
  %v1302 = vpop.f32.mrb[0].mxu0
  %v1303 = vadd.f32 %v129, %v1302
  %v1304 = vpop.f32.mrb[0].mxu0
  %v1305 = vadd.f32 %v125, %v1304
  %v1306 = vpop.f32.mrb[0].mxu0
  %v1307 = vadd.f32 %v129, %v1306
  %1308 = vmatprep.mubr.bf16.mxu0 %v1112
  %1309 = vmatmul.mubr.bf16.gmra.mrb[0].mxu0 %v1083
  %v1310 = vpop.f32.mrb[0].mxu0
  %v1311 = vadd.f32 %v125, %v1310
  %v1312 = vpop.f32.mrb[0].mxu0
  %v1313 = vadd.f32 %v129, %v1312
  %v1314 = vpop.f32.mrb[0].mxu0
  %v1315 = vadd.f32 %v125, %v1314
  %v1316 = vpop.f32.mrb[0].mxu0
  %v1317 = vadd.f32 %v129, %v1316
  %1318 = vmatprep.mubr.bf16.mxu0 %v1115
  %1319 = vmatmul.mubr.bf16.gmra.mrb[0].mxu0 %v1085
  %v1320 = vpop.f32.mrb[0].mxu0
  %v1321 = vadd.f32 %v125, %v1320
  %v1322 = vpop.f32.mrb[0].mxu0
  %v1323 = vadd.f32 %v129, %v1322
  %v1324 = vpop.f32.mrb[0].mxu0
  %v1325 = vadd.f32 %v125, %v1324
  %v1326 = vpop.f32.mrb[0].mxu0
  %v1327 = vadd.f32 %v129, %v1326
  %1328 = vmatprep.mubr.bf16.mxu0 %v1118
  %1329 = vmatmul.mubr.bf16.gmra.mrb[0].mxu0 %v1087
  %v1330 = vpop.f32.mrb[0].mxu0
  %v1331 = vadd.f32 %v125, %v1330
  %v1332 = vpop.f32.mrb[0].mxu0
  %v1333 = vadd.f32 %v129, %v1332
  %v1334 = vpop.f32.mrb[0].mxu0
  %v1335 = vadd.f32 %v125, %v1334
  %v1336 = vpop.f32.mrb[0].mxu0
  %v1337 = vadd.f32 %v129, %v1336
  %1338 = vmatprep.mubr.bf16.mxu0 %v1121
  %1339 = vmatmul.mubr.bf16.gmra.mrb[0].mxu0 %v1089
  %v1340 = vpop.f32.mrb[0].mxu0
  %v1341 = vadd.f32 %v125, %v1340
  %v1342 = vpop.f32.mrb[0].mxu0
  %v1343 = vadd.f32 %v129, %v1342
  %v1344 = vpop.f32.mrb[0].mxu0
  %v1345 = vadd.f32 %v125, %v1344
  %v1346 = vpop.f32.mrb[0].mxu0
  %v1347 = vadd.f32 %v129, %v1346
  %1348 = vdwg.mxu0
  %1349 = vmatprep.subr.bf16.mxu0 %v410
  %1350 = vmatpush1.bf16.msra.mxu0 %v409
  %1351 = vmatprep.subr.bf16.mxu0 %v416
  %1352 = vmatpush1.bf16.msra.mxu0 %v415
  %1353 = vmatprep.subr.bf16.mxu0 %v422
  %1354 = vmatpush1.bf16.msra.mxu0 %v421
  %1355 = vmatprep.subr.bf16.mxu0 %v428
  %1356 = vmatpush1.bf16.msra.mxu0 %v427
  %1357 = vmatprep.subr.bf16.mxu0 %v434
  %1358 = vmatpush1.bf16.msra.mxu0 %v433
  %1359 = vmatprep.subr.bf16.mxu0 %v440
  %1360 = vmatpush1.bf16.msra.mxu0 %v439
  %1361 = vmatprep.subr.bf16.mxu0 %v446
  %1362 = vmatpush1.bf16.msra.mxu0 %v445
  %1363 = vmatprep.subr.bf16.mxu0 %v452
  %1364 = vmatpush1.bf16.msra.mxu0 %v451
  %1365 = vmatprep.subr.bf16.mxu0 %v458
  %1366 = vmatpush1.bf16.msra.mxu0 %v457
  %1367 = vmatprep.subr.bf16.mxu0 %v464
  %1368 = vmatpush1.bf16.msra.mxu0 %v463
  %1369 = vmatprep.subr.bf16.mxu0 %v573
  %1370 = vmatpush1.bf16.msra.mxu0 %v570
  %1371 = vmatprep.subr.bf16.mxu0 0
  %1372 = vmatpush1.bf16.msra.mxu0 0
  %1373 = vmatprep.subr.bf16.mxu0 0
  %1374 = vmatpush1.bf16.msra.mxu0 0
  %1375 = vmatprep.subr.bf16.mxu0 0
  %1376 = vmatpush1.bf16.msra.mxu0 0
  %1377 = vmatprep.subr.bf16.mxu0 0
  %1378 = vmatpush1.bf16.msra.mxu0 0
  %1379 = vmatprep.subr.bf16.mxu0 0
  %1380 = vmatpush1.bf16.msra.mxu0 0
  %1381 = vmatprep.mubr.bf16.mxu0 %v1100
  %1382 = vmatmul.mubr.bf16.gmra.mrb[0].mxu0 %v1075
  %v1383 = vpop.f32.mrb[0].mxu0
  %v1384 = vadd.f32 %v133, %v1383
  %v1385 = vpop.f32.mrb[0].mxu0
  %v1386 = vadd.f32 %v137, %v1385
  %v1387 = vpop.f32.mrb[0].mxu0
  %v1388 = vadd.f32 %v133, %v1387
  %v1389 = vpop.f32.mrb[0].mxu0
  %v1390 = vadd.f32 %v137, %v1389
  %1391 = vmatprep.mubr.bf16.mxu0 %v1103
  %1392 = vmatmul.mubr.bf16.gmra.mrb[0].mxu0 %v1077
  %v1393 = vpop.f32.mrb[0].mxu0
  %v1394 = vadd.f32 %v133, %v1393
  %v1395 = vpop.f32.mrb[0].mxu0
  %v1396 = vadd.f32 %v137, %v1395
  %v1397 = vpop.f32.mrb[0].mxu0
  %v1398 = vadd.f32 %v133, %v1397
  %v1399 = vpop.f32.mrb[0].mxu0
  %v1400 = vadd.f32 %v137, %v1399
  %1401 = vmatprep.mubr.bf16.mxu0 %v1106
  %1402 = vmatmul.mubr.bf16.gmra.mrb[0].mxu0 %v1079
  %v1403 = vpop.f32.mrb[0].mxu0
  %v1404 = vadd.f32 %v133, %v1403
  %v1405 = vpop.f32.mrb[0].mxu0
  %v1406 = vadd.f32 %v137, %v1405
  %v1407 = vpop.f32.mrb[0].mxu0
  %v1408 = vadd.f32 %v133, %v1407
  %v1409 = vpop.f32.mrb[0].mxu0
  %v1410 = vadd.f32 %v137, %v1409
  %1411 = vmatprep.mubr.bf16.mxu0 %v1109
  %1412 = vmatmul.mubr.bf16.gmra.mrb[0].mxu0 %v1081
  %v1413 = vpop.f32.mrb[0].mxu0
  %v1414 = vadd.f32 %v133, %v1413
  %v1415 = vpop.f32.mrb[0].mxu0
  %v1416 = vadd.f32 %v137, %v1415
  %v1417 = vpop.f32.mrb[0].mxu0
  %v1418 = vadd.f32 %v133, %v1417
  %v1419 = vpop.f32.mrb[0].mxu0
  %v1420 = vadd.f32 %v137, %v1419
  %1421 = vmatprep.mubr.bf16.mxu0 %v1112
  %1422 = vmatmul.mubr.bf16.gmra.mrb[0].mxu0 %v1083
  %v1423 = vpop.f32.mrb[0].mxu0
  %v1424 = vadd.f32 %v133, %v1423
  %v1425 = vpop.f32.mrb[0].mxu0
  %v1426 = vadd.f32 %v137, %v1425
  %v1427 = vpop.f32.mrb[0].mxu0
  %v1428 = vadd.f32 %v133, %v1427
  %v1429 = vpop.f32.mrb[0].mxu0
  %v1430 = vadd.f32 %v137, %v1429
  %1431 = vmatprep.mubr.bf16.mxu0 %v1115
  %1432 = vmatmul.mubr.bf16.gmra.mrb[0].mxu0 %v1085
  %v1433 = vpop.f32.mrb[0].mxu0
  %v1434 = vadd.f32 %v133, %v1433
  %v1435 = vpop.f32.mrb[0].mxu0
  %v1436 = vadd.f32 %v137, %v1435
  %v1437 = vpop.f32.mrb[0].mxu0
  %v1438 = vadd.f32 %v133, %v1437
  %v1439 = vpop.f32.mrb[0].mxu0
  %v1440 = vadd.f32 %v137, %v1439
  %1441 = vmatprep.mubr.bf16.mxu0 %v1118
  %1442 = vmatmul.mubr.bf16.gmra.mrb[0].mxu0 %v1087
  %v1443 = vpop.f32.mrb[0].mxu0
  %v1444 = vadd.f32 %v133, %v1443
  %v1445 = vpop.f32.mrb[0].mxu0
  %v1446 = vadd.f32 %v137, %v1445
  %v1447 = vpop.f32.mrb[0].mxu0
  %v1448 = vadd.f32 %v133, %v1447
  %v1449 = vpop.f32.mrb[0].mxu0
  %v1450 = vadd.f32 %v137, %v1449
  %1451 = vmatprep.mubr.bf16.mxu0 %v1121
  %1452 = vmatmul.mubr.bf16.gmra.mrb[0].mxu0 %v1089
  %v1453 = vpop.f32.mrb[0].mxu0
  %v1454 = vadd.f32 %v133, %v1453
  %v1455 = vpop.f32.mrb[0].mxu0
  %v1456 = vadd.f32 %v137, %v1455
  %v1457 = vpop.f32.mrb[0].mxu0
  %v1458 = vadd.f32 %v133, %v1457
  %v1459 = vpop.f32.mrb[0].mxu0
  %v1460 = vadd.f32 %v137, %v1459
  %1461 = vdwg.mxu0
  %v1462 = vmax.f32 %v1158, 0.0
  %v1463 = vmax.f32 %v1160, 0.0
  %v1464 = vmax.f32 %v1271, 0.0
  %v1465 = vmax.f32 %v1273, 0.0
  %v1466 = vmax.f32 %v1384, 0.0
  %v1467 = vmax.f32 %v1386, 0.0
  %v1468 = vmax.f32 %v1162, 0.0
  %v1469 = vmax.f32 %v1164, 0.0
  %v1470 = vmax.f32 %v1275, 0.0
  %v1471 = vmax.f32 %v1277, 0.0
  %v1472 = vmax.f32 %v1388, 0.0
  %v1473 = vmax.f32 %v1390, 0.0
  %v1474 = vmax.f32 %v1168, 0.0
  %v1475 = vmax.f32 %v1170, 0.0
  %v1476 = vmax.f32 %v1281, 0.0
  %v1477 = vmax.f32 %v1283, 0.0
  %v1478 = vmax.f32 %v1394, 0.0
  %v1479 = vmax.f32 %v1396, 0.0
  %v1480 = vmax.f32 %v1172, 0.0
  %v1481 = vmax.f32 %v1174, 0.0
  %v1482 = vmax.f32 %v1285, 0.0
  %v1483 = vmax.f32 %v1287, 0.0
  %v1484 = vmax.f32 %v1398, 0.0
  %v1485 = vmax.f32 %v1400, 0.0
  %v1486 = vmax.f32 %v1178, 0.0
  %v1487 = vmax.f32 %v1180, 0.0
  %v1488 = vmax.f32 %v1291, 0.0
  %v1489 = vmax.f32 %v1293, 0.0
  %v1490 = vmax.f32 %v1404, 0.0
  %v1491 = vmax.f32 %v1406, 0.0
  %v1492 = vmax.f32 %v1182, 0.0
  %v1493 = vmax.f32 %v1184, 0.0
  %v1494 = vmax.f32 %v1295, 0.0
  %v1495 = vmax.f32 %v1297, 0.0
  %v1496 = vmax.f32 %v1408, 0.0
  %v1497 = vmax.f32 %v1410, 0.0
  %v1498 = vmax.f32 %v1188, 0.0
  %v1499 = vmax.f32 %v1190, 0.0
  %v1500 = vmax.f32 %v1301, 0.0
  %v1501 = vmax.f32 %v1303, 0.0
  %v1502 = vmax.f32 %v1414, 0.0
  %v1503 = vmax.f32 %v1416, 0.0
  %v1504 = vmax.f32 %v1192, 0.0
  %v1505 = vmax.f32 %v1194, 0.0
  %v1506 = vmax.f32 %v1305, 0.0
  %v1507 = vmax.f32 %v1307, 0.0
  %v1508 = vmax.f32 %v1418, 0.0
  %v1509 = vmax.f32 %v1420, 0.0
  %v1510 = vmax.f32 %v1198, 0.0
  %v1511 = vmax.f32 %v1200, 0.0
  %v1512 = vmax.f32 %v1311, 0.0
  %v1513 = vmax.f32 %v1313, 0.0
  %v1514 = vmax.f32 %v1424, 0.0
  %v1515 = vmax.f32 %v1426, 0.0
  %v1516 = vmax.f32 %v1202, 0.0
  %v1517 = vmax.f32 %v1204, 0.0
  %v1518 = vmax.f32 %v1315, 0.0
  %v1519 = vmax.f32 %v1317, 0.0
  %v1520 = vmax.f32 %v1428, 0.0
  %v1521 = vmax.f32 %v1430, 0.0
  %v1522 = vmax.f32 %v1208, 0.0
  %v1523 = vmax.f32 %v1210, 0.0
  %v1524 = vmax.f32 %v1321, 0.0
  %v1525 = vmax.f32 %v1323, 0.0
  %v1526 = vmax.f32 %v1434, 0.0
  %v1527 = vmax.f32 %v1436, 0.0
  %v1528 = vmax.f32 %v1212, 0.0
  %v1529 = vmax.f32 %v1214, 0.0
  %v1530 = vmax.f32 %v1325, 0.0
  %v1531 = vmax.f32 %v1327, 0.0
  %v1532 = vmax.f32 %v1438, 0.0
  %v1533 = vmax.f32 %v1440, 0.0
  %v1534 = vmax.f32 %v1218, 0.0
  %v1535 = vmax.f32 %v1220, 0.0
  %v1536 = vmax.f32 %v1331, 0.0
  %v1537 = vmax.f32 %v1333, 0.0
  %v1538 = vmax.f32 %v1444, 0.0
  %v1539 = vmax.f32 %v1446, 0.0
  %v1540 = vmax.f32 %v1222, 0.0
  %v1541 = vmax.f32 %v1224, 0.0
  %v1542 = vmax.f32 %v1335, 0.0
  %v1543 = vmax.f32 %v1337, 0.0
  %v1544 = vmax.f32 %v1448, 0.0
  %v1545 = vmax.f32 %v1450, 0.0
  %v1546 = vmax.f32 %v1228, 0.0
  %v1547 = vmax.f32 %v1230, 0.0
  %v1548 = vmax.f32 %v1341, 0.0
  %v1549 = vmax.f32 %v1343, 0.0
  %v1550 = vmax.f32 %v1454, 0.0
  %v1551 = vmax.f32 %v1456, 0.0
  %v1552 = vmax.f32 %v1232, 0.0
  %v1553 = vmax.f32 %v1234, 0.0
  %v1554 = vmax.f32 %v1345, 0.0
  %v1555 = vmax.f32 %v1347, 0.0
  %v1556 = vmax.f32 %v1458, 0.0
  %v1557 = vmax.f32 %v1460, 0.0
  %v1558 = vmax.f32 %v914, %v1462
  %v1559 = vmax.f32 %v915, %v1463
  %v1560 = vmax.f32 %v916, %v1464
  %v1561 = vmax.f32 %v917, %v1465
  %v1562 = vmax.f32 %v918, %v1466
  %v1563 = vmax.f32 %v919, %v1467
  %v1564 = vmax.f32 %v920, %v1468
  %v1565 = vmax.f32 %v921, %v1469
  %v1566 = vmax.f32 %v922, %v1470
  %v1567 = vmax.f32 %v923, %v1471
  %v1568 = vmax.f32 %v924, %v1472
  %v1569 = vmax.f32 %v925, %v1473
  %v1570 = vmax.f32 %v926, %v1474
  %v1571 = vmax.f32 %v927, %v1475
  %v1572 = vmax.f32 %v928, %v1476
  %v1573 = vmax.f32 %v929, %v1477
  %v1574 = vmax.f32 %v930, %v1478
  %v1575 = vmax.f32 %v931, %v1479
  %v1576 = vmax.f32 %v932, %v1480
  %v1577 = vmax.f32 %v933, %v1481
  %v1578 = vmax.f32 %v934, %v1482
  %v1579 = vmax.f32 %v935, %v1483
  %v1580 = vmax.f32 %v936, %v1484
  %v1581 = vmax.f32 %v937, %v1485
  %v1582 = vmax.f32 %v938, %v1486
  %v1583 = vmax.f32 %v939, %v1487
  %v1584 = vmax.f32 %v940, %v1488
  %v1585 = vmax.f32 %v941, %v1489
  %v1586 = vmax.f32 %v942, %v1490
  %v1587 = vmax.f32 %v943, %v1491
  %v1588 = vmax.f32 %v944, %v1492
  %v1589 = vmax.f32 %v945, %v1493
  %v1590 = vmax.f32 %v946, %v1494
  %v1591 = vmax.f32 %v947, %v1495
  %v1592 = vmax.f32 %v948, %v1496
  %v1593 = vmax.f32 %v949, %v1497
  %v1594 = vmax.f32 %v950, %v1498
  %v1595 = vmax.f32 %v951, %v1499
  %v1596 = vmax.f32 %v952, %v1500
  %v1597 = vmax.f32 %v953, %v1501
  %v1598 = vmax.f32 %v954, %v1502
  %v1599 = vmax.f32 %v955, %v1503
  %v1600 = vmax.f32 %v956, %v1504
  %v1601 = vmax.f32 %v957, %v1505
  %v1602 = vmax.f32 %v958, %v1506
  %v1603 = vmax.f32 %v959, %v1507
  %v1604 = vmax.f32 %v960, %v1508
  %v1605 = vmax.f32 %v961, %v1509
  %v1606 = vmax.f32 %v962, %v1510
  %v1607 = vmax.f32 %v963, %v1511
  %v1608 = vmax.f32 %v964, %v1512
  %v1609 = vmax.f32 %v965, %v1513
  %v1610 = vmax.f32 %v966, %v1514
  %v1611 = vmax.f32 %v967, %v1515
  %v1612 = vmax.f32 %v968, %v1516
  %v1613 = vmax.f32 %v969, %v1517
  %v1614 = vmax.f32 %v970, %v1518
  %v1615 = vmax.f32 %v971, %v1519
  %v1616 = vmax.f32 %v972, %v1520
  %v1617 = vmax.f32 %v973, %v1521
  %v1618 = vmax.f32 %v974, %v1522
  %v1619 = vmax.f32 %v975, %v1523
  %v1620 = vmax.f32 %v976, %v1524
  %v1621 = vmax.f32 %v977, %v1525
  %v1622 = vmax.f32 %v978, %v1526
  %v1623 = vmax.f32 %v979, %v1527
  %v1624 = vmax.f32 %v980, %v1528
  %v1625 = vmax.f32 %v981, %v1529
  %v1626 = vmax.f32 %v982, %v1530
  %v1627 = vmax.f32 %v983, %v1531
  %v1628 = vmax.f32 %v984, %v1532
  %v1629 = vmax.f32 %v985, %v1533
  %v1630 = vmax.f32 %v986, %v1534
  %v1631 = vmax.f32 %v987, %v1535
  %v1632 = vmax.f32 %v988, %v1536
  %v1633 = vmax.f32 %v989, %v1537
  %v1634 = vmax.f32 %v990, %v1538
  %v1635 = vmax.f32 %v991, %v1539
  %v1636 = vmax.f32 %v992, %v1540
  %v1637 = vmax.f32 %v993, %v1541
  %v1638 = vmax.f32 %v994, %v1542
  %v1639 = vmax.f32 %v995, %v1543
  %v1640 = vmax.f32 %v996, %v1544
  %v1641 = vmax.f32 %v997, %v1545
  %v1642 = vmax.f32 %v998, %v1546
  %v1643 = vmax.f32 %v999, %v1547
  %v1644 = vmax.f32 %v1000, %v1548
  %v1645 = vmax.f32 %v1001, %v1549
  %v1646 = vmax.f32 %v1002, %v1550
  %v1647 = vmax.f32 %v1003, %v1551
  %v1648 = vmax.f32 %v1004, %v1552
  %v1649 = vmax.f32 %v1005, %v1553
  %v1650 = vmax.f32 %v1006, %v1554
  %v1651 = vmax.f32 %v1007, %v1555
  %v1652 = vmax.f32 %v1008, %v1556
  %v1653 = vmax.f32 %v1009, %v1557
  %s1654 = scalar_lea.vmem %s0, 256
  %v1655 = vld [vmem:[%s1654] sm:$0xff]
  %v1656 = vld [vmem:[%s1654 + $0x8] sm:$0xff]
  %v1657 = vld [vmem:[%s1654 + $0x10] sm:$0xff]
  %v1658 = vld [vmem:[%s1654 + $0x18] sm:$0xff]
  %v1659 = vld [vmem:[%s1654 + $0x20] sm:$0xff]
  %v1660 = vld [vmem:[%s1654 + $0x28] sm:$0xff]
  %v1661 = vld [vmem:[%s1654 + $0x30] sm:$0xff]
  %v1662 = vld [vmem:[%s1654 + $0x38] sm:$0xff]
  %v1663 = vld [vmem:[%s1654 + $0x40] sm:$0xff]
  %v1664 = vld [vmem:[%s1654 + $0x48] sm:$0xff]
  %v1665 = vld [vmem:[%s1654 + $0x50] sm:$0xff]
  %v1666 = vld [vmem:[%s1654 + $0x58] sm:$0xff]
  %v1667 = vld [vmem:[%s1654 + $0x60] sm:$0xff]
  %v1668 = vld [vmem:[%s1654 + $0x68] sm:$0xff]
  %v1669 = vld [vmem:[%s1654 + $0x70] sm:$0xff]
  %v1670 = vld [vmem:[%s1654 + $0x78] sm:$0xff]
  %v1687 = vunpack.c.l.b16 %v1655
  %v1688 = vunpack.c.h.b16 %v1655
  %v1689 = vunpack.c.l.b16 %v1656
  %v1690 = vunpack.c.h.b16 %v1656
  %v1691 = vunpack.c.l.b16 %v1657
  %v1692 = vunpack.c.h.b16 %v1657
  %v1693 = vunpack.c.l.b16 %v1658
  %v1694 = vunpack.c.h.b16 %v1658
  %v1695 = vunpack.c.l.b16 %v1659
  %v1696 = vunpack.c.h.b16 %v1659
  %v1697 = vunpack.c.l.b16 %v1660
  %v1698 = vunpack.c.h.b16 %v1660
  %v1699 = vunpack.c.l.b16 %v1661
  %v1700 = vunpack.c.h.b16 %v1661
  %v1701 = vunpack.c.l.b16 %v1662
  %v1702 = vunpack.c.h.b16 %v1662
  %v1703 = vunpack.c.l.b16 %v1663
  %v1704 = vunpack.c.h.b16 %v1663
  %v1705 = vunpack.c.l.b16 %v1664
  %v1706 = vunpack.c.h.b16 %v1664
  %v1707 = vunpack.c.l.b16 %v1665
  %v1708 = vunpack.c.h.b16 %v1665
  %v1709 = vunpack.c.l.b16 %v1666
  %v1710 = vunpack.c.h.b16 %v1666
  %v1711 = vunpack.c.l.b16 %v1667
  %v1712 = vunpack.c.h.b16 %v1667
  %v1713 = vunpack.c.l.b16 %v1668
  %v1714 = vunpack.c.h.b16 %v1668
  %v1715 = vunpack.c.l.b16 %v1669
  %v1716 = vunpack.c.h.b16 %v1669
  %v1717 = vunpack.c.l.b16 %v1670
  %v1718 = vunpack.c.h.b16 %v1670
  %v1719 = vpack.c.b16 %v1689, %v1687
  %v1720 = vpack.c.b16 %v1690, %v1688
  %v1721 = vpack.c.b16 %v1693, %v1691
  %v1722 = vpack.c.b16 %v1694, %v1692
  %v1723 = vpack.c.b16 %v1697, %v1695
  %v1724 = vpack.c.b16 %v1698, %v1696
  %v1725 = vpack.c.b16 %v1701, %v1699
  %v1726 = vpack.c.b16 %v1702, %v1700
  %v1727 = vpack.c.b16 %v1705, %v1703
  %v1728 = vpack.c.b16 %v1706, %v1704
  %v1729 = vpack.c.b16 %v1709, %v1707
  %v1730 = vpack.c.b16 %v1710, %v1708
  %v1731 = vpack.c.b16 %v1713, %v1711
  %v1732 = vpack.c.b16 %v1714, %v1712
  %v1733 = vpack.c.b16 %v1717, %v1715
  %v1734 = vpack.c.b16 %v1718, %v1716
  %v1744 = vsel %vm531, %v1720, 0
  %v1747 = vsel %vm531, %v1722, 0
  %v1750 = vsel %vm531, %v1724, 0
  %v1753 = vsel %vm531, %v1726, 0
  %v1756 = vsel %vm531, %v1728, 0
  %v1759 = vsel %vm531, %v1730, 0
  %v1762 = vsel %vm531, %v1732, 0
  %v1765 = vsel %vm531, %v1734, 0
  %1767 = vmatprep.subr.bf16.mxu0 %v406
  %1768 = vmatpush1.bf16.msra.mxu0 %v405
  %1769 = vmatprep.subr.bf16.mxu0 %v412
  %1770 = vmatpush1.bf16.msra.mxu0 %v411
  %1771 = vmatprep.subr.bf16.mxu0 %v418
  %1772 = vmatpush1.bf16.msra.mxu0 %v417
  %1773 = vmatprep.subr.bf16.mxu0 %v424
  %1774 = vmatpush1.bf16.msra.mxu0 %v423
  %1775 = vmatprep.subr.bf16.mxu0 %v430
  %1776 = vmatpush1.bf16.msra.mxu0 %v429
  %1777 = vmatprep.subr.bf16.mxu0 %v436
  %1778 = vmatpush1.bf16.msra.mxu0 %v435
  %1779 = vmatprep.subr.bf16.mxu0 %v442
  %1780 = vmatpush1.bf16.msra.mxu0 %v441
  %1781 = vmatprep.subr.bf16.mxu0 %v448
  %1782 = vmatpush1.bf16.msra.mxu0 %v447
  %1783 = vmatprep.subr.bf16.mxu0 %v454
  %1784 = vmatpush1.bf16.msra.mxu0 %v453
  %1785 = vmatprep.subr.bf16.mxu0 %v460
  %1786 = vmatpush1.bf16.msra.mxu0 %v459
  %1787 = vmatprep.subr.bf16.mxu0 %v561
  %1788 = vmatpush1.bf16.msra.mxu0 %v558
  %1789 = vmatprep.subr.bf16.mxu0 0
  %1790 = vmatpush1.bf16.msra.mxu0 0
  %1791 = vmatprep.subr.bf16.mxu0 0
  %1792 = vmatpush1.bf16.msra.mxu0 0
  %1793 = vmatprep.subr.bf16.mxu0 0
  %1794 = vmatpush1.bf16.msra.mxu0 0
  %1795 = vmatprep.subr.bf16.mxu0 0
  %1796 = vmatpush1.bf16.msra.mxu0 0
  %1797 = vmatprep.subr.bf16.mxu0 0
  %1798 = vmatpush1.bf16.msra.mxu0 0
  %1799 = vmatprep.mubr.bf16.mxu0 %v1744
  %1800 = vmatmul.mubr.bf16.gmra.mrb[0].mxu0 %v1719
  %v1801 = vpop.f32.mrb[0].mxu0
  %v1802 = vadd.f32 %v117, %v1801
  %v1803 = vpop.f32.mrb[0].mxu0
  %v1804 = vadd.f32 %v121, %v1803
  %v1805 = vpop.f32.mrb[0].mxu0
  %v1806 = vadd.f32 %v117, %v1805
  %v1807 = vpop.f32.mrb[0].mxu0
  %v1808 = vadd.f32 %v121, %v1807
  %1809 = vmatprep.mubr.bf16.mxu0 %v1747
  %1810 = vmatmul.mubr.bf16.gmra.mrb[0].mxu0 %v1721
  %v1811 = vpop.f32.mrb[0].mxu0
  %v1812 = vadd.f32 %v117, %v1811
  %v1813 = vpop.f32.mrb[0].mxu0
  %v1814 = vadd.f32 %v121, %v1813
  %v1815 = vpop.f32.mrb[0].mxu0
  %v1816 = vadd.f32 %v117, %v1815
  %v1817 = vpop.f32.mrb[0].mxu0
  %v1818 = vadd.f32 %v121, %v1817
  %1819 = vmatprep.mubr.bf16.mxu0 %v1750
  %1820 = vmatmul.mubr.bf16.gmra.mrb[0].mxu0 %v1723
  %v1821 = vpop.f32.mrb[0].mxu0
  %v1822 = vadd.f32 %v117, %v1821
  %v1823 = vpop.f32.mrb[0].mxu0
  %v1824 = vadd.f32 %v121, %v1823
  %v1825 = vpop.f32.mrb[0].mxu0
  %v1826 = vadd.f32 %v117, %v1825
  %v1827 = vpop.f32.mrb[0].mxu0
  %v1828 = vadd.f32 %v121, %v1827
  %1829 = vmatprep.mubr.bf16.mxu0 %v1753
  %1830 = vmatmul.mubr.bf16.gmra.mrb[0].mxu0 %v1725
  %v1831 = vpop.f32.mrb[0].mxu0
  %v1832 = vadd.f32 %v117, %v1831
  %v1833 = vpop.f32.mrb[0].mxu0
  %v1834 = vadd.f32 %v121, %v1833
  %v1835 = vpop.f32.mrb[0].mxu0
  %v1836 = vadd.f32 %v117, %v1835
  %v1837 = vpop.f32.mrb[0].mxu0
  %v1838 = vadd.f32 %v121, %v1837
  %1839 = vmatprep.mubr.bf16.mxu0 %v1756
  %1840 = vmatmul.mubr.bf16.gmra.mrb[0].mxu0 %v1727
  %v1841 = vpop.f32.mrb[0].mxu0
  %v1842 = vadd.f32 %v117, %v1841
  %v1843 = vpop.f32.mrb[0].mxu0
  %v1844 = vadd.f32 %v121, %v1843
  %v1845 = vpop.f32.mrb[0].mxu0
  %v1846 = vadd.f32 %v117, %v1845
  %v1847 = vpop.f32.mrb[0].mxu0
  %v1848 = vadd.f32 %v121, %v1847
  %1849 = vmatprep.mubr.bf16.mxu0 %v1759
  %1850 = vmatmul.mubr.bf16.gmra.mrb[0].mxu0 %v1729
  %v1851 = vpop.f32.mrb[0].mxu0
  %v1852 = vadd.f32 %v117, %v1851
  %v1853 = vpop.f32.mrb[0].mxu0
  %v1854 = vadd.f32 %v121, %v1853
  %v1855 = vpop.f32.mrb[0].mxu0
  %v1856 = vadd.f32 %v117, %v1855
  %v1857 = vpop.f32.mrb[0].mxu0
  %v1858 = vadd.f32 %v121, %v1857
  %1859 = vmatprep.mubr.bf16.mxu0 %v1762
  %1860 = vmatmul.mubr.bf16.gmra.mrb[0].mxu0 %v1731
  %v1861 = vpop.f32.mrb[0].mxu0
  %v1862 = vadd.f32 %v117, %v1861
  %v1863 = vpop.f32.mrb[0].mxu0
  %v1864 = vadd.f32 %v121, %v1863
  %v1865 = vpop.f32.mrb[0].mxu0
  %v1866 = vadd.f32 %v117, %v1865
  %v1867 = vpop.f32.mrb[0].mxu0
  %v1868 = vadd.f32 %v121, %v1867
  %1869 = vmatprep.mubr.bf16.mxu0 %v1765
  %1870 = vmatmul.mubr.bf16.gmra.mrb[0].mxu0 %v1733
  %v1871 = vpop.f32.mrb[0].mxu0
  %v1872 = vadd.f32 %v117, %v1871
  %v1873 = vpop.f32.mrb[0].mxu0
  %v1874 = vadd.f32 %v121, %v1873
  %v1875 = vpop.f32.mrb[0].mxu0
  %v1876 = vadd.f32 %v117, %v1875
  %v1877 = vpop.f32.mrb[0].mxu0
  %v1878 = vadd.f32 %v121, %v1877
  %1879 = vdwg.mxu0
  %1880 = vmatprep.subr.bf16.mxu0 %v408
  %1881 = vmatpush1.bf16.msra.mxu0 %v407
  %1882 = vmatprep.subr.bf16.mxu0 %v414
  %1883 = vmatpush1.bf16.msra.mxu0 %v413
  %1884 = vmatprep.subr.bf16.mxu0 %v420
  %1885 = vmatpush1.bf16.msra.mxu0 %v419
  %1886 = vmatprep.subr.bf16.mxu0 %v426
  %1887 = vmatpush1.bf16.msra.mxu0 %v425
  %1888 = vmatprep.subr.bf16.mxu0 %v432
  %1889 = vmatpush1.bf16.msra.mxu0 %v431
  %1890 = vmatprep.subr.bf16.mxu0 %v438
  %1891 = vmatpush1.bf16.msra.mxu0 %v437
  %1892 = vmatprep.subr.bf16.mxu0 %v444
  %1893 = vmatpush1.bf16.msra.mxu0 %v443
  %1894 = vmatprep.subr.bf16.mxu0 %v450
  %1895 = vmatpush1.bf16.msra.mxu0 %v449
  %1896 = vmatprep.subr.bf16.mxu0 %v456
  %1897 = vmatpush1.bf16.msra.mxu0 %v455
  %1898 = vmatprep.subr.bf16.mxu0 %v462
  %1899 = vmatpush1.bf16.msra.mxu0 %v461
  %1900 = vmatprep.subr.bf16.mxu0 %v567
  %1901 = vmatpush1.bf16.msra.mxu0 %v564
  %1902 = vmatprep.subr.bf16.mxu0 0
  %1903 = vmatpush1.bf16.msra.mxu0 0
  %1904 = vmatprep.subr.bf16.mxu0 0
  %1905 = vmatpush1.bf16.msra.mxu0 0
  %1906 = vmatprep.subr.bf16.mxu0 0
  %1907 = vmatpush1.bf16.msra.mxu0 0
  %1908 = vmatprep.subr.bf16.mxu0 0
  %1909 = vmatpush1.bf16.msra.mxu0 0
  %1910 = vmatprep.subr.bf16.mxu0 0
  %1911 = vmatpush1.bf16.msra.mxu0 0
  %1912 = vmatprep.mubr.bf16.mxu0 %v1744
  %1913 = vmatmul.mubr.bf16.gmra.mrb[0].mxu0 %v1719
  %v1914 = vpop.f32.mrb[0].mxu0
  %v1915 = vadd.f32 %v125, %v1914
  %v1916 = vpop.f32.mrb[0].mxu0
  %v1917 = vadd.f32 %v129, %v1916
  %v1918 = vpop.f32.mrb[0].mxu0
  %v1919 = vadd.f32 %v125, %v1918
  %v1920 = vpop.f32.mrb[0].mxu0
  %v1921 = vadd.f32 %v129, %v1920
  %1922 = vmatprep.mubr.bf16.mxu0 %v1747
  %1923 = vmatmul.mubr.bf16.gmra.mrb[0].mxu0 %v1721
  %v1924 = vpop.f32.mrb[0].mxu0
  %v1925 = vadd.f32 %v125, %v1924
  %v1926 = vpop.f32.mrb[0].mxu0
  %v1927 = vadd.f32 %v129, %v1926
  %v1928 = vpop.f32.mrb[0].mxu0
  %v1929 = vadd.f32 %v125, %v1928
  %v1930 = vpop.f32.mrb[0].mxu0
  %v1931 = vadd.f32 %v129, %v1930
  %1932 = vmatprep.mubr.bf16.mxu0 %v1750
  %1933 = vmatmul.mubr.bf16.gmra.mrb[0].mxu0 %v1723
  %v1934 = vpop.f32.mrb[0].mxu0
  %v1935 = vadd.f32 %v125, %v1934
  %v1936 = vpop.f32.mrb[0].mxu0
  %v1937 = vadd.f32 %v129, %v1936
  %v1938 = vpop.f32.mrb[0].mxu0
  %v1939 = vadd.f32 %v125, %v1938
  %v1940 = vpop.f32.mrb[0].mxu0
  %v1941 = vadd.f32 %v129, %v1940
  %1942 = vmatprep.mubr.bf16.mxu0 %v1753
  %1943 = vmatmul.mubr.bf16.gmra.mrb[0].mxu0 %v1725
  %v1944 = vpop.f32.mrb[0].mxu0
  %v1945 = vadd.f32 %v125, %v1944
  %v1946 = vpop.f32.mrb[0].mxu0
  %v1947 = vadd.f32 %v129, %v1946
  %v1948 = vpop.f32.mrb[0].mxu0
  %v1949 = vadd.f32 %v125, %v1948
  %v1950 = vpop.f32.mrb[0].mxu0
  %v1951 = vadd.f32 %v129, %v1950
  %1952 = vmatprep.mubr.bf16.mxu0 %v1756
  %1953 = vmatmul.mubr.bf16.gmra.mrb[0].mxu0 %v1727
  %v1954 = vpop.f32.mrb[0].mxu0
  %v1955 = vadd.f32 %v125, %v1954
  %v1956 = vpop.f32.mrb[0].mxu0
  %v1957 = vadd.f32 %v129, %v1956
  %v1958 = vpop.f32.mrb[0].mxu0
  %v1959 = vadd.f32 %v125, %v1958
  %v1960 = vpop.f32.mrb[0].mxu0
  %v1961 = vadd.f32 %v129, %v1960
  %1962 = vmatprep.mubr.bf16.mxu0 %v1759
  %1963 = vmatmul.mubr.bf16.gmra.mrb[0].mxu0 %v1729
  %v1964 = vpop.f32.mrb[0].mxu0
  %v1965 = vadd.f32 %v125, %v1964
  %v1966 = vpop.f32.mrb[0].mxu0
  %v1967 = vadd.f32 %v129, %v1966
  %v1968 = vpop.f32.mrb[0].mxu0
  %v1969 = vadd.f32 %v125, %v1968
  %v1970 = vpop.f32.mrb[0].mxu0
  %v1971 = vadd.f32 %v129, %v1970
  %1972 = vmatprep.mubr.bf16.mxu0 %v1762
  %1973 = vmatmul.mubr.bf16.gmra.mrb[0].mxu0 %v1731
  %v1974 = vpop.f32.mrb[0].mxu0
  %v1975 = vadd.f32 %v125, %v1974
  %v1976 = vpop.f32.mrb[0].mxu0
  %v1977 = vadd.f32 %v129, %v1976
  %v1978 = vpop.f32.mrb[0].mxu0
  %v1979 = vadd.f32 %v125, %v1978
  %v1980 = vpop.f32.mrb[0].mxu0
  %v1981 = vadd.f32 %v129, %v1980
  %1982 = vmatprep.mubr.bf16.mxu0 %v1765
  %1983 = vmatmul.mubr.bf16.gmra.mrb[0].mxu0 %v1733
  %v1984 = vpop.f32.mrb[0].mxu0
  %v1985 = vadd.f32 %v125, %v1984
  %v1986 = vpop.f32.mrb[0].mxu0
  %v1987 = vadd.f32 %v129, %v1986
  %v1988 = vpop.f32.mrb[0].mxu0
  %v1989 = vadd.f32 %v125, %v1988
  %v1990 = vpop.f32.mrb[0].mxu0
  %v1991 = vadd.f32 %v129, %v1990
  %1992 = vdwg.mxu0
  %1993 = vmatprep.subr.bf16.mxu0 %v410
  %1994 = vmatpush1.bf16.msra.mxu0 %v409
  %1995 = vmatprep.subr.bf16.mxu0 %v416
  %1996 = vmatpush1.bf16.msra.mxu0 %v415
  %1997 = vmatprep.subr.bf16.mxu0 %v422
  %1998 = vmatpush1.bf16.msra.mxu0 %v421
  %1999 = vmatprep.subr.bf16.mxu0 %v428
  %2000 = vmatpush1.bf16.msra.mxu0 %v427
  %2001 = vmatprep.subr.bf16.mxu0 %v434
  %2002 = vmatpush1.bf16.msra.mxu0 %v433
  %2003 = vmatprep.subr.bf16.mxu0 %v440
  %2004 = vmatpush1.bf16.msra.mxu0 %v439
  %2005 = vmatprep.subr.bf16.mxu0 %v446
  %2006 = vmatpush1.bf16.msra.mxu0 %v445
  %2007 = vmatprep.subr.bf16.mxu0 %v452
  %2008 = vmatpush1.bf16.msra.mxu0 %v451
  %2009 = vmatprep.subr.bf16.mxu0 %v458
  %2010 = vmatpush1.bf16.msra.mxu0 %v457
  %2011 = vmatprep.subr.bf16.mxu0 %v464
  %2012 = vmatpush1.bf16.msra.mxu0 %v463
  %2013 = vmatprep.subr.bf16.mxu0 %v573
  %2014 = vmatpush1.bf16.msra.mxu0 %v570
  %2015 = vmatprep.subr.bf16.mxu0 0
  %2016 = vmatpush1.bf16.msra.mxu0 0
  %2017 = vmatprep.subr.bf16.mxu0 0
  %2018 = vmatpush1.bf16.msra.mxu0 0
  %2019 = vmatprep.subr.bf16.mxu0 0
  %2020 = vmatpush1.bf16.msra.mxu0 0
  %2021 = vmatprep.subr.bf16.mxu0 0
  %2022 = vmatpush1.bf16.msra.mxu0 0
  %2023 = vmatprep.subr.bf16.mxu0 0
  %2024 = vmatpush1.bf16.msra.mxu0 0
  %2025 = vmatprep.mubr.bf16.mxu0 %v1744
  %2026 = vmatmul.mubr.bf16.gmra.mrb[0].mxu0 %v1719
  %v2027 = vpop.f32.mrb[0].mxu0
  %v2028 = vadd.f32 %v133, %v2027
  %v2029 = vpop.f32.mrb[0].mxu0
  %v2030 = vadd.f32 %v137, %v2029
  %v2031 = vpop.f32.mrb[0].mxu0
  %v2032 = vadd.f32 %v133, %v2031
  %v2033 = vpop.f32.mrb[0].mxu0
  %v2034 = vadd.f32 %v137, %v2033
  %2035 = vmatprep.mubr.bf16.mxu0 %v1747
  %2036 = vmatmul.mubr.bf16.gmra.mrb[0].mxu0 %v1721
  %v2037 = vpop.f32.mrb[0].mxu0
  %v2038 = vadd.f32 %v133, %v2037
  %v2039 = vpop.f32.mrb[0].mxu0
  %v2040 = vadd.f32 %v137, %v2039
  %v2041 = vpop.f32.mrb[0].mxu0
  %v2042 = vadd.f32 %v133, %v2041
  %v2043 = vpop.f32.mrb[0].mxu0
  %v2044 = vadd.f32 %v137, %v2043
  %2045 = vmatprep.mubr.bf16.mxu0 %v1750
  %2046 = vmatmul.mubr.bf16.gmra.mrb[0].mxu0 %v1723
  %v2047 = vpop.f32.mrb[0].mxu0
  %v2048 = vadd.f32 %v133, %v2047
  %v2049 = vpop.f32.mrb[0].mxu0
  %v2050 = vadd.f32 %v137, %v2049
  %v2051 = vpop.f32.mrb[0].mxu0
  %v2052 = vadd.f32 %v133, %v2051
  %v2053 = vpop.f32.mrb[0].mxu0
  %v2054 = vadd.f32 %v137, %v2053
  %2055 = vmatprep.mubr.bf16.mxu0 %v1753
  %2056 = vmatmul.mubr.bf16.gmra.mrb[0].mxu0 %v1725
  %v2057 = vpop.f32.mrb[0].mxu0
  %v2058 = vadd.f32 %v133, %v2057
  %v2059 = vpop.f32.mrb[0].mxu0
  %v2060 = vadd.f32 %v137, %v2059
  %v2061 = vpop.f32.mrb[0].mxu0
  %v2062 = vadd.f32 %v133, %v2061
  %v2063 = vpop.f32.mrb[0].mxu0
  %v2064 = vadd.f32 %v137, %v2063
  %2065 = vmatprep.mubr.bf16.mxu0 %v1756
  %2066 = vmatmul.mubr.bf16.gmra.mrb[0].mxu0 %v1727
  %v2067 = vpop.f32.mrb[0].mxu0
  %v2068 = vadd.f32 %v133, %v2067
  %v2069 = vpop.f32.mrb[0].mxu0
  %v2070 = vadd.f32 %v137, %v2069
  %v2071 = vpop.f32.mrb[0].mxu0
  %v2072 = vadd.f32 %v133, %v2071
  %v2073 = vpop.f32.mrb[0].mxu0
  %v2074 = vadd.f32 %v137, %v2073
  %2075 = vmatprep.mubr.bf16.mxu0 %v1759
  %2076 = vmatmul.mubr.bf16.gmra.mrb[0].mxu0 %v1729
  %v2077 = vpop.f32.mrb[0].mxu0
  %v2078 = vadd.f32 %v133, %v2077
  %v2079 = vpop.f32.mrb[0].mxu0
  %v2080 = vadd.f32 %v137, %v2079
  %v2081 = vpop.f32.mrb[0].mxu0
  %v2082 = vadd.f32 %v133, %v2081
  %v2083 = vpop.f32.mrb[0].mxu0
  %v2084 = vadd.f32 %v137, %v2083
  %2085 = vmatprep.mubr.bf16.mxu0 %v1762
  %2086 = vmatmul.mubr.bf16.gmra.mrb[0].mxu0 %v1731
  %v2087 = vpop.f32.mrb[0].mxu0
  %v2088 = vadd.f32 %v133, %v2087
  %v2089 = vpop.f32.mrb[0].mxu0
  %v2090 = vadd.f32 %v137, %v2089
  %v2091 = vpop.f32.mrb[0].mxu0
  %v2092 = vadd.f32 %v133, %v2091
  %v2093 = vpop.f32.mrb[0].mxu0
  %v2094 = vadd.f32 %v137, %v2093
  %2095 = vmatprep.mubr.bf16.mxu0 %v1765
  %2096 = vmatmul.mubr.bf16.gmra.mrb[0].mxu0 %v1733
  %v2097 = vpop.f32.mrb[0].mxu0
  %v2098 = vadd.f32 %v133, %v2097
  %v2099 = vpop.f32.mrb[0].mxu0
  %v2100 = vadd.f32 %v137, %v2099
  %v2101 = vpop.f32.mrb[0].mxu0
  %v2102 = vadd.f32 %v133, %v2101
  %v2103 = vpop.f32.mrb[0].mxu0
  %v2104 = vadd.f32 %v137, %v2103
  %2105 = vdwg.mxu0
  %v2106 = vmax.f32 %v1802, 0.0
  %v2107 = vmax.f32 %v1804, 0.0
  %v2108 = vmax.f32 %v1915, 0.0
  %v2109 = vmax.f32 %v1917, 0.0
  %v2110 = vmax.f32 %v2028, 0.0
  %v2111 = vmax.f32 %v2030, 0.0
  %v2112 = vmax.f32 %v1806, 0.0
  %v2113 = vmax.f32 %v1808, 0.0
  %v2114 = vmax.f32 %v1919, 0.0
  %v2115 = vmax.f32 %v1921, 0.0
  %v2116 = vmax.f32 %v2032, 0.0
  %v2117 = vmax.f32 %v2034, 0.0
  %v2118 = vmax.f32 %v1812, 0.0
  %v2119 = vmax.f32 %v1814, 0.0
  %v2120 = vmax.f32 %v1925, 0.0
  %v2121 = vmax.f32 %v1927, 0.0
  %v2122 = vmax.f32 %v2038, 0.0
  %v2123 = vmax.f32 %v2040, 0.0
  %v2124 = vmax.f32 %v1816, 0.0
  %v2125 = vmax.f32 %v1818, 0.0
  %v2126 = vmax.f32 %v1929, 0.0
  %v2127 = vmax.f32 %v1931, 0.0
  %v2128 = vmax.f32 %v2042, 0.0
  %v2129 = vmax.f32 %v2044, 0.0
  %v2130 = vmax.f32 %v1822, 0.0
  %v2131 = vmax.f32 %v1824, 0.0
  %v2132 = vmax.f32 %v1935, 0.0
  %v2133 = vmax.f32 %v1937, 0.0
  %v2134 = vmax.f32 %v2048, 0.0
  %v2135 = vmax.f32 %v2050, 0.0
  %v2136 = vmax.f32 %v1826, 0.0
  %v2137 = vmax.f32 %v1828, 0.0
  %v2138 = vmax.f32 %v1939, 0.0
  %v2139 = vmax.f32 %v1941, 0.0
  %v2140 = vmax.f32 %v2052, 0.0
  %v2141 = vmax.f32 %v2054, 0.0
  %v2142 = vmax.f32 %v1832, 0.0
  %v2143 = vmax.f32 %v1834, 0.0
  %v2144 = vmax.f32 %v1945, 0.0
  %v2145 = vmax.f32 %v1947, 0.0
  %v2146 = vmax.f32 %v2058, 0.0
  %v2147 = vmax.f32 %v2060, 0.0
  %v2148 = vmax.f32 %v1836, 0.0
  %v2149 = vmax.f32 %v1838, 0.0
  %v2150 = vmax.f32 %v1949, 0.0
  %v2151 = vmax.f32 %v1951, 0.0
  %v2152 = vmax.f32 %v2062, 0.0
  %v2153 = vmax.f32 %v2064, 0.0
  %v2154 = vmax.f32 %v1842, 0.0
  %v2155 = vmax.f32 %v1844, 0.0
  %v2156 = vmax.f32 %v1955, 0.0
  %v2157 = vmax.f32 %v1957, 0.0
  %v2158 = vmax.f32 %v2068, 0.0
  %v2159 = vmax.f32 %v2070, 0.0
  %v2160 = vmax.f32 %v1846, 0.0
  %v2161 = vmax.f32 %v1848, 0.0
  %v2162 = vmax.f32 %v1959, 0.0
  %v2163 = vmax.f32 %v1961, 0.0
  %v2164 = vmax.f32 %v2072, 0.0
  %v2165 = vmax.f32 %v2074, 0.0
  %v2166 = vmax.f32 %v1852, 0.0
  %v2167 = vmax.f32 %v1854, 0.0
  %v2168 = vmax.f32 %v1965, 0.0
  %v2169 = vmax.f32 %v1967, 0.0
  %v2170 = vmax.f32 %v2078, 0.0
  %v2171 = vmax.f32 %v2080, 0.0
  %v2172 = vmax.f32 %v1856, 0.0
  %v2173 = vmax.f32 %v1858, 0.0
  %v2174 = vmax.f32 %v1969, 0.0
  %v2175 = vmax.f32 %v1971, 0.0
  %v2176 = vmax.f32 %v2082, 0.0
  %v2177 = vmax.f32 %v2084, 0.0
  %v2178 = vmax.f32 %v1862, 0.0
  %v2179 = vmax.f32 %v1864, 0.0
  %v2180 = vmax.f32 %v1975, 0.0
  %v2181 = vmax.f32 %v1977, 0.0
  %v2182 = vmax.f32 %v2088, 0.0
  %v2183 = vmax.f32 %v2090, 0.0
  %v2184 = vmax.f32 %v1866, 0.0
  %v2185 = vmax.f32 %v1868, 0.0
  %v2186 = vmax.f32 %v1979, 0.0
  %v2187 = vmax.f32 %v1981, 0.0
  %v2188 = vmax.f32 %v2092, 0.0
  %v2189 = vmax.f32 %v2094, 0.0
  %v2190 = vmax.f32 %v1872, 0.0
  %v2191 = vmax.f32 %v1874, 0.0
  %v2192 = vmax.f32 %v1985, 0.0
  %v2193 = vmax.f32 %v1987, 0.0
  %v2194 = vmax.f32 %v2098, 0.0
  %v2195 = vmax.f32 %v2100, 0.0
  %v2196 = vmax.f32 %v1876, 0.0
  %v2197 = vmax.f32 %v1878, 0.0
  %v2198 = vmax.f32 %v1989, 0.0
  %v2199 = vmax.f32 %v1991, 0.0
  %v2200 = vmax.f32 %v2102, 0.0
  %v2201 = vmax.f32 %v2104, 0.0
  %v2202 = vmax.f32 %v1558, %v2106
  %v2203 = vmax.f32 %v1559, %v2107
  %v2204 = vmax.f32 %v1560, %v2108
  %v2205 = vmax.f32 %v1561, %v2109
  %v2206 = vmax.f32 %v1562, %v2110
  %v2207 = vmax.f32 %v1563, %v2111
  %v2208 = vmax.f32 %v1564, %v2112
  %v2209 = vmax.f32 %v1565, %v2113
  %v2210 = vmax.f32 %v1566, %v2114
  %v2211 = vmax.f32 %v1567, %v2115
  %v2212 = vmax.f32 %v1568, %v2116
  %v2213 = vmax.f32 %v1569, %v2117
  %v2214 = vmax.f32 %v1570, %v2118
  %v2215 = vmax.f32 %v1571, %v2119
  %v2216 = vmax.f32 %v1572, %v2120
  %v2217 = vmax.f32 %v1573, %v2121
  %v2218 = vmax.f32 %v1574, %v2122
  %v2219 = vmax.f32 %v1575, %v2123
  %v2220 = vmax.f32 %v1576, %v2124
  %v2221 = vmax.f32 %v1577, %v2125
  %v2222 = vmax.f32 %v1578, %v2126
  %v2223 = vmax.f32 %v1579, %v2127
  %v2224 = vmax.f32 %v1580, %v2128
  %v2225 = vmax.f32 %v1581, %v2129
  %v2226 = vmax.f32 %v1582, %v2130
  %v2227 = vmax.f32 %v1583, %v2131
  %v2228 = vmax.f32 %v1584, %v2132
  %v2229 = vmax.f32 %v1585, %v2133
  %v2230 = vmax.f32 %v1586, %v2134
  %v2231 = vmax.f32 %v1587, %v2135
  %v2232 = vmax.f32 %v1588, %v2136
  %v2233 = vmax.f32 %v1589, %v2137
  %v2234 = vmax.f32 %v1590, %v2138
  %v2235 = vmax.f32 %v1591, %v2139
  %v2236 = vmax.f32 %v1592, %v2140
  %v2237 = vmax.f32 %v1593, %v2141
  %v2238 = vmax.f32 %v1594, %v2142
  %v2239 = vmax.f32 %v1595, %v2143
  %v2240 = vmax.f32 %v1596, %v2144
  %v2241 = vmax.f32 %v1597, %v2145
  %v2242 = vmax.f32 %v1598, %v2146
  %v2243 = vmax.f32 %v1599, %v2147
  %v2244 = vmax.f32 %v1600, %v2148
  %v2245 = vmax.f32 %v1601, %v2149
  %v2246 = vmax.f32 %v1602, %v2150
  %v2247 = vmax.f32 %v1603, %v2151
  %v2248 = vmax.f32 %v1604, %v2152
  %v2249 = vmax.f32 %v1605, %v2153
  %v2250 = vmax.f32 %v1606, %v2154
  %v2251 = vmax.f32 %v1607, %v2155
  %v2252 = vmax.f32 %v1608, %v2156
  %v2253 = vmax.f32 %v1609, %v2157
  %v2254 = vmax.f32 %v1610, %v2158
  %v2255 = vmax.f32 %v1611, %v2159
  %v2256 = vmax.f32 %v1612, %v2160
  %v2257 = vmax.f32 %v1613, %v2161
  %v2258 = vmax.f32 %v1614, %v2162
  %v2259 = vmax.f32 %v1615, %v2163
  %v2260 = vmax.f32 %v1616, %v2164
  %v2261 = vmax.f32 %v1617, %v2165
  %v2262 = vmax.f32 %v1618, %v2166
  %v2263 = vmax.f32 %v1619, %v2167
  %v2264 = vmax.f32 %v1620, %v2168
  %v2265 = vmax.f32 %v1621, %v2169
  %v2266 = vmax.f32 %v1622, %v2170
  %v2267 = vmax.f32 %v1623, %v2171
  %v2268 = vmax.f32 %v1624, %v2172
  %v2269 = vmax.f32 %v1625, %v2173
  %v2270 = vmax.f32 %v1626, %v2174
  %v2271 = vmax.f32 %v1627, %v2175
  %v2272 = vmax.f32 %v1628, %v2176
  %v2273 = vmax.f32 %v1629, %v2177
  %v2274 = vmax.f32 %v1630, %v2178
  %v2275 = vmax.f32 %v1631, %v2179
  %v2276 = vmax.f32 %v1632, %v2180
  %v2277 = vmax.f32 %v1633, %v2181
  %v2278 = vmax.f32 %v1634, %v2182
  %v2279 = vmax.f32 %v1635, %v2183
  %v2280 = vmax.f32 %v1636, %v2184
  %v2281 = vmax.f32 %v1637, %v2185
  %v2282 = vmax.f32 %v1638, %v2186
  %v2283 = vmax.f32 %v1639, %v2187
  %v2284 = vmax.f32 %v1640, %v2188
  %v2285 = vmax.f32 %v1641, %v2189
  %v2286 = vmax.f32 %v1642, %v2190
  %v2287 = vmax.f32 %v1643, %v2191
  %v2288 = vmax.f32 %v1644, %v2192
  %v2289 = vmax.f32 %v1645, %v2193
  %v2290 = vmax.f32 %v1646, %v2194
  %v2291 = vmax.f32 %v1647, %v2195
  %v2292 = vmax.f32 %v1648, %v2196
  %v2293 = vmax.f32 %v1649, %v2197
  %v2294 = vmax.f32 %v1650, %v2198
  %v2295 = vmax.f32 %v1651, %v2199
  %v2296 = vmax.f32 %v1652, %v2200
  %v2297 = vmax.f32 %v1653, %v2201
  %2394 = vrot.lane.b32.xlu0 %v2202, 64
  %v2395 = vpop.permute.xlu0 %2394
  %2396 = vrot.lane.b32.xlu0 %v2203, 64
  %v2397 = vpop.permute.xlu0 %2396
  %2398 = vrot.lane.b32.xlu0 %v2204, 64
  %v2399 = vpop.permute.xlu0 %2398
  %2400 = vrot.lane.b32.xlu0 %v2205, 64
  %v2401 = vpop.permute.xlu0 %2400
  %2402 = vrot.lane.b32.xlu0 %v2206, 64
  %v2403 = vpop.permute.xlu0 %2402
  %2404 = vrot.lane.b32.xlu0 %v2207, 64
  %v2405 = vpop.permute.xlu0 %2404
  %2406 = vrot.lane.b32.xlu0 %v2208, 64
  %v2407 = vpop.permute.xlu0 %2406
  %2408 = vrot.lane.b32.xlu0 %v2209, 64
  %v2409 = vpop.permute.xlu0 %2408
  %2410 = vrot.lane.b32.xlu0 %v2210, 64
  %v2411 = vpop.permute.xlu0 %2410
  %2412 = vrot.lane.b32.xlu0 %v2211, 64
  %v2413 = vpop.permute.xlu0 %2412
  %2414 = vrot.lane.b32.xlu0 %v2212, 64
  %v2415 = vpop.permute.xlu0 %2414
  %2416 = vrot.lane.b32.xlu0 %v2213, 64
  %v2417 = vpop.permute.xlu0 %2416
  %2418 = vrot.lane.b32.xlu0 %v2214, 64
  %v2419 = vpop.permute.xlu0 %2418
  %2420 = vrot.lane.b32.xlu0 %v2215, 64
  %v2421 = vpop.permute.xlu0 %2420
  %2422 = vrot.lane.b32.xlu0 %v2216, 64
  %v2423 = vpop.permute.xlu0 %2422
  %2424 = vrot.lane.b32.xlu0 %v2217, 64
  %v2425 = vpop.permute.xlu0 %2424
  %2426 = vrot.lane.b32.xlu0 %v2218, 64
  %v2427 = vpop.permute.xlu0 %2426
  %2428 = vrot.lane.b32.xlu0 %v2219, 64
  %v2429 = vpop.permute.xlu0 %2428
  %2430 = vrot.lane.b32.xlu0 %v2220, 64
  %v2431 = vpop.permute.xlu0 %2430
  %2432 = vrot.lane.b32.xlu0 %v2221, 64
  %v2433 = vpop.permute.xlu0 %2432
  %2434 = vrot.lane.b32.xlu0 %v2222, 64
  %v2435 = vpop.permute.xlu0 %2434
  %2436 = vrot.lane.b32.xlu0 %v2223, 64
  %v2437 = vpop.permute.xlu0 %2436
  %2438 = vrot.lane.b32.xlu0 %v2224, 64
  %v2439 = vpop.permute.xlu0 %2438
  %2440 = vrot.lane.b32.xlu0 %v2225, 64
  %v2441 = vpop.permute.xlu0 %2440
  %2442 = vrot.lane.b32.xlu0 %v2226, 64
  %v2443 = vpop.permute.xlu0 %2442
  %2444 = vrot.lane.b32.xlu0 %v2227, 64
  %v2445 = vpop.permute.xlu0 %2444
  %2446 = vrot.lane.b32.xlu0 %v2228, 64
  %v2447 = vpop.permute.xlu0 %2446
  %2448 = vrot.lane.b32.xlu0 %v2229, 64
  %v2449 = vpop.permute.xlu0 %2448
  %2450 = vrot.lane.b32.xlu0 %v2230, 64
  %v2451 = vpop.permute.xlu0 %2450
  %2452 = vrot.lane.b32.xlu0 %v2231, 64
  %v2453 = vpop.permute.xlu0 %2452
  %2454 = vrot.lane.b32.xlu0 %v2232, 64
  %v2455 = vpop.permute.xlu0 %2454
  %2456 = vrot.lane.b32.xlu0 %v2233, 64
  %v2457 = vpop.permute.xlu0 %2456
  %2458 = vrot.lane.b32.xlu0 %v2234, 64
  %v2459 = vpop.permute.xlu0 %2458
  %2460 = vrot.lane.b32.xlu0 %v2235, 64
  %v2461 = vpop.permute.xlu0 %2460
  %2462 = vrot.lane.b32.xlu0 %v2236, 64
  %v2463 = vpop.permute.xlu0 %2462
  %2464 = vrot.lane.b32.xlu0 %v2237, 64
  %v2465 = vpop.permute.xlu0 %2464
  %2466 = vrot.lane.b32.xlu0 %v2238, 64
  %v2467 = vpop.permute.xlu0 %2466
  %2468 = vrot.lane.b32.xlu0 %v2239, 64
  %v2469 = vpop.permute.xlu0 %2468
  %2470 = vrot.lane.b32.xlu0 %v2240, 64
  %v2471 = vpop.permute.xlu0 %2470
  %2472 = vrot.lane.b32.xlu0 %v2241, 64
  %v2473 = vpop.permute.xlu0 %2472
  %2474 = vrot.lane.b32.xlu0 %v2242, 64
  %v2475 = vpop.permute.xlu0 %2474
  %2476 = vrot.lane.b32.xlu0 %v2243, 64
  %v2477 = vpop.permute.xlu0 %2476
  %2478 = vrot.lane.b32.xlu0 %v2244, 64
  %v2479 = vpop.permute.xlu0 %2478
  %2480 = vrot.lane.b32.xlu0 %v2245, 64
  %v2481 = vpop.permute.xlu0 %2480
  %2482 = vrot.lane.b32.xlu0 %v2246, 64
  %v2483 = vpop.permute.xlu0 %2482
  %2484 = vrot.lane.b32.xlu0 %v2247, 64
  %v2485 = vpop.permute.xlu0 %2484
  %2486 = vrot.lane.b32.xlu0 %v2248, 64
  %v2487 = vpop.permute.xlu0 %2486
  %2488 = vrot.lane.b32.xlu0 %v2249, 64
  %v2489 = vpop.permute.xlu0 %2488
  %2490 = vrot.lane.b32.xlu0 %v2250, 64
  %v2491 = vpop.permute.xlu0 %2490
  %2492 = vrot.lane.b32.xlu0 %v2251, 64
  %v2493 = vpop.permute.xlu0 %2492
  %2494 = vrot.lane.b32.xlu0 %v2252, 64
  %v2495 = vpop.permute.xlu0 %2494
  %2496 = vrot.lane.b32.xlu0 %v2253, 64
  %v2497 = vpop.permute.xlu0 %2496
  %2498 = vrot.lane.b32.xlu0 %v2254, 64
  %v2499 = vpop.permute.xlu0 %2498
  %2500 = vrot.lane.b32.xlu0 %v2255, 64
  %v2501 = vpop.permute.xlu0 %2500
  %2502 = vrot.lane.b32.xlu0 %v2256, 64
  %v2503 = vpop.permute.xlu0 %2502
  %2504 = vrot.lane.b32.xlu0 %v2257, 64
  %v2505 = vpop.permute.xlu0 %2504
  %2506 = vrot.lane.b32.xlu0 %v2258, 64
  %v2507 = vpop.permute.xlu0 %2506
  %2508 = vrot.lane.b32.xlu0 %v2259, 64
  %v2509 = vpop.permute.xlu0 %2508
  %2510 = vrot.lane.b32.xlu0 %v2260, 64
  %v2511 = vpop.permute.xlu0 %2510
  %2512 = vrot.lane.b32.xlu0 %v2261, 64
  %v2513 = vpop.permute.xlu0 %2512
  %2514 = vrot.lane.b32.xlu0 %v2262, 64
  %v2515 = vpop.permute.xlu0 %2514
  %2516 = vrot.lane.b32.xlu0 %v2263, 64
  %v2517 = vpop.permute.xlu0 %2516
  %2518 = vrot.lane.b32.xlu0 %v2264, 64
  %v2519 = vpop.permute.xlu0 %2518
  %2520 = vrot.lane.b32.xlu0 %v2265, 64
  %v2521 = vpop.permute.xlu0 %2520
  %2522 = vrot.lane.b32.xlu0 %v2266, 64
  %v2523 = vpop.permute.xlu0 %2522
  %2524 = vrot.lane.b32.xlu0 %v2267, 64
  %v2525 = vpop.permute.xlu0 %2524
  %2526 = vrot.lane.b32.xlu0 %v2268, 64
  %v2527 = vpop.permute.xlu0 %2526
  %2528 = vrot.lane.b32.xlu0 %v2269, 64
  %v2529 = vpop.permute.xlu0 %2528
  %2530 = vrot.lane.b32.xlu0 %v2270, 64
  %v2531 = vpop.permute.xlu0 %2530
  %2532 = vrot.lane.b32.xlu0 %v2271, 64
  %v2533 = vpop.permute.xlu0 %2532
  %2534 = vrot.lane.b32.xlu0 %v2272, 64
  %v2535 = vpop.permute.xlu0 %2534
  %2536 = vrot.lane.b32.xlu0 %v2273, 64
  %v2537 = vpop.permute.xlu0 %2536
  %2538 = vrot.lane.b32.xlu0 %v2274, 64
  %v2539 = vpop.permute.xlu0 %2538
  %2540 = vrot.lane.b32.xlu0 %v2275, 64
  %v2541 = vpop.permute.xlu0 %2540
  %2542 = vrot.lane.b32.xlu0 %v2276, 64
  %v2543 = vpop.permute.xlu0 %2542
  %2544 = vrot.lane.b32.xlu0 %v2277, 64
  %v2545 = vpop.permute.xlu0 %2544
  %2546 = vrot.lane.b32.xlu0 %v2278, 64
  %v2547 = vpop.permute.xlu0 %2546
  %2548 = vrot.lane.b32.xlu0 %v2279, 64
  %v2549 = vpop.permute.xlu0 %2548
  %2550 = vrot.lane.b32.xlu0 %v2280, 64
  %v2551 = vpop.permute.xlu0 %2550
  %2552 = vrot.lane.b32.xlu0 %v2281, 64
  %v2553 = vpop.permute.xlu0 %2552
  %2554 = vrot.lane.b32.xlu0 %v2282, 64
  %v2555 = vpop.permute.xlu0 %2554
  %2556 = vrot.lane.b32.xlu0 %v2283, 64
  %v2557 = vpop.permute.xlu0 %2556
  %2558 = vrot.lane.b32.xlu0 %v2284, 64
  %v2559 = vpop.permute.xlu0 %2558
  %2560 = vrot.lane.b32.xlu0 %v2285, 64
  %v2561 = vpop.permute.xlu0 %2560
  %2562 = vrot.lane.b32.xlu0 %v2286, 64
  %v2563 = vpop.permute.xlu0 %2562
  %2564 = vrot.lane.b32.xlu0 %v2287, 64
  %v2565 = vpop.permute.xlu0 %2564
  %2566 = vrot.lane.b32.xlu0 %v2288, 64
  %v2567 = vpop.permute.xlu0 %2566
  %2568 = vrot.lane.b32.xlu0 %v2289, 64
  %v2569 = vpop.permute.xlu0 %2568
  %2570 = vrot.lane.b32.xlu0 %v2290, 64
  %v2571 = vpop.permute.xlu0 %2570
  %2572 = vrot.lane.b32.xlu0 %v2291, 64
  %v2573 = vpop.permute.xlu0 %2572
  %2574 = vrot.lane.b32.xlu0 %v2292, 64
  %v2575 = vpop.permute.xlu0 %2574
  %2576 = vrot.lane.b32.xlu0 %v2293, 64
  %v2577 = vpop.permute.xlu0 %2576
  %2578 = vrot.lane.b32.xlu0 %v2294, 64
  %v2579 = vpop.permute.xlu0 %2578
  %2580 = vrot.lane.b32.xlu0 %v2295, 64
  %v2581 = vpop.permute.xlu0 %2580
  %2582 = vrot.lane.b32.xlu0 %v2296, 64
  %v2583 = vpop.permute.xlu0 %2582
  %2584 = vrot.lane.b32.xlu0 %v2297, 64
  %v2585 = vpop.permute.xlu0 %2584
  %vm2586 = vcmask 523264
  %v2587 = vsel %vm2586, %v2395, %v2397
  %v2588 = vsel %vm2586, %v2397, %v2399
  %v2589 = vsel %vm2586, %v2399, %v2401
  %v2590 = vsel %vm2586, %v2401, %v2403
  %v2591 = vsel %vm2586, %v2403, %v2405
  %v2592 = vsel %vm2586, %v2407, %v2409
  %v2593 = vsel %vm2586, %v2409, %v2411
  %v2594 = vsel %vm2586, %v2411, %v2413
  %v2595 = vsel %vm2586, %v2413, %v2415
  %v2596 = vsel %vm2586, %v2415, %v2417
  %v2597 = vsel %vm2586, %v2419, %v2421
  %v2598 = vsel %vm2586, %v2421, %v2423
  %v2599 = vsel %vm2586, %v2423, %v2425
  %v2600 = vsel %vm2586, %v2425, %v2427
  %v2601 = vsel %vm2586, %v2427, %v2429
  %v2602 = vsel %vm2586, %v2431, %v2433
  %v2603 = vsel %vm2586, %v2433, %v2435
  %v2604 = vsel %vm2586, %v2435, %v2437
  %v2605 = vsel %vm2586, %v2437, %v2439
  %v2606 = vsel %vm2586, %v2439, %v2441
  %v2607 = vsel %vm2586, %v2443, %v2445
  %v2608 = vsel %vm2586, %v2445, %v2447
  %v2609 = vsel %vm2586, %v2447, %v2449
  %v2610 = vsel %vm2586, %v2449, %v2451
  %v2611 = vsel %vm2586, %v2451, %v2453
  %v2612 = vsel %vm2586, %v2455, %v2457
  %v2613 = vsel %vm2586, %v2457, %v2459
  %v2614 = vsel %vm2586, %v2459, %v2461
  %v2615 = vsel %vm2586, %v2461, %v2463
  %v2616 = vsel %vm2586, %v2463, %v2465
  %v2617 = vsel %vm2586, %v2467, %v2469
  %v2618 = vsel %vm2586, %v2469, %v2471
  %v2619 = vsel %vm2586, %v2471, %v2473
  %v2620 = vsel %vm2586, %v2473, %v2475
  %v2621 = vsel %vm2586, %v2475, %v2477
  %v2622 = vsel %vm2586, %v2479, %v2481
  %v2623 = vsel %vm2586, %v2481, %v2483
  %v2624 = vsel %vm2586, %v2483, %v2485
  %v2625 = vsel %vm2586, %v2485, %v2487
  %v2626 = vsel %vm2586, %v2487, %v2489
  %v2627 = vsel %vm2586, %v2491, %v2493
  %v2628 = vsel %vm2586, %v2493, %v2495
  %v2629 = vsel %vm2586, %v2495, %v2497
  %v2630 = vsel %vm2586, %v2497, %v2499
  %v2631 = vsel %vm2586, %v2499, %v2501
  %v2632 = vsel %vm2586, %v2503, %v2505
  %v2633 = vsel %vm2586, %v2505, %v2507
  %v2634 = vsel %vm2586, %v2507, %v2509
  %v2635 = vsel %vm2586, %v2509, %v2511
  %v2636 = vsel %vm2586, %v2511, %v2513
  %v2637 = vsel %vm2586, %v2515, %v2517
  %v2638 = vsel %vm2586, %v2517, %v2519
  %v2639 = vsel %vm2586, %v2519, %v2521
  %v2640 = vsel %vm2586, %v2521, %v2523
  %v2641 = vsel %vm2586, %v2523, %v2525
  %v2642 = vsel %vm2586, %v2527, %v2529
  %v2643 = vsel %vm2586, %v2529, %v2531
  %v2644 = vsel %vm2586, %v2531, %v2533
  %v2645 = vsel %vm2586, %v2533, %v2535
  %v2646 = vsel %vm2586, %v2535, %v2537
  %v2647 = vsel %vm2586, %v2539, %v2541
  %v2648 = vsel %vm2586, %v2541, %v2543
  %v2649 = vsel %vm2586, %v2543, %v2545
  %v2650 = vsel %vm2586, %v2545, %v2547
  %v2651 = vsel %vm2586, %v2547, %v2549
  %v2652 = vsel %vm2586, %v2551, %v2553
  %v2653 = vsel %vm2586, %v2553, %v2555
  %v2654 = vsel %vm2586, %v2555, %v2557
  %v2655 = vsel %vm2586, %v2557, %v2559
  %v2656 = vsel %vm2586, %v2559, %v2561
  %v2657 = vsel %vm2586, %v2563, %v2565
  %v2658 = vsel %vm2586, %v2565, %v2567
  %v2659 = vsel %vm2586, %v2567, %v2569
  %v2660 = vsel %vm2586, %v2569, %v2571
  %v2661 = vsel %vm2586, %v2571, %v2573
  %v2662 = vsel %vm2586, %v2575, %v2577
  %v2663 = vsel %vm2586, %v2577, %v2579
  %v2664 = vsel %vm2586, %v2579, %v2581
  %v2665 = vsel %vm2586, %v2581, %v2583
  %v2666 = vsel %vm2586, %v2583, %v2585
  %v2747 = vmax.f32 %v2202, %v2587
  %v2748 = vmax.f32 %v2203, %v2588
  %v2749 = vmax.f32 %v2204, %v2589
  %v2750 = vmax.f32 %v2205, %v2590
  %v2751 = vmax.f32 %v2206, %v2591
  %v2752 = vmax.f32 %v2208, %v2592
  %v2753 = vmax.f32 %v2209, %v2593
  %v2754 = vmax.f32 %v2210, %v2594
  %v2755 = vmax.f32 %v2211, %v2595
  %v2756 = vmax.f32 %v2212, %v2596
  %v2757 = vmax.f32 %v2214, %v2597
  %v2758 = vmax.f32 %v2215, %v2598
  %v2759 = vmax.f32 %v2216, %v2599
  %v2760 = vmax.f32 %v2217, %v2600
  %v2761 = vmax.f32 %v2218, %v2601
  %v2762 = vmax.f32 %v2220, %v2602
  %v2763 = vmax.f32 %v2221, %v2603
  %v2764 = vmax.f32 %v2222, %v2604
  %v2765 = vmax.f32 %v2223, %v2605
  %v2766 = vmax.f32 %v2224, %v2606
  %v2767 = vmax.f32 %v2226, %v2607
  %v2768 = vmax.f32 %v2227, %v2608
  %v2769 = vmax.f32 %v2228, %v2609
  %v2770 = vmax.f32 %v2229, %v2610
  %v2771 = vmax.f32 %v2230, %v2611
  %v2772 = vmax.f32 %v2232, %v2612
  %v2773 = vmax.f32 %v2233, %v2613
  %v2774 = vmax.f32 %v2234, %v2614
  %v2775 = vmax.f32 %v2235, %v2615
  %v2776 = vmax.f32 %v2236, %v2616
  %v2777 = vmax.f32 %v2238, %v2617
  %v2778 = vmax.f32 %v2239, %v2618
  %v2779 = vmax.f32 %v2240, %v2619
  %v2780 = vmax.f32 %v2241, %v2620
  %v2781 = vmax.f32 %v2242, %v2621
  %v2782 = vmax.f32 %v2244, %v2622
  %v2783 = vmax.f32 %v2245, %v2623
  %v2784 = vmax.f32 %v2246, %v2624
  %v2785 = vmax.f32 %v2247, %v2625
  %v2786 = vmax.f32 %v2248, %v2626
  %v2787 = vmax.f32 %v2250, %v2627
  %v2788 = vmax.f32 %v2251, %v2628
  %v2789 = vmax.f32 %v2252, %v2629
  %v2790 = vmax.f32 %v2253, %v2630
  %v2791 = vmax.f32 %v2254, %v2631
  %v2792 = vmax.f32 %v2256, %v2632
  %v2793 = vmax.f32 %v2257, %v2633
  %v2794 = vmax.f32 %v2258, %v2634
  %v2795 = vmax.f32 %v2259, %v2635
  %v2796 = vmax.f32 %v2260, %v2636
  %v2797 = vmax.f32 %v2262, %v2637
  %v2798 = vmax.f32 %v2263, %v2638
  %v2799 = vmax.f32 %v2264, %v2639
  %v2800 = vmax.f32 %v2265, %v2640
  %v2801 = vmax.f32 %v2266, %v2641
  %v2802 = vmax.f32 %v2268, %v2642
  %v2803 = vmax.f32 %v2269, %v2643
  %v2804 = vmax.f32 %v2270, %v2644
  %v2805 = vmax.f32 %v2271, %v2645
  %v2806 = vmax.f32 %v2272, %v2646
  %v2807 = vmax.f32 %v2274, %v2647
  %v2808 = vmax.f32 %v2275, %v2648
  %v2809 = vmax.f32 %v2276, %v2649
  %v2810 = vmax.f32 %v2277, %v2650
  %v2811 = vmax.f32 %v2278, %v2651
  %v2812 = vmax.f32 %v2280, %v2652
  %v2813 = vmax.f32 %v2281, %v2653
  %v2814 = vmax.f32 %v2282, %v2654
  %v2815 = vmax.f32 %v2283, %v2655
  %v2816 = vmax.f32 %v2284, %v2656
  %v2817 = vmax.f32 %v2286, %v2657
  %v2818 = vmax.f32 %v2287, %v2658
  %v2819 = vmax.f32 %v2288, %v2659
  %v2820 = vmax.f32 %v2289, %v2660
  %v2821 = vmax.f32 %v2290, %v2661
  %v2822 = vmax.f32 %v2292, %v2662
  %v2823 = vmax.f32 %v2293, %v2663
  %v2824 = vmax.f32 %v2294, %v2664
  %v2825 = vmax.f32 %v2295, %v2665
  %v2826 = vmax.f32 %v2296, %v2666
  %v2827 = vmax.f32 %v2747, %v2203
  %v2828 = vmax.f32 %v2748, %v2204
  %v2829 = vmax.f32 %v2749, %v2205
  %v2830 = vmax.f32 %v2750, %v2206
  %v2831 = vmax.f32 %v2751, %v2207
  %v2832 = vmax.f32 %v2752, %v2209
  %v2833 = vmax.f32 %v2753, %v2210
  %v2834 = vmax.f32 %v2754, %v2211
  %v2835 = vmax.f32 %v2755, %v2212
  %v2836 = vmax.f32 %v2756, %v2213
  %v2837 = vmax.f32 %v2757, %v2215
  %v2838 = vmax.f32 %v2758, %v2216
  %v2839 = vmax.f32 %v2759, %v2217
  %v2840 = vmax.f32 %v2760, %v2218
  %v2841 = vmax.f32 %v2761, %v2219
  %v2842 = vmax.f32 %v2762, %v2221
  %v2843 = vmax.f32 %v2763, %v2222
  %v2844 = vmax.f32 %v2764, %v2223
  %v2845 = vmax.f32 %v2765, %v2224
  %v2846 = vmax.f32 %v2766, %v2225
  %v2847 = vmax.f32 %v2767, %v2227
  %v2848 = vmax.f32 %v2768, %v2228
  %v2849 = vmax.f32 %v2769, %v2229
  %v2850 = vmax.f32 %v2770, %v2230
  %v2851 = vmax.f32 %v2771, %v2231
  %v2852 = vmax.f32 %v2772, %v2233
  %v2853 = vmax.f32 %v2773, %v2234
  %v2854 = vmax.f32 %v2774, %v2235
  %v2855 = vmax.f32 %v2775, %v2236
  %v2856 = vmax.f32 %v2776, %v2237
  %v2857 = vmax.f32 %v2777, %v2239
  %v2858 = vmax.f32 %v2778, %v2240
  %v2859 = vmax.f32 %v2779, %v2241
  %v2860 = vmax.f32 %v2780, %v2242
  %v2861 = vmax.f32 %v2781, %v2243
  %v2862 = vmax.f32 %v2782, %v2245
  %v2863 = vmax.f32 %v2783, %v2246
  %v2864 = vmax.f32 %v2784, %v2247
  %v2865 = vmax.f32 %v2785, %v2248
  %v2866 = vmax.f32 %v2786, %v2249
  %v2867 = vmax.f32 %v2787, %v2251
  %v2868 = vmax.f32 %v2788, %v2252
  %v2869 = vmax.f32 %v2789, %v2253
  %v2870 = vmax.f32 %v2790, %v2254
  %v2871 = vmax.f32 %v2791, %v2255
  %v2872 = vmax.f32 %v2792, %v2257
  %v2873 = vmax.f32 %v2793, %v2258
  %v2874 = vmax.f32 %v2794, %v2259
  %v2875 = vmax.f32 %v2795, %v2260
  %v2876 = vmax.f32 %v2796, %v2261
  %v2877 = vmax.f32 %v2797, %v2263
  %v2878 = vmax.f32 %v2798, %v2264
  %v2879 = vmax.f32 %v2799, %v2265
  %v2880 = vmax.f32 %v2800, %v2266
  %v2881 = vmax.f32 %v2801, %v2267
  %v2882 = vmax.f32 %v2802, %v2269
  %v2883 = vmax.f32 %v2803, %v2270
  %v2884 = vmax.f32 %v2804, %v2271
  %v2885 = vmax.f32 %v2805, %v2272
  %v2886 = vmax.f32 %v2806, %v2273
  %v2887 = vmax.f32 %v2807, %v2275
  %v2888 = vmax.f32 %v2808, %v2276
  %v2889 = vmax.f32 %v2809, %v2277
  %v2890 = vmax.f32 %v2810, %v2278
  %v2891 = vmax.f32 %v2811, %v2279
  %v2892 = vmax.f32 %v2812, %v2281
  %v2893 = vmax.f32 %v2813, %v2282
  %v2894 = vmax.f32 %v2814, %v2283
  %v2895 = vmax.f32 %v2815, %v2284
  %v2896 = vmax.f32 %v2816, %v2285
  %v2897 = vmax.f32 %v2817, %v2287
  %v2898 = vmax.f32 %v2818, %v2288
  %v2899 = vmax.f32 %v2819, %v2289
  %v2900 = vmax.f32 %v2820, %v2290
  %v2901 = vmax.f32 %v2821, %v2291
  %v2902 = vmax.f32 %v2822, %v2293
  %v2903 = vmax.f32 %v2823, %v2294
  %v2904 = vmax.f32 %v2824, %v2295
  %v2905 = vmax.f32 %v2825, %v2296
  %v2906 = vmax.f32 %v2826, %v2297
  %2907 = vst [vmem:[#allocation2] sm:$0xff] 0.0
  %2908 = vst [vmem:[#allocation2 + $0x8] sm:$0xff] 0.0
  %2909 = vst [vmem:[#allocation2 + $0x10] sm:$0xff] 0.0
  %2910 = vst [vmem:[#allocation2 + $0x18] sm:$0xff] 0.0
  %2911 = vst [vmem:[#allocation2 + $0x20] sm:$0xff] 0.0
  %2912 = vst [vmem:[#allocation2 + $0x2a8] sm:$0xff] 0.0
  %2913 = vst [vmem:[#allocation2 + $0x2b0] sm:$0xff] 0.0
  %2914 = vst [vmem:[#allocation2 + $0x2b8] sm:$0xff] 0.0
  %2915 = vst [vmem:[#allocation2 + $0x2c0] sm:$0xff] 0.0
  %2916 = vst [vmem:[#allocation2 + $0x2c8] sm:$0xff] 0.0
  %2917 = vst [vmem:[#allocation2 + $0x28] sm:$0xff] %v2827
  %2918 = vst [vmem:[#allocation2 + $0x30] sm:$0xff] %v2828
  %2919 = vst [vmem:[#allocation2 + $0x38] sm:$0xff] %v2829
  %2920 = vst [vmem:[#allocation2 + $0x40] sm:$0xff] %v2830
  %2921 = vst [vmem:[#allocation2 + $0x48] sm:$0xff] %v2831
  %2922 = vst [vmem:[#allocation2 + $0x50] sm:$0xff] %v2832
  %2923 = vst [vmem:[#allocation2 + $0x58] sm:$0xff] %v2833
  %2924 = vst [vmem:[#allocation2 + $0x60] sm:$0xff] %v2834
  %2925 = vst [vmem:[#allocation2 + $0x68] sm:$0xff] %v2835
  %2926 = vst [vmem:[#allocation2 + $0x70] sm:$0xff] %v2836
  %2927 = vst [vmem:[#allocation2 + $0x78] sm:$0xff] %v2837
  %2928 = vst [vmem:[#allocation2 + $0x80] sm:$0xff] %v2838
  %2929 = vst [vmem:[#allocation2 + $0x88] sm:$0xff] %v2839
  %2930 = vst [vmem:[#allocation2 + $0x90] sm:$0xff] %v2840
  %2931 = vst [vmem:[#allocation2 + $0x98] sm:$0xff] %v2841
  %2932 = vst [vmem:[#allocation2 + $0xa0] sm:$0xff] %v2842
  %2933 = vst [vmem:[#allocation2 + $0xa8] sm:$0xff] %v2843
  %2934 = vst [vmem:[#allocation2 + $0xb0] sm:$0xff] %v2844
  %2935 = vst [vmem:[#allocation2 + $0xb8] sm:$0xff] %v2845
  %2936 = vst [vmem:[#allocation2 + $0xc0] sm:$0xff] %v2846
  %2937 = vst [vmem:[#allocation2 + $0xc8] sm:$0xff] %v2847
  %2938 = vst [vmem:[#allocation2 + $0xd0] sm:$0xff] %v2848
  %2939 = vst [vmem:[#allocation2 + $0xd8] sm:$0xff] %v2849
  %2940 = vst [vmem:[#allocation2 + $0xe0] sm:$0xff] %v2850
  %2941 = vst [vmem:[#allocation2 + $0xe8] sm:$0xff] %v2851
  %2942 = vst [vmem:[#allocation2 + $0xf0] sm:$0xff] %v2852
  %2943 = vst [vmem:[#allocation2 + $0xf8] sm:$0xff] %v2853
  %2944 = vst [vmem:[#allocation2 + $0x100] sm:$0xff] %v2854
  %2945 = vst [vmem:[#allocation2 + $0x108] sm:$0xff] %v2855
  %2946 = vst [vmem:[#allocation2 + $0x110] sm:$0xff] %v2856
  %2947 = vst [vmem:[#allocation2 + $0x118] sm:$0xff] %v2857
  %2948 = vst [vmem:[#allocation2 + $0x120] sm:$0xff] %v2858
  %2949 = vst [vmem:[#allocation2 + $0x128] sm:$0xff] %v2859
  %2950 = vst [vmem:[#allocation2 + $0x130] sm:$0xff] %v2860
  %2951 = vst [vmem:[#allocation2 + $0x138] sm:$0xff] %v2861
  %2952 = vst [vmem:[#allocation2 + $0x140] sm:$0xff] %v2862
  %2953 = vst [vmem:[#allocation2 + $0x148] sm:$0xff] %v2863
  %2954 = vst [vmem:[#allocation2 + $0x150] sm:$0xff] %v2864
  %2955 = vst [vmem:[#allocation2 + $0x158] sm:$0xff] %v2865
  %2956 = vst [vmem:[#allocation2 + $0x160] sm:$0xff] %v2866
  %2957 = vst [vmem:[#allocation2 + $0x168] sm:$0xff] %v2867
  %2958 = vst [vmem:[#allocation2 + $0x170] sm:$0xff] %v2868
  %2959 = vst [vmem:[#allocation2 + $0x178] sm:$0xff] %v2869
  %2960 = vst [vmem:[#allocation2 + $0x180] sm:$0xff] %v2870
  %2961 = vst [vmem:[#allocation2 + $0x188] sm:$0xff] %v2871
  %2962 = vst [vmem:[#allocation2 + $0x190] sm:$0xff] %v2872
  %2963 = vst [vmem:[#allocation2 + $0x198] sm:$0xff] %v2873
  %2964 = vst [vmem:[#allocation2 + $0x1a0] sm:$0xff] %v2874
  %2965 = vst [vmem:[#allocation2 + $0x1a8] sm:$0xff] %v2875
  %2966 = vst [vmem:[#allocation2 + $0x1b0] sm:$0xff] %v2876
  %2967 = vst [vmem:[#allocation2 + $0x1b8] sm:$0xff] %v2877
  %2968 = vst [vmem:[#allocation2 + $0x1c0] sm:$0xff] %v2878
  %2969 = vst [vmem:[#allocation2 + $0x1c8] sm:$0xff] %v2879
  %2970 = vst [vmem:[#allocation2 + $0x1d0] sm:$0xff] %v2880
  %2971 = vst [vmem:[#allocation2 + $0x1d8] sm:$0xff] %v2881
  %2972 = vst [vmem:[#allocation2 + $0x1e0] sm:$0xff] %v2882
  %2973 = vst [vmem:[#allocation2 + $0x1e8] sm:$0xff] %v2883
  %2974 = vst [vmem:[#allocation2 + $0x1f0] sm:$0xff] %v2884
  %2975 = vst [vmem:[#allocation2 + $0x1f8] sm:$0xff] %v2885
  %2976 = vst [vmem:[#allocation2 + $0x200] sm:$0xff] %v2886
  %2977 = vst [vmem:[#allocation2 + $0x208] sm:$0xff] %v2887
  %2978 = vst [vmem:[#allocation2 + $0x210] sm:$0xff] %v2888
  %2979 = vst [vmem:[#allocation2 + $0x218] sm:$0xff] %v2889
  %2980 = vst [vmem:[#allocation2 + $0x220] sm:$0xff] %v2890
  %2981 = vst [vmem:[#allocation2 + $0x228] sm:$0xff] %v2891
  %2982 = vst [vmem:[#allocation2 + $0x230] sm:$0xff] %v2892
  %2983 = vst [vmem:[#allocation2 + $0x238] sm:$0xff] %v2893
  %2984 = vst [vmem:[#allocation2 + $0x240] sm:$0xff] %v2894
  %2985 = vst [vmem:[#allocation2 + $0x248] sm:$0xff] %v2895
  %2986 = vst [vmem:[#allocation2 + $0x250] sm:$0xff] %v2896
  %2987 = vst [vmem:[#allocation2 + $0x258] sm:$0xff] %v2897
  %2988 = vst [vmem:[#allocation2 + $0x260] sm:$0xff] %v2898
  %2989 = vst [vmem:[#allocation2 + $0x268] sm:$0xff] %v2899
  %2990 = vst [vmem:[#allocation2 + $0x270] sm:$0xff] %v2900
  %2991 = vst [vmem:[#allocation2 + $0x278] sm:$0xff] %v2901
  %2992 = vst [vmem:[#allocation2 + $0x280] sm:$0xff] %v2902
  %2993 = vst [vmem:[#allocation2 + $0x288] sm:$0xff] %v2903
  %2994 = vst [vmem:[#allocation2 + $0x290] sm:$0xff] %v2904
  %2995 = vst [vmem:[#allocation2 + $0x298] sm:$0xff] %v2905
  %2996 = vst [vmem:[#allocation2 + $0x2a0] sm:$0xff] %v2906
  %v2997 = vlaneseq
  %v2998 = vshrl.u32 %v2997, 7
  %v2999 = vadd.s32 %v2998, 8
  %v3000 = vadd.s32 %v2998, 16
  %v3001 = vadd.s32 %v2998, 24
  %v3002 = vadd.s32 %v2998, 32
  %v3003 = vadd.s32 %v2998, 40
  %v3004 = vadd.s32 %v2998, 48
  %v3005 = vadd.s32 %v2998, 56
  %v3006 = vadd.s32 %v2998, 64
  %v3007 = vadd.s32 %v2998, 72
  %v3008 = vadd.s32 %v2998, 80
  %v3009 = vadd.s32 %v2998, 88
  %v3010 = vadd.s32 %v2998, 96
  %v3011 = vadd.s32 %v2998, 104
  %v3012 = vadd.s32 %v2998, 112
  %v3013 = vadd.s32 %v2998, 120
  %vm3014 = vcmp.lt.s32.totalorder %v2998, 0
  %v3015 = vsub.s32 0, %v2998
  %v3016 = vsel %vm3014, %v3015, %v2998
  %v3017 = vshrl.u32 %v3016, 2
  %v3018 = vand.u32 %v3016, 3
  %v3019 = vsub.s32 0, %v3018
  %v3020 = vsel %vm3014, %v3019, %v3018
  %vm3021 = vcmp.lt.s32.totalorder %v2999, 0
  %v3022 = vsub.s32 0, %v2999
  %v3023 = vsel %vm3021, %v3022, %v2999
  %v3024 = vshrl.u32 %v3023, 2
  %v3025 = vand.u32 %v3023, 3
  %v3026 = vsub.s32 0, %v3025
  %v3027 = vsel %vm3021, %v3026, %v3025
  %vm3028 = vcmp.lt.s32.totalorder %v3000, 0
  %v3029 = vsub.s32 0, %v3000
  %v3030 = vsel %vm3028, %v3029, %v3000
  %v3031 = vshrl.u32 %v3030, 2
  %v3032 = vand.u32 %v3030, 3
  %v3033 = vsub.s32 0, %v3032
  %v3034 = vsel %vm3028, %v3033, %v3032
  %vm3035 = vcmp.lt.s32.totalorder %v3001, 0
  %v3036 = vsub.s32 0, %v3001
  %v3037 = vsel %vm3035, %v3036, %v3001
  %v3038 = vshrl.u32 %v3037, 2
  %v3039 = vand.u32 %v3037, 3
  %v3040 = vsub.s32 0, %v3039
  %v3041 = vsel %vm3035, %v3040, %v3039
  %vm3042 = vcmp.lt.s32.totalorder %v3002, 0
  %v3043 = vsub.s32 0, %v3002
  %v3044 = vsel %vm3042, %v3043, %v3002
  %v3045 = vshrl.u32 %v3044, 2
  %v3046 = vand.u32 %v3044, 3
  %v3047 = vsub.s32 0, %v3046
  %v3048 = vsel %vm3042, %v3047, %v3046
  %vm3049 = vcmp.lt.s32.totalorder %v3003, 0
  %v3050 = vsub.s32 0, %v3003
  %v3051 = vsel %vm3049, %v3050, %v3003
  %v3052 = vshrl.u32 %v3051, 2
  %v3053 = vand.u32 %v3051, 3
  %v3054 = vsub.s32 0, %v3053
  %v3055 = vsel %vm3049, %v3054, %v3053
  %vm3056 = vcmp.lt.s32.totalorder %v3004, 0
  %v3057 = vsub.s32 0, %v3004
  %v3058 = vsel %vm3056, %v3057, %v3004
  %v3059 = vshrl.u32 %v3058, 2
  %v3060 = vand.u32 %v3058, 3
  %v3061 = vsub.s32 0, %v3060
  %v3062 = vsel %vm3056, %v3061, %v3060
  %vm3063 = vcmp.lt.s32.totalorder %v3005, 0
  %v3064 = vsub.s32 0, %v3005
  %v3065 = vsel %vm3063, %v3064, %v3005
  %v3066 = vshrl.u32 %v3065, 2
  %v3067 = vand.u32 %v3065, 3
  %v3068 = vsub.s32 0, %v3067
  %v3069 = vsel %vm3063, %v3068, %v3067
  %vm3070 = vcmp.lt.s32.totalorder %v3006, 0
  %v3071 = vsub.s32 0, %v3006
  %v3072 = vsel %vm3070, %v3071, %v3006
  %v3073 = vshrl.u32 %v3072, 2
  %v3074 = vand.u32 %v3072, 3
  %v3075 = vsub.s32 0, %v3074
  %v3076 = vsel %vm3070, %v3075, %v3074
  %vm3077 = vcmp.lt.s32.totalorder %v3007, 0
  %v3078 = vsub.s32 0, %v3007
  %v3079 = vsel %vm3077, %v3078, %v3007
  %v3080 = vshrl.u32 %v3079, 2
  %v3081 = vand.u32 %v3079, 3
  %v3082 = vsub.s32 0, %v3081
  %v3083 = vsel %vm3077, %v3082, %v3081
  %vm3084 = vcmp.lt.s32.totalorder %v3008, 0
  %v3085 = vsub.s32 0, %v3008
  %v3086 = vsel %vm3084, %v3085, %v3008
  %v3087 = vshrl.u32 %v3086, 2
  %v3088 = vand.u32 %v3086, 3
  %v3089 = vsub.s32 0, %v3088
  %v3090 = vsel %vm3084, %v3089, %v3088
  %vm3091 = vcmp.lt.s32.totalorder %v3009, 0
  %v3092 = vsub.s32 0, %v3009
  %v3093 = vsel %vm3091, %v3092, %v3009
  %v3094 = vshrl.u32 %v3093, 2
  %v3095 = vand.u32 %v3093, 3
  %v3096 = vsub.s32 0, %v3095
  %v3097 = vsel %vm3091, %v3096, %v3095
  %vm3098 = vcmp.lt.s32.totalorder %v3010, 0
  %v3099 = vsub.s32 0, %v3010
  %v3100 = vsel %vm3098, %v3099, %v3010
  %v3101 = vshrl.u32 %v3100, 2
  %v3102 = vand.u32 %v3100, 3
  %v3103 = vsub.s32 0, %v3102
  %v3104 = vsel %vm3098, %v3103, %v3102
  %vm3105 = vcmp.lt.s32.totalorder %v3011, 0
  %v3106 = vsub.s32 0, %v3011
  %v3107 = vsel %vm3105, %v3106, %v3011
  %v3108 = vshrl.u32 %v3107, 2
  %v3109 = vand.u32 %v3107, 3
  %v3110 = vsub.s32 0, %v3109
  %v3111 = vsel %vm3105, %v3110, %v3109
  %vm3112 = vcmp.lt.s32.totalorder %v3012, 0
  %v3113 = vsub.s32 0, %v3012
  %v3114 = vsel %vm3112, %v3113, %v3012
  %v3115 = vshrl.u32 %v3114, 2
  %v3116 = vand.u32 %v3114, 3
  %v3117 = vsub.s32 0, %v3116
  %v3118 = vsel %vm3112, %v3117, %v3116
  %vm3119 = vcmp.lt.s32.totalorder %v3013, 0
  %v3120 = vsub.s32 0, %v3013
  %v3121 = vsel %vm3119, %v3120, %v3013
  %v3122 = vshrl.u32 %v3121, 2
  %v3123 = vand.u32 %v3121, 3
  %v3124 = vsub.s32 0, %v3123
  %v3125 = vsel %vm3119, %v3124, %v3123
  %vm3126 = vcmp.ne.s32.totalorder %v3020, 0
  %vm3127 = vcmp.ne.s32.totalorder %v3027, 0
  %vm3128 = vcmp.ne.s32.totalorder %v3034, 0
  %vm3129 = vcmp.ne.s32.totalorder %v3041, 0
  %vm3130 = vcmp.ne.s32.totalorder %v3048, 0
  %vm3131 = vcmp.ne.s32.totalorder %v3055, 0
  %vm3132 = vcmp.ne.s32.totalorder %v3062, 0
  %vm3133 = vcmp.ne.s32.totalorder %v3069, 0
  %vm3134 = vcmp.ne.s32.totalorder %v3076, 0
  %vm3135 = vcmp.ne.s32.totalorder %v3083, 0
  %vm3136 = vcmp.ne.s32.totalorder %v3090, 0
  %vm3137 = vcmp.ne.s32.totalorder %v3097, 0
  %vm3138 = vcmp.ne.s32.totalorder %v3104, 0
  %vm3139 = vcmp.ne.s32.totalorder %v3111, 0
  %vm3140 = vcmp.ne.s32.totalorder %v3118, 0
  %vm3141 = vcmp.ne.s32.totalorder %v3125, 0
  %vm3142 = vcmp.lt.s32.totalorder %v3020, 0
  %vm3143 = vcmp.lt.s32.totalorder %v3027, 0
  %vm3144 = vcmp.lt.s32.totalorder %v3034, 0
  %vm3145 = vcmp.lt.s32.totalorder %v3041, 0
  %vm3146 = vcmp.lt.s32.totalorder %v3048, 0
  %vm3147 = vcmp.lt.s32.totalorder %v3055, 0
  %vm3148 = vcmp.lt.s32.totalorder %v3062, 0
  %vm3149 = vcmp.lt.s32.totalorder %v3069, 0
  %vm3150 = vcmp.lt.s32.totalorder %v3076, 0
  %vm3151 = vcmp.lt.s32.totalorder %v3083, 0
  %vm3152 = vcmp.lt.s32.totalorder %v3090, 0
  %vm3153 = vcmp.lt.s32.totalorder %v3097, 0
  %vm3154 = vcmp.lt.s32.totalorder %v3104, 0
  %vm3155 = vcmp.lt.s32.totalorder %v3111, 0
  %vm3156 = vcmp.lt.s32.totalorder %v3118, 0
  %vm3157 = vcmp.lt.s32.totalorder %v3125, 0
  %vm3158 = vmand %vm3142, %vm3126
  %vm3159 = vmand %vm3143, %vm3127
  %vm3160 = vmand %vm3144, %vm3128
  %vm3161 = vmand %vm3145, %vm3129
  %vm3162 = vmand %vm3146, %vm3130
  %vm3163 = vmand %vm3147, %vm3131
  %vm3164 = vmand %vm3148, %vm3132
  %vm3165 = vmand %vm3149, %vm3133
  %vm3166 = vmand %vm3150, %vm3134
  %vm3167 = vmand %vm3151, %vm3135
  %vm3168 = vmand %vm3152, %vm3136
  %vm3169 = vmand %vm3153, %vm3137
  %vm3170 = vmand %vm3154, %vm3138
  %vm3171 = vmand %vm3155, %vm3139
  %vm3172 = vmand %vm3156, %vm3140
  %vm3173 = vmand %vm3157, %vm3141
  %v3174 = vadd.s32 %v3020, 4
  %v3175 = vadd.s32 %v3027, 4
  %v3176 = vadd.s32 %v3034, 4
  %v3177 = vadd.s32 %v3041, 4
  %v3178 = vadd.s32 %v3048, 4
  %v3179 = vadd.s32 %v3055, 4
  %v3180 = vadd.s32 %v3062, 4
  %v3181 = vadd.s32 %v3069, 4
  %v3182 = vadd.s32 %v3076, 4
  %v3183 = vadd.s32 %v3083, 4
  %v3184 = vadd.s32 %v3090, 4
  %v3185 = vadd.s32 %v3097, 4
  %v3186 = vadd.s32 %v3104, 4
  %v3187 = vadd.s32 %v3111, 4
  %v3188 = vadd.s32 %v3118, 4
  %v3189 = vadd.s32 %v3125, 4
  %v3190 = vsel %vm3158, %v3174, %v3020
  %v3191 = vsel %vm3159, %v3175, %v3027
  %v3192 = vsel %vm3160, %v3176, %v3034
  %v3193 = vsel %vm3161, %v3177, %v3041
  %v3194 = vsel %vm3162, %v3178, %v3048
  %v3195 = vsel %vm3163, %v3179, %v3055
  %v3196 = vsel %vm3164, %v3180, %v3062
  %v3197 = vsel %vm3165, %v3181, %v3069
  %v3198 = vsel %vm3166, %v3182, %v3076
  %v3199 = vsel %vm3167, %v3183, %v3083
  %v3200 = vsel %vm3168, %v3184, %v3090
  %v3201 = vsel %vm3169, %v3185, %v3097
  %v3202 = vsel %vm3170, %v3186, %v3104
  %v3203 = vsel %vm3171, %v3187, %v3111
  %v3204 = vsel %vm3172, %v3188, %v3118
  %v3205 = vsel %vm3173, %v3189, %v3125
  %vm3206 = vcmp.gt.s32.totalorder %v3190, 0
  %vm3207 = vcmp.gt.s32.totalorder %v3191, 0
  %vm3208 = vcmp.gt.s32.totalorder %v3192, 0
  %vm3209 = vcmp.gt.s32.totalorder %v3193, 0
  %vm3210 = vcmp.gt.s32.totalorder %v3194, 0
  %vm3211 = vcmp.gt.s32.totalorder %v3195, 0
  %vm3212 = vcmp.gt.s32.totalorder %v3196, 0
  %vm3213 = vcmp.gt.s32.totalorder %v3197, 0
  %vm3214 = vcmp.gt.s32.totalorder %v3198, 0
  %vm3215 = vcmp.gt.s32.totalorder %v3199, 0
  %vm3216 = vcmp.gt.s32.totalorder %v3200, 0
  %vm3217 = vcmp.gt.s32.totalorder %v3201, 0
  %vm3218 = vcmp.gt.s32.totalorder %v3202, 0
  %vm3219 = vcmp.gt.s32.totalorder %v3203, 0
  %vm3220 = vcmp.gt.s32.totalorder %v3204, 0
  %vm3221 = vcmp.gt.s32.totalorder %v3205, 0
  %v3222 = vld [vmem:[#allocation2] sm:$0x80]
  %v3223 = vld [vmem:[#allocation2 + $0x8] sm:$0x80]
  %v3224 = vld [vmem:[#allocation2 + $0x10] sm:$0x80]
  %v3225 = vld [vmem:[#allocation2 + $0x18] sm:$0x80]
  %v3226 = vld [vmem:[#allocation2 + $0x20] sm:$0x80]
  %v3227 = vld [vmem:[#allocation2 + $0x28] sm:$0xff]
  %v3228 = vld [vmem:[#allocation2 + $0x30] sm:$0xff]
  %v3229 = vld [vmem:[#allocation2 + $0x38] sm:$0xff]
  %v3230 = vld [vmem:[#allocation2 + $0x40] sm:$0xff]
  %v3231 = vld [vmem:[#allocation2 + $0x48] sm:$0xff]
  %v3232 = vld [vmem:[#allocation2 + $0x50] sm:$0xff]
  %v3233 = vld [vmem:[#allocation2 + $0x58] sm:$0xff]
  %v3234 = vld [vmem:[#allocation2 + $0x60] sm:$0xff]
  %v3235 = vld [vmem:[#allocation2 + $0x68] sm:$0xff]
  %v3236 = vld [vmem:[#allocation2 + $0x70] sm:$0xff]
  %v3237 = vld [vmem:[#allocation2 + $0x78] sm:$0xff]
  %v3238 = vld [vmem:[#allocation2 + $0x80] sm:$0xff]
  %v3239 = vld [vmem:[#allocation2 + $0x88] sm:$0xff]
  %v3240 = vld [vmem:[#allocation2 + $0x90] sm:$0xff]
  %v3241 = vld [vmem:[#allocation2 + $0x98] sm:$0xff]
  %v3242 = vld [vmem:[#allocation2 + $0xa0] sm:$0xff]
  %v3243 = vld [vmem:[#allocation2 + $0xa8] sm:$0xff]
  %v3244 = vld [vmem:[#allocation2 + $0xb0] sm:$0xff]
  %v3245 = vld [vmem:[#allocation2 + $0xb8] sm:$0xff]
  %v3246 = vld [vmem:[#allocation2 + $0xc0] sm:$0xff]
  %v3247 = vld [vmem:[#allocation2 + $0xc8] sm:$0xff]
  %v3248 = vld [vmem:[#allocation2 + $0xd0] sm:$0xff]
  %v3249 = vld [vmem:[#allocation2 + $0xd8] sm:$0xff]
  %v3250 = vld [vmem:[#allocation2 + $0xe0] sm:$0xff]
  %v3251 = vld [vmem:[#allocation2 + $0xe8] sm:$0xff]
  %v3252 = vld [vmem:[#allocation2 + $0xf0] sm:$0xff]
  %v3253 = vld [vmem:[#allocation2 + $0xf8] sm:$0xff]
  %v3254 = vld [vmem:[#allocation2 + $0x100] sm:$0xff]
  %v3255 = vld [vmem:[#allocation2 + $0x108] sm:$0xff]
  %v3256 = vld [vmem:[#allocation2 + $0x110] sm:$0xff]
  %v3257 = vld [vmem:[#allocation2 + $0x118] sm:$0xff]
  %v3258 = vld [vmem:[#allocation2 + $0x120] sm:$0xff]
  %v3259 = vld [vmem:[#allocation2 + $0x128] sm:$0xff]
  %v3260 = vld [vmem:[#allocation2 + $0x130] sm:$0xff]
  %v3261 = vld [vmem:[#allocation2 + $0x138] sm:$0xff]
  %v3262 = vld [vmem:[#allocation2 + $0x140] sm:$0xff]
  %v3263 = vld [vmem:[#allocation2 + $0x148] sm:$0xff]
  %v3264 = vld [vmem:[#allocation2 + $0x150] sm:$0xff]
  %v3265 = vld [vmem:[#allocation2 + $0x158] sm:$0xff]
  %v3266 = vld [vmem:[#allocation2 + $0x160] sm:$0xff]
  %v3267 = vld [vmem:[#allocation2 + $0x168] sm:$0xff]
  %v3268 = vld [vmem:[#allocation2 + $0x170] sm:$0xff]
  %v3269 = vld [vmem:[#allocation2 + $0x178] sm:$0xff]
  %v3270 = vld [vmem:[#allocation2 + $0x180] sm:$0xff]
  %v3271 = vld [vmem:[#allocation2 + $0x188] sm:$0xff]
  %v3272 = vld [vmem:[#allocation2 + $0x190] sm:$0xff]
  %v3273 = vld [vmem:[#allocation2 + $0x198] sm:$0xff]
  %v3274 = vld [vmem:[#allocation2 + $0x1a0] sm:$0xff]
  %v3275 = vld [vmem:[#allocation2 + $0x1a8] sm:$0xff]
  %v3276 = vld [vmem:[#allocation2 + $0x1b0] sm:$0xff]
  %v3277 = vld [vmem:[#allocation2 + $0x1b8] sm:$0xff]
  %v3278 = vld [vmem:[#allocation2 + $0x1c0] sm:$0xff]
  %v3279 = vld [vmem:[#allocation2 + $0x1c8] sm:$0xff]
  %v3280 = vld [vmem:[#allocation2 + $0x1d0] sm:$0xff]
  %v3281 = vld [vmem:[#allocation2 + $0x1d8] sm:$0xff]
  %v3282 = vld [vmem:[#allocation2 + $0x1e0] sm:$0xff]
  %v3283 = vld [vmem:[#allocation2 + $0x1e8] sm:$0xff]
  %v3284 = vld [vmem:[#allocation2 + $0x1f0] sm:$0xff]
  %v3285 = vld [vmem:[#allocation2 + $0x1f8] sm:$0xff]
  %v3286 = vld [vmem:[#allocation2 + $0x200] sm:$0xff]
  %v3287 = vld [vmem:[#allocation2 + $0x208] sm:$0xff]
  %v3288 = vld [vmem:[#allocation2 + $0x210] sm:$0xff]
  %v3289 = vld [vmem:[#allocation2 + $0x218] sm:$0xff]
  %v3290 = vld [vmem:[#allocation2 + $0x220] sm:$0xff]
  %v3291 = vld [vmem:[#allocation2 + $0x228] sm:$0xff]
  %v3292 = vld [vmem:[#allocation2 + $0x230] sm:$0xff]
  %v3293 = vld [vmem:[#allocation2 + $0x238] sm:$0xff]
  %v3294 = vld [vmem:[#allocation2 + $0x240] sm:$0xff]
  %v3295 = vld [vmem:[#allocation2 + $0x248] sm:$0xff]
  %v3296 = vld [vmem:[#allocation2 + $0x250] sm:$0xff]
  %v3297 = vld [vmem:[#allocation2 + $0x258] sm:$0xff]
  %v3298 = vld [vmem:[#allocation2 + $0x260] sm:$0xff]
  %v3299 = vld [vmem:[#allocation2 + $0x268] sm:$0xff]
  %v3300 = vld [vmem:[#allocation2 + $0x270] sm:$0xff]
  %v3301 = vld [vmem:[#allocation2 + $0x278] sm:$0xff]
  %v3302 = vld [vmem:[#allocation2 + $0x280] sm:$0x7f]
  %v3303 = vld [vmem:[#allocation2 + $0x288] sm:$0x7f]
  %v3304 = vld [vmem:[#allocation2 + $0x290] sm:$0x7f]
  %v3305 = vld [vmem:[#allocation2 + $0x298] sm:$0x7f]
  %v3306 = vld [vmem:[#allocation2 + $0x2a0] sm:$0x7f]
  %v3307 = vsel %vm3206, 1, 0
  %v3308 = vsel %vm3207, 1, 0
  %v3309 = vsel %vm3208, 1, 0
  %v3310 = vsel %vm3209, 1, 0
  %v3311 = vsel %vm3210, 1, 0
  %v3312 = vsel %vm3211, 1, 0
  %v3313 = vsel %vm3212, 1, 0
  %v3314 = vsel %vm3213, 1, 0
  %v3315 = vsel %vm3214, 1, 0
  %v3316 = vsel %vm3215, 1, 0
  %v3317 = vsel %vm3216, 1, 0
  %v3318 = vsel %vm3217, 1, 0
  %v3319 = vsel %vm3218, 1, 0
  %v3320 = vsel %vm3219, 1, 0
  %v3321 = vsel %vm3220, 1, 0
  %v3322 = vsel %vm3221, 1, 0
  %vm3323 = vcmp.eq.s32.totalorder %v3307, 1
  %vm3324 = vcmp.eq.s32.totalorder %v3308, 1
  %vm3325 = vcmp.eq.s32.totalorder %v3309, 1
  %vm3326 = vcmp.eq.s32.totalorder %v3310, 1
  %vm3327 = vcmp.eq.s32.totalorder %v3311, 1
  %vm3328 = vcmp.eq.s32.totalorder %v3312, 1
  %vm3329 = vcmp.eq.s32.totalorder %v3313, 1
  %vm3330 = vcmp.eq.s32.totalorder %v3314, 1
  %vm3331 = vcmp.eq.s32.totalorder %v3315, 1
  %vm3332 = vcmp.eq.s32.totalorder %v3316, 1
  %vm3333 = vcmp.eq.s32.totalorder %v3317, 1
  %vm3334 = vcmp.eq.s32.totalorder %v3318, 1
  %vm3335 = vcmp.eq.s32.totalorder %v3319, 1
  %vm3336 = vcmp.eq.s32.totalorder %v3320, 1
  %vm3337 = vcmp.eq.s32.totalorder %v3321, 1
  %vm3338 = vcmp.eq.s32.totalorder %v3322, 1
  %vm3424 = vcmask 1040384
  %v3425 = vrot.slane %v3222, 7
  %v3426 = vrot.slane %v3227, 7
  %v3427 = vsel %vm3424, %v3425, %v3426
  %v3428 = vrot.slane %v3223, 7
  %v3429 = vrot.slane %v3228, 7
  %v3430 = vsel %vm3424, %v3428, %v3429
  %v3431 = vrot.slane %v3224, 7
  %v3432 = vrot.slane %v3229, 7
  %v3433 = vsel %vm3424, %v3431, %v3432
  %v3434 = vrot.slane %v3225, 7
  %v3435 = vrot.slane %v3230, 7
  %v3436 = vsel %vm3424, %v3434, %v3435
  %v3437 = vrot.slane %v3226, 7
  %v3438 = vrot.slane %v3231, 7
  %v3439 = vsel %vm3424, %v3437, %v3438
  %v3440 = vrot.slane %v3232, 7
  %v3441 = vsel %vm3424, %v3426, %v3440
  %v3442 = vrot.slane %v3233, 7
  %v3443 = vsel %vm3424, %v3429, %v3442
  %v3444 = vrot.slane %v3234, 7
  %v3445 = vsel %vm3424, %v3432, %v3444
  %v3446 = vrot.slane %v3235, 7
  %v3447 = vsel %vm3424, %v3435, %v3446
  %v3448 = vrot.slane %v3236, 7
  %v3449 = vsel %vm3424, %v3438, %v3448
  %v3450 = vrot.slane %v3237, 7
  %v3451 = vsel %vm3424, %v3440, %v3450
  %v3452 = vrot.slane %v3238, 7
  %v3453 = vsel %vm3424, %v3442, %v3452
  %v3454 = vrot.slane %v3239, 7
  %v3455 = vsel %vm3424, %v3444, %v3454
  %v3456 = vrot.slane %v3240, 7
  %v3457 = vsel %vm3424, %v3446, %v3456
  %v3458 = vrot.slane %v3241, 7
  %v3459 = vsel %vm3424, %v3448, %v3458
  %v3460 = vrot.slane %v3242, 7
  %v3461 = vsel %vm3424, %v3450, %v3460
  %v3462 = vrot.slane %v3243, 7
  %v3463 = vsel %vm3424, %v3452, %v3462
  %v3464 = vrot.slane %v3244, 7
  %v3465 = vsel %vm3424, %v3454, %v3464
  %v3466 = vrot.slane %v3245, 7
  %v3467 = vsel %vm3424, %v3456, %v3466
  %v3468 = vrot.slane %v3246, 7
  %v3469 = vsel %vm3424, %v3458, %v3468
  %v3470 = vrot.slane %v3247, 7
  %v3471 = vsel %vm3424, %v3460, %v3470
  %v3472 = vrot.slane %v3248, 7
  %v3473 = vsel %vm3424, %v3462, %v3472
  %v3474 = vrot.slane %v3249, 7
  %v3475 = vsel %vm3424, %v3464, %v3474
  %v3476 = vrot.slane %v3250, 7
  %v3477 = vsel %vm3424, %v3466, %v3476
  %v3478 = vrot.slane %v3251, 7
  %v3479 = vsel %vm3424, %v3468, %v3478
  %v3480 = vrot.slane %v3252, 7
  %v3481 = vsel %vm3424, %v3470, %v3480
  %v3482 = vrot.slane %v3253, 7
  %v3483 = vsel %vm3424, %v3472, %v3482
  %v3484 = vrot.slane %v3254, 7
  %v3485 = vsel %vm3424, %v3474, %v3484
  %v3486 = vrot.slane %v3255, 7
  %v3487 = vsel %vm3424, %v3476, %v3486
  %v3488 = vrot.slane %v3256, 7
  %v3489 = vsel %vm3424, %v3478, %v3488
  %v3490 = vrot.slane %v3257, 7
  %v3491 = vsel %vm3424, %v3480, %v3490
  %v3492 = vrot.slane %v3258, 7
  %v3493 = vsel %vm3424, %v3482, %v3492
  %v3494 = vrot.slane %v3259, 7
  %v3495 = vsel %vm3424, %v3484, %v3494
  %v3496 = vrot.slane %v3260, 7
  %v3497 = vsel %vm3424, %v3486, %v3496
  %v3498 = vrot.slane %v3261, 7
  %v3499 = vsel %vm3424, %v3488, %v3498
  %v3500 = vrot.slane %v3262, 7
  %v3501 = vsel %vm3424, %v3490, %v3500
  %v3502 = vrot.slane %v3263, 7
  %v3503 = vsel %vm3424, %v3492, %v3502
  %v3504 = vrot.slane %v3264, 7
  %v3505 = vsel %vm3424, %v3494, %v3504
  %v3506 = vrot.slane %v3265, 7
  %v3507 = vsel %vm3424, %v3496, %v3506
  %v3508 = vrot.slane %v3266, 7
  %v3509 = vsel %vm3424, %v3498, %v3508
  %v3510 = vrot.slane %v3267, 7
  %v3511 = vsel %vm3424, %v3500, %v3510
  %v3512 = vrot.slane %v3268, 7
  %v3513 = vsel %vm3424, %v3502, %v3512
  %v3514 = vrot.slane %v3269, 7
  %v3515 = vsel %vm3424, %v3504, %v3514
  %v3516 = vrot.slane %v3270, 7
  %v3517 = vsel %vm3424, %v3506, %v3516
  %v3518 = vrot.slane %v3271, 7
  %v3519 = vsel %vm3424, %v3508, %v3518
  %v3520 = vrot.slane %v3272, 7
  %v3521 = vsel %vm3424, %v3510, %v3520
  %v3522 = vrot.slane %v3273, 7
  %v3523 = vsel %vm3424, %v3512, %v3522
  %v3524 = vrot.slane %v3274, 7
  %v3525 = vsel %vm3424, %v3514, %v3524
  %v3526 = vrot.slane %v3275, 7
  %v3527 = vsel %vm3424, %v3516, %v3526
  %v3528 = vrot.slane %v3276, 7
  %v3529 = vsel %vm3424, %v3518, %v3528
  %v3530 = vrot.slane %v3277, 7
  %v3531 = vsel %vm3424, %v3520, %v3530
  %v3532 = vrot.slane %v3278, 7
  %v3533 = vsel %vm3424, %v3522, %v3532
  %v3534 = vrot.slane %v3279, 7
  %v3535 = vsel %vm3424, %v3524, %v3534
  %v3536 = vrot.slane %v3280, 7
  %v3537 = vsel %vm3424, %v3526, %v3536
  %v3538 = vrot.slane %v3281, 7
  %v3539 = vsel %vm3424, %v3528, %v3538
  %v3540 = vrot.slane %v3282, 7
  %v3541 = vsel %vm3424, %v3530, %v3540
  %v3542 = vrot.slane %v3283, 7
  %v3543 = vsel %vm3424, %v3532, %v3542
  %v3544 = vrot.slane %v3284, 7
  %v3545 = vsel %vm3424, %v3534, %v3544
  %v3546 = vrot.slane %v3285, 7
  %v3547 = vsel %vm3424, %v3536, %v3546
  %v3548 = vrot.slane %v3286, 7
  %v3549 = vsel %vm3424, %v3538, %v3548
  %v3550 = vrot.slane %v3287, 7
  %v3551 = vsel %vm3424, %v3540, %v3550
  %v3552 = vrot.slane %v3288, 7
  %v3553 = vsel %vm3424, %v3542, %v3552
  %v3554 = vrot.slane %v3289, 7
  %v3555 = vsel %vm3424, %v3544, %v3554
  %v3556 = vrot.slane %v3290, 7
  %v3557 = vsel %vm3424, %v3546, %v3556
  %v3558 = vrot.slane %v3291, 7
  %v3559 = vsel %vm3424, %v3548, %v3558
  %v3560 = vrot.slane %v3292, 7
  %v3561 = vsel %vm3424, %v3550, %v3560
  %v3562 = vrot.slane %v3293, 7
  %v3563 = vsel %vm3424, %v3552, %v3562
  %v3564 = vrot.slane %v3294, 7
  %v3565 = vsel %vm3424, %v3554, %v3564
  %v3566 = vrot.slane %v3295, 7
  %v3567 = vsel %vm3424, %v3556, %v3566
  %v3568 = vrot.slane %v3296, 7
  %v3569 = vsel %vm3424, %v3558, %v3568
  %v3570 = vrot.slane %v3297, 7
  %v3571 = vsel %vm3424, %v3560, %v3570
  %v3572 = vrot.slane %v3298, 7
  %v3573 = vsel %vm3424, %v3562, %v3572
  %v3574 = vrot.slane %v3299, 7
  %v3575 = vsel %vm3424, %v3564, %v3574
  %v3576 = vrot.slane %v3300, 7
  %v3577 = vsel %vm3424, %v3566, %v3576
  %v3578 = vrot.slane %v3301, 7
  %v3579 = vsel %vm3424, %v3568, %v3578
  %v3580 = vrot.slane %v3302, 7
  %v3581 = vsel %vm3424, %v3570, %v3580
  %v3582 = vrot.slane %v3303, 7
  %v3583 = vsel %vm3424, %v3572, %v3582
  %v3584 = vrot.slane %v3304, 7
  %v3585 = vsel %vm3424, %v3574, %v3584
  %v3586 = vrot.slane %v3305, 7
  %v3587 = vsel %vm3424, %v3576, %v3586
  %v3588 = vrot.slane %v3306, 7
  %v3589 = vsel %vm3424, %v3578, %v3588
  %v3670 = vsel %vm3323, %v3427, 0.0
  %v3671 = vsel %vm3323, %v3430, 0.0
  %v3672 = vsel %vm3323, %v3433, 0.0
  %v3673 = vsel %vm3323, %v3436, 0.0
  %v3674 = vsel %vm3323, %v3439, 0.0
  %v3675 = vsel %vm3324, %v3441, 0.0
  %v3676 = vsel %vm3324, %v3443, 0.0
  %v3677 = vsel %vm3324, %v3445, 0.0
  %v3678 = vsel %vm3324, %v3447, 0.0
  %v3679 = vsel %vm3324, %v3449, 0.0
  %v3680 = vsel %vm3325, %v3451, 0.0
  %v3681 = vsel %vm3325, %v3453, 0.0
  %v3682 = vsel %vm3325, %v3455, 0.0
  %v3683 = vsel %vm3325, %v3457, 0.0
  %v3684 = vsel %vm3325, %v3459, 0.0
  %v3685 = vsel %vm3326, %v3461, 0.0
  %v3686 = vsel %vm3326, %v3463, 0.0
  %v3687 = vsel %vm3326, %v3465, 0.0
  %v3688 = vsel %vm3326, %v3467, 0.0
  %v3689 = vsel %vm3326, %v3469, 0.0
  %v3690 = vsel %vm3327, %v3471, 0.0
  %v3691 = vsel %vm3327, %v3473, 0.0
  %v3692 = vsel %vm3327, %v3475, 0.0
  %v3693 = vsel %vm3327, %v3477, 0.0
  %v3694 = vsel %vm3327, %v3479, 0.0
  %v3695 = vsel %vm3328, %v3481, 0.0
  %v3696 = vsel %vm3328, %v3483, 0.0
  %v3697 = vsel %vm3328, %v3485, 0.0
  %v3698 = vsel %vm3328, %v3487, 0.0
  %v3699 = vsel %vm3328, %v3489, 0.0
  %v3700 = vsel %vm3329, %v3491, 0.0
  %v3701 = vsel %vm3329, %v3493, 0.0
  %v3702 = vsel %vm3329, %v3495, 0.0
  %v3703 = vsel %vm3329, %v3497, 0.0
  %v3704 = vsel %vm3329, %v3499, 0.0
  %v3705 = vsel %vm3330, %v3501, 0.0
  %v3706 = vsel %vm3330, %v3503, 0.0
  %v3707 = vsel %vm3330, %v3505, 0.0
  %v3708 = vsel %vm3330, %v3507, 0.0
  %v3709 = vsel %vm3330, %v3509, 0.0
  %v3710 = vsel %vm3331, %v3511, 0.0
  %v3711 = vsel %vm3331, %v3513, 0.0
  %v3712 = vsel %vm3331, %v3515, 0.0
  %v3713 = vsel %vm3331, %v3517, 0.0
  %v3714 = vsel %vm3331, %v3519, 0.0
  %v3715 = vsel %vm3332, %v3521, 0.0
  %v3716 = vsel %vm3332, %v3523, 0.0
  %v3717 = vsel %vm3332, %v3525, 0.0
  %v3718 = vsel %vm3332, %v3527, 0.0
  %v3719 = vsel %vm3332, %v3529, 0.0
  %v3720 = vsel %vm3333, %v3531, 0.0
  %v3721 = vsel %vm3333, %v3533, 0.0
  %v3722 = vsel %vm3333, %v3535, 0.0
  %v3723 = vsel %vm3333, %v3537, 0.0
  %v3724 = vsel %vm3333, %v3539, 0.0
  %v3725 = vsel %vm3334, %v3541, 0.0
  %v3726 = vsel %vm3334, %v3543, 0.0
  %v3727 = vsel %vm3334, %v3545, 0.0
  %v3728 = vsel %vm3334, %v3547, 0.0
  %v3729 = vsel %vm3334, %v3549, 0.0
  %v3730 = vsel %vm3335, %v3551, 0.0
  %v3731 = vsel %vm3335, %v3553, 0.0
  %v3732 = vsel %vm3335, %v3555, 0.0
  %v3733 = vsel %vm3335, %v3557, 0.0
  %v3734 = vsel %vm3335, %v3559, 0.0
  %v3735 = vsel %vm3336, %v3561, 0.0
  %v3736 = vsel %vm3336, %v3563, 0.0
  %v3737 = vsel %vm3336, %v3565, 0.0
  %v3738 = vsel %vm3336, %v3567, 0.0
  %v3739 = vsel %vm3336, %v3569, 0.0
  %v3740 = vsel %vm3337, %v3571, 0.0
  %v3741 = vsel %vm3337, %v3573, 0.0
  %v3742 = vsel %vm3337, %v3575, 0.0
  %v3743 = vsel %vm3337, %v3577, 0.0
  %v3744 = vsel %vm3337, %v3579, 0.0
  %v3745 = vsel %vm3338, %v3581, 0.0
  %v3746 = vsel %vm3338, %v3583, 0.0
  %v3747 = vsel %vm3338, %v3585, 0.0
  %v3748 = vsel %vm3338, %v3587, 0.0
  %v3749 = vsel %vm3338, %v3589, 0.0
  %vm3750 = vcmp.lt.s32.totalorder %v3190, 3
  %vm3751 = vcmp.lt.s32.totalorder %v3191, 3
  %vm3752 = vcmp.lt.s32.totalorder %v3192, 3
  %vm3753 = vcmp.lt.s32.totalorder %v3193, 3
  %vm3754 = vcmp.lt.s32.totalorder %v3194, 3
  %vm3755 = vcmp.lt.s32.totalorder %v3195, 3
  %vm3756 = vcmp.lt.s32.totalorder %v3196, 3
  %vm3757 = vcmp.lt.s32.totalorder %v3197, 3
  %vm3758 = vcmp.lt.s32.totalorder %v3198, 3
  %vm3759 = vcmp.lt.s32.totalorder %v3199, 3
  %vm3760 = vcmp.lt.s32.totalorder %v3200, 3
  %vm3761 = vcmp.lt.s32.totalorder %v3201, 3
  %vm3762 = vcmp.lt.s32.totalorder %v3202, 3
  %vm3763 = vcmp.lt.s32.totalorder %v3203, 3
  %vm3764 = vcmp.lt.s32.totalorder %v3204, 3
  %vm3765 = vcmp.lt.s32.totalorder %v3205, 3
  %v3766 = vld [vmem:[#allocation2 + $0x28] sm:$0xfe]
  %v3767 = vld [vmem:[#allocation2 + $0x30] sm:$0xfe]
  %v3768 = vld [vmem:[#allocation2 + $0x38] sm:$0xfe]
  %v3769 = vld [vmem:[#allocation2 + $0x40] sm:$0xfe]
  %v3770 = vld [vmem:[#allocation2 + $0x48] sm:$0xfe]
  %v3771 = vld [vmem:[#allocation2 + $0x50] sm:$0xff]
  %v3772 = vld [vmem:[#allocation2 + $0x58] sm:$0xff]
  %v3773 = vld [vmem:[#allocation2 + $0x60] sm:$0xff]
  %v3774 = vld [vmem:[#allocation2 + $0x68] sm:$0xff]
  %v3775 = vld [vmem:[#allocation2 + $0x70] sm:$0xff]
  %v3776 = vld [vmem:[#allocation2 + $0x78] sm:$0xff]
  %v3777 = vld [vmem:[#allocation2 + $0x80] sm:$0xff]
  %v3778 = vld [vmem:[#allocation2 + $0x88] sm:$0xff]
  %v3779 = vld [vmem:[#allocation2 + $0x90] sm:$0xff]
  %v3780 = vld [vmem:[#allocation2 + $0x98] sm:$0xff]
  %v3781 = vld [vmem:[#allocation2 + $0xa0] sm:$0xff]
  %v3782 = vld [vmem:[#allocation2 + $0xa8] sm:$0xff]
  %v3783 = vld [vmem:[#allocation2 + $0xb0] sm:$0xff]
  %v3784 = vld [vmem:[#allocation2 + $0xb8] sm:$0xff]
  %v3785 = vld [vmem:[#allocation2 + $0xc0] sm:$0xff]
  %v3786 = vld [vmem:[#allocation2 + $0xc8] sm:$0xff]
  %v3787 = vld [vmem:[#allocation2 + $0xd0] sm:$0xff]
  %v3788 = vld [vmem:[#allocation2 + $0xd8] sm:$0xff]
  %v3789 = vld [vmem:[#allocation2 + $0xe0] sm:$0xff]
  %v3790 = vld [vmem:[#allocation2 + $0xe8] sm:$0xff]
  %v3791 = vld [vmem:[#allocation2 + $0xf0] sm:$0xff]
  %v3792 = vld [vmem:[#allocation2 + $0xf8] sm:$0xff]
  %v3793 = vld [vmem:[#allocation2 + $0x100] sm:$0xff]
  %v3794 = vld [vmem:[#allocation2 + $0x108] sm:$0xff]
  %v3795 = vld [vmem:[#allocation2 + $0x110] sm:$0xff]
  %v3796 = vld [vmem:[#allocation2 + $0x118] sm:$0xff]
  %v3797 = vld [vmem:[#allocation2 + $0x120] sm:$0xff]
  %v3798 = vld [vmem:[#allocation2 + $0x128] sm:$0xff]
  %v3799 = vld [vmem:[#allocation2 + $0x130] sm:$0xff]
  %v3800 = vld [vmem:[#allocation2 + $0x138] sm:$0xff]
  %v3801 = vld [vmem:[#allocation2 + $0x140] sm:$0xff]
  %v3802 = vld [vmem:[#allocation2 + $0x148] sm:$0xff]
  %v3803 = vld [vmem:[#allocation2 + $0x150] sm:$0xff]
  %v3804 = vld [vmem:[#allocation2 + $0x158] sm:$0xff]
  %v3805 = vld [vmem:[#allocation2 + $0x160] sm:$0xff]
  %v3806 = vld [vmem:[#allocation2 + $0x168] sm:$0xff]
  %v3807 = vld [vmem:[#allocation2 + $0x170] sm:$0xff]
  %v3808 = vld [vmem:[#allocation2 + $0x178] sm:$0xff]
  %v3809 = vld [vmem:[#allocation2 + $0x180] sm:$0xff]
  %v3810 = vld [vmem:[#allocation2 + $0x188] sm:$0xff]
  %v3811 = vld [vmem:[#allocation2 + $0x190] sm:$0xff]
  %v3812 = vld [vmem:[#allocation2 + $0x198] sm:$0xff]
  %v3813 = vld [vmem:[#allocation2 + $0x1a0] sm:$0xff]
  %v3814 = vld [vmem:[#allocation2 + $0x1a8] sm:$0xff]
  %v3815 = vld [vmem:[#allocation2 + $0x1b0] sm:$0xff]
  %v3816 = vld [vmem:[#allocation2 + $0x1b8] sm:$0xff]
  %v3817 = vld [vmem:[#allocation2 + $0x1c0] sm:$0xff]
  %v3818 = vld [vmem:[#allocation2 + $0x1c8] sm:$0xff]
  %v3819 = vld [vmem:[#allocation2 + $0x1d0] sm:$0xff]
  %v3820 = vld [vmem:[#allocation2 + $0x1d8] sm:$0xff]
  %v3821 = vld [vmem:[#allocation2 + $0x1e0] sm:$0xff]
  %v3822 = vld [vmem:[#allocation2 + $0x1e8] sm:$0xff]
  %v3823 = vld [vmem:[#allocation2 + $0x1f0] sm:$0xff]
  %v3824 = vld [vmem:[#allocation2 + $0x1f8] sm:$0xff]
  %v3825 = vld [vmem:[#allocation2 + $0x200] sm:$0xff]
  %v3826 = vld [vmem:[#allocation2 + $0x208] sm:$0xff]
  %v3827 = vld [vmem:[#allocation2 + $0x210] sm:$0xff]
  %v3828 = vld [vmem:[#allocation2 + $0x218] sm:$0xff]
  %v3829 = vld [vmem:[#allocation2 + $0x220] sm:$0xff]
  %v3830 = vld [vmem:[#allocation2 + $0x228] sm:$0xff]
  %v3831 = vld [vmem:[#allocation2 + $0x230] sm:$0xff]
  %v3832 = vld [vmem:[#allocation2 + $0x238] sm:$0xff]
  %v3833 = vld [vmem:[#allocation2 + $0x240] sm:$0xff]
  %v3834 = vld [vmem:[#allocation2 + $0x248] sm:$0xff]
  %v3835 = vld [vmem:[#allocation2 + $0x250] sm:$0xff]
  %v3836 = vld [vmem:[#allocation2 + $0x258] sm:$0xff]
  %v3837 = vld [vmem:[#allocation2 + $0x260] sm:$0xff]
  %v3838 = vld [vmem:[#allocation2 + $0x268] sm:$0xff]
  %v3839 = vld [vmem:[#allocation2 + $0x270] sm:$0xff]
  %v3840 = vld [vmem:[#allocation2 + $0x278] sm:$0xff]
  %v3841 = vld [vmem:[#allocation2 + $0x280] sm:$0xff]
  %v3842 = vld [vmem:[#allocation2 + $0x288] sm:$0xff]
  %v3843 = vld [vmem:[#allocation2 + $0x290] sm:$0xff]
  %v3844 = vld [vmem:[#allocation2 + $0x298] sm:$0xff]
  %v3845 = vld [vmem:[#allocation2 + $0x2a0] sm:$0xff]
  %v3846 = vld [vmem:[#allocation2 + $0x2a8] sm:$0x1]
  %v3847 = vld [vmem:[#allocation2 + $0x2b0] sm:$0x1]
  %v3848 = vld [vmem:[#allocation2 + $0x2b8] sm:$0x1]
  %v3849 = vld [vmem:[#allocation2 + $0x2c0] sm:$0x1]
  %v3850 = vld [vmem:[#allocation2 + $0x2c8] sm:$0x1]
  %v3851 = vsel %vm3750, 1, 0
  %v3852 = vsel %vm3751, 1, 0
  %v3853 = vsel %vm3752, 1, 0
  %v3854 = vsel %vm3753, 1, 0
  %v3855 = vsel %vm3754, 1, 0
  %v3856 = vsel %vm3755, 1, 0
  %v3857 = vsel %vm3756, 1, 0
  %v3858 = vsel %vm3757, 1, 0
  %v3859 = vsel %vm3758, 1, 0
  %v3860 = vsel %vm3759, 1, 0
  %v3861 = vsel %vm3760, 1, 0
  %v3862 = vsel %vm3761, 1, 0
  %v3863 = vsel %vm3762, 1, 0
  %v3864 = vsel %vm3763, 1, 0
  %v3865 = vsel %vm3764, 1, 0
  %v3866 = vsel %vm3765, 1, 0
  %vm3867 = vcmp.eq.s32.totalorder %v3851, 1
  %vm3868 = vcmp.eq.s32.totalorder %v3852, 1
  %vm3869 = vcmp.eq.s32.totalorder %v3853, 1
  %vm3870 = vcmp.eq.s32.totalorder %v3854, 1
  %vm3871 = vcmp.eq.s32.totalorder %v3855, 1
  %vm3872 = vcmp.eq.s32.totalorder %v3856, 1
  %vm3873 = vcmp.eq.s32.totalorder %v3857, 1
  %vm3874 = vcmp.eq.s32.totalorder %v3858, 1
  %vm3875 = vcmp.eq.s32.totalorder %v3859, 1
  %vm3876 = vcmp.eq.s32.totalorder %v3860, 1
  %vm3877 = vcmp.eq.s32.totalorder %v3861, 1
  %vm3878 = vcmp.eq.s32.totalorder %v3862, 1
  %vm3879 = vcmp.eq.s32.totalorder %v3863, 1
  %vm3880 = vcmp.eq.s32.totalorder %v3864, 1
  %vm3881 = vcmp.eq.s32.totalorder %v3865, 1
  %vm3882 = vcmp.eq.s32.totalorder %v3866, 1
  %vm3968 = vcmask 1046528
  %v3969 = vrot.slane %v3766, 1
  %v3970 = vrot.slane %v3771, 1
  %v3971 = vsel %vm3968, %v3969, %v3970
  %v3972 = vrot.slane %v3767, 1
  %v3973 = vrot.slane %v3772, 1
  %v3974 = vsel %vm3968, %v3972, %v3973
  %v3975 = vrot.slane %v3768, 1
  %v3976 = vrot.slane %v3773, 1
  %v3977 = vsel %vm3968, %v3975, %v3976
  %v3978 = vrot.slane %v3769, 1
  %v3979 = vrot.slane %v3774, 1
  %v3980 = vsel %vm3968, %v3978, %v3979
  %v3981 = vrot.slane %v3770, 1
  %v3982 = vrot.slane %v3775, 1
  %v3983 = vsel %vm3968, %v3981, %v3982
  %v3984 = vrot.slane %v3776, 1
  %v3985 = vsel %vm3968, %v3970, %v3984
  %v3986 = vrot.slane %v3777, 1
  %v3987 = vsel %vm3968, %v3973, %v3986
  %v3988 = vrot.slane %v3778, 1
  %v3989 = vsel %vm3968, %v3976, %v3988
  %v3990 = vrot.slane %v3779, 1
  %v3991 = vsel %vm3968, %v3979, %v3990
  %v3992 = vrot.slane %v3780, 1
  %v3993 = vsel %vm3968, %v3982, %v3992
  %v3994 = vrot.slane %v3781, 1
  %v3995 = vsel %vm3968, %v3984, %v3994
  %v3996 = vrot.slane %v3782, 1
  %v3997 = vsel %vm3968, %v3986, %v3996
  %v3998 = vrot.slane %v3783, 1
  %v3999 = vsel %vm3968, %v3988, %v3998
  %v4000 = vrot.slane %v3784, 1
  %v4001 = vsel %vm3968, %v3990, %v4000
  %v4002 = vrot.slane %v3785, 1
  %v4003 = vsel %vm3968, %v3992, %v4002
  %v4004 = vrot.slane %v3786, 1
  %v4005 = vsel %vm3968, %v3994, %v4004
  %v4006 = vrot.slane %v3787, 1
  %v4007 = vsel %vm3968, %v3996, %v4006
  %v4008 = vrot.slane %v3788, 1
  %v4009 = vsel %vm3968, %v3998, %v4008
  %v4010 = vrot.slane %v3789, 1
  %v4011 = vsel %vm3968, %v4000, %v4010
  %v4012 = vrot.slane %v3790, 1
  %v4013 = vsel %vm3968, %v4002, %v4012
  %v4014 = vrot.slane %v3791, 1
  %v4015 = vsel %vm3968, %v4004, %v4014
  %v4016 = vrot.slane %v3792, 1
  %v4017 = vsel %vm3968, %v4006, %v4016
  %v4018 = vrot.slane %v3793, 1
  %v4019 = vsel %vm3968, %v4008, %v4018
  %v4020 = vrot.slane %v3794, 1
  %v4021 = vsel %vm3968, %v4010, %v4020
  %v4022 = vrot.slane %v3795, 1
  %v4023 = vsel %vm3968, %v4012, %v4022
  %v4024 = vrot.slane %v3796, 1
  %v4025 = vsel %vm3968, %v4014, %v4024
  %v4026 = vrot.slane %v3797, 1
  %v4027 = vsel %vm3968, %v4016, %v4026
  %v4028 = vrot.slane %v3798, 1
  %v4029 = vsel %vm3968, %v4018, %v4028
  %v4030 = vrot.slane %v3799, 1
  %v4031 = vsel %vm3968, %v4020, %v4030
  %v4032 = vrot.slane %v3800, 1
  %v4033 = vsel %vm3968, %v4022, %v4032
  %v4034 = vrot.slane %v3801, 1
  %v4035 = vsel %vm3968, %v4024, %v4034
  %v4036 = vrot.slane %v3802, 1
  %v4037 = vsel %vm3968, %v4026, %v4036
  %v4038 = vrot.slane %v3803, 1
  %v4039 = vsel %vm3968, %v4028, %v4038
  %v4040 = vrot.slane %v3804, 1
  %v4041 = vsel %vm3968, %v4030, %v4040
  %v4042 = vrot.slane %v3805, 1
  %v4043 = vsel %vm3968, %v4032, %v4042
  %v4044 = vrot.slane %v3806, 1
  %v4045 = vsel %vm3968, %v4034, %v4044
  %v4046 = vrot.slane %v3807, 1
  %v4047 = vsel %vm3968, %v4036, %v4046
  %v4048 = vrot.slane %v3808, 1
  %v4049 = vsel %vm3968, %v4038, %v4048
  %v4050 = vrot.slane %v3809, 1
  %v4051 = vsel %vm3968, %v4040, %v4050
  %v4052 = vrot.slane %v3810, 1
  %v4053 = vsel %vm3968, %v4042, %v4052
  %v4054 = vrot.slane %v3811, 1
  %v4055 = vsel %vm3968, %v4044, %v4054
  %v4056 = vrot.slane %v3812, 1
  %v4057 = vsel %vm3968, %v4046, %v4056
  %v4058 = vrot.slane %v3813, 1
  %v4059 = vsel %vm3968, %v4048, %v4058
  %v4060 = vrot.slane %v3814, 1
  %v4061 = vsel %vm3968, %v4050, %v4060
  %v4062 = vrot.slane %v3815, 1
  %v4063 = vsel %vm3968, %v4052, %v4062
  %v4064 = vrot.slane %v3816, 1
  %v4065 = vsel %vm3968, %v4054, %v4064
  %v4066 = vrot.slane %v3817, 1
  %v4067 = vsel %vm3968, %v4056, %v4066
  %v4068 = vrot.slane %v3818, 1
  %v4069 = vsel %vm3968, %v4058, %v4068
  %v4070 = vrot.slane %v3819, 1
  %v4071 = vsel %vm3968, %v4060, %v4070
  %v4072 = vrot.slane %v3820, 1
  %v4073 = vsel %vm3968, %v4062, %v4072
  %v4074 = vrot.slane %v3821, 1
  %v4075 = vsel %vm3968, %v4064, %v4074
  %v4076 = vrot.slane %v3822, 1
  %v4077 = vsel %vm3968, %v4066, %v4076
  %v4078 = vrot.slane %v3823, 1
  %v4079 = vsel %vm3968, %v4068, %v4078
  %v4080 = vrot.slane %v3824, 1
  %v4081 = vsel %vm3968, %v4070, %v4080
  %v4082 = vrot.slane %v3825, 1
  %v4083 = vsel %vm3968, %v4072, %v4082
  %v4084 = vrot.slane %v3826, 1
  %v4085 = vsel %vm3968, %v4074, %v4084
  %v4086 = vrot.slane %v3827, 1
  %v4087 = vsel %vm3968, %v4076, %v4086
  %v4088 = vrot.slane %v3828, 1
  %v4089 = vsel %vm3968, %v4078, %v4088
  %v4090 = vrot.slane %v3829, 1
  %v4091 = vsel %vm3968, %v4080, %v4090
  %v4092 = vrot.slane %v3830, 1
  %v4093 = vsel %vm3968, %v4082, %v4092
  %v4094 = vrot.slane %v3831, 1
  %v4095 = vsel %vm3968, %v4084, %v4094
  %v4096 = vrot.slane %v3832, 1
  %v4097 = vsel %vm3968, %v4086, %v4096
  %v4098 = vrot.slane %v3833, 1
  %v4099 = vsel %vm3968, %v4088, %v4098
  %v4100 = vrot.slane %v3834, 1
  %v4101 = vsel %vm3968, %v4090, %v4100
  %v4102 = vrot.slane %v3835, 1
  %v4103 = vsel %vm3968, %v4092, %v4102
  %v4104 = vrot.slane %v3836, 1
  %v4105 = vsel %vm3968, %v4094, %v4104
  %v4106 = vrot.slane %v3837, 1
  %v4107 = vsel %vm3968, %v4096, %v4106
  %v4108 = vrot.slane %v3838, 1
  %v4109 = vsel %vm3968, %v4098, %v4108
  %v4110 = vrot.slane %v3839, 1
  %v4111 = vsel %vm3968, %v4100, %v4110
  %v4112 = vrot.slane %v3840, 1
  %v4113 = vsel %vm3968, %v4102, %v4112
  %v4114 = vrot.slane %v3841, 1
  %v4115 = vsel %vm3968, %v4104, %v4114
  %v4116 = vrot.slane %v3842, 1
  %v4117 = vsel %vm3968, %v4106, %v4116
  %v4118 = vrot.slane %v3843, 1
  %v4119 = vsel %vm3968, %v4108, %v4118
  %v4120 = vrot.slane %v3844, 1
  %v4121 = vsel %vm3968, %v4110, %v4120
  %v4122 = vrot.slane %v3845, 1
  %v4123 = vsel %vm3968, %v4112, %v4122
  %v4124 = vrot.slane %v3846, 1
  %v4125 = vsel %vm3968, %v4114, %v4124
  %v4126 = vrot.slane %v3847, 1
  %v4127 = vsel %vm3968, %v4116, %v4126
  %v4128 = vrot.slane %v3848, 1
  %v4129 = vsel %vm3968, %v4118, %v4128
  %v4130 = vrot.slane %v3849, 1
  %v4131 = vsel %vm3968, %v4120, %v4130
  %v4132 = vrot.slane %v3850, 1
  %v4133 = vsel %vm3968, %v4122, %v4132
  %v4214 = vsel %vm3867, %v3971, 0.0
  %v4215 = vsel %vm3867, %v3974, 0.0
  %v4216 = vsel %vm3867, %v3977, 0.0
  %v4217 = vsel %vm3867, %v3980, 0.0
  %v4218 = vsel %vm3867, %v3983, 0.0
  %v4219 = vsel %vm3868, %v3985, 0.0
  %v4220 = vsel %vm3868, %v3987, 0.0
  %v4221 = vsel %vm3868, %v3989, 0.0
  %v4222 = vsel %vm3868, %v3991, 0.0
  %v4223 = vsel %vm3868, %v3993, 0.0
  %v4224 = vsel %vm3869, %v3995, 0.0
  %v4225 = vsel %vm3869, %v3997, 0.0
  %v4226 = vsel %vm3869, %v3999, 0.0
  %v4227 = vsel %vm3869, %v4001, 0.0
  %v4228 = vsel %vm3869, %v4003, 0.0
  %v4229 = vsel %vm3870, %v4005, 0.0
  %v4230 = vsel %vm3870, %v4007, 0.0
  %v4231 = vsel %vm3870, %v4009, 0.0
  %v4232 = vsel %vm3870, %v4011, 0.0
  %v4233 = vsel %vm3870, %v4013, 0.0
  %v4234 = vsel %vm3871, %v4015, 0.0
  %v4235 = vsel %vm3871, %v4017, 0.0
  %v4236 = vsel %vm3871, %v4019, 0.0
  %v4237 = vsel %vm3871, %v4021, 0.0
  %v4238 = vsel %vm3871, %v4023, 0.0
  %v4239 = vsel %vm3872, %v4025, 0.0
  %v4240 = vsel %vm3872, %v4027, 0.0
  %v4241 = vsel %vm3872, %v4029, 0.0
  %v4242 = vsel %vm3872, %v4031, 0.0
  %v4243 = vsel %vm3872, %v4033, 0.0
  %v4244 = vsel %vm3873, %v4035, 0.0
  %v4245 = vsel %vm3873, %v4037, 0.0
  %v4246 = vsel %vm3873, %v4039, 0.0
  %v4247 = vsel %vm3873, %v4041, 0.0
  %v4248 = vsel %vm3873, %v4043, 0.0
  %v4249 = vsel %vm3874, %v4045, 0.0
  %v4250 = vsel %vm3874, %v4047, 0.0
  %v4251 = vsel %vm3874, %v4049, 0.0
  %v4252 = vsel %vm3874, %v4051, 0.0
  %v4253 = vsel %vm3874, %v4053, 0.0
  %v4254 = vsel %vm3875, %v4055, 0.0
  %v4255 = vsel %vm3875, %v4057, 0.0
  %v4256 = vsel %vm3875, %v4059, 0.0
  %v4257 = vsel %vm3875, %v4061, 0.0
  %v4258 = vsel %vm3875, %v4063, 0.0
  %v4259 = vsel %vm3876, %v4065, 0.0
  %v4260 = vsel %vm3876, %v4067, 0.0
  %v4261 = vsel %vm3876, %v4069, 0.0
  %v4262 = vsel %vm3876, %v4071, 0.0
  %v4263 = vsel %vm3876, %v4073, 0.0
  %v4264 = vsel %vm3877, %v4075, 0.0
  %v4265 = vsel %vm3877, %v4077, 0.0
  %v4266 = vsel %vm3877, %v4079, 0.0
  %v4267 = vsel %vm3877, %v4081, 0.0
  %v4268 = vsel %vm3877, %v4083, 0.0
  %v4269 = vsel %vm3878, %v4085, 0.0
  %v4270 = vsel %vm3878, %v4087, 0.0
  %v4271 = vsel %vm3878, %v4089, 0.0
  %v4272 = vsel %vm3878, %v4091, 0.0
  %v4273 = vsel %vm3878, %v4093, 0.0
  %v4274 = vsel %vm3879, %v4095, 0.0
  %v4275 = vsel %vm3879, %v4097, 0.0
  %v4276 = vsel %vm3879, %v4099, 0.0
  %v4277 = vsel %vm3879, %v4101, 0.0
  %v4278 = vsel %vm3879, %v4103, 0.0
  %v4279 = vsel %vm3880, %v4105, 0.0
  %v4280 = vsel %vm3880, %v4107, 0.0
  %v4281 = vsel %vm3880, %v4109, 0.0
  %v4282 = vsel %vm3880, %v4111, 0.0
  %v4283 = vsel %vm3880, %v4113, 0.0
  %v4284 = vsel %vm3881, %v4115, 0.0
  %v4285 = vsel %vm3881, %v4117, 0.0
  %v4286 = vsel %vm3881, %v4119, 0.0
  %v4287 = vsel %vm3881, %v4121, 0.0
  %v4288 = vsel %vm3881, %v4123, 0.0
  %v4289 = vsel %vm3882, %v4125, 0.0
  %v4290 = vsel %vm3882, %v4127, 0.0
  %v4291 = vsel %vm3882, %v4129, 0.0
  %v4292 = vsel %vm3882, %v4131, 0.0
  %v4293 = vsel %vm3882, %v4133, 0.0
  %v4294 = vpack.c.bf16 %v3675, %v3670
  %v4295 = vpack.c.bf16 %v3676, %v3671
  %v4296 = vpack.c.bf16 %v3677, %v3672
  %v4297 = vpack.c.bf16 %v3678, %v3673
  %v4298 = vpack.c.bf16 %v3679, %v3674
  %v4299 = vpack.c.bf16 %v3685, %v3680
  %v4300 = vpack.c.bf16 %v3686, %v3681
  %v4301 = vpack.c.bf16 %v3687, %v3682
  %v4302 = vpack.c.bf16 %v3688, %v3683
  %v4303 = vpack.c.bf16 %v3689, %v3684
  %v4304 = vpack.c.bf16 %v3695, %v3690
  %v4305 = vpack.c.bf16 %v3696, %v3691
  %v4306 = vpack.c.bf16 %v3697, %v3692
  %v4307 = vpack.c.bf16 %v3698, %v3693
  %v4308 = vpack.c.bf16 %v3699, %v3694
  %v4309 = vpack.c.bf16 %v3705, %v3700
  %v4310 = vpack.c.bf16 %v3706, %v3701
  %v4311 = vpack.c.bf16 %v3707, %v3702
  %v4312 = vpack.c.bf16 %v3708, %v3703
  %v4313 = vpack.c.bf16 %v3709, %v3704
  %v4314 = vpack.c.bf16 %v3715, %v3710
  %v4315 = vpack.c.bf16 %v3716, %v3711
  %v4316 = vpack.c.bf16 %v3717, %v3712
  %v4317 = vpack.c.bf16 %v3718, %v3713
  %v4318 = vpack.c.bf16 %v3719, %v3714
  %v4319 = vpack.c.bf16 %v3725, %v3720
  %v4320 = vpack.c.bf16 %v3726, %v3721
  %v4321 = vpack.c.bf16 %v3727, %v3722
  %v4322 = vpack.c.bf16 %v3728, %v3723
  %v4323 = vpack.c.bf16 %v3729, %v3724
  %v4324 = vpack.c.bf16 %v3735, %v3730
  %v4325 = vpack.c.bf16 %v3736, %v3731
  %v4326 = vpack.c.bf16 %v3737, %v3732
  %v4327 = vpack.c.bf16 %v3738, %v3733
  %v4328 = vpack.c.bf16 %v3739, %v3734
  %v4329 = vpack.c.bf16 %v3745, %v3740
  %v4330 = vpack.c.bf16 %v3746, %v3741
  %v4331 = vpack.c.bf16 %v3747, %v3742
  %v4332 = vpack.c.bf16 %v3748, %v3743
  %v4333 = vpack.c.bf16 %v3749, %v3744
  %v4334 = vld [vmem:[%s3] sm:$0xf]
  %v4335 = vld [vmem:[%s3 + $0x4] sm:$0xf]
  %v4336 = vld [vmem:[%s3 + $0x8] sm:$0xf]
  %v4337 = vld [vmem:[%s3 + $0xc] sm:$0xf]
  %v4338 = vld [vmem:[%s3 + $0x10] sm:$0xf]
  %v4339 = vld [vmem:[%s3 + $0x14] sm:$0xf]
  %v4340 = vld [vmem:[%s3 + $0x18] sm:$0xf]
  %v4341 = vld [vmem:[%s3 + $0x1c] sm:$0xf]
  %v4342 = vld [vmem:[%s3 + $0x20] sm:$0xf]
  %v4343 = vld [vmem:[%s3 + $0x24] sm:$0xf]
  %v4344 = vld [vmem:[%s3 + $0x28] sm:$0xf]
  %v4345 = vld [vmem:[%s3 + $0x2c] sm:$0xf]
  %v4346 = vld [vmem:[%s3 + $0x30] sm:$0xf]
  %v4347 = vld [vmem:[%s3 + $0x34] sm:$0xf]
  %v4348 = vld [vmem:[%s3 + $0x38] sm:$0xf]
  %v4349 = vld [vmem:[%s3 + $0x3c] sm:$0xf]
  %v4350 = vld [vmem:[%s3 + $0x40] sm:$0xf]
  %v4351 = vld [vmem:[%s3 + $0x44] sm:$0xf]
  %v4352 = vld [vmem:[%s3 + $0x48] sm:$0xf]
  %v4353 = vld [vmem:[%s3 + $0x4c] sm:$0xf]
  %v4354 = vld [vmem:[%s3 + $0x50] sm:$0xf]
  %v4355 = vld [vmem:[%s3 + $0x54] sm:$0xf]
  %v4356 = vld [vmem:[%s3 + $0x58] sm:$0xf]
  %v4357 = vld [vmem:[%s3 + $0x5c] sm:$0xf]
  %v4358 = vld [vmem:[%s3 + $0x60] sm:$0xf]
  %v4359 = vld [vmem:[%s3 + $0x64] sm:$0xf]
  %v4360 = vld [vmem:[%s3 + $0x68] sm:$0xf]
  %v4361 = vld [vmem:[%s3 + $0x6c] sm:$0xf]
  %v4362 = vld [vmem:[%s3 + $0x70] sm:$0xf]
  %v4363 = vld [vmem:[%s3 + $0x74] sm:$0xf]
  %v4364 = vld [vmem:[%s3 + $0x78] sm:$0xf]
  %v4365 = vld [vmem:[%s3 + $0x7c] sm:$0xf]
  %v4366 = vld [vmem:[%s3 + $0x80] sm:$0xf]
  %v4367 = vld [vmem:[%s3 + $0x84] sm:$0xf]
  %v4368 = vld [vmem:[%s3 + $0x88] sm:$0xf]
  %v4369 = vld [vmem:[%s3 + $0x8c] sm:$0xf]
  %v4370 = vld [vmem:[%s3 + $0x90] sm:$0xf]
  %v4371 = vld [vmem:[%s3 + $0x94] sm:$0xf]
  %v4372 = vld [vmem:[%s3 + $0x98] sm:$0xf]
  %v4373 = vld [vmem:[%s3 + $0x9c] sm:$0xf]
  %v4374 = vld [vmem:[%s3 + $0xa0] sm:$0xf]
  %v4375 = vld [vmem:[%s3 + $0xa4] sm:$0xf]
  %v4376 = vld [vmem:[%s3 + $0xa8] sm:$0xf]
  %v4377 = vld [vmem:[%s3 + $0xac] sm:$0xf]
  %v4378 = vld [vmem:[%s3 + $0xb0] sm:$0xf]
  %v4379 = vld [vmem:[%s3 + $0xb4] sm:$0xf]
  %v4380 = vld [vmem:[%s3 + $0xb8] sm:$0xf]
  %v4381 = vld [vmem:[%s3 + $0xbc] sm:$0xf]
  %v4382 = vld [vmem:[%s3 + $0xc0] sm:$0xf]
  %v4383 = vld [vmem:[%s3 + $0xc4] sm:$0xf]
  %v4384 = vld [vmem:[%s3 + $0xc8] sm:$0xf]
  %v4385 = vld [vmem:[%s3 + $0xcc] sm:$0xf]
  %v4386 = vld [vmem:[%s3 + $0xd0] sm:$0xf]
  %v4387 = vld [vmem:[%s3 + $0xd4] sm:$0xf]
  %v4388 = vld [vmem:[%s3 + $0xd8] sm:$0xf]
  %v4389 = vld [vmem:[%s3 + $0xdc] sm:$0xf]
  %v4390 = vld [vmem:[%s3 + $0xe0] sm:$0xf]
  %v4391 = vld [vmem:[%s3 + $0xe4] sm:$0xf]
  %v4392 = vld [vmem:[%s3 + $0xe8] sm:$0xf]
  %v4393 = vld [vmem:[%s3 + $0xec] sm:$0xf]
  %v4394 = vld [vmem:[%s3 + $0xf0] sm:$0xf]
  %v4395 = vld [vmem:[%s3 + $0xf4] sm:$0xf]
  %v4396 = vld [vmem:[%s3 + $0xf8] sm:$0xf]
  %v4397 = vld [vmem:[%s3 + $0xfc] sm:$0xf]
  %v4398 = vld [vmem:[%s3 + $0x100] sm:$0xf]
  %v4399 = vld [vmem:[%s3 + $0x104] sm:$0xf]
  %v4400 = vld [vmem:[%s3 + $0x108] sm:$0xf]
  %v4401 = vld [vmem:[%s3 + $0x10c] sm:$0xf]
  %v4402 = vld [vmem:[%s3 + $0x110] sm:$0xf]
  %v4403 = vld [vmem:[%s3 + $0x114] sm:$0xf]
  %v4404 = vld [vmem:[%s3 + $0x118] sm:$0xf]
  %v4405 = vld [vmem:[%s3 + $0x11c] sm:$0xf]
  %v4406 = vld [vmem:[%s3 + $0x120] sm:$0xf]
  %v4407 = vld [vmem:[%s3 + $0x124] sm:$0xf]
  %v4408 = vld [vmem:[%s3 + $0x128] sm:$0xf]
  %v4409 = vld [vmem:[%s3 + $0x12c] sm:$0xf]
  %v4410 = vld [vmem:[%s3 + $0x130] sm:$0xf]
  %v4411 = vld [vmem:[%s3 + $0x134] sm:$0xf]
  %v4412 = vld [vmem:[%s3 + $0x138] sm:$0xf]
  %v4413 = vld [vmem:[%s3 + $0x13c] sm:$0xf]
  %v4414 = vpack.c.bf16 %v2832, %v2827
  %v4415 = vpack.c.bf16 %v2833, %v2828
  %v4416 = vpack.c.bf16 %v2834, %v2829
  %v4417 = vpack.c.bf16 %v2835, %v2830
  %v4418 = vpack.c.bf16 %v2836, %v2831
  %v4419 = vpack.c.bf16 %v2842, %v2837
  %v4420 = vpack.c.bf16 %v2843, %v2838
  %v4421 = vpack.c.bf16 %v2844, %v2839
  %v4422 = vpack.c.bf16 %v2845, %v2840
  %v4423 = vpack.c.bf16 %v2846, %v2841
  %v4424 = vpack.c.bf16 %v2852, %v2847
  %v4425 = vpack.c.bf16 %v2853, %v2848
  %v4426 = vpack.c.bf16 %v2854, %v2849
  %v4427 = vpack.c.bf16 %v2855, %v2850
  %v4428 = vpack.c.bf16 %v2856, %v2851
  %v4429 = vpack.c.bf16 %v2862, %v2857
  %v4430 = vpack.c.bf16 %v2863, %v2858
  %v4431 = vpack.c.bf16 %v2864, %v2859
  %v4432 = vpack.c.bf16 %v2865, %v2860
  %v4433 = vpack.c.bf16 %v2866, %v2861
  %v4434 = vpack.c.bf16 %v2872, %v2867
  %v4435 = vpack.c.bf16 %v2873, %v2868
  %v4436 = vpack.c.bf16 %v2874, %v2869
  %v4437 = vpack.c.bf16 %v2875, %v2870
  %v4438 = vpack.c.bf16 %v2876, %v2871
  %v4439 = vpack.c.bf16 %v2882, %v2877
  %v4440 = vpack.c.bf16 %v2883, %v2878
  %v4441 = vpack.c.bf16 %v2884, %v2879
  %v4442 = vpack.c.bf16 %v2885, %v2880
  %v4443 = vpack.c.bf16 %v2886, %v2881
  %v4444 = vpack.c.bf16 %v2892, %v2887
  %v4445 = vpack.c.bf16 %v2893, %v2888
  %v4446 = vpack.c.bf16 %v2894, %v2889
  %v4447 = vpack.c.bf16 %v2895, %v2890
  %v4448 = vpack.c.bf16 %v2896, %v2891
  %v4449 = vpack.c.bf16 %v2902, %v2897
  %v4450 = vpack.c.bf16 %v2903, %v2898
  %v4451 = vpack.c.bf16 %v2904, %v2899
  %v4452 = vpack.c.bf16 %v2905, %v2900
  %v4453 = vpack.c.bf16 %v2906, %v2901
  %s4454 = scalar_lea.vmem %s3, 320
  %v4455 = vld [vmem:[%s4454] sm:$0xf]
  %v4456 = vld [vmem:[%s4454 + $0x4] sm:$0xf]
  %v4457 = vld [vmem:[%s4454 + $0x8] sm:$0xf]
  %v4458 = vld [vmem:[%s4454 + $0xc] sm:$0xf]
  %v4459 = vld [vmem:[%s4454 + $0x10] sm:$0xf]
  %v4460 = vld [vmem:[%s4454 + $0x14] sm:$0xf]
  %v4461 = vld [vmem:[%s4454 + $0x18] sm:$0xf]
  %v4462 = vld [vmem:[%s4454 + $0x1c] sm:$0xf]
  %v4463 = vld [vmem:[%s4454 + $0x20] sm:$0xf]
  %v4464 = vld [vmem:[%s4454 + $0x24] sm:$0xf]
  %v4465 = vld [vmem:[%s4454 + $0x28] sm:$0xf]
  %v4466 = vld [vmem:[%s4454 + $0x2c] sm:$0xf]
  %v4467 = vld [vmem:[%s4454 + $0x30] sm:$0xf]
  %v4468 = vld [vmem:[%s4454 + $0x34] sm:$0xf]
  %v4469 = vld [vmem:[%s4454 + $0x38] sm:$0xf]
  %v4470 = vld [vmem:[%s4454 + $0x3c] sm:$0xf]
  %v4471 = vld [vmem:[%s4454 + $0x40] sm:$0xf]
  %v4472 = vld [vmem:[%s4454 + $0x44] sm:$0xf]
  %v4473 = vld [vmem:[%s4454 + $0x48] sm:$0xf]
  %v4474 = vld [vmem:[%s4454 + $0x4c] sm:$0xf]
  %v4475 = vld [vmem:[%s4454 + $0x50] sm:$0xf]
  %v4476 = vld [vmem:[%s4454 + $0x54] sm:$0xf]
  %v4477 = vld [vmem:[%s4454 + $0x58] sm:$0xf]
  %v4478 = vld [vmem:[%s4454 + $0x5c] sm:$0xf]
  %v4479 = vld [vmem:[%s4454 + $0x60] sm:$0xf]
  %v4480 = vld [vmem:[%s4454 + $0x64] sm:$0xf]
  %v4481 = vld [vmem:[%s4454 + $0x68] sm:$0xf]
  %v4482 = vld [vmem:[%s4454 + $0x6c] sm:$0xf]
  %v4483 = vld [vmem:[%s4454 + $0x70] sm:$0xf]
  %v4484 = vld [vmem:[%s4454 + $0x74] sm:$0xf]
  %v4485 = vld [vmem:[%s4454 + $0x78] sm:$0xf]
  %v4486 = vld [vmem:[%s4454 + $0x7c] sm:$0xf]
  %v4487 = vld [vmem:[%s4454 + $0x80] sm:$0xf]
  %v4488 = vld [vmem:[%s4454 + $0x84] sm:$0xf]
  %v4489 = vld [vmem:[%s4454 + $0x88] sm:$0xf]
  %v4490 = vld [vmem:[%s4454 + $0x8c] sm:$0xf]
  %v4491 = vld [vmem:[%s4454 + $0x90] sm:$0xf]
  %v4492 = vld [vmem:[%s4454 + $0x94] sm:$0xf]
  %v4493 = vld [vmem:[%s4454 + $0x98] sm:$0xf]
  %v4494 = vld [vmem:[%s4454 + $0x9c] sm:$0xf]
  %v4495 = vld [vmem:[%s4454 + $0xa0] sm:$0xf]
  %v4496 = vld [vmem:[%s4454 + $0xa4] sm:$0xf]
  %v4497 = vld [vmem:[%s4454 + $0xa8] sm:$0xf]
  %v4498 = vld [vmem:[%s4454 + $0xac] sm:$0xf]
  %v4499 = vld [vmem:[%s4454 + $0xb0] sm:$0xf]
  %v4500 = vld [vmem:[%s4454 + $0xb4] sm:$0xf]
  %v4501 = vld [vmem:[%s4454 + $0xb8] sm:$0xf]
  %v4502 = vld [vmem:[%s4454 + $0xbc] sm:$0xf]
  %v4503 = vld [vmem:[%s4454 + $0xc0] sm:$0xf]
  %v4504 = vld [vmem:[%s4454 + $0xc4] sm:$0xf]
  %v4505 = vld [vmem:[%s4454 + $0xc8] sm:$0xf]
  %v4506 = vld [vmem:[%s4454 + $0xcc] sm:$0xf]
  %v4507 = vld [vmem:[%s4454 + $0xd0] sm:$0xf]
  %v4508 = vld [vmem:[%s4454 + $0xd4] sm:$0xf]
  %v4509 = vld [vmem:[%s4454 + $0xd8] sm:$0xf]
  %v4510 = vld [vmem:[%s4454 + $0xdc] sm:$0xf]
  %v4511 = vld [vmem:[%s4454 + $0xe0] sm:$0xf]
  %v4512 = vld [vmem:[%s4454 + $0xe4] sm:$0xf]
  %v4513 = vld [vmem:[%s4454 + $0xe8] sm:$0xf]
  %v4514 = vld [vmem:[%s4454 + $0xec] sm:$0xf]
  %v4515 = vld [vmem:[%s4454 + $0xf0] sm:$0xf]
  %v4516 = vld [vmem:[%s4454 + $0xf4] sm:$0xf]
  %v4517 = vld [vmem:[%s4454 + $0xf8] sm:$0xf]
  %v4518 = vld [vmem:[%s4454 + $0xfc] sm:$0xf]
  %v4519 = vld [vmem:[%s4454 + $0x100] sm:$0xf]
  %v4520 = vld [vmem:[%s4454 + $0x104] sm:$0xf]
  %v4521 = vld [vmem:[%s4454 + $0x108] sm:$0xf]
  %v4522 = vld [vmem:[%s4454 + $0x10c] sm:$0xf]
  %v4523 = vld [vmem:[%s4454 + $0x110] sm:$0xf]
  %v4524 = vld [vmem:[%s4454 + $0x114] sm:$0xf]
  %v4525 = vld [vmem:[%s4454 + $0x118] sm:$0xf]
  %v4526 = vld [vmem:[%s4454 + $0x11c] sm:$0xf]
  %v4527 = vld [vmem:[%s4454 + $0x120] sm:$0xf]
  %v4528 = vld [vmem:[%s4454 + $0x124] sm:$0xf]
  %v4529 = vld [vmem:[%s4454 + $0x128] sm:$0xf]
  %v4530 = vld [vmem:[%s4454 + $0x12c] sm:$0xf]
  %v4531 = vld [vmem:[%s4454 + $0x130] sm:$0xf]
  %v4532 = vld [vmem:[%s4454 + $0x134] sm:$0xf]
  %v4533 = vld [vmem:[%s4454 + $0x138] sm:$0xf]
  %v4534 = vld [vmem:[%s4454 + $0x13c] sm:$0xf]
  %v4615 = vunpack.c.l.b16 %v4455
  %v4616 = vunpack.c.l.b16 %v4456
  %v4617 = vunpack.c.l.b16 %v4457
  %v4618 = vunpack.c.l.b16 %v4458
  %v4619 = vunpack.c.l.b16 %v4459
  %v4620 = vunpack.c.l.b16 %v4460
  %v4621 = vunpack.c.l.b16 %v4461
  %v4622 = vunpack.c.l.b16 %v4462
  %v4623 = vunpack.c.l.b16 %v4463
  %v4624 = vunpack.c.l.b16 %v4464
  %v4625 = vunpack.c.l.b16 %v4465
  %v4626 = vunpack.c.l.b16 %v4466
  %v4627 = vunpack.c.l.b16 %v4467
  %v4628 = vunpack.c.l.b16 %v4468
  %v4629 = vunpack.c.l.b16 %v4469
  %v4630 = vunpack.c.l.b16 %v4470
  %v4631 = vunpack.c.l.b16 %v4471
  %v4632 = vunpack.c.l.b16 %v4472
  %v4633 = vunpack.c.l.b16 %v4473
  %v4634 = vunpack.c.l.b16 %v4474
  %v4635 = vunpack.c.l.b16 %v4475
  %v4636 = vunpack.c.l.b16 %v4476
  %v4637 = vunpack.c.l.b16 %v4477
  %v4638 = vunpack.c.l.b16 %v4478
  %v4639 = vunpack.c.l.b16 %v4479
  %v4640 = vunpack.c.l.b16 %v4480
  %v4641 = vunpack.c.l.b16 %v4481
  %v4642 = vunpack.c.l.b16 %v4482
  %v4643 = vunpack.c.l.b16 %v4483
  %v4644 = vunpack.c.l.b16 %v4484
  %v4645 = vunpack.c.l.b16 %v4485
  %v4646 = vunpack.c.l.b16 %v4486
  %v4647 = vunpack.c.l.b16 %v4487
  %v4648 = vunpack.c.l.b16 %v4488
  %v4649 = vunpack.c.l.b16 %v4489
  %v4650 = vunpack.c.l.b16 %v4490
  %v4651 = vunpack.c.l.b16 %v4491
  %v4652 = vunpack.c.l.b16 %v4492
  %v4653 = vunpack.c.l.b16 %v4493
  %v4654 = vunpack.c.l.b16 %v4494
  %v4655 = vunpack.c.l.b16 %v4495
  %v4656 = vunpack.c.l.b16 %v4496
  %v4657 = vunpack.c.l.b16 %v4497
  %v4658 = vunpack.c.l.b16 %v4498
  %v4659 = vunpack.c.l.b16 %v4499
  %v4660 = vunpack.c.l.b16 %v4500
  %v4661 = vunpack.c.l.b16 %v4501
  %v4662 = vunpack.c.l.b16 %v4502
  %v4663 = vunpack.c.l.b16 %v4503
  %v4664 = vunpack.c.l.b16 %v4504
  %v4665 = vunpack.c.l.b16 %v4505
  %v4666 = vunpack.c.l.b16 %v4506
  %v4667 = vunpack.c.l.b16 %v4507
  %v4668 = vunpack.c.l.b16 %v4508
  %v4669 = vunpack.c.l.b16 %v4509
  %v4670 = vunpack.c.l.b16 %v4510
  %v4671 = vunpack.c.l.b16 %v4511
  %v4672 = vunpack.c.l.b16 %v4512
  %v4673 = vunpack.c.l.b16 %v4513
  %v4674 = vunpack.c.l.b16 %v4514
  %v4675 = vunpack.c.l.b16 %v4515
  %v4676 = vunpack.c.l.b16 %v4516
  %v4677 = vunpack.c.l.b16 %v4517
  %v4678 = vunpack.c.l.b16 %v4518
  %v4679 = vunpack.c.l.b16 %v4519
  %v4680 = vunpack.c.l.b16 %v4520
  %v4681 = vunpack.c.l.b16 %v4521
  %v4682 = vunpack.c.l.b16 %v4522
  %v4683 = vunpack.c.l.b16 %v4523
  %v4684 = vunpack.c.l.b16 %v4524
  %v4685 = vunpack.c.l.b16 %v4525
  %v4686 = vunpack.c.l.b16 %v4526
  %v4687 = vunpack.c.l.b16 %v4527
  %v4688 = vunpack.c.l.b16 %v4528
  %v4689 = vunpack.c.l.b16 %v4529
  %v4690 = vunpack.c.l.b16 %v4530
  %v4691 = vunpack.c.l.b16 %v4531
  %v4692 = vunpack.c.l.b16 %v4532
  %v4693 = vunpack.c.l.b16 %v4533
  %v4694 = vunpack.c.l.b16 %v4534
  %v4695 = vpack.c.b16 %v4616, %v4615
  %v4696 = vpack.c.b16 %v4618, %v4617
  %v4697 = vpack.c.b16 %v4620, %v4619
  %v4698 = vpack.c.b16 %v4622, %v4621
  %v4699 = vpack.c.b16 %v4624, %v4623
  %v4700 = vpack.c.b16 %v4626, %v4625
  %v4701 = vpack.c.b16 %v4628, %v4627
  %v4702 = vpack.c.b16 %v4630, %v4629
  %v4703 = vpack.c.b16 %v4632, %v4631
  %v4704 = vpack.c.b16 %v4634, %v4633
  %v4705 = vpack.c.b16 %v4636, %v4635
  %v4706 = vpack.c.b16 %v4638, %v4637
  %v4707 = vpack.c.b16 %v4640, %v4639
  %v4708 = vpack.c.b16 %v4642, %v4641
  %v4709 = vpack.c.b16 %v4644, %v4643
  %v4710 = vpack.c.b16 %v4646, %v4645
  %v4711 = vpack.c.b16 %v4648, %v4647
  %v4712 = vpack.c.b16 %v4650, %v4649
  %v4713 = vpack.c.b16 %v4652, %v4651
  %v4714 = vpack.c.b16 %v4654, %v4653
  %v4715 = vpack.c.b16 %v4656, %v4655
  %v4716 = vpack.c.b16 %v4658, %v4657
  %v4717 = vpack.c.b16 %v4660, %v4659
  %v4718 = vpack.c.b16 %v4662, %v4661
  %v4719 = vpack.c.b16 %v4664, %v4663
  %v4720 = vpack.c.b16 %v4666, %v4665
  %v4721 = vpack.c.b16 %v4668, %v4667
  %v4722 = vpack.c.b16 %v4670, %v4669
  %v4723 = vpack.c.b16 %v4672, %v4671
  %v4724 = vpack.c.b16 %v4674, %v4673
  %v4725 = vpack.c.b16 %v4676, %v4675
  %v4726 = vpack.c.b16 %v4678, %v4677
  %v4727 = vpack.c.b16 %v4680, %v4679
  %v4728 = vpack.c.b16 %v4682, %v4681
  %v4729 = vpack.c.b16 %v4684, %v4683
  %v4730 = vpack.c.b16 %v4686, %v4685
  %v4731 = vpack.c.b16 %v4688, %v4687
  %v4732 = vpack.c.b16 %v4690, %v4689
  %v4733 = vpack.c.b16 %v4692, %v4691
  %v4734 = vpack.c.b16 %v4694, %v4693
  %4775 = vmatprep.subr.bf16.mxu0 0
  %4776 = vmatpush1.bf16.msra.mxu0 %v4695
  %4777 = vmatprep.subr.bf16.mxu0 0
  %4778 = vmatpush1.bf16.msra.mxu0 %v4696
  %4779 = vmatprep.subr.bf16.mxu0 0
  %4780 = vmatpush1.bf16.msra.mxu0 %v4697
  %4781 = vmatprep.subr.bf16.mxu0 0
  %4782 = vmatpush1.bf16.msra.mxu0 %v4698
  %4783 = vmatprep.subr.bf16.mxu0 0
  %4784 = vmatpush1.bf16.msra.mxu0 %v4699
  %4785 = vmatprep.subr.bf16.mxu0 0
  %4786 = vmatpush1.bf16.msra.mxu0 %v4700
  %4787 = vmatprep.subr.bf16.mxu0 0
  %4788 = vmatpush1.bf16.msra.mxu0 %v4701
  %4789 = vmatprep.subr.bf16.mxu0 0
  %4790 = vmatpush1.bf16.msra.mxu0 %v4702
  %4791 = vmatprep.subr.bf16.mxu0 0
  %4792 = vmatpush1.bf16.msra.mxu0 %v4703
  %4793 = vmatprep.subr.bf16.mxu0 0
  %4794 = vmatpush1.bf16.msra.mxu0 %v4704
  %4795 = vmatprep.subr.bf16.mxu0 0
  %4796 = vmatpush1.bf16.msra.mxu0 %v4705
  %4797 = vmatprep.subr.bf16.mxu0 0
  %4798 = vmatpush1.bf16.msra.mxu0 %v4706
  %4799 = vmatprep.subr.bf16.mxu0 0
  %4800 = vmatpush1.bf16.msra.mxu0 %v4707
  %4801 = vmatprep.subr.bf16.mxu0 0
  %4802 = vmatpush1.bf16.msra.mxu0 %v4708
  %4803 = vmatprep.subr.bf16.mxu0 0
  %4804 = vmatpush1.bf16.msra.mxu0 %v4709
  %4805 = vmatprep.subr.bf16.mxu0 0
  %4806 = vmatpush1.bf16.msra.mxu0 %v4710
  %4807 = vmatprep.mubr.bf16.mxu0 %v4415
  %4808 = vmatmul.mubr.bf16.gmra.mrb[0].mxu0 %v4414
  %v4809 = vpop.f32.mrb[0].mxu0
  %v4810 = vadd.f32 0.0, %v4809
  %v4811 = vpop.f32.mrb[0].mxu0
  %v4812 = vpop.f32.mrb[0].mxu0
  %v4813 = vadd.f32 0.0, %v4812
  %v4814 = vpop.f32.mrb[0].mxu0
  %4815 = vmatprep.mubr.bf16.mxu0 %v4420
  %4816 = vmatmul.mubr.bf16.gmra.mrb[0].mxu0 %v4419
  %v4817 = vpop.f32.mrb[0].mxu0
  %v4818 = vadd.f32 0.0, %v4817
  %v4819 = vpop.f32.mrb[0].mxu0
  %v4820 = vpop.f32.mrb[0].mxu0
  %v4821 = vadd.f32 0.0, %v4820
  %v4822 = vpop.f32.mrb[0].mxu0
  %4823 = vmatprep.mubr.bf16.mxu0 %v4425
  %4824 = vmatmul.mubr.bf16.gmra.mrb[0].mxu0 %v4424
  %v4825 = vpop.f32.mrb[0].mxu0
  %v4826 = vadd.f32 0.0, %v4825
  %v4827 = vpop.f32.mrb[0].mxu0
  %v4828 = vpop.f32.mrb[0].mxu0
  %v4829 = vadd.f32 0.0, %v4828
  %v4830 = vpop.f32.mrb[0].mxu0
  %4831 = vmatprep.mubr.bf16.mxu0 %v4430
  %4832 = vmatmul.mubr.bf16.gmra.mrb[0].mxu0 %v4429
  %v4833 = vpop.f32.mrb[0].mxu0
  %v4834 = vadd.f32 0.0, %v4833
  %v4835 = vpop.f32.mrb[0].mxu0
  %v4836 = vpop.f32.mrb[0].mxu0
  %v4837 = vadd.f32 0.0, %v4836
  %v4838 = vpop.f32.mrb[0].mxu0
  %4839 = vmatprep.mubr.bf16.mxu0 %v4435
  %4840 = vmatmul.mubr.bf16.gmra.mrb[0].mxu0 %v4434
  %v4841 = vpop.f32.mrb[0].mxu0
  %v4842 = vadd.f32 0.0, %v4841
  %v4843 = vpop.f32.mrb[0].mxu0
  %v4844 = vpop.f32.mrb[0].mxu0
  %v4845 = vadd.f32 0.0, %v4844
  %v4846 = vpop.f32.mrb[0].mxu0
  %4847 = vmatprep.mubr.bf16.mxu0 %v4440
  %4848 = vmatmul.mubr.bf16.gmra.mrb[0].mxu0 %v4439
  %v4849 = vpop.f32.mrb[0].mxu0
  %v4850 = vadd.f32 0.0, %v4849
  %v4851 = vpop.f32.mrb[0].mxu0
  %v4852 = vpop.f32.mrb[0].mxu0
  %v4853 = vadd.f32 0.0, %v4852
  %v4854 = vpop.f32.mrb[0].mxu0
  %4855 = vmatprep.mubr.bf16.mxu0 %v4445
  %4856 = vmatmul.mubr.bf16.gmra.mrb[0].mxu0 %v4444
  %v4857 = vpop.f32.mrb[0].mxu0
  %v4858 = vadd.f32 0.0, %v4857
  %v4859 = vpop.f32.mrb[0].mxu0
  %v4860 = vpop.f32.mrb[0].mxu0
  %v4861 = vadd.f32 0.0, %v4860
  %v4862 = vpop.f32.mrb[0].mxu0
  %4863 = vmatprep.mubr.bf16.mxu0 %v4450
  %4864 = vmatmul.mubr.bf16.gmra.mrb[0].mxu0 %v4449
  %v4865 = vpop.f32.mrb[0].mxu0
  %v4866 = vadd.f32 0.0, %v4865
  %v4867 = vpop.f32.mrb[0].mxu0
  %v4868 = vpop.f32.mrb[0].mxu0
  %v4869 = vadd.f32 0.0, %v4868
  %v4870 = vpop.f32.mrb[0].mxu0
  %4871 = vdwg.mxu0
  %4872 = vmatprep.subr.bf16.mxu0 0
  %4873 = vmatpush1.bf16.msra.mxu0 %v4711
  %4874 = vmatprep.subr.bf16.mxu0 0
  %4875 = vmatpush1.bf16.msra.mxu0 %v4712
  %4876 = vmatprep.subr.bf16.mxu0 0
  %4877 = vmatpush1.bf16.msra.mxu0 %v4713
  %4878 = vmatprep.subr.bf16.mxu0 0
  %4879 = vmatpush1.bf16.msra.mxu0 %v4714
  %4880 = vmatprep.subr.bf16.mxu0 0
  %4881 = vmatpush1.bf16.msra.mxu0 %v4715
  %4882 = vmatprep.subr.bf16.mxu0 0
  %4883 = vmatpush1.bf16.msra.mxu0 %v4716
  %4884 = vmatprep.subr.bf16.mxu0 0
  %4885 = vmatpush1.bf16.msra.mxu0 %v4717
  %4886 = vmatprep.subr.bf16.mxu0 0
  %4887 = vmatpush1.bf16.msra.mxu0 %v4718
  %4888 = vmatprep.subr.bf16.mxu0 0
  %4889 = vmatpush1.bf16.msra.mxu0 %v4719
  %4890 = vmatprep.subr.bf16.mxu0 0
  %4891 = vmatpush1.bf16.msra.mxu0 %v4720
  %4892 = vmatprep.subr.bf16.mxu0 0
  %4893 = vmatpush1.bf16.msra.mxu0 %v4721
  %4894 = vmatprep.subr.bf16.mxu0 0
  %4895 = vmatpush1.bf16.msra.mxu0 %v4722
  %4896 = vmatprep.subr.bf16.mxu0 0
  %4897 = vmatpush1.bf16.msra.mxu0 %v4723
  %4898 = vmatprep.subr.bf16.mxu0 0
  %4899 = vmatpush1.bf16.msra.mxu0 %v4724
  %4900 = vmatprep.subr.bf16.mxu0 0
  %4901 = vmatpush1.bf16.msra.mxu0 %v4725
  %4902 = vmatprep.subr.bf16.mxu0 0
  %4903 = vmatpush1.bf16.msra.mxu0 %v4726
  %4904 = vmatprep.mubr.bf16.mxu0 %v4417
  %4905 = vmatmul.mubr.bf16.gmra.mrb[0].mxu0 %v4416
  %v4906 = vpop.f32.mrb[0].mxu0
  %v4907 = vadd.f32 %v4810, %v4906
  %v4908 = vpop.f32.mrb[0].mxu0
  %v4909 = vpop.f32.mrb[0].mxu0
  %v4910 = vadd.f32 %v4813, %v4909
  %v4911 = vpop.f32.mrb[0].mxu0
  %4912 = vmatprep.mubr.bf16.mxu0 %v4422
  %4913 = vmatmul.mubr.bf16.gmra.mrb[0].mxu0 %v4421
  %v4914 = vpop.f32.mrb[0].mxu0
  %v4915 = vadd.f32 %v4818, %v4914
  %v4916 = vpop.f32.mrb[0].mxu0
  %v4917 = vpop.f32.mrb[0].mxu0
  %v4918 = vadd.f32 %v4821, %v4917
  %v4919 = vpop.f32.mrb[0].mxu0
  %4920 = vmatprep.mubr.bf16.mxu0 %v4427
  %4921 = vmatmul.mubr.bf16.gmra.mrb[0].mxu0 %v4426
  %v4922 = vpop.f32.mrb[0].mxu0
  %v4923 = vadd.f32 %v4826, %v4922
  %v4924 = vpop.f32.mrb[0].mxu0
  %v4925 = vpop.f32.mrb[0].mxu0
  %v4926 = vadd.f32 %v4829, %v4925
  %v4927 = vpop.f32.mrb[0].mxu0
  %4928 = vmatprep.mubr.bf16.mxu0 %v4432
  %4929 = vmatmul.mubr.bf16.gmra.mrb[0].mxu0 %v4431
  %v4930 = vpop.f32.mrb[0].mxu0
  %v4931 = vadd.f32 %v4834, %v4930
  %v4932 = vpop.f32.mrb[0].mxu0
  %v4933 = vpop.f32.mrb[0].mxu0
  %v4934 = vadd.f32 %v4837, %v4933
  %v4935 = vpop.f32.mrb[0].mxu0
  %4936 = vmatprep.mubr.bf16.mxu0 %v4437
  %4937 = vmatmul.mubr.bf16.gmra.mrb[0].mxu0 %v4436
  %v4938 = vpop.f32.mrb[0].mxu0
  %v4939 = vadd.f32 %v4842, %v4938
  %v4940 = vpop.f32.mrb[0].mxu0
  %v4941 = vpop.f32.mrb[0].mxu0
  %v4942 = vadd.f32 %v4845, %v4941
  %v4943 = vpop.f32.mrb[0].mxu0
  %4944 = vmatprep.mubr.bf16.mxu0 %v4442
  %4945 = vmatmul.mubr.bf16.gmra.mrb[0].mxu0 %v4441
  %v4946 = vpop.f32.mrb[0].mxu0
  %v4947 = vadd.f32 %v4850, %v4946
  %v4948 = vpop.f32.mrb[0].mxu0
  %v4949 = vpop.f32.mrb[0].mxu0
  %v4950 = vadd.f32 %v4853, %v4949
  %v4951 = vpop.f32.mrb[0].mxu0
  %4952 = vmatprep.mubr.bf16.mxu0 %v4447
  %4953 = vmatmul.mubr.bf16.gmra.mrb[0].mxu0 %v4446
  %v4954 = vpop.f32.mrb[0].mxu0
  %v4955 = vadd.f32 %v4858, %v4954
  %v4956 = vpop.f32.mrb[0].mxu0
  %v4957 = vpop.f32.mrb[0].mxu0
  %v4958 = vadd.f32 %v4861, %v4957
  %v4959 = vpop.f32.mrb[0].mxu0
  %4960 = vmatprep.mubr.bf16.mxu0 %v4452
  %4961 = vmatmul.mubr.bf16.gmra.mrb[0].mxu0 %v4451
  %v4962 = vpop.f32.mrb[0].mxu0
  %v4963 = vadd.f32 %v4866, %v4962
  %v4964 = vpop.f32.mrb[0].mxu0
  %v4965 = vpop.f32.mrb[0].mxu0
  %v4966 = vadd.f32 %v4869, %v4965
  %v4967 = vpop.f32.mrb[0].mxu0
  %4968 = vdwg.mxu0
  %4969 = vmatprep.subr.bf16.mxu0 0
  %4970 = vmatpush1.bf16.msra.mxu0 %v4727
  %4971 = vmatprep.subr.bf16.mxu0 0
  %4972 = vmatpush1.bf16.msra.mxu0 %v4728
  %4973 = vmatprep.subr.bf16.mxu0 0
  %4974 = vmatpush1.bf16.msra.mxu0 %v4729
  %4975 = vmatprep.subr.bf16.mxu0 0
  %4976 = vmatpush1.bf16.msra.mxu0 %v4730
  %4977 = vmatprep.subr.bf16.mxu0 0
  %4978 = vmatpush1.bf16.msra.mxu0 %v4731
  %4979 = vmatprep.subr.bf16.mxu0 0
  %4980 = vmatpush1.bf16.msra.mxu0 %v4732
  %4981 = vmatprep.subr.bf16.mxu0 0
  %4982 = vmatpush1.bf16.msra.mxu0 %v4733
  %4983 = vmatprep.subr.bf16.mxu0 0
  %4984 = vmatpush1.bf16.msra.mxu0 %v4734
  %4985 = vmatprep.subr.bf16.mxu0 0
  %4986 = vmatpush1.bf16.msra.mxu0 0
  %4987 = vmatprep.subr.bf16.mxu0 0
  %4988 = vmatpush1.bf16.msra.mxu0 0
  %4989 = vmatprep.subr.bf16.mxu0 0
  %4990 = vmatpush1.bf16.msra.mxu0 0
  %4991 = vmatprep.subr.bf16.mxu0 0
  %4992 = vmatpush1.bf16.msra.mxu0 0
  %4993 = vmatprep.subr.bf16.mxu0 0
  %4994 = vmatpush1.bf16.msra.mxu0 0
  %4995 = vmatprep.subr.bf16.mxu0 0
  %4996 = vmatpush1.bf16.msra.mxu0 0
  %4997 = vmatprep.subr.bf16.mxu0 0
  %4998 = vmatpush1.bf16.msra.mxu0 0
  %4999 = vmatprep.subr.bf16.mxu0 0
  %5000 = vmatpush1.bf16.msra.mxu0 0
  %5001 = vmatprep.mubr.bf16.mxu0 0
  %5002 = vmatmul.mubr.bf16.gmra.mrb[0].mxu0 %v4418
  %v5003 = vpop.f32.mrb[0].mxu0
  %v5004 = vadd.f32 %v4907, %v5003
  %v5005 = vpop.f32.mrb[0].mxu0
  %v5006 = vpop.f32.mrb[0].mxu0
  %v5007 = vadd.f32 %v4910, %v5006
  %v5008 = vpop.f32.mrb[0].mxu0
  %5009 = vmatprep.mubr.bf16.mxu0 0
  %5010 = vmatmul.mubr.bf16.gmra.mrb[0].mxu0 %v4423
  %v5011 = vpop.f32.mrb[0].mxu0
  %v5012 = vadd.f32 %v4915, %v5011
  %v5013 = vpop.f32.mrb[0].mxu0
  %v5014 = vpop.f32.mrb[0].mxu0
  %v5015 = vadd.f32 %v4918, %v5014
  %v5016 = vpop.f32.mrb[0].mxu0
  %5017 = vmatprep.mubr.bf16.mxu0 0
  %5018 = vmatmul.mubr.bf16.gmra.mrb[0].mxu0 %v4428
  %v5019 = vpop.f32.mrb[0].mxu0
  %v5020 = vadd.f32 %v4923, %v5019
  %v5021 = vpop.f32.mrb[0].mxu0
  %v5022 = vpop.f32.mrb[0].mxu0
  %v5023 = vadd.f32 %v4926, %v5022
  %v5024 = vpop.f32.mrb[0].mxu0
  %5025 = vmatprep.mubr.bf16.mxu0 0
  %5026 = vmatmul.mubr.bf16.gmra.mrb[0].mxu0 %v4433
  %v5027 = vpop.f32.mrb[0].mxu0
  %v5028 = vadd.f32 %v4931, %v5027
  %v5029 = vpop.f32.mrb[0].mxu0
  %v5030 = vpop.f32.mrb[0].mxu0
  %v5031 = vadd.f32 %v4934, %v5030
  %v5032 = vpop.f32.mrb[0].mxu0
  %5033 = vmatprep.mubr.bf16.mxu0 0
  %5034 = vmatmul.mubr.bf16.gmra.mrb[0].mxu0 %v4438
  %v5035 = vpop.f32.mrb[0].mxu0
  %v5036 = vadd.f32 %v4939, %v5035
  %v5037 = vpop.f32.mrb[0].mxu0
  %v5038 = vpop.f32.mrb[0].mxu0
  %v5039 = vadd.f32 %v4942, %v5038
  %v5040 = vpop.f32.mrb[0].mxu0
  %5041 = vmatprep.mubr.bf16.mxu0 0
  %5042 = vmatmul.mubr.bf16.gmra.mrb[0].mxu0 %v4443
  %v5043 = vpop.f32.mrb[0].mxu0
  %v5044 = vadd.f32 %v4947, %v5043
  %v5045 = vpop.f32.mrb[0].mxu0
  %v5046 = vpop.f32.mrb[0].mxu0
  %v5047 = vadd.f32 %v4950, %v5046
  %v5048 = vpop.f32.mrb[0].mxu0
  %5049 = vmatprep.mubr.bf16.mxu0 0
  %5050 = vmatmul.mubr.bf16.gmra.mrb[0].mxu0 %v4448
  %v5051 = vpop.f32.mrb[0].mxu0
  %v5052 = vadd.f32 %v4955, %v5051
  %v5053 = vpop.f32.mrb[0].mxu0
  %v5054 = vpop.f32.mrb[0].mxu0
  %v5055 = vadd.f32 %v4958, %v5054
  %v5056 = vpop.f32.mrb[0].mxu0
  %5057 = vmatprep.mubr.bf16.mxu0 0
  %5058 = vmatmul.mubr.bf16.gmra.mrb[0].mxu0 %v4453
  %v5059 = vpop.f32.mrb[0].mxu0
  %v5060 = vadd.f32 %v4963, %v5059
  %v5061 = vpop.f32.mrb[0].mxu0
  %v5062 = vpop.f32.mrb[0].mxu0
  %v5063 = vadd.f32 %v4966, %v5062
  %v5064 = vpop.f32.mrb[0].mxu0
  %5065 = vdwg.mxu0
  %v5146 = vunpack.c.l.b16 %v4334
  %v5147 = vunpack.c.l.b16 %v4335
  %v5148 = vunpack.c.l.b16 %v4336
  %v5149 = vunpack.c.l.b16 %v4337
  %v5150 = vunpack.c.l.b16 %v4338
  %v5151 = vunpack.c.l.b16 %v4339
  %v5152 = vunpack.c.l.b16 %v4340
  %v5153 = vunpack.c.l.b16 %v4341
  %v5154 = vunpack.c.l.b16 %v4342
  %v5155 = vunpack.c.l.b16 %v4343
  %v5156 = vunpack.c.l.b16 %v4344
  %v5157 = vunpack.c.l.b16 %v4345
  %v5158 = vunpack.c.l.b16 %v4346
  %v5159 = vunpack.c.l.b16 %v4347
  %v5160 = vunpack.c.l.b16 %v4348
  %v5161 = vunpack.c.l.b16 %v4349
  %v5162 = vunpack.c.l.b16 %v4350
  %v5163 = vunpack.c.l.b16 %v4351
  %v5164 = vunpack.c.l.b16 %v4352
  %v5165 = vunpack.c.l.b16 %v4353
  %v5166 = vunpack.c.l.b16 %v4354
  %v5167 = vunpack.c.l.b16 %v4355
  %v5168 = vunpack.c.l.b16 %v4356
  %v5169 = vunpack.c.l.b16 %v4357
  %v5170 = vunpack.c.l.b16 %v4358
  %v5171 = vunpack.c.l.b16 %v4359
  %v5172 = vunpack.c.l.b16 %v4360
  %v5173 = vunpack.c.l.b16 %v4361
  %v5174 = vunpack.c.l.b16 %v4362
  %v5175 = vunpack.c.l.b16 %v4363
  %v5176 = vunpack.c.l.b16 %v4364
  %v5177 = vunpack.c.l.b16 %v4365
  %v5178 = vunpack.c.l.b16 %v4366
  %v5179 = vunpack.c.l.b16 %v4367
  %v5180 = vunpack.c.l.b16 %v4368
  %v5181 = vunpack.c.l.b16 %v4369
  %v5182 = vunpack.c.l.b16 %v4370
  %v5183 = vunpack.c.l.b16 %v4371
  %v5184 = vunpack.c.l.b16 %v4372
  %v5185 = vunpack.c.l.b16 %v4373
  %v5186 = vunpack.c.l.b16 %v4374
  %v5187 = vunpack.c.l.b16 %v4375
  %v5188 = vunpack.c.l.b16 %v4376
  %v5189 = vunpack.c.l.b16 %v4377
  %v5190 = vunpack.c.l.b16 %v4378
  %v5191 = vunpack.c.l.b16 %v4379
  %v5192 = vunpack.c.l.b16 %v4380
  %v5193 = vunpack.c.l.b16 %v4381
  %v5194 = vunpack.c.l.b16 %v4382
  %v5195 = vunpack.c.l.b16 %v4383
  %v5196 = vunpack.c.l.b16 %v4384
  %v5197 = vunpack.c.l.b16 %v4385
  %v5198 = vunpack.c.l.b16 %v4386
  %v5199 = vunpack.c.l.b16 %v4387
  %v5200 = vunpack.c.l.b16 %v4388
  %v5201 = vunpack.c.l.b16 %v4389
  %v5202 = vunpack.c.l.b16 %v4390
  %v5203 = vunpack.c.l.b16 %v4391
  %v5204 = vunpack.c.l.b16 %v4392
  %v5205 = vunpack.c.l.b16 %v4393
  %v5206 = vunpack.c.l.b16 %v4394
  %v5207 = vunpack.c.l.b16 %v4395
  %v5208 = vunpack.c.l.b16 %v4396
  %v5209 = vunpack.c.l.b16 %v4397
  %v5210 = vunpack.c.l.b16 %v4398
  %v5211 = vunpack.c.l.b16 %v4399
  %v5212 = vunpack.c.l.b16 %v4400
  %v5213 = vunpack.c.l.b16 %v4401
  %v5214 = vunpack.c.l.b16 %v4402
  %v5215 = vunpack.c.l.b16 %v4403
  %v5216 = vunpack.c.l.b16 %v4404
  %v5217 = vunpack.c.l.b16 %v4405
  %v5218 = vunpack.c.l.b16 %v4406
  %v5219 = vunpack.c.l.b16 %v4407
  %v5220 = vunpack.c.l.b16 %v4408
  %v5221 = vunpack.c.l.b16 %v4409
  %v5222 = vunpack.c.l.b16 %v4410
  %v5223 = vunpack.c.l.b16 %v4411
  %v5224 = vunpack.c.l.b16 %v4412
  %v5225 = vunpack.c.l.b16 %v4413
  %v5226 = vpack.c.b16 %v5147, %v5146
  %v5227 = vpack.c.b16 %v5149, %v5148
  %v5228 = vpack.c.b16 %v5151, %v5150
  %v5229 = vpack.c.b16 %v5153, %v5152
  %v5230 = vpack.c.b16 %v5155, %v5154
  %v5231 = vpack.c.b16 %v5157, %v5156
  %v5232 = vpack.c.b16 %v5159, %v5158
  %v5233 = vpack.c.b16 %v5161, %v5160
  %v5234 = vpack.c.b16 %v5163, %v5162
  %v5235 = vpack.c.b16 %v5165, %v5164
  %v5236 = vpack.c.b16 %v5167, %v5166
  %v5237 = vpack.c.b16 %v5169, %v5168
  %v5238 = vpack.c.b16 %v5171, %v5170
  %v5239 = vpack.c.b16 %v5173, %v5172
  %v5240 = vpack.c.b16 %v5175, %v5174
  %v5241 = vpack.c.b16 %v5177, %v5176
  %v5242 = vpack.c.b16 %v5179, %v5178
  %v5243 = vpack.c.b16 %v5181, %v5180
  %v5244 = vpack.c.b16 %v5183, %v5182
  %v5245 = vpack.c.b16 %v5185, %v5184
  %v5246 = vpack.c.b16 %v5187, %v5186
  %v5247 = vpack.c.b16 %v5189, %v5188
  %v5248 = vpack.c.b16 %v5191, %v5190
  %v5249 = vpack.c.b16 %v5193, %v5192
  %v5250 = vpack.c.b16 %v5195, %v5194
  %v5251 = vpack.c.b16 %v5197, %v5196
  %v5252 = vpack.c.b16 %v5199, %v5198
  %v5253 = vpack.c.b16 %v5201, %v5200
  %v5254 = vpack.c.b16 %v5203, %v5202
  %v5255 = vpack.c.b16 %v5205, %v5204
  %v5256 = vpack.c.b16 %v5207, %v5206
  %v5257 = vpack.c.b16 %v5209, %v5208
  %v5258 = vpack.c.b16 %v5211, %v5210
  %v5259 = vpack.c.b16 %v5213, %v5212
  %v5260 = vpack.c.b16 %v5215, %v5214
  %v5261 = vpack.c.b16 %v5217, %v5216
  %v5262 = vpack.c.b16 %v5219, %v5218
  %v5263 = vpack.c.b16 %v5221, %v5220
  %v5264 = vpack.c.b16 %v5223, %v5222
  %v5265 = vpack.c.b16 %v5225, %v5224
  %5306 = vmatprep.subr.bf16.mxu0 0
  %5307 = vmatpush1.bf16.msra.mxu0 %v5226
  %5308 = vmatprep.subr.bf16.mxu0 0
  %5309 = vmatpush1.bf16.msra.mxu0 %v5227
  %5310 = vmatprep.subr.bf16.mxu0 0
  %5311 = vmatpush1.bf16.msra.mxu0 %v5228
  %5312 = vmatprep.subr.bf16.mxu0 0
  %5313 = vmatpush1.bf16.msra.mxu0 %v5229
  %5314 = vmatprep.subr.bf16.mxu0 0
  %5315 = vmatpush1.bf16.msra.mxu0 %v5230
  %5316 = vmatprep.subr.bf16.mxu0 0
  %5317 = vmatpush1.bf16.msra.mxu0 %v5231
  %5318 = vmatprep.subr.bf16.mxu0 0
  %5319 = vmatpush1.bf16.msra.mxu0 %v5232
  %5320 = vmatprep.subr.bf16.mxu0 0
  %5321 = vmatpush1.bf16.msra.mxu0 %v5233
  %5322 = vmatprep.subr.bf16.mxu0 0
  %5323 = vmatpush1.bf16.msra.mxu0 %v5234
  %5324 = vmatprep.subr.bf16.mxu0 0
  %5325 = vmatpush1.bf16.msra.mxu0 %v5235
  %5326 = vmatprep.subr.bf16.mxu0 0
  %5327 = vmatpush1.bf16.msra.mxu0 %v5236
  %5328 = vmatprep.subr.bf16.mxu0 0
  %5329 = vmatpush1.bf16.msra.mxu0 %v5237
  %5330 = vmatprep.subr.bf16.mxu0 0
  %5331 = vmatpush1.bf16.msra.mxu0 %v5238
  %5332 = vmatprep.subr.bf16.mxu0 0
  %5333 = vmatpush1.bf16.msra.mxu0 %v5239
  %5334 = vmatprep.subr.bf16.mxu0 0
  %5335 = vmatpush1.bf16.msra.mxu0 %v5240
  %5336 = vmatprep.subr.bf16.mxu0 0
  %5337 = vmatpush1.bf16.msra.mxu0 %v5241
  %5338 = vmatprep.mubr.bf16.mxu0 %v4295
  %5339 = vmatmul.mubr.bf16.gmra.mrb[0].mxu0 %v4294
  %v5340 = vpop.f32.mrb[0].mxu0
  %v5341 = vadd.f32 %v5004, %v5340
  %v5342 = vpop.f32.mrb[0].mxu0
  %v5343 = vpop.f32.mrb[0].mxu0
  %v5344 = vadd.f32 %v5007, %v5343
  %v5345 = vpop.f32.mrb[0].mxu0
  %5346 = vmatprep.mubr.bf16.mxu0 %v4300
  %5347 = vmatmul.mubr.bf16.gmra.mrb[0].mxu0 %v4299
  %v5348 = vpop.f32.mrb[0].mxu0
  %v5349 = vadd.f32 %v5012, %v5348
  %v5350 = vpop.f32.mrb[0].mxu0
  %v5351 = vpop.f32.mrb[0].mxu0
  %v5352 = vadd.f32 %v5015, %v5351
  %v5353 = vpop.f32.mrb[0].mxu0
  %5354 = vmatprep.mubr.bf16.mxu0 %v4305
  %5355 = vmatmul.mubr.bf16.gmra.mrb[0].mxu0 %v4304
  %v5356 = vpop.f32.mrb[0].mxu0
  %v5357 = vadd.f32 %v5020, %v5356
  %v5358 = vpop.f32.mrb[0].mxu0
  %v5359 = vpop.f32.mrb[0].mxu0
  %v5360 = vadd.f32 %v5023, %v5359
  %v5361 = vpop.f32.mrb[0].mxu0
  %5362 = vmatprep.mubr.bf16.mxu0 %v4310
  %5363 = vmatmul.mubr.bf16.gmra.mrb[0].mxu0 %v4309
  %v5364 = vpop.f32.mrb[0].mxu0
  %v5365 = vadd.f32 %v5028, %v5364
  %v5366 = vpop.f32.mrb[0].mxu0
  %v5367 = vpop.f32.mrb[0].mxu0
  %v5368 = vadd.f32 %v5031, %v5367
  %v5369 = vpop.f32.mrb[0].mxu0
  %5370 = vmatprep.mubr.bf16.mxu0 %v4315
  %5371 = vmatmul.mubr.bf16.gmra.mrb[0].mxu0 %v4314
  %v5372 = vpop.f32.mrb[0].mxu0
  %v5373 = vadd.f32 %v5036, %v5372
  %v5374 = vpop.f32.mrb[0].mxu0
  %v5375 = vpop.f32.mrb[0].mxu0
  %v5376 = vadd.f32 %v5039, %v5375
  %v5377 = vpop.f32.mrb[0].mxu0
  %5378 = vmatprep.mubr.bf16.mxu0 %v4320
  %5379 = vmatmul.mubr.bf16.gmra.mrb[0].mxu0 %v4319
  %v5380 = vpop.f32.mrb[0].mxu0
  %v5381 = vadd.f32 %v5044, %v5380
  %v5382 = vpop.f32.mrb[0].mxu0
  %v5383 = vpop.f32.mrb[0].mxu0
  %v5384 = vadd.f32 %v5047, %v5383
  %v5385 = vpop.f32.mrb[0].mxu0
  %5386 = vmatprep.mubr.bf16.mxu0 %v4325
  %5387 = vmatmul.mubr.bf16.gmra.mrb[0].mxu0 %v4324
  %v5388 = vpop.f32.mrb[0].mxu0
  %v5389 = vadd.f32 %v5052, %v5388
  %v5390 = vpop.f32.mrb[0].mxu0
  %v5391 = vpop.f32.mrb[0].mxu0
  %v5392 = vadd.f32 %v5055, %v5391
  %v5393 = vpop.f32.mrb[0].mxu0
  %5394 = vmatprep.mubr.bf16.mxu0 %v4330
  %5395 = vmatmul.mubr.bf16.gmra.mrb[0].mxu0 %v4329
  %v5396 = vpop.f32.mrb[0].mxu0
  %v5397 = vadd.f32 %v5060, %v5396
  %v5398 = vpop.f32.mrb[0].mxu0
  %v5399 = vpop.f32.mrb[0].mxu0
  %v5400 = vadd.f32 %v5063, %v5399
  %v5401 = vpop.f32.mrb[0].mxu0
  %5402 = vdwg.mxu0
  %5403 = vmatprep.subr.bf16.mxu0 0
  %5404 = vmatpush1.bf16.msra.mxu0 %v5242
  %5405 = vmatprep.subr.bf16.mxu0 0
  %5406 = vmatpush1.bf16.msra.mxu0 %v5243
  %5407 = vmatprep.subr.bf16.mxu0 0
  %5408 = vmatpush1.bf16.msra.mxu0 %v5244
  %5409 = vmatprep.subr.bf16.mxu0 0
  %5410 = vmatpush1.bf16.msra.mxu0 %v5245
  %5411 = vmatprep.subr.bf16.mxu0 0
  %5412 = vmatpush1.bf16.msra.mxu0 %v5246
  %5413 = vmatprep.subr.bf16.mxu0 0
  %5414 = vmatpush1.bf16.msra.mxu0 %v5247
  %5415 = vmatprep.subr.bf16.mxu0 0
  %5416 = vmatpush1.bf16.msra.mxu0 %v5248
  %5417 = vmatprep.subr.bf16.mxu0 0
  %5418 = vmatpush1.bf16.msra.mxu0 %v5249
  %5419 = vmatprep.subr.bf16.mxu0 0
  %5420 = vmatpush1.bf16.msra.mxu0 %v5250
  %5421 = vmatprep.subr.bf16.mxu0 0
  %5422 = vmatpush1.bf16.msra.mxu0 %v5251
  %5423 = vmatprep.subr.bf16.mxu0 0
  %5424 = vmatpush1.bf16.msra.mxu0 %v5252
  %5425 = vmatprep.subr.bf16.mxu0 0
  %5426 = vmatpush1.bf16.msra.mxu0 %v5253
  %5427 = vmatprep.subr.bf16.mxu0 0
  %5428 = vmatpush1.bf16.msra.mxu0 %v5254
  %5429 = vmatprep.subr.bf16.mxu0 0
  %5430 = vmatpush1.bf16.msra.mxu0 %v5255
  %5431 = vmatprep.subr.bf16.mxu0 0
  %5432 = vmatpush1.bf16.msra.mxu0 %v5256
  %5433 = vmatprep.subr.bf16.mxu0 0
  %5434 = vmatpush1.bf16.msra.mxu0 %v5257
  %5435 = vmatprep.mubr.bf16.mxu0 %v4297
  %5436 = vmatmul.mubr.bf16.gmra.mrb[0].mxu0 %v4296
  %v5437 = vpop.f32.mrb[0].mxu0
  %v5438 = vadd.f32 %v5341, %v5437
  %v5439 = vpop.f32.mrb[0].mxu0
  %v5440 = vpop.f32.mrb[0].mxu0
  %v5441 = vadd.f32 %v5344, %v5440
  %v5442 = vpop.f32.mrb[0].mxu0
  %5443 = vmatprep.mubr.bf16.mxu0 %v4302
  %5444 = vmatmul.mubr.bf16.gmra.mrb[0].mxu0 %v4301
  %v5445 = vpop.f32.mrb[0].mxu0
  %v5446 = vadd.f32 %v5349, %v5445
  %v5447 = vpop.f32.mrb[0].mxu0
  %v5448 = vpop.f32.mrb[0].mxu0
  %v5449 = vadd.f32 %v5352, %v5448
  %v5450 = vpop.f32.mrb[0].mxu0
  %5451 = vmatprep.mubr.bf16.mxu0 %v4307
  %5452 = vmatmul.mubr.bf16.gmra.mrb[0].mxu0 %v4306
  %v5453 = vpop.f32.mrb[0].mxu0
  %v5454 = vadd.f32 %v5357, %v5453
  %v5455 = vpop.f32.mrb[0].mxu0
  %v5456 = vpop.f32.mrb[0].mxu0
  %v5457 = vadd.f32 %v5360, %v5456
  %v5458 = vpop.f32.mrb[0].mxu0
  %5459 = vmatprep.mubr.bf16.mxu0 %v4312
  %5460 = vmatmul.mubr.bf16.gmra.mrb[0].mxu0 %v4311
  %v5461 = vpop.f32.mrb[0].mxu0
  %v5462 = vadd.f32 %v5365, %v5461
  %v5463 = vpop.f32.mrb[0].mxu0
  %v5464 = vpop.f32.mrb[0].mxu0
  %v5465 = vadd.f32 %v5368, %v5464
  %v5466 = vpop.f32.mrb[0].mxu0
  %5467 = vmatprep.mubr.bf16.mxu0 %v4317
  %5468 = vmatmul.mubr.bf16.gmra.mrb[0].mxu0 %v4316
  %v5469 = vpop.f32.mrb[0].mxu0
  %v5470 = vadd.f32 %v5373, %v5469
  %v5471 = vpop.f32.mrb[0].mxu0
  %v5472 = vpop.f32.mrb[0].mxu0
  %v5473 = vadd.f32 %v5376, %v5472
  %v5474 = vpop.f32.mrb[0].mxu0
  %5475 = vmatprep.mubr.bf16.mxu0 %v4322
  %5476 = vmatmul.mubr.bf16.gmra.mrb[0].mxu0 %v4321
  %v5477 = vpop.f32.mrb[0].mxu0
  %v5478 = vadd.f32 %v5381, %v5477
  %v5479 = vpop.f32.mrb[0].mxu0
  %v5480 = vpop.f32.mrb[0].mxu0
  %v5481 = vadd.f32 %v5384, %v5480
  %v5482 = vpop.f32.mrb[0].mxu0
  %5483 = vmatprep.mubr.bf16.mxu0 %v4327
  %5484 = vmatmul.mubr.bf16.gmra.mrb[0].mxu0 %v4326
  %v5485 = vpop.f32.mrb[0].mxu0
  %v5486 = vadd.f32 %v5389, %v5485
  %v5487 = vpop.f32.mrb[0].mxu0
  %v5488 = vpop.f32.mrb[0].mxu0
  %v5489 = vadd.f32 %v5392, %v5488
  %v5490 = vpop.f32.mrb[0].mxu0
  %5491 = vmatprep.mubr.bf16.mxu0 %v4332
  %5492 = vmatmul.mubr.bf16.gmra.mrb[0].mxu0 %v4331
  %v5493 = vpop.f32.mrb[0].mxu0
  %v5494 = vadd.f32 %v5397, %v5493
  %v5495 = vpop.f32.mrb[0].mxu0
  %v5496 = vpop.f32.mrb[0].mxu0
  %v5497 = vadd.f32 %v5400, %v5496
  %v5498 = vpop.f32.mrb[0].mxu0
  %5499 = vdwg.mxu0
  %5500 = vmatprep.subr.bf16.mxu0 0
  %5501 = vmatpush1.bf16.msra.mxu0 %v5258
  %5502 = vmatprep.subr.bf16.mxu0 0
  %5503 = vmatpush1.bf16.msra.mxu0 %v5259
  %5504 = vmatprep.subr.bf16.mxu0 0
  %5505 = vmatpush1.bf16.msra.mxu0 %v5260
  %5506 = vmatprep.subr.bf16.mxu0 0
  %5507 = vmatpush1.bf16.msra.mxu0 %v5261
  %5508 = vmatprep.subr.bf16.mxu0 0
  %5509 = vmatpush1.bf16.msra.mxu0 %v5262
  %5510 = vmatprep.subr.bf16.mxu0 0
  %5511 = vmatpush1.bf16.msra.mxu0 %v5263
  %5512 = vmatprep.subr.bf16.mxu0 0
  %5513 = vmatpush1.bf16.msra.mxu0 %v5264
  %5514 = vmatprep.subr.bf16.mxu0 0
  %5515 = vmatpush1.bf16.msra.mxu0 %v5265
  %5516 = vmatprep.subr.bf16.mxu0 0
  %5517 = vmatpush1.bf16.msra.mxu0 0
  %5518 = vmatprep.subr.bf16.mxu0 0
  %5519 = vmatpush1.bf16.msra.mxu0 0
  %5520 = vmatprep.subr.bf16.mxu0 0
  %5521 = vmatpush1.bf16.msra.mxu0 0
  %5522 = vmatprep.subr.bf16.mxu0 0
  %5523 = vmatpush1.bf16.msra.mxu0 0
  %5524 = vmatprep.subr.bf16.mxu0 0
  %5525 = vmatpush1.bf16.msra.mxu0 0
  %5526 = vmatprep.subr.bf16.mxu0 0
  %5527 = vmatpush1.bf16.msra.mxu0 0
  %5528 = vmatprep.subr.bf16.mxu0 0
  %5529 = vmatpush1.bf16.msra.mxu0 0
  %5530 = vmatprep.subr.bf16.mxu0 0
  %5531 = vmatpush1.bf16.msra.mxu0 0
  %5532 = vmatprep.mubr.bf16.mxu0 0
  %5533 = vmatmul.mubr.bf16.gmra.mrb[0].mxu0 %v4298
  %v5534 = vpop.f32.mrb[0].mxu0
  %v5535 = vadd.f32 %v5438, %v5534
  %v5536 = vpop.f32.mrb[0].mxu0
  %v5537 = vpop.f32.mrb[0].mxu0
  %v5538 = vadd.f32 %v5441, %v5537
  %v5539 = vpop.f32.mrb[0].mxu0
  %5540 = vmatprep.mubr.bf16.mxu0 0
  %5541 = vmatmul.mubr.bf16.gmra.mrb[0].mxu0 %v4303
  %v5542 = vpop.f32.mrb[0].mxu0
  %v5543 = vadd.f32 %v5446, %v5542
  %v5544 = vpop.f32.mrb[0].mxu0
  %v5545 = vpop.f32.mrb[0].mxu0
  %v5546 = vadd.f32 %v5449, %v5545
  %v5547 = vpop.f32.mrb[0].mxu0
  %5548 = vmatprep.mubr.bf16.mxu0 0
  %5549 = vmatmul.mubr.bf16.gmra.mrb[0].mxu0 %v4308
  %v5550 = vpop.f32.mrb[0].mxu0
  %v5551 = vadd.f32 %v5454, %v5550
  %v5552 = vpop.f32.mrb[0].mxu0
  %v5553 = vpop.f32.mrb[0].mxu0
  %v5554 = vadd.f32 %v5457, %v5553
  %v5555 = vpop.f32.mrb[0].mxu0
  %5556 = vmatprep.mubr.bf16.mxu0 0
  %5557 = vmatmul.mubr.bf16.gmra.mrb[0].mxu0 %v4313
  %v5558 = vpop.f32.mrb[0].mxu0
  %v5559 = vadd.f32 %v5462, %v5558
  %v5560 = vpop.f32.mrb[0].mxu0
  %v5561 = vpop.f32.mrb[0].mxu0
  %v5562 = vadd.f32 %v5465, %v5561
  %v5563 = vpop.f32.mrb[0].mxu0
  %5564 = vmatprep.mubr.bf16.mxu0 0
  %5565 = vmatmul.mubr.bf16.gmra.mrb[0].mxu0 %v4318
  %v5566 = vpop.f32.mrb[0].mxu0
  %v5567 = vadd.f32 %v5470, %v5566
  %v5568 = vpop.f32.mrb[0].mxu0
  %v5569 = vpop.f32.mrb[0].mxu0
  %v5570 = vadd.f32 %v5473, %v5569
  %v5571 = vpop.f32.mrb[0].mxu0
  %5572 = vmatprep.mubr.bf16.mxu0 0
  %5573 = vmatmul.mubr.bf16.gmra.mrb[0].mxu0 %v4323
  %v5574 = vpop.f32.mrb[0].mxu0
  %v5575 = vadd.f32 %v5478, %v5574
  %v5576 = vpop.f32.mrb[0].mxu0
  %v5577 = vpop.f32.mrb[0].mxu0
  %v5578 = vadd.f32 %v5481, %v5577
  %v5579 = vpop.f32.mrb[0].mxu0
  %5580 = vmatprep.mubr.bf16.mxu0 0
  %5581 = vmatmul.mubr.bf16.gmra.mrb[0].mxu0 %v4328
  %v5582 = vpop.f32.mrb[0].mxu0
  %v5583 = vadd.f32 %v5486, %v5582
  %v5584 = vpop.f32.mrb[0].mxu0
  %v5585 = vpop.f32.mrb[0].mxu0
  %v5586 = vadd.f32 %v5489, %v5585
  %v5587 = vpop.f32.mrb[0].mxu0
  %5588 = vmatprep.mubr.bf16.mxu0 0
  %5589 = vmatmul.mubr.bf16.gmra.mrb[0].mxu0 %v4333
  %v5590 = vpop.f32.mrb[0].mxu0
  %v5591 = vadd.f32 %v5494, %v5590
  %v5592 = vpop.f32.mrb[0].mxu0
  %v5593 = vpop.f32.mrb[0].mxu0
  %v5594 = vadd.f32 %v5497, %v5593
  %v5595 = vpop.f32.mrb[0].mxu0
  %5596 = vdwg.mxu0
  %v5597 = vpack.c.bf16 %v4219, %v4214
  %v5598 = vpack.c.bf16 %v4220, %v4215
  %v5599 = vpack.c.bf16 %v4221, %v4216
  %v5600 = vpack.c.bf16 %v4222, %v4217
  %v5601 = vpack.c.bf16 %v4223, %v4218
  %v5602 = vpack.c.bf16 %v4229, %v4224
  %v5603 = vpack.c.bf16 %v4230, %v4225
  %v5604 = vpack.c.bf16 %v4231, %v4226
  %v5605 = vpack.c.bf16 %v4232, %v4227
  %v5606 = vpack.c.bf16 %v4233, %v4228
  %v5607 = vpack.c.bf16 %v4239, %v4234
  %v5608 = vpack.c.bf16 %v4240, %v4235
  %v5609 = vpack.c.bf16 %v4241, %v4236
  %v5610 = vpack.c.bf16 %v4242, %v4237
  %v5611 = vpack.c.bf16 %v4243, %v4238
  %v5612 = vpack.c.bf16 %v4249, %v4244
  %v5613 = vpack.c.bf16 %v4250, %v4245
  %v5614 = vpack.c.bf16 %v4251, %v4246
  %v5615 = vpack.c.bf16 %v4252, %v4247
  %v5616 = vpack.c.bf16 %v4253, %v4248
  %v5617 = vpack.c.bf16 %v4259, %v4254
  %v5618 = vpack.c.bf16 %v4260, %v4255
  %v5619 = vpack.c.bf16 %v4261, %v4256
  %v5620 = vpack.c.bf16 %v4262, %v4257
  %v5621 = vpack.c.bf16 %v4263, %v4258
  %v5622 = vpack.c.bf16 %v4269, %v4264
  %v5623 = vpack.c.bf16 %v4270, %v4265
  %v5624 = vpack.c.bf16 %v4271, %v4266
  %v5625 = vpack.c.bf16 %v4272, %v4267
  %v5626 = vpack.c.bf16 %v4273, %v4268
  %v5627 = vpack.c.bf16 %v4279, %v4274
  %v5628 = vpack.c.bf16 %v4280, %v4275
  %v5629 = vpack.c.bf16 %v4281, %v4276
  %v5630 = vpack.c.bf16 %v4282, %v4277
  %v5631 = vpack.c.bf16 %v4283, %v4278
  %v5632 = vpack.c.bf16 %v4289, %v4284
  %v5633 = vpack.c.bf16 %v4290, %v4285
  %v5634 = vpack.c.bf16 %v4291, %v4286
  %v5635 = vpack.c.bf16 %v4292, %v4287
  %v5636 = vpack.c.bf16 %v4293, %v4288
  %s5637 = scalar_lea.vmem %s3, 640
  %v5638 = vld [vmem:[%s5637] sm:$0xf]
  %v5639 = vld [vmem:[%s5637 + $0x4] sm:$0xf]
  %v5640 = vld [vmem:[%s5637 + $0x8] sm:$0xf]
  %v5641 = vld [vmem:[%s5637 + $0xc] sm:$0xf]
  %v5642 = vld [vmem:[%s5637 + $0x10] sm:$0xf]
  %v5643 = vld [vmem:[%s5637 + $0x14] sm:$0xf]
  %v5644 = vld [vmem:[%s5637 + $0x18] sm:$0xf]
  %v5645 = vld [vmem:[%s5637 + $0x1c] sm:$0xf]
  %v5646 = vld [vmem:[%s5637 + $0x20] sm:$0xf]
  %v5647 = vld [vmem:[%s5637 + $0x24] sm:$0xf]
  %v5648 = vld [vmem:[%s5637 + $0x28] sm:$0xf]
  %v5649 = vld [vmem:[%s5637 + $0x2c] sm:$0xf]
  %v5650 = vld [vmem:[%s5637 + $0x30] sm:$0xf]
  %v5651 = vld [vmem:[%s5637 + $0x34] sm:$0xf]
  %v5652 = vld [vmem:[%s5637 + $0x38] sm:$0xf]
  %v5653 = vld [vmem:[%s5637 + $0x3c] sm:$0xf]
  %v5654 = vld [vmem:[%s5637 + $0x40] sm:$0xf]
  %v5655 = vld [vmem:[%s5637 + $0x44] sm:$0xf]
  %v5656 = vld [vmem:[%s5637 + $0x48] sm:$0xf]
  %v5657 = vld [vmem:[%s5637 + $0x4c] sm:$0xf]
  %v5658 = vld [vmem:[%s5637 + $0x50] sm:$0xf]
  %v5659 = vld [vmem:[%s5637 + $0x54] sm:$0xf]
  %v5660 = vld [vmem:[%s5637 + $0x58] sm:$0xf]
  %v5661 = vld [vmem:[%s5637 + $0x5c] sm:$0xf]
  %v5662 = vld [vmem:[%s5637 + $0x60] sm:$0xf]
  %v5663 = vld [vmem:[%s5637 + $0x64] sm:$0xf]
  %v5664 = vld [vmem:[%s5637 + $0x68] sm:$0xf]
  %v5665 = vld [vmem:[%s5637 + $0x6c] sm:$0xf]
  %v5666 = vld [vmem:[%s5637 + $0x70] sm:$0xf]
  %v5667 = vld [vmem:[%s5637 + $0x74] sm:$0xf]
  %v5668 = vld [vmem:[%s5637 + $0x78] sm:$0xf]
  %v5669 = vld [vmem:[%s5637 + $0x7c] sm:$0xf]
  %v5670 = vld [vmem:[%s5637 + $0x80] sm:$0xf]
  %v5671 = vld [vmem:[%s5637 + $0x84] sm:$0xf]
  %v5672 = vld [vmem:[%s5637 + $0x88] sm:$0xf]
  %v5673 = vld [vmem:[%s5637 + $0x8c] sm:$0xf]
  %v5674 = vld [vmem:[%s5637 + $0x90] sm:$0xf]
  %v5675 = vld [vmem:[%s5637 + $0x94] sm:$0xf]
  %v5676 = vld [vmem:[%s5637 + $0x98] sm:$0xf]
  %v5677 = vld [vmem:[%s5637 + $0x9c] sm:$0xf]
  %v5678 = vld [vmem:[%s5637 + $0xa0] sm:$0xf]
  %v5679 = vld [vmem:[%s5637 + $0xa4] sm:$0xf]
  %v5680 = vld [vmem:[%s5637 + $0xa8] sm:$0xf]
  %v5681 = vld [vmem:[%s5637 + $0xac] sm:$0xf]
  %v5682 = vld [vmem:[%s5637 + $0xb0] sm:$0xf]
  %v5683 = vld [vmem:[%s5637 + $0xb4] sm:$0xf]
  %v5684 = vld [vmem:[%s5637 + $0xb8] sm:$0xf]
  %v5685 = vld [vmem:[%s5637 + $0xbc] sm:$0xf]
  %v5686 = vld [vmem:[%s5637 + $0xc0] sm:$0xf]
  %v5687 = vld [vmem:[%s5637 + $0xc4] sm:$0xf]
  %v5688 = vld [vmem:[%s5637 + $0xc8] sm:$0xf]
  %v5689 = vld [vmem:[%s5637 + $0xcc] sm:$0xf]
  %v5690 = vld [vmem:[%s5637 + $0xd0] sm:$0xf]
  %v5691 = vld [vmem:[%s5637 + $0xd4] sm:$0xf]
  %v5692 = vld [vmem:[%s5637 + $0xd8] sm:$0xf]
  %v5693 = vld [vmem:[%s5637 + $0xdc] sm:$0xf]
  %v5694 = vld [vmem:[%s5637 + $0xe0] sm:$0xf]
  %v5695 = vld [vmem:[%s5637 + $0xe4] sm:$0xf]
  %v5696 = vld [vmem:[%s5637 + $0xe8] sm:$0xf]
  %v5697 = vld [vmem:[%s5637 + $0xec] sm:$0xf]
  %v5698 = vld [vmem:[%s5637 + $0xf0] sm:$0xf]
  %v5699 = vld [vmem:[%s5637 + $0xf4] sm:$0xf]
  %v5700 = vld [vmem:[%s5637 + $0xf8] sm:$0xf]
  %v5701 = vld [vmem:[%s5637 + $0xfc] sm:$0xf]
  %v5702 = vld [vmem:[%s5637 + $0x100] sm:$0xf]
  %v5703 = vld [vmem:[%s5637 + $0x104] sm:$0xf]
  %v5704 = vld [vmem:[%s5637 + $0x108] sm:$0xf]
  %v5705 = vld [vmem:[%s5637 + $0x10c] sm:$0xf]
  %v5706 = vld [vmem:[%s5637 + $0x110] sm:$0xf]
  %v5707 = vld [vmem:[%s5637 + $0x114] sm:$0xf]
  %v5708 = vld [vmem:[%s5637 + $0x118] sm:$0xf]
  %v5709 = vld [vmem:[%s5637 + $0x11c] sm:$0xf]
  %v5710 = vld [vmem:[%s5637 + $0x120] sm:$0xf]
  %v5711 = vld [vmem:[%s5637 + $0x124] sm:$0xf]
  %v5712 = vld [vmem:[%s5637 + $0x128] sm:$0xf]
  %v5713 = vld [vmem:[%s5637 + $0x12c] sm:$0xf]
  %v5714 = vld [vmem:[%s5637 + $0x130] sm:$0xf]
  %v5715 = vld [vmem:[%s5637 + $0x134] sm:$0xf]
  %v5716 = vld [vmem:[%s5637 + $0x138] sm:$0xf]
  %v5717 = vld [vmem:[%s5637 + $0x13c] sm:$0xf]
  %v5798 = vunpack.c.l.b16 %v5638
  %v5799 = vunpack.c.l.b16 %v5639
  %v5800 = vunpack.c.l.b16 %v5640
  %v5801 = vunpack.c.l.b16 %v5641
  %v5802 = vunpack.c.l.b16 %v5642
  %v5803 = vunpack.c.l.b16 %v5643
  %v5804 = vunpack.c.l.b16 %v5644
  %v5805 = vunpack.c.l.b16 %v5645
  %v5806 = vunpack.c.l.b16 %v5646
  %v5807 = vunpack.c.l.b16 %v5647
  %v5808 = vunpack.c.l.b16 %v5648
  %v5809 = vunpack.c.l.b16 %v5649
  %v5810 = vunpack.c.l.b16 %v5650
  %v5811 = vunpack.c.l.b16 %v5651
  %v5812 = vunpack.c.l.b16 %v5652
  %v5813 = vunpack.c.l.b16 %v5653
  %v5814 = vunpack.c.l.b16 %v5654
  %v5815 = vunpack.c.l.b16 %v5655
  %v5816 = vunpack.c.l.b16 %v5656
  %v5817 = vunpack.c.l.b16 %v5657
  %v5818 = vunpack.c.l.b16 %v5658
  %v5819 = vunpack.c.l.b16 %v5659
  %v5820 = vunpack.c.l.b16 %v5660
  %v5821 = vunpack.c.l.b16 %v5661
  %v5822 = vunpack.c.l.b16 %v5662
  %v5823 = vunpack.c.l.b16 %v5663
  %v5824 = vunpack.c.l.b16 %v5664
  %v5825 = vunpack.c.l.b16 %v5665
  %v5826 = vunpack.c.l.b16 %v5666
  %v5827 = vunpack.c.l.b16 %v5667
  %v5828 = vunpack.c.l.b16 %v5668
  %v5829 = vunpack.c.l.b16 %v5669
  %v5830 = vunpack.c.l.b16 %v5670
  %v5831 = vunpack.c.l.b16 %v5671
  %v5832 = vunpack.c.l.b16 %v5672
  %v5833 = vunpack.c.l.b16 %v5673
  %v5834 = vunpack.c.l.b16 %v5674
  %v5835 = vunpack.c.l.b16 %v5675
  %v5836 = vunpack.c.l.b16 %v5676
  %v5837 = vunpack.c.l.b16 %v5677
  %v5838 = vunpack.c.l.b16 %v5678
  %v5839 = vunpack.c.l.b16 %v5679
  %v5840 = vunpack.c.l.b16 %v5680
  %v5841 = vunpack.c.l.b16 %v5681
  %v5842 = vunpack.c.l.b16 %v5682
  %v5843 = vunpack.c.l.b16 %v5683
  %v5844 = vunpack.c.l.b16 %v5684
  %v5845 = vunpack.c.l.b16 %v5685
  %v5846 = vunpack.c.l.b16 %v5686
  %v5847 = vunpack.c.l.b16 %v5687
  %v5848 = vunpack.c.l.b16 %v5688
  %v5849 = vunpack.c.l.b16 %v5689
  %v5850 = vunpack.c.l.b16 %v5690
  %v5851 = vunpack.c.l.b16 %v5691
  %v5852 = vunpack.c.l.b16 %v5692
  %v5853 = vunpack.c.l.b16 %v5693
  %v5854 = vunpack.c.l.b16 %v5694
  %v5855 = vunpack.c.l.b16 %v5695
  %v5856 = vunpack.c.l.b16 %v5696
  %v5857 = vunpack.c.l.b16 %v5697
  %v5858 = vunpack.c.l.b16 %v5698
  %v5859 = vunpack.c.l.b16 %v5699
  %v5860 = vunpack.c.l.b16 %v5700
  %v5861 = vunpack.c.l.b16 %v5701
  %v5862 = vunpack.c.l.b16 %v5702
  %v5863 = vunpack.c.l.b16 %v5703
  %v5864 = vunpack.c.l.b16 %v5704
  %v5865 = vunpack.c.l.b16 %v5705
  %v5866 = vunpack.c.l.b16 %v5706
  %v5867 = vunpack.c.l.b16 %v5707
  %v5868 = vunpack.c.l.b16 %v5708
  %v5869 = vunpack.c.l.b16 %v5709
  %v5870 = vunpack.c.l.b16 %v5710
  %v5871 = vunpack.c.l.b16 %v5711
  %v5872 = vunpack.c.l.b16 %v5712
  %v5873 = vunpack.c.l.b16 %v5713
  %v5874 = vunpack.c.l.b16 %v5714
  %v5875 = vunpack.c.l.b16 %v5715
  %v5876 = vunpack.c.l.b16 %v5716
  %v5877 = vunpack.c.l.b16 %v5717
  %v5878 = vpack.c.b16 %v5799, %v5798
  %v5879 = vpack.c.b16 %v5801, %v5800
  %v5880 = vpack.c.b16 %v5803, %v5802
  %v5881 = vpack.c.b16 %v5805, %v5804
  %v5882 = vpack.c.b16 %v5807, %v5806
  %v5883 = vpack.c.b16 %v5809, %v5808
  %v5884 = vpack.c.b16 %v5811, %v5810
  %v5885 = vpack.c.b16 %v5813, %v5812
  %v5886 = vpack.c.b16 %v5815, %v5814
  %v5887 = vpack.c.b16 %v5817, %v5816
  %v5888 = vpack.c.b16 %v5819, %v5818
  %v5889 = vpack.c.b16 %v5821, %v5820
  %v5890 = vpack.c.b16 %v5823, %v5822
  %v5891 = vpack.c.b16 %v5825, %v5824
  %v5892 = vpack.c.b16 %v5827, %v5826
  %v5893 = vpack.c.b16 %v5829, %v5828
  %v5894 = vpack.c.b16 %v5831, %v5830
  %v5895 = vpack.c.b16 %v5833, %v5832
  %v5896 = vpack.c.b16 %v5835, %v5834
  %v5897 = vpack.c.b16 %v5837, %v5836
  %v5898 = vpack.c.b16 %v5839, %v5838
  %v5899 = vpack.c.b16 %v5841, %v5840
  %v5900 = vpack.c.b16 %v5843, %v5842
  %v5901 = vpack.c.b16 %v5845, %v5844
  %v5902 = vpack.c.b16 %v5847, %v5846
  %v5903 = vpack.c.b16 %v5849, %v5848
  %v5904 = vpack.c.b16 %v5851, %v5850
  %v5905 = vpack.c.b16 %v5853, %v5852
  %v5906 = vpack.c.b16 %v5855, %v5854
  %v5907 = vpack.c.b16 %v5857, %v5856
  %v5908 = vpack.c.b16 %v5859, %v5858
  %v5909 = vpack.c.b16 %v5861, %v5860
  %v5910 = vpack.c.b16 %v5863, %v5862
  %v5911 = vpack.c.b16 %v5865, %v5864
  %v5912 = vpack.c.b16 %v5867, %v5866
  %v5913 = vpack.c.b16 %v5869, %v5868
  %v5914 = vpack.c.b16 %v5871, %v5870
  %v5915 = vpack.c.b16 %v5873, %v5872
  %v5916 = vpack.c.b16 %v5875, %v5874
  %v5917 = vpack.c.b16 %v5877, %v5876
  %5958 = vmatprep.subr.bf16.mxu0 0
  %5959 = vmatpush1.bf16.msra.mxu0 %v5878
  %5960 = vmatprep.subr.bf16.mxu0 0
  %5961 = vmatpush1.bf16.msra.mxu0 %v5879
  %5962 = vmatprep.subr.bf16.mxu0 0
  %5963 = vmatpush1.bf16.msra.mxu0 %v5880
  %5964 = vmatprep.subr.bf16.mxu0 0
  %5965 = vmatpush1.bf16.msra.mxu0 %v5881
  %5966 = vmatprep.subr.bf16.mxu0 0
  %5967 = vmatpush1.bf16.msra.mxu0 %v5882
  %5968 = vmatprep.subr.bf16.mxu0 0
  %5969 = vmatpush1.bf16.msra.mxu0 %v5883
  %5970 = vmatprep.subr.bf16.mxu0 0
  %5971 = vmatpush1.bf16.msra.mxu0 %v5884
  %5972 = vmatprep.subr.bf16.mxu0 0
  %5973 = vmatpush1.bf16.msra.mxu0 %v5885
  %5974 = vmatprep.subr.bf16.mxu0 0
  %5975 = vmatpush1.bf16.msra.mxu0 %v5886
  %5976 = vmatprep.subr.bf16.mxu0 0
  %5977 = vmatpush1.bf16.msra.mxu0 %v5887
  %5978 = vmatprep.subr.bf16.mxu0 0
  %5979 = vmatpush1.bf16.msra.mxu0 %v5888
  %5980 = vmatprep.subr.bf16.mxu0 0
  %5981 = vmatpush1.bf16.msra.mxu0 %v5889
  %5982 = vmatprep.subr.bf16.mxu0 0
  %5983 = vmatpush1.bf16.msra.mxu0 %v5890
  %5984 = vmatprep.subr.bf16.mxu0 0
  %5985 = vmatpush1.bf16.msra.mxu0 %v5891
  %5986 = vmatprep.subr.bf16.mxu0 0
  %5987 = vmatpush1.bf16.msra.mxu0 %v5892
  %5988 = vmatprep.subr.bf16.mxu0 0
  %5989 = vmatpush1.bf16.msra.mxu0 %v5893
  %5990 = vmatprep.mubr.bf16.mxu0 %v5598
  %5991 = vmatmul.mubr.bf16.gmra.mrb[0].mxu0 %v5597
  %v5992 = vpop.f32.mrb[0].mxu0
  %v5993 = vadd.f32 0.0, %v5992
  %v5994 = vpop.f32.mrb[0].mxu0
  %v5995 = vpop.f32.mrb[0].mxu0
  %v5996 = vadd.f32 0.0, %v5995
  %v5997 = vpop.f32.mrb[0].mxu0
  %5998 = vmatprep.mubr.bf16.mxu0 %v5603
  %5999 = vmatmul.mubr.bf16.gmra.mrb[0].mxu0 %v5602
  %v6000 = vpop.f32.mrb[0].mxu0
  %v6001 = vadd.f32 0.0, %v6000
  %v6002 = vpop.f32.mrb[0].mxu0
  %v6003 = vpop.f32.mrb[0].mxu0
  %v6004 = vadd.f32 0.0, %v6003
  %v6005 = vpop.f32.mrb[0].mxu0
  %6006 = vmatprep.mubr.bf16.mxu0 %v5608
  %6007 = vmatmul.mubr.bf16.gmra.mrb[0].mxu0 %v5607
  %v6008 = vpop.f32.mrb[0].mxu0
  %v6009 = vadd.f32 0.0, %v6008
  %v6010 = vpop.f32.mrb[0].mxu0
  %v6011 = vpop.f32.mrb[0].mxu0
  %v6012 = vadd.f32 0.0, %v6011
  %v6013 = vpop.f32.mrb[0].mxu0
  %6014 = vmatprep.mubr.bf16.mxu0 %v5613
  %6015 = vmatmul.mubr.bf16.gmra.mrb[0].mxu0 %v5612
  %v6016 = vpop.f32.mrb[0].mxu0
  %v6017 = vadd.f32 0.0, %v6016
  %v6018 = vpop.f32.mrb[0].mxu0
  %v6019 = vpop.f32.mrb[0].mxu0
  %v6020 = vadd.f32 0.0, %v6019
  %v6021 = vpop.f32.mrb[0].mxu0
  %6022 = vmatprep.mubr.bf16.mxu0 %v5618
  %6023 = vmatmul.mubr.bf16.gmra.mrb[0].mxu0 %v5617
  %v6024 = vpop.f32.mrb[0].mxu0
  %v6025 = vadd.f32 0.0, %v6024
  %v6026 = vpop.f32.mrb[0].mxu0
  %v6027 = vpop.f32.mrb[0].mxu0
  %v6028 = vadd.f32 0.0, %v6027
  %v6029 = vpop.f32.mrb[0].mxu0
  %6030 = vmatprep.mubr.bf16.mxu0 %v5623
  %6031 = vmatmul.mubr.bf16.gmra.mrb[0].mxu0 %v5622
  %v6032 = vpop.f32.mrb[0].mxu0
  %v6033 = vadd.f32 0.0, %v6032
  %v6034 = vpop.f32.mrb[0].mxu0
  %v6035 = vpop.f32.mrb[0].mxu0
  %v6036 = vadd.f32 0.0, %v6035
  %v6037 = vpop.f32.mrb[0].mxu0
  %6038 = vmatprep.mubr.bf16.mxu0 %v5628
  %6039 = vmatmul.mubr.bf16.gmra.mrb[0].mxu0 %v5627
  %v6040 = vpop.f32.mrb[0].mxu0
  %v6041 = vadd.f32 0.0, %v6040
  %v6042 = vpop.f32.mrb[0].mxu0
  %v6043 = vpop.f32.mrb[0].mxu0
  %v6044 = vadd.f32 0.0, %v6043
  %v6045 = vpop.f32.mrb[0].mxu0
  %6046 = vmatprep.mubr.bf16.mxu0 %v5633
  %6047 = vmatmul.mubr.bf16.gmra.mrb[0].mxu0 %v5632
  %v6048 = vpop.f32.mrb[0].mxu0
  %v6049 = vadd.f32 0.0, %v6048
  %v6050 = vpop.f32.mrb[0].mxu0
  %v6051 = vpop.f32.mrb[0].mxu0
  %v6052 = vadd.f32 0.0, %v6051
  %v6053 = vpop.f32.mrb[0].mxu0
  %6054 = vdwg.mxu0
  %6055 = vmatprep.subr.bf16.mxu0 0
  %6056 = vmatpush1.bf16.msra.mxu0 %v5894
  %6057 = vmatprep.subr.bf16.mxu0 0
  %6058 = vmatpush1.bf16.msra.mxu0 %v5895
  %6059 = vmatprep.subr.bf16.mxu0 0
  %6060 = vmatpush1.bf16.msra.mxu0 %v5896
  %6061 = vmatprep.subr.bf16.mxu0 0
  %6062 = vmatpush1.bf16.msra.mxu0 %v5897
  %6063 = vmatprep.subr.bf16.mxu0 0
  %6064 = vmatpush1.bf16.msra.mxu0 %v5898
  %6065 = vmatprep.subr.bf16.mxu0 0
  %6066 = vmatpush1.bf16.msra.mxu0 %v5899
  %6067 = vmatprep.subr.bf16.mxu0 0
  %6068 = vmatpush1.bf16.msra.mxu0 %v5900
  %6069 = vmatprep.subr.bf16.mxu0 0
  %6070 = vmatpush1.bf16.msra.mxu0 %v5901
  %6071 = vmatprep.subr.bf16.mxu0 0
  %6072 = vmatpush1.bf16.msra.mxu0 %v5902
  %6073 = vmatprep.subr.bf16.mxu0 0
  %6074 = vmatpush1.bf16.msra.mxu0 %v5903
  %6075 = vmatprep.subr.bf16.mxu0 0
  %6076 = vmatpush1.bf16.msra.mxu0 %v5904
  %6077 = vmatprep.subr.bf16.mxu0 0
  %6078 = vmatpush1.bf16.msra.mxu0 %v5905
  %6079 = vmatprep.subr.bf16.mxu0 0
  %6080 = vmatpush1.bf16.msra.mxu0 %v5906
  %6081 = vmatprep.subr.bf16.mxu0 0
  %6082 = vmatpush1.bf16.msra.mxu0 %v5907
  %6083 = vmatprep.subr.bf16.mxu0 0
  %6084 = vmatpush1.bf16.msra.mxu0 %v5908
  %6085 = vmatprep.subr.bf16.mxu0 0
  %6086 = vmatpush1.bf16.msra.mxu0 %v5909
  %6087 = vmatprep.mubr.bf16.mxu0 %v5600
  %6088 = vmatmul.mubr.bf16.gmra.mrb[0].mxu0 %v5599
  %v6089 = vpop.f32.mrb[0].mxu0
  %v6090 = vadd.f32 %v5993, %v6089
  %v6091 = vpop.f32.mrb[0].mxu0
  %v6092 = vpop.f32.mrb[0].mxu0
  %v6093 = vadd.f32 %v5996, %v6092
  %v6094 = vpop.f32.mrb[0].mxu0
  %6095 = vmatprep.mubr.bf16.mxu0 %v5605
  %6096 = vmatmul.mubr.bf16.gmra.mrb[0].mxu0 %v5604
  %v6097 = vpop.f32.mrb[0].mxu0
  %v6098 = vadd.f32 %v6001, %v6097
  %v6099 = vpop.f32.mrb[0].mxu0
  %v6100 = vpop.f32.mrb[0].mxu0
  %v6101 = vadd.f32 %v6004, %v6100
  %v6102 = vpop.f32.mrb[0].mxu0
  %6103 = vmatprep.mubr.bf16.mxu0 %v5610
  %6104 = vmatmul.mubr.bf16.gmra.mrb[0].mxu0 %v5609
  %v6105 = vpop.f32.mrb[0].mxu0
  %v6106 = vadd.f32 %v6009, %v6105
  %v6107 = vpop.f32.mrb[0].mxu0
  %v6108 = vpop.f32.mrb[0].mxu0
  %v6109 = vadd.f32 %v6012, %v6108
  %v6110 = vpop.f32.mrb[0].mxu0
  %6111 = vmatprep.mubr.bf16.mxu0 %v5615
  %6112 = vmatmul.mubr.bf16.gmra.mrb[0].mxu0 %v5614
  %v6113 = vpop.f32.mrb[0].mxu0
  %v6114 = vadd.f32 %v6017, %v6113
  %v6115 = vpop.f32.mrb[0].mxu0
  %v6116 = vpop.f32.mrb[0].mxu0
  %v6117 = vadd.f32 %v6020, %v6116
  %v6118 = vpop.f32.mrb[0].mxu0
  %6119 = vmatprep.mubr.bf16.mxu0 %v5620
  %6120 = vmatmul.mubr.bf16.gmra.mrb[0].mxu0 %v5619
  %v6121 = vpop.f32.mrb[0].mxu0
  %v6122 = vadd.f32 %v6025, %v6121
  %v6123 = vpop.f32.mrb[0].mxu0
  %v6124 = vpop.f32.mrb[0].mxu0
  %v6125 = vadd.f32 %v6028, %v6124
  %v6126 = vpop.f32.mrb[0].mxu0
  %6127 = vmatprep.mubr.bf16.mxu0 %v5625
  %6128 = vmatmul.mubr.bf16.gmra.mrb[0].mxu0 %v5624
  %v6129 = vpop.f32.mrb[0].mxu0
  %v6130 = vadd.f32 %v6033, %v6129
  %v6131 = vpop.f32.mrb[0].mxu0
  %v6132 = vpop.f32.mrb[0].mxu0
  %v6133 = vadd.f32 %v6036, %v6132
  %v6134 = vpop.f32.mrb[0].mxu0
  %6135 = vmatprep.mubr.bf16.mxu0 %v5630
  %6136 = vmatmul.mubr.bf16.gmra.mrb[0].mxu0 %v5629
  %v6137 = vpop.f32.mrb[0].mxu0
  %v6138 = vadd.f32 %v6041, %v6137
  %v6139 = vpop.f32.mrb[0].mxu0
  %v6140 = vpop.f32.mrb[0].mxu0
  %v6141 = vadd.f32 %v6044, %v6140
  %v6142 = vpop.f32.mrb[0].mxu0
  %6143 = vmatprep.mubr.bf16.mxu0 %v5635
  %6144 = vmatmul.mubr.bf16.gmra.mrb[0].mxu0 %v5634
  %v6145 = vpop.f32.mrb[0].mxu0
  %v6146 = vadd.f32 %v6049, %v6145
  %v6147 = vpop.f32.mrb[0].mxu0
  %v6148 = vpop.f32.mrb[0].mxu0
  %v6149 = vadd.f32 %v6052, %v6148
  %v6150 = vpop.f32.mrb[0].mxu0
  %6151 = vdwg.mxu0
  %6152 = vmatprep.subr.bf16.mxu0 0
  %6153 = vmatpush1.bf16.msra.mxu0 %v5910
  %6154 = vmatprep.subr.bf16.mxu0 0
  %6155 = vmatpush1.bf16.msra.mxu0 %v5911
  %6156 = vmatprep.subr.bf16.mxu0 0
  %6157 = vmatpush1.bf16.msra.mxu0 %v5912
  %6158 = vmatprep.subr.bf16.mxu0 0
  %6159 = vmatpush1.bf16.msra.mxu0 %v5913
  %6160 = vmatprep.subr.bf16.mxu0 0
  %6161 = vmatpush1.bf16.msra.mxu0 %v5914
  %6162 = vmatprep.subr.bf16.mxu0 0
  %6163 = vmatpush1.bf16.msra.mxu0 %v5915
  %6164 = vmatprep.subr.bf16.mxu0 0
  %6165 = vmatpush1.bf16.msra.mxu0 %v5916
  %6166 = vmatprep.subr.bf16.mxu0 0
  %6167 = vmatpush1.bf16.msra.mxu0 %v5917
  %6168 = vmatprep.subr.bf16.mxu0 0
  %6169 = vmatpush1.bf16.msra.mxu0 0
  %6170 = vmatprep.subr.bf16.mxu0 0
  %6171 = vmatpush1.bf16.msra.mxu0 0
  %6172 = vmatprep.subr.bf16.mxu0 0
  %6173 = vmatpush1.bf16.msra.mxu0 0
  %6174 = vmatprep.subr.bf16.mxu0 0
  %6175 = vmatpush1.bf16.msra.mxu0 0
  %6176 = vmatprep.subr.bf16.mxu0 0
  %6177 = vmatpush1.bf16.msra.mxu0 0
  %6178 = vmatprep.subr.bf16.mxu0 0
  %6179 = vmatpush1.bf16.msra.mxu0 0
  %6180 = vmatprep.subr.bf16.mxu0 0
  %6181 = vmatpush1.bf16.msra.mxu0 0
  %6182 = vmatprep.subr.bf16.mxu0 0
  %6183 = vmatpush1.bf16.msra.mxu0 0
  %6184 = vmatprep.mubr.bf16.mxu0 0
  %6185 = vmatmul.mubr.bf16.gmra.mrb[0].mxu0 %v5601
  %v6186 = vpop.f32.mrb[0].mxu0
  %v6187 = vadd.f32 %v6090, %v6186
  %v6188 = vpop.f32.mrb[0].mxu0
  %v6189 = vpop.f32.mrb[0].mxu0
  %v6190 = vadd.f32 %v6093, %v6189
  %v6191 = vpop.f32.mrb[0].mxu0
  %6192 = vmatprep.mubr.bf16.mxu0 0
  %6193 = vmatmul.mubr.bf16.gmra.mrb[0].mxu0 %v5606
  %v6194 = vpop.f32.mrb[0].mxu0
  %v6195 = vadd.f32 %v6098, %v6194
  %v6196 = vpop.f32.mrb[0].mxu0
  %v6197 = vpop.f32.mrb[0].mxu0
  %v6198 = vadd.f32 %v6101, %v6197
  %v6199 = vpop.f32.mrb[0].mxu0
  %6200 = vmatprep.mubr.bf16.mxu0 0
  %6201 = vmatmul.mubr.bf16.gmra.mrb[0].mxu0 %v5611
  %v6202 = vpop.f32.mrb[0].mxu0
  %v6203 = vadd.f32 %v6106, %v6202
  %v6204 = vpop.f32.mrb[0].mxu0
  %v6205 = vpop.f32.mrb[0].mxu0
  %v6206 = vadd.f32 %v6109, %v6205
  %v6207 = vpop.f32.mrb[0].mxu0
  %6208 = vmatprep.mubr.bf16.mxu0 0
  %6209 = vmatmul.mubr.bf16.gmra.mrb[0].mxu0 %v5616
  %v6210 = vpop.f32.mrb[0].mxu0
  %v6211 = vadd.f32 %v6114, %v6210
  %v6212 = vpop.f32.mrb[0].mxu0
  %v6213 = vpop.f32.mrb[0].mxu0
  %v6214 = vadd.f32 %v6117, %v6213
  %v6215 = vpop.f32.mrb[0].mxu0
  %6216 = vmatprep.mubr.bf16.mxu0 0
  %6217 = vmatmul.mubr.bf16.gmra.mrb[0].mxu0 %v5621
  %v6218 = vpop.f32.mrb[0].mxu0
  %v6219 = vadd.f32 %v6122, %v6218
  %v6220 = vpop.f32.mrb[0].mxu0
  %v6221 = vpop.f32.mrb[0].mxu0
  %v6222 = vadd.f32 %v6125, %v6221
  %v6223 = vpop.f32.mrb[0].mxu0
  %6224 = vmatprep.mubr.bf16.mxu0 0
  %6225 = vmatmul.mubr.bf16.gmra.mrb[0].mxu0 %v5626
  %v6226 = vpop.f32.mrb[0].mxu0
  %v6227 = vadd.f32 %v6130, %v6226
  %v6228 = vpop.f32.mrb[0].mxu0
  %v6229 = vpop.f32.mrb[0].mxu0
  %v6230 = vadd.f32 %v6133, %v6229
  %v6231 = vpop.f32.mrb[0].mxu0
  %6232 = vmatprep.mubr.bf16.mxu0 0
  %6233 = vmatmul.mubr.bf16.gmra.mrb[0].mxu0 %v5631
  %v6234 = vpop.f32.mrb[0].mxu0
  %v6235 = vadd.f32 %v6138, %v6234
  %v6236 = vpop.f32.mrb[0].mxu0
  %v6237 = vpop.f32.mrb[0].mxu0
  %v6238 = vadd.f32 %v6141, %v6237
  %v6239 = vpop.f32.mrb[0].mxu0
  %6240 = vmatprep.mubr.bf16.mxu0 0
  %6241 = vmatmul.mubr.bf16.gmra.mrb[0].mxu0 %v5636
  %v6242 = vpop.f32.mrb[0].mxu0
  %v6243 = vadd.f32 %v6146, %v6242
  %v6244 = vpop.f32.mrb[0].mxu0
  %v6245 = vpop.f32.mrb[0].mxu0
  %v6246 = vadd.f32 %v6149, %v6245
  %v6247 = vpop.f32.mrb[0].mxu0
  %6248 = vdwg.mxu0
  %v6249 = vadd.f32 %v5535, %v6187
  %v6250 = vadd.f32 %v5538, %v6190
  %v6251 = vadd.f32 %v5543, %v6195
  %v6252 = vadd.f32 %v5546, %v6198
  %v6253 = vadd.f32 %v5551, %v6203
  %v6254 = vadd.f32 %v5554, %v6206
  %v6255 = vadd.f32 %v5559, %v6211
  %v6256 = vadd.f32 %v5562, %v6214
  %v6257 = vadd.f32 %v5567, %v6219
  %v6258 = vadd.f32 %v5570, %v6222
  %v6259 = vadd.f32 %v5575, %v6227
  %v6260 = vadd.f32 %v5578, %v6230
  %v6261 = vadd.f32 %v5583, %v6235
  %v6262 = vadd.f32 %v5586, %v6238
  %v6263 = vadd.f32 %v5591, %v6243
  %v6264 = vadd.f32 %v5594, %v6246
  %v6265 = vld [vmem:[%s4] sm:$0x1]
  %v6267 = vlaneseq
  %v6268 = vshrl.u32 %v6267, 7
  %v6269 = vsub.s32 0, %v6268
  %v6270 = vrot.slane %v6265, %v6269
  %v6272 = vadd.f32 %v6249, %v6270
  %v6273 = vadd.f32 %v6250, %v6270
  %v6274 = vadd.f32 %v6251, %v6270
  %v6275 = vadd.f32 %v6252, %v6270
  %v6276 = vadd.f32 %v6253, %v6270
  %v6277 = vadd.f32 %v6254, %v6270
  %v6278 = vadd.f32 %v6255, %v6270
  %v6279 = vadd.f32 %v6256, %v6270
  %v6280 = vadd.f32 %v6257, %v6270
  %v6281 = vadd.f32 %v6258, %v6270
  %v6282 = vadd.f32 %v6259, %v6270
  %v6283 = vadd.f32 %v6260, %v6270
  %v6284 = vadd.f32 %v6261, %v6270
  %v6285 = vadd.f32 %v6262, %v6270
  %v6286 = vadd.f32 %v6263, %v6270
  %v6287 = vadd.f32 %v6264, %v6270
  %v6288 = vtanh.pop %v6272
  %v6289 = vtanh.pop %v6273
  %v6290 = vtanh.pop %v6274
  %v6291 = vtanh.pop %v6275
  %v6292 = vtanh.pop %v6276
  %v6293 = vtanh.pop %v6277
  %v6294 = vtanh.pop %v6278
  %v6295 = vtanh.pop %v6279
  %v6296 = vtanh.pop %v6280
  %v6297 = vtanh.pop %v6281
  %v6298 = vtanh.pop %v6282
  %v6299 = vtanh.pop %v6283
  %v6300 = vtanh.pop %v6284
  %v6301 = vtanh.pop %v6285
  %v6302 = vtanh.pop %v6286
  %v6303 = vtanh.pop %v6287
  %v6304 = vlaneseq
  %v6305 = vand.u32 %v6304, 127
  %v6306 = vmul.u32 %v2998, 4
  %v6307 = vmul.u32 %v2999, 4
  %v6308 = vmul.u32 %v3000, 4
  %v6309 = vmul.u32 %v3001, 4
  %v6310 = vsub.s32 %v6305, %v6306
  %v6311 = vsub.s32 %v6305, %v6307
  %v6312 = vsub.s32 %v6305, %v6308
  %v6313 = vsub.s32 %v6305, %v6309
  %vm6314 = vcmp.eq.s32.totalorder %v6310, 0
  %vm6315 = vcmp.eq.s32.totalorder %v6311, 0
  %vm6316 = vcmp.eq.s32.totalorder %v6312, 0
  %vm6317 = vcmp.eq.s32.totalorder %v6313, 0
  %v6318 = vsel %vm6314, 1, 0
  %v6319 = vsel %vm6315, 1, 0
  %v6320 = vsel %vm6316, 1, 0
  %v6321 = vsel %vm6317, 1, 0
  %v6322 = vcvt.s32.f32 %v6318
  %v6323 = vcvt.s32.f32 %v6319
  %v6324 = vcvt.s32.f32 %v6320
  %v6325 = vcvt.s32.f32 %v6321
  %6326 = vmatprep.subr.mxu0 0.0
  %6327 = vmatpush1.msra.mxu0 %v6288
  %6328 = vmatprep.subr.mxu0 0.0
  %6329 = vmatpush1.msra.mxu0 %v6289
  %6330 = vmatprep.subr.mxu0 0.0
  %6331 = vmatpush1.msra.mxu0 %v6290
  %6332 = vmatprep.subr.mxu0 0.0
  %6333 = vmatpush1.msra.mxu0 %v6291
  %6334 = vmatprep.subr.mxu0 0.0
  %6335 = vmatpush1.msra.mxu0 %v6292
  %6336 = vmatprep.subr.mxu0 0.0
  %6337 = vmatpush1.msra.mxu0 %v6293
  %6338 = vmatprep.subr.mxu0 0.0
  %6339 = vmatpush1.msra.mxu0 %v6294
  %6340 = vmatprep.subr.mxu0 0.0
  %6341 = vmatpush1.msra.mxu0 %v6295
  %6342 = vmatprep.subr.mxu0 0.0
  %6343 = vmatpush1.msra.mxu0 %v6296
  %6344 = vmatprep.subr.mxu0 0.0
  %6345 = vmatpush1.msra.mxu0 %v6297
  %6346 = vmatprep.subr.mxu0 0.0
  %6347 = vmatpush1.msra.mxu0 %v6298
  %6348 = vmatprep.subr.mxu0 0.0
  %6349 = vmatpush1.msra.mxu0 %v6299
  %6350 = vmatprep.subr.mxu0 0.0
  %6351 = vmatpush1.msra.mxu0 %v6300
  %6352 = vmatprep.subr.mxu0 0.0
  %6353 = vmatpush1.msra.mxu0 %v6301
  %6354 = vmatprep.subr.mxu0 0.0
  %6355 = vmatpush1.msra.mxu0 %v6302
  %6356 = vmatprep.subr.mxu0 0.0
  %6357 = vmatpush1.msra.mxu0 %v6303
  %6358 = vmatprep.subr.mxu0 0.0
  %6359 = vmatpush1.msra.mxu0 0.0
  %6360 = vmatprep.subr.mxu0 0.0
  %6361 = vmatpush1.msra.mxu0 0.0
  %6362 = vmatprep.subr.mxu0 0.0
  %6363 = vmatpush1.msra.mxu0 0.0
  %6364 = vmatprep.subr.mxu0 0.0
  %6365 = vmatpush1.msra.mxu0 0.0
  %6366 = vmatprep.subr.mxu0 0.0
  %6367 = vmatpush1.msra.mxu0 0.0
  %6368 = vmatprep.subr.mxu0 0.0
  %6369 = vmatpush1.msra.mxu0 0.0
  %6370 = vmatprep.subr.mxu0 0.0
  %6371 = vmatpush1.msra.mxu0 0.0
  %6372 = vmatprep.subr.mxu0 0.0
  %6373 = vmatpush1.msra.mxu0 0.0
  %6374 = vmatprep.subr.mxu0 0.0
  %6375 = vmatpush1.msra.mxu0 0.0
  %6376 = vmatprep.subr.mxu0 0.0
  %6377 = vmatpush1.msra.mxu0 0.0
  %6378 = vmatprep.subr.mxu0 0.0
  %6379 = vmatpush1.msra.mxu0 0.0
  %6380 = vmatprep.subr.mxu0 0.0
  %6381 = vmatpush1.msra.mxu0 0.0
  %6382 = vmatprep.subr.mxu0 0.0
  %6383 = vmatpush1.msra.mxu0 0.0
  %6384 = vmatprep.subr.mxu0 0.0
  %6385 = vmatpush1.msra.mxu0 0.0
  %6386 = vmatprep.subr.mxu0 0.0
  %6387 = vmatpush1.msra.mxu0 0.0
  %6388 = vmatprep.subr.mxu0 0.0
  %6389 = vmatpush1.msra.mxu0 0.0
  %6390 = vmatprep.mubr.f32.mxu0 0.0
  %6391 = vmatmul.mubr.f32.gmra.mrb[0].mxu0 %v6322
  %v6392 = vpop.f32.mrb[0].mxu0
  %v6393 = vadd.f32 0.0, %v6392
  %v6394 = vpop.f32.mrb[0].mxu0
  %6395 = vmatprep.mubr.f32.mxu0 0.0
  %6396 = vmatmul.mubr.f32.gmra.mrb[0].mxu0 %v6323
  %v6397 = vpop.f32.mrb[0].mxu0
  %v6398 = vadd.f32 0.0, %v6397
  %v6399 = vpop.f32.mrb[0].mxu0
  %6400 = vmatprep.mubr.f32.mxu0 0.0
  %6401 = vmatmul.mubr.f32.gmra.mrb[0].mxu0 %v6324
  %v6402 = vpop.f32.mrb[0].mxu0
  %v6403 = vadd.f32 0.0, %v6402
  %v6404 = vpop.f32.mrb[0].mxu0
  %6405 = vmatprep.mubr.f32.mxu0 0.0
  %6406 = vmatmul.mubr.f32.gmra.mrb[0].mxu0 %v6325
  %v6407 = vpop.f32.mrb[0].mxu0
  %v6408 = vadd.f32 0.0, %v6407
  %v6409 = vpop.f32.mrb[0].mxu0
  %6410 = vdwg.mxu0
  %vm6411 = vcmp.eq.s32.totalorder %v6310, 1
  %vm6412 = vcmp.eq.s32.totalorder %v6311, 1
  %vm6413 = vcmp.eq.s32.totalorder %v6312, 1
  %vm6414 = vcmp.eq.s32.totalorder %v6313, 1
  %v6415 = vsel %vm6411, 1, 0
  %v6416 = vsel %vm6412, 1, 0
  %v6417 = vsel %vm6413, 1, 0
  %v6418 = vsel %vm6414, 1, 0
  %v6419 = vcvt.s32.f32 %v6415
  %v6420 = vcvt.s32.f32 %v6416
  %v6421 = vcvt.s32.f32 %v6417
  %v6422 = vcvt.s32.f32 %v6418
  %6423 = vmatprep.subr.mxu0 0.0
  %6424 = vmatpush1.msra.mxu0 %v6288
  %6425 = vmatprep.subr.mxu0 0.0
  %6426 = vmatpush1.msra.mxu0 %v6289
  %6427 = vmatprep.subr.mxu0 0.0
  %6428 = vmatpush1.msra.mxu0 %v6290
  %6429 = vmatprep.subr.mxu0 0.0
  %6430 = vmatpush1.msra.mxu0 %v6291
  %6431 = vmatprep.subr.mxu0 0.0
  %6432 = vmatpush1.msra.mxu0 %v6292
  %6433 = vmatprep.subr.mxu0 0.0
  %6434 = vmatpush1.msra.mxu0 %v6293
  %6435 = vmatprep.subr.mxu0 0.0
  %6436 = vmatpush1.msra.mxu0 %v6294
  %6437 = vmatprep.subr.mxu0 0.0
  %6438 = vmatpush1.msra.mxu0 %v6295
  %6439 = vmatprep.subr.mxu0 0.0
  %6440 = vmatpush1.msra.mxu0 %v6296
  %6441 = vmatprep.subr.mxu0 0.0
  %6442 = vmatpush1.msra.mxu0 %v6297
  %6443 = vmatprep.subr.mxu0 0.0
  %6444 = vmatpush1.msra.mxu0 %v6298
  %6445 = vmatprep.subr.mxu0 0.0
  %6446 = vmatpush1.msra.mxu0 %v6299
  %6447 = vmatprep.subr.mxu0 0.0
  %6448 = vmatpush1.msra.mxu0 %v6300
  %6449 = vmatprep.subr.mxu0 0.0
  %6450 = vmatpush1.msra.mxu0 %v6301
  %6451 = vmatprep.subr.mxu0 0.0
  %6452 = vmatpush1.msra.mxu0 %v6302
  %6453 = vmatprep.subr.mxu0 0.0
  %6454 = vmatpush1.msra.mxu0 %v6303
  %6455 = vmatprep.subr.mxu0 0.0
  %6456 = vmatpush1.msra.mxu0 0.0
  %6457 = vmatprep.subr.mxu0 0.0
  %6458 = vmatpush1.msra.mxu0 0.0
  %6459 = vmatprep.subr.mxu0 0.0
  %6460 = vmatpush1.msra.mxu0 0.0
  %6461 = vmatprep.subr.mxu0 0.0
  %6462 = vmatpush1.msra.mxu0 0.0
  %6463 = vmatprep.subr.mxu0 0.0
  %6464 = vmatpush1.msra.mxu0 0.0
  %6465 = vmatprep.subr.mxu0 0.0
  %6466 = vmatpush1.msra.mxu0 0.0
  %6467 = vmatprep.subr.mxu0 0.0
  %6468 = vmatpush1.msra.mxu0 0.0
  %6469 = vmatprep.subr.mxu0 0.0
  %6470 = vmatpush1.msra.mxu0 0.0
  %6471 = vmatprep.subr.mxu0 0.0
  %6472 = vmatpush1.msra.mxu0 0.0
  %6473 = vmatprep.subr.mxu0 0.0
  %6474 = vmatpush1.msra.mxu0 0.0
  %6475 = vmatprep.subr.mxu0 0.0
  %6476 = vmatpush1.msra.mxu0 0.0
  %6477 = vmatprep.subr.mxu0 0.0
  %6478 = vmatpush1.msra.mxu0 0.0
  %6479 = vmatprep.subr.mxu0 0.0
  %6480 = vmatpush1.msra.mxu0 0.0
  %6481 = vmatprep.subr.mxu0 0.0
  %6482 = vmatpush1.msra.mxu0 0.0
  %6483 = vmatprep.subr.mxu0 0.0
  %6484 = vmatpush1.msra.mxu0 0.0
  %6485 = vmatprep.subr.mxu0 0.0
  %6486 = vmatpush1.msra.mxu0 0.0
  %6487 = vmatprep.mubr.f32.mxu0 0.0
  %6488 = vmatmul.mubr.f32.gmra.mrb[0].mxu0 %v6419
  %v6489 = vpop.f32.mrb[0].mxu0
  %v6490 = vadd.f32 0.0, %v6489
  %v6491 = vpop.f32.mrb[0].mxu0
  %6492 = vmatprep.mubr.f32.mxu0 0.0
  %6493 = vmatmul.mubr.f32.gmra.mrb[0].mxu0 %v6420
  %v6494 = vpop.f32.mrb[0].mxu0
  %v6495 = vadd.f32 0.0, %v6494
  %v6496 = vpop.f32.mrb[0].mxu0
  %6497 = vmatprep.mubr.f32.mxu0 0.0
  %6498 = vmatmul.mubr.f32.gmra.mrb[0].mxu0 %v6421
  %v6499 = vpop.f32.mrb[0].mxu0
  %v6500 = vadd.f32 0.0, %v6499
  %v6501 = vpop.f32.mrb[0].mxu0
  %6502 = vmatprep.mubr.f32.mxu0 0.0
  %6503 = vmatmul.mubr.f32.gmra.mrb[0].mxu0 %v6422
  %v6504 = vpop.f32.mrb[0].mxu0
  %v6505 = vadd.f32 0.0, %v6504
  %v6506 = vpop.f32.mrb[0].mxu0
  %6507 = vdwg.mxu0
  %v6508 = vmax.f32 %v6393, %v6490
  %v6509 = vmax.f32 %v6398, %v6495
  %v6510 = vmax.f32 %v6403, %v6500
  %v6511 = vmax.f32 %v6408, %v6505
  %vm6512 = vcmp.eq.s32.totalorder %v6310, 2
  %vm6513 = vcmp.eq.s32.totalorder %v6311, 2
  %vm6514 = vcmp.eq.s32.totalorder %v6312, 2
  %vm6515 = vcmp.eq.s32.totalorder %v6313, 2
  %v6516 = vsel %vm6512, 1, 0
  %v6517 = vsel %vm6513, 1, 0
  %v6518 = vsel %vm6514, 1, 0
  %v6519 = vsel %vm6515, 1, 0
  %v6520 = vcvt.s32.f32 %v6516
  %v6521 = vcvt.s32.f32 %v6517
  %v6522 = vcvt.s32.f32 %v6518
  %v6523 = vcvt.s32.f32 %v6519
  %6524 = vmatprep.subr.mxu0 0.0
  %6525 = vmatpush1.msra.mxu0 %v6288
  %6526 = vmatprep.subr.mxu0 0.0
  %6527 = vmatpush1.msra.mxu0 %v6289
  %6528 = vmatprep.subr.mxu0 0.0
  %6529 = vmatpush1.msra.mxu0 %v6290
  %6530 = vmatprep.subr.mxu0 0.0
  %6531 = vmatpush1.msra.mxu0 %v6291
  %6532 = vmatprep.subr.mxu0 0.0
  %6533 = vmatpush1.msra.mxu0 %v6292
  %6534 = vmatprep.subr.mxu0 0.0
  %6535 = vmatpush1.msra.mxu0 %v6293
  %6536 = vmatprep.subr.mxu0 0.0
  %6537 = vmatpush1.msra.mxu0 %v6294
  %6538 = vmatprep.subr.mxu0 0.0
  %6539 = vmatpush1.msra.mxu0 %v6295
  %6540 = vmatprep.subr.mxu0 0.0
  %6541 = vmatpush1.msra.mxu0 %v6296
  %6542 = vmatprep.subr.mxu0 0.0
  %6543 = vmatpush1.msra.mxu0 %v6297
  %6544 = vmatprep.subr.mxu0 0.0
  %6545 = vmatpush1.msra.mxu0 %v6298
  %6546 = vmatprep.subr.mxu0 0.0
  %6547 = vmatpush1.msra.mxu0 %v6299
  %6548 = vmatprep.subr.mxu0 0.0
  %6549 = vmatpush1.msra.mxu0 %v6300
  %6550 = vmatprep.subr.mxu0 0.0
  %6551 = vmatpush1.msra.mxu0 %v6301
  %6552 = vmatprep.subr.mxu0 0.0
  %6553 = vmatpush1.msra.mxu0 %v6302
  %6554 = vmatprep.subr.mxu0 0.0
  %6555 = vmatpush1.msra.mxu0 %v6303
  %6556 = vmatprep.subr.mxu0 0.0
  %6557 = vmatpush1.msra.mxu0 0.0
  %6558 = vmatprep.subr.mxu0 0.0
  %6559 = vmatpush1.msra.mxu0 0.0
  %6560 = vmatprep.subr.mxu0 0.0
  %6561 = vmatpush1.msra.mxu0 0.0
  %6562 = vmatprep.subr.mxu0 0.0
  %6563 = vmatpush1.msra.mxu0 0.0
  %6564 = vmatprep.subr.mxu0 0.0
  %6565 = vmatpush1.msra.mxu0 0.0
  %6566 = vmatprep.subr.mxu0 0.0
  %6567 = vmatpush1.msra.mxu0 0.0
  %6568 = vmatprep.subr.mxu0 0.0
  %6569 = vmatpush1.msra.mxu0 0.0
  %6570 = vmatprep.subr.mxu0 0.0
  %6571 = vmatpush1.msra.mxu0 0.0
  %6572 = vmatprep.subr.mxu0 0.0
  %6573 = vmatpush1.msra.mxu0 0.0
  %6574 = vmatprep.subr.mxu0 0.0
  %6575 = vmatpush1.msra.mxu0 0.0
  %6576 = vmatprep.subr.mxu0 0.0
  %6577 = vmatpush1.msra.mxu0 0.0
  %6578 = vmatprep.subr.mxu0 0.0
  %6579 = vmatpush1.msra.mxu0 0.0
  %6580 = vmatprep.subr.mxu0 0.0
  %6581 = vmatpush1.msra.mxu0 0.0
  %6582 = vmatprep.subr.mxu0 0.0
  %6583 = vmatpush1.msra.mxu0 0.0
  %6584 = vmatprep.subr.mxu0 0.0
  %6585 = vmatpush1.msra.mxu0 0.0
  %6586 = vmatprep.subr.mxu0 0.0
  %6587 = vmatpush1.msra.mxu0 0.0
  %6588 = vmatprep.mubr.f32.mxu0 0.0
  %6589 = vmatmul.mubr.f32.gmra.mrb[0].mxu0 %v6520
  %v6590 = vpop.f32.mrb[0].mxu0
  %v6591 = vadd.f32 0.0, %v6590
  %v6592 = vpop.f32.mrb[0].mxu0
  %6593 = vmatprep.mubr.f32.mxu0 0.0
  %6594 = vmatmul.mubr.f32.gmra.mrb[0].mxu0 %v6521
  %v6595 = vpop.f32.mrb[0].mxu0
  %v6596 = vadd.f32 0.0, %v6595
  %v6597 = vpop.f32.mrb[0].mxu0
  %6598 = vmatprep.mubr.f32.mxu0 0.0
  %6599 = vmatmul.mubr.f32.gmra.mrb[0].mxu0 %v6522
  %v6600 = vpop.f32.mrb[0].mxu0
  %v6601 = vadd.f32 0.0, %v6600
  %v6602 = vpop.f32.mrb[0].mxu0
  %6603 = vmatprep.mubr.f32.mxu0 0.0
  %6604 = vmatmul.mubr.f32.gmra.mrb[0].mxu0 %v6523
  %v6605 = vpop.f32.mrb[0].mxu0
  %v6606 = vadd.f32 0.0, %v6605
  %v6607 = vpop.f32.mrb[0].mxu0
  %6608 = vdwg.mxu0
  %vm6609 = vcmp.eq.s32.totalorder %v6310, 3
  %vm6610 = vcmp.eq.s32.totalorder %v6311, 3
  %vm6611 = vcmp.eq.s32.totalorder %v6312, 3
  %vm6612 = vcmp.eq.s32.totalorder %v6313, 3
  %v6613 = vsel %vm6609, 1, 0
  %v6614 = vsel %vm6610, 1, 0
  %v6615 = vsel %vm6611, 1, 0
  %v6616 = vsel %vm6612, 1, 0
  %v6617 = vcvt.s32.f32 %v6613
  %v6618 = vcvt.s32.f32 %v6614
  %v6619 = vcvt.s32.f32 %v6615
  %v6620 = vcvt.s32.f32 %v6616
  %6621 = vmatprep.subr.mxu0 0.0
  %6622 = vmatpush1.msra.mxu0 %v6288
  %6623 = vmatprep.subr.mxu0 0.0
  %6624 = vmatpush1.msra.mxu0 %v6289
  %6625 = vmatprep.subr.mxu0 0.0
  %6626 = vmatpush1.msra.mxu0 %v6290
  %6627 = vmatprep.subr.mxu0 0.0
  %6628 = vmatpush1.msra.mxu0 %v6291
  %6629 = vmatprep.subr.mxu0 0.0
  %6630 = vmatpush1.msra.mxu0 %v6292
  %6631 = vmatprep.subr.mxu0 0.0
  %6632 = vmatpush1.msra.mxu0 %v6293
  %6633 = vmatprep.subr.mxu0 0.0
  %6634 = vmatpush1.msra.mxu0 %v6294
  %6635 = vmatprep.subr.mxu0 0.0
  %6636 = vmatpush1.msra.mxu0 %v6295
  %6637 = vmatprep.subr.mxu0 0.0
  %6638 = vmatpush1.msra.mxu0 %v6296
  %6639 = vmatprep.subr.mxu0 0.0
  %6640 = vmatpush1.msra.mxu0 %v6297
  %6641 = vmatprep.subr.mxu0 0.0
  %6642 = vmatpush1.msra.mxu0 %v6298
  %6643 = vmatprep.subr.mxu0 0.0
  %6644 = vmatpush1.msra.mxu0 %v6299
  %6645 = vmatprep.subr.mxu0 0.0
  %6646 = vmatpush1.msra.mxu0 %v6300
  %6647 = vmatprep.subr.mxu0 0.0
  %6648 = vmatpush1.msra.mxu0 %v6301
  %6649 = vmatprep.subr.mxu0 0.0
  %6650 = vmatpush1.msra.mxu0 %v6302
  %6651 = vmatprep.subr.mxu0 0.0
  %6652 = vmatpush1.msra.mxu0 %v6303
  %6653 = vmatprep.subr.mxu0 0.0
  %6654 = vmatpush1.msra.mxu0 0.0
  %6655 = vmatprep.subr.mxu0 0.0
  %6656 = vmatpush1.msra.mxu0 0.0
  %6657 = vmatprep.subr.mxu0 0.0
  %6658 = vmatpush1.msra.mxu0 0.0
  %6659 = vmatprep.subr.mxu0 0.0
  %6660 = vmatpush1.msra.mxu0 0.0
  %6661 = vmatprep.subr.mxu0 0.0
  %6662 = vmatpush1.msra.mxu0 0.0
  %6663 = vmatprep.subr.mxu0 0.0
  %6664 = vmatpush1.msra.mxu0 0.0
  %6665 = vmatprep.subr.mxu0 0.0
  %6666 = vmatpush1.msra.mxu0 0.0
  %6667 = vmatprep.subr.mxu0 0.0
  %6668 = vmatpush1.msra.mxu0 0.0
  %6669 = vmatprep.subr.mxu0 0.0
  %6670 = vmatpush1.msra.mxu0 0.0
  %6671 = vmatprep.subr.mxu0 0.0
  %6672 = vmatpush1.msra.mxu0 0.0
  %6673 = vmatprep.subr.mxu0 0.0
  %6674 = vmatpush1.msra.mxu0 0.0
  %6675 = vmatprep.subr.mxu0 0.0
  %6676 = vmatpush1.msra.mxu0 0.0
  %6677 = vmatprep.subr.mxu0 0.0
  %6678 = vmatpush1.msra.mxu0 0.0
  %6679 = vmatprep.subr.mxu0 0.0
  %6680 = vmatpush1.msra.mxu0 0.0
  %6681 = vmatprep.subr.mxu0 0.0
  %6682 = vmatpush1.msra.mxu0 0.0
  %6683 = vmatprep.subr.mxu0 0.0
  %6684 = vmatpush1.msra.mxu0 0.0
  %6685 = vmatprep.mubr.f32.mxu0 0.0
  %6686 = vmatmul.mubr.f32.gmra.mrb[0].mxu0 %v6617
  %v6687 = vpop.f32.mrb[0].mxu0
  %v6688 = vadd.f32 0.0, %v6687
  %v6689 = vpop.f32.mrb[0].mxu0
  %6690 = vmatprep.mubr.f32.mxu0 0.0
  %6691 = vmatmul.mubr.f32.gmra.mrb[0].mxu0 %v6618
  %v6692 = vpop.f32.mrb[0].mxu0
  %v6693 = vadd.f32 0.0, %v6692
  %v6694 = vpop.f32.mrb[0].mxu0
  %6695 = vmatprep.mubr.f32.mxu0 0.0
  %6696 = vmatmul.mubr.f32.gmra.mrb[0].mxu0 %v6619
  %v6697 = vpop.f32.mrb[0].mxu0
  %v6698 = vadd.f32 0.0, %v6697
  %v6699 = vpop.f32.mrb[0].mxu0
  %6700 = vmatprep.mubr.f32.mxu0 0.0
  %6701 = vmatmul.mubr.f32.gmra.mrb[0].mxu0 %v6620
  %v6702 = vpop.f32.mrb[0].mxu0
  %v6703 = vadd.f32 0.0, %v6702
  %v6704 = vpop.f32.mrb[0].mxu0
  %6705 = vdwg.mxu0
  %v6706 = vmax.f32 %v6591, %v6688
  %v6707 = vmax.f32 %v6596, %v6693
  %v6708 = vmax.f32 %v6601, %v6698
  %v6709 = vmax.f32 %v6606, %v6703
  %6714 = vrot.lane.b32.xlu0 %v6508, 112
  %v6715 = vpop.permute.xlu0 %6714
  %6716 = vrot.lane.b32.xlu0 %v6509, 112
  %v6717 = vpop.permute.xlu0 %6716
  %6718 = vrot.lane.b32.xlu0 %v6510, 112
  %v6719 = vpop.permute.xlu0 %6718
  %6720 = vrot.lane.b32.xlu0 %v6511, 112
  %v6721 = vpop.permute.xlu0 %6720
  %v6726 = vmax.f32 %v6508, %v6715
  %v6727 = vmax.f32 %v6509, %v6717
  %v6728 = vmax.f32 %v6510, %v6719
  %v6729 = vmax.f32 %v6511, %v6721
  %6734 = vrot.lane.b32.xlu0 %v6706, 112
  %v6735 = vpop.permute.xlu0 %6734
  %6736 = vrot.lane.b32.xlu0 %v6707, 112
  %v6737 = vpop.permute.xlu0 %6736
  %6738 = vrot.lane.b32.xlu0 %v6708, 112
  %v6739 = vpop.permute.xlu0 %6738
  %6740 = vrot.lane.b32.xlu0 %v6709, 112
  %v6741 = vpop.permute.xlu0 %6740
  %v6746 = vmax.f32 %v6706, %v6735
  %v6747 = vmax.f32 %v6707, %v6737
  %v6748 = vmax.f32 %v6708, %v6739
  %v6749 = vmax.f32 %v6709, %v6741
  %6754 = vrot.lane.b32.xlu0 %v6746, 48
  %v6755 = vpop.permute.xlu0 %6754
  %6756 = vrot.lane.b32.xlu0 %v6747, 48
  %v6757 = vpop.permute.xlu0 %6756
  %6758 = vrot.lane.b32.xlu0 %v6748, 48
  %v6759 = vpop.permute.xlu0 %6758
  %6760 = vrot.lane.b32.xlu0 %v6749, 48
  %v6761 = vpop.permute.xlu0 %6760
  %vm6766 = vcmask 392192
  %v6767 = vsel %vm6766, %v6726, %v6755
  %v6768 = vsel %vm6766, %v6727, %v6757
  %v6769 = vsel %vm6766, %v6728, %v6759
  %v6770 = vsel %vm6766, %v6729, %v6761
  %v6771 = vpack.c.bf16 %v6768, %v6767
  %v6772 = vpack.c.bf16 %v6770, %v6769
  %v6773 = vld [vmem:[%s5] sm:$0xf]
  %v6774 = vld [vmem:[%s5 + $0x4] sm:$0xf]
  %v6775 = vld [vmem:[%s5 + $0x8] sm:$0xf]
  %v6776 = vld [vmem:[%s5 + $0xc] sm:$0xf]
  %v6777 = vld [vmem:[%s5 + $0x10] sm:$0xf]
  %v6778 = vld [vmem:[%s5 + $0x14] sm:$0xf]
  %v6779 = vld [vmem:[%s5 + $0x18] sm:$0xf]
  %v6780 = vld [vmem:[%s5 + $0x1c] sm:$0xf]
  %v6781 = vld [vmem:[%s5 + $0x20] sm:$0xf]
  %v6782 = vld [vmem:[%s5 + $0x24] sm:$0xf]
  %v6783 = vld [vmem:[%s5 + $0x28] sm:$0xf]
  %v6784 = vld [vmem:[%s5 + $0x2c] sm:$0xf]
  %v6785 = vld [vmem:[%s6] sm:$0x1]
  %v6787 = vlaneseq
  %v6788 = vshrl.u32 %v6787, 7
  %v6789 = vsub.s32 0, %v6788
  %v6790 = vrot.slane %v6785, %v6789
  %v6804 = vunpack.c.l.b16 %v6773
  %v6805 = vunpack.c.l.b16 %v6774
  %v6806 = vunpack.c.l.b16 %v6775
  %v6807 = vunpack.c.l.b16 %v6776
  %v6808 = vunpack.c.l.b16 %v6777
  %v6809 = vunpack.c.l.b16 %v6778
  %v6810 = vunpack.c.l.b16 %v6779
  %v6811 = vunpack.c.l.b16 %v6780
  %v6812 = vunpack.c.l.b16 %v6781
  %v6813 = vunpack.c.l.b16 %v6782
  %v6814 = vunpack.c.l.b16 %v6783
  %v6815 = vunpack.c.l.b16 %v6784
  %v6816 = vpack.c.b16 %v6805, %v6804
  %v6817 = vpack.c.b16 %v6807, %v6806
  %v6818 = vpack.c.b16 %v6809, %v6808
  %v6819 = vpack.c.b16 %v6811, %v6810
  %v6820 = vpack.c.b16 %v6813, %v6812
  %v6821 = vpack.c.b16 %v6815, %v6814
  %vm6828 = vcmask 785408
  %v6830 = vsel %vm6828, %v6771, 0
  %v6833 = vsel %vm6828, %v6772, 0
  %6835 = vmatprep.subr.bf16.mxu0 0
  %6836 = vmatpush1.bf16.msra.mxu0 %v6816
  %6837 = vmatprep.subr.bf16.mxu0 0
  %6838 = vmatpush1.bf16.msra.mxu0 %v6817
  %6839 = vmatprep.subr.bf16.mxu0 0
  %6840 = vmatpush1.bf16.msra.mxu0 %v6818
  %6841 = vmatprep.subr.bf16.mxu0 0
  %6842 = vmatpush1.bf16.msra.mxu0 %v6819
  %6843 = vmatprep.subr.bf16.mxu0 0
  %6844 = vmatpush1.bf16.msra.mxu0 %v6820
  %6845 = vmatprep.subr.bf16.mxu0 0
  %6846 = vmatpush1.bf16.msra.mxu0 %v6821
  %6847 = vmatprep.subr.bf16.mxu0 0
  %6848 = vmatpush1.bf16.msra.mxu0 0
  %6849 = vmatprep.subr.bf16.mxu0 0
  %6850 = vmatpush1.bf16.msra.mxu0 0
  %6851 = vmatprep.subr.bf16.mxu0 0
  %6852 = vmatpush1.bf16.msra.mxu0 0
  %6853 = vmatprep.subr.bf16.mxu0 0
  %6854 = vmatpush1.bf16.msra.mxu0 0
  %6855 = vmatprep.subr.bf16.mxu0 0
  %6856 = vmatpush1.bf16.msra.mxu0 0
  %6857 = vmatprep.subr.bf16.mxu0 0
  %6858 = vmatpush1.bf16.msra.mxu0 0
  %6859 = vmatprep.subr.bf16.mxu0 0
  %6860 = vmatpush1.bf16.msra.mxu0 0
  %6861 = vmatprep.subr.bf16.mxu0 0
  %6862 = vmatpush1.bf16.msra.mxu0 0
  %6863 = vmatprep.subr.bf16.mxu0 0
  %6864 = vmatpush1.bf16.msra.mxu0 0
  %6865 = vmatprep.subr.bf16.mxu0 0
  %6866 = vmatpush1.bf16.msra.mxu0 0
  %6867 = vmatprep.mubr.bf16.mxu0 0
  %6868 = vmatmul.mubr.bf16.gmra.mrb[0].mxu0 %v6830
  %v6869 = vpop.f32.mrb[0].mxu0
  %v6870 = vadd.f32 %v6790, %v6869
  %v6871 = vpop.f32.mrb[0].mxu0
  %v6872 = vpop.f32.mrb[0].mxu0
  %v6873 = vadd.f32 %v6790, %v6872
  %v6874 = vpop.f32.mrb[0].mxu0
  %6875 = vmatprep.mubr.bf16.mxu0 0
  %6876 = vmatmul.mubr.bf16.gmra.mrb[0].mxu0 %v6833
  %v6877 = vpop.f32.mrb[0].mxu0
  %v6878 = vadd.f32 %v6790, %v6877
  %v6879 = vpop.f32.mrb[0].mxu0
  %v6880 = vpop.f32.mrb[0].mxu0
  %v6881 = vadd.f32 %v6790, %v6880
  %v6882 = vpop.f32.mrb[0].mxu0
  %6883 = vdwg.mxu0
  %v6884 = vmax.f32 %v6870, 0.0
  %v6885 = vmax.f32 %v6873, 0.0
  %v6886 = vmax.f32 %v6878, 0.0
  %v6887 = vmax.f32 %v6881, 0.0
  %v6888 = vpack.c.bf16 %v6885, %v6884
  %v6889 = vpack.c.bf16 %v6887, %v6886
  %v6890 = vld [vmem:[%s7] sm:$0xf]
  %v6891 = vld [vmem:[%s7 + $0x4] sm:$0xf]
  %v6892 = vld [vmem:[%s7 + $0x8] sm:$0xf]
  %v6893 = vld [vmem:[%s7 + $0xc] sm:$0xf]
  %v6894 = vld [vmem:[%s7 + $0x10] sm:$0xf]
  %v6895 = vld [vmem:[%s7 + $0x14] sm:$0xf]
  %v6896 = vld [vmem:[%s7 + $0x18] sm:$0xf]
  %v6897 = vld [vmem:[%s7 + $0x1c] sm:$0xf]
  %v6898 = vld [vmem:[%s7 + $0x20] sm:$0xf]
  %v6899 = vld [vmem:[%s7 + $0x24] sm:$0xf]
  %v6900 = vld [vmem:[%s7 + $0x28] sm:$0xf]
  %v6901 = vld [vmem:[%s7 + $0x2c] sm:$0xf]
  %v6902 = vld [vmem:[%s7 + $0x30] sm:$0xf]
  %v6903 = vld [vmem:[%s7 + $0x34] sm:$0xf]
  %v6904 = vld [vmem:[%s7 + $0x38] sm:$0xf]
  %v6905 = vld [vmem:[%s7 + $0x3c] sm:$0xf]
  %v6906 = vld [vmem:[%s8] sm:$0x1]
  %v6908 = vlaneseq
  %v6909 = vshrl.u32 %v6908, 7
  %v6910 = vsub.s32 0, %v6909
  %v6911 = vrot.slane %v6906, %v6910
  %v6929 = vunpack.c.l.b16 %v6890
  %v6930 = vunpack.c.l.b16 %v6891
  %v6931 = vunpack.c.l.b16 %v6892
  %v6932 = vunpack.c.l.b16 %v6893
  %v6933 = vunpack.c.l.b16 %v6894
  %v6934 = vunpack.c.l.b16 %v6895
  %v6935 = vunpack.c.l.b16 %v6896
  %v6936 = vunpack.c.l.b16 %v6897
  %v6937 = vunpack.c.l.b16 %v6898
  %v6938 = vunpack.c.l.b16 %v6899
  %v6939 = vunpack.c.l.b16 %v6900
  %v6940 = vunpack.c.l.b16 %v6901
  %v6941 = vunpack.c.l.b16 %v6902
  %v6942 = vunpack.c.l.b16 %v6903
  %v6943 = vunpack.c.l.b16 %v6904
  %v6944 = vunpack.c.l.b16 %v6905
  %v6945 = vpack.c.b16 %v6930, %v6929
  %v6946 = vpack.c.b16 %v6932, %v6931
  %v6947 = vpack.c.b16 %v6934, %v6933
  %v6948 = vpack.c.b16 %v6936, %v6935
  %v6949 = vpack.c.b16 %v6938, %v6937
  %v6950 = vpack.c.b16 %v6940, %v6939
  %v6951 = vpack.c.b16 %v6942, %v6941
  %v6952 = vpack.c.b16 %v6944, %v6943
  %6961 = vmatprep.subr.bf16.mxu0 0
  %6962 = vmatpush1.bf16.msra.mxu0 %v6945
  %6963 = vmatprep.subr.bf16.mxu0 0
  %6964 = vmatpush1.bf16.msra.mxu0 %v6946
  %6965 = vmatprep.subr.bf16.mxu0 0
  %6966 = vmatpush1.bf16.msra.mxu0 %v6947
  %6967 = vmatprep.subr.bf16.mxu0 0
  %6968 = vmatpush1.bf16.msra.mxu0 %v6948
  %6969 = vmatprep.subr.bf16.mxu0 0
  %6970 = vmatpush1.bf16.msra.mxu0 %v6949
  %6971 = vmatprep.subr.bf16.mxu0 0
  %6972 = vmatpush1.bf16.msra.mxu0 %v6950
  %6973 = vmatprep.subr.bf16.mxu0 0
  %6974 = vmatpush1.bf16.msra.mxu0 %v6951
  %6975 = vmatprep.subr.bf16.mxu0 0
  %6976 = vmatpush1.bf16.msra.mxu0 %v6952
  %6977 = vmatprep.subr.bf16.mxu0 0
  %6978 = vmatpush1.bf16.msra.mxu0 0
  %6979 = vmatprep.subr.bf16.mxu0 0
  %6980 = vmatpush1.bf16.msra.mxu0 0
  %6981 = vmatprep.subr.bf16.mxu0 0
  %6982 = vmatpush1.bf16.msra.mxu0 0
  %6983 = vmatprep.subr.bf16.mxu0 0
  %6984 = vmatpush1.bf16.msra.mxu0 0
  %6985 = vmatprep.subr.bf16.mxu0 0
  %6986 = vmatpush1.bf16.msra.mxu0 0
  %6987 = vmatprep.subr.bf16.mxu0 0
  %6988 = vmatpush1.bf16.msra.mxu0 0
  %6989 = vmatprep.subr.bf16.mxu0 0
  %6990 = vmatpush1.bf16.msra.mxu0 0
  %6991 = vmatprep.subr.bf16.mxu0 0
  %6992 = vmatpush1.bf16.msra.mxu0 0
  %6993 = vmatprep.mubr.bf16.mxu0 0
  %6994 = vmatmul.mubr.bf16.gmra.mrb[0].mxu0 %v6888
  %v6995 = vpop.f32.mrb[0].mxu0
  %v6996 = vadd.f32 %v6911, %v6995
  %v6997 = vpop.f32.mrb[0].mxu0
  %v6998 = vpop.f32.mrb[0].mxu0
  %v6999 = vadd.f32 %v6911, %v6998
  %v7000 = vpop.f32.mrb[0].mxu0
  %7001 = vmatprep.mubr.bf16.mxu0 0
  %7002 = vmatmul.mubr.bf16.gmra.mrb[0].mxu0 %v6889
  %v7003 = vpop.f32.mrb[0].mxu0
  %v7004 = vadd.f32 %v6911, %v7003
  %v7005 = vpop.f32.mrb[0].mxu0
  %v7006 = vpop.f32.mrb[0].mxu0
  %v7007 = vadd.f32 %v6911, %v7006
  %v7008 = vpop.f32.mrb[0].mxu0
  %7009 = vdwg.mxu0
  %7010 = vmax.xlane.f32.xlu0 %v6996
  %v7011 = vpop.xlane.xlu0 %7010
  %7012 = vmax.xlane.f32.xlu0 %v6999
  %v7013 = vpop.xlane.xlu0 %7012
  %7014 = vmax.xlane.f32.xlu0 %v7004
  %v7015 = vpop.xlane.xlu0 %7014
  %7016 = vmax.xlane.f32.xlu0 %v7007
  %v7017 = vpop.xlane.xlu0 %7016
  %v7018 = vsub.f32 %v6996, %v7011
  %v7019 = vsub.f32 %v6999, %v7013
  %v7020 = vsub.f32 %v7004, %v7015
  %v7021 = vsub.f32 %v7007, %v7017
  %v7022 = vmul.f32 %v7018, 1.442695
  %v7023 = vpow.pop %v7022
  %v7024 = vmul.f32 %v7019, 1.442695
  %v7025 = vpow.pop %v7024
  %v7026 = vmul.f32 %v7020, 1.442695
  %v7027 = vpow.pop %v7026
  %v7028 = vmul.f32 %v7021, 1.442695
  %v7029 = vpow.pop %v7028
  %7030 = vadd.xlane.f32.xlu0 %v7023
  %v7031 = vpop.xlane.xlu0 %7030
  %7032 = vadd.xlane.f32.xlu0 %v7025
  %v7033 = vpop.xlane.xlu0 %7032
  %7034 = vadd.xlane.f32.xlu0 %v7027
  %v7035 = vpop.xlane.xlu0 %7034
  %7036 = vadd.xlane.f32.xlu0 %v7029
  %v7037 = vpop.xlane.xlu0 %7036
  %v7038 = vrcp.pop %v7031
  %v7039 = vrcp.pop %v7033
  %v7040 = vrcp.pop %v7035
  %v7041 = vrcp.pop %v7037
  %v7042 = vmul.f32 %v7023, %v7038
  %v7043 = vmul.f32 %v7025, %v7039
  %v7044 = vmul.f32 %v7027, %v7040
  %v7045 = vmul.f32 %v7029, %v7041
  %7046 = vst [vmem:[%s9] sm:$0xff] %v7042
  %7047 = vst [vmem:[%s9 + $0x8] sm:$0xff] %v7043
  %7048 = vst [vmem:[%s9 + $0x10] sm:$0xff] %v7044
  %7049 = vst [vmem:[%s9 + $0x18] sm:$0xff] %v7045
  // Predicated region
  $region38: #{forward.1} parent=0 // pred_check
    _
  $region39: #{forward.1} parent=0 // pred_check_branch
    %7051 = sbr.rel (0) target = $region41
  $region40: #{forward.1} parent=0 // pred_region
    _
  $region41: #{forward.1} parent=0 // pred_fallthru
    _
  // Predicated region
  $region42: #{forward.1} parent=0 // pred_check
    _
  $region43: #{forward.1} parent=0 // pred_check_branch
    %7053 = sbr.rel (0) target = $region45
  $region44: #{forward.1} parent=0 // pred_region
    _
  $region45: #{forward.1} parent=0 // pred_fallthru
    _

</llo_original>
